<compile_context>
chip_gen: v7x
topology: tpu7x:2x2x1
jax: 0.10.0
libtpu: 0.0.40
codegen_flags: <defaults>
</compile_context>

<pallas_src>
import jax
import jax.numpy as jnp
from jax import lax
from jax.experimental import pallas as pl
from jax.experimental.pallas import tpu as pltpu

LANES = 128  # all channel dims are zero-padded to one full lane group


# ----------------------------- Pallas kernels ------------------------------


def _conv1_pool_kernel(x_ref, w_ref, b_ref, o_ref):
    """Fused conv1(3x3, pad=1, Cin=1) + bias + ReLU + 2x2 maxpool, one image.

    x_ref: (1, 2, 30, 16, 1) f32  - even/odd-column planes of the zero-padded
                                    28x28 input (plane[par][h, u] = pad[h, 2u+par]).
    w_ref: (9, 128) f32           - conv1 weights, tap-major (kh*3+kw),
                                    output channels zero-padded 32 -> 128.
    b_ref: (1, 128) f32
    o_ref: (1, 14, 14, 128) bf16  - pooled activations, channels on lanes.
    """
    bias = b_ref[...]                                     # (1, 128)

    def conv_row(h):
        # ReLU(conv + bias) for conv-output row h, already max-pooled over W.
        acc_e = jnp.zeros((14, LANES), jnp.float32)       # even output cols
        acc_o = jnp.zeros((14, LANES), jnp.float32)       # odd output cols
        for dy in range(3):
            e_row = x_ref[0, 0, h + dy]                   # (16, 1)
            o_row = x_ref[0, 1, h + dy]                   # (16, 1)
            e0, e1 = e_row[0:14, :], e_row[1:15, :]       # (14, 1)
            o0, o1 = o_row[0:14, :], o_row[1:15, :]
            w0 = w_ref[3 * dy + 0]                        # (128,)
            w1 = w_ref[3 * dy + 1]
            w2 = w_ref[3 * dy + 2]
            # VPU broadcast FMAs: (14, 1) * (128,) -> (14, 128)
            acc_e = acc_e + e0 * w0 + o0 * w1 + e1 * w2
            acc_o = acc_o + o0 * w0 + e1 * w1 + o1 * w2
        return jnp.maximum(jnp.maximum(acc_e, acc_o) + bias, 0.0)

    def body(i, carry):
        pooled = jnp.maximum(conv_row(2 * i), conv_row(2 * i + 1))  # (14, 128)
        o_ref[0, i] = pooled.astype(o_ref.dtype)
        return carry

    lax.fori_loop(0, 14, body, 0)


def _conv2_pool_kernel(x_ref, w_ref, b_ref, o_ref):
    """Fused conv2(3x3, pad=1) + bias + ReLU + 2x2 maxpool, one image.

    x_ref: (1, 2, 16, 9, 128) bf16 - even/odd-column planes of the zero-padded
                                     14x14x(32->128) conv1 output.
    w_ref: (9, 128, 128) bf16      - [tap, cin, cout], channel dims padded to 128.
    b_ref: (1, 128) f32
    o_ref: (1, 7, 8, 128) bf16     - pooled activations; column 7 is a dummy
                                     (padding) column, channels on lanes.
    """
    bias = b_ref[...]                                     # (1, 128)
    f32 = jnp.float32

    def conv_row(h):
        acc_e = jnp.zeros((8, LANES), f32)                # even output cols
        acc_o = jnp.zeros((8, LANES), f32)                # odd output cols
        for dy in range(3):
            # Widen before the sub-tile slices (keeps layout work in 32-bit),
            # narrow again right before the MXU.
            e_row = x_ref[0, 0, h + dy].astype(f32)       # (9, 128)
            o_row = x_ref[0, 1, h + dy].astype(f32)
            e0 = e_row[0:8, :].astype(jnp.bfloat16)       # (8, 128)
            e1 = e_row[1:9, :].astype(jnp.bfloat16)
            o0 = o_row[0:8, :].astype(jnp.bfloat16)
            o1 = o_row[1:9, :].astype(jnp.bfloat16)
            w0 = w_ref[3 * dy + 0]                        # (128, 128) bf16
            w1 = w_ref[3 * dy + 1]
            w2 = w_ref[3 * dy + 2]
            acc_e = (acc_e
                     + jnp.dot(e0, w0, preferred_element_type=f32)
                     + jnp.dot(o0, w1, preferred_element_type=f32)
                     + jnp.dot(e1, w2, preferred_element_type=f32))
            acc_o = (acc_o
                     + jnp.dot(o0, w0, preferred_element_type=f32)
                     + jnp.dot(e1, w1, preferred_element_type=f32)
                     + jnp.dot(o1, w2, preferred_element_type=f32))
        return jnp.maximum(jnp.maximum(acc_e, acc_o) + bias, 0.0)

    def body(i, carry):
        pooled = jnp.maximum(conv_row(2 * i), conv_row(2 * i + 1))  # (8, 128)
        o_ref[0, i] = pooled.astype(o_ref.dtype)
        return carry

    lax.fori_loop(0, 7, body, 0)


def _fc_fused_kernel(x_ref, w1_ref, b1_ref, w2_ref, b2_ref, o_ref):
    """Fused fc1 + ReLU + fc2: the (B, 128) intermediate never leaves VMEM."""
    h = jnp.dot(x_ref[...], w1_ref[...], preferred_element_type=jnp.float32)
    h = jnp.maximum(h + b1_ref[...], 0.0)
    y = jnp.dot(h.astype(jnp.bfloat16), w2_ref[...],
                preferred_element_type=jnp.float32)
    o_ref[...] = y + b2_ref[...]


# ------------------------------ Pallas wrappers -----------------------------


def conv1_pool(x1, w1p, b1p):
    B = x1.shape[0]
    return pl.pallas_call(
        _conv1_pool_kernel,
        out_shape=jax.ShapeDtypeStruct((B, 14, 14, LANES), jnp.bfloat16),
        grid=(B,),
        in_specs=[
            pl.BlockSpec((1, 2, 30, 16, 1), lambda b: (b, 0, 0, 0, 0)),
            pl.BlockSpec((9, LANES), lambda b: (0, 0)),
            pl.BlockSpec((1, LANES), lambda b: (0, 0)),
        ],
        out_specs=pl.BlockSpec((1, 14, 14, LANES), lambda b: (b, 0, 0, 0)),
        compiler_params=pltpu.CompilerParams(
            dimension_semantics=("parallel",)),
    )(x1, w1p, b1p)


def conv2_pool(x2, w2p, b2p):
    B = x2.shape[0]
    return pl.pallas_call(
        _conv2_pool_kernel,
        out_shape=jax.ShapeDtypeStruct((B, 7, 8, LANES), jnp.bfloat16),
        grid=(B,),
        in_specs=[
            pl.BlockSpec((1, 2, 16, 9, LANES), lambda b: (b, 0, 0, 0, 0)),
            pl.BlockSpec((9, LANES, LANES), lambda b: (0, 0, 0)),
            pl.BlockSpec((1, LANES), lambda b: (0, 0)),
        ],
        out_specs=pl.BlockSpec((1, 7, 8, LANES), lambda b: (b, 0, 0, 0)),
        compiler_params=pltpu.CompilerParams(
            dimension_semantics=("parallel",)),
    )(x2, w2p, b2p)


def fc_fused(xf, wf1p, bf1p, wf2p, bf2p):
    B, K = xf.shape
    # B=2 here, so a single whole-problem block is the right tiling; for large
    # batches this grid would tile over M instead.
    return pl.pallas_call(
        _fc_fused_kernel,
        out_shape=jax.ShapeDtypeStruct((B, LANES), jnp.float32),
        grid=(1,),
        in_specs=[
            pl.BlockSpec((B, K), lambda i: (0, 0)),
            pl.BlockSpec((K, LANES), lambda i: (0, 0)),
            pl.BlockSpec((1, LANES), lambda i: (0, 0)),
            pl.BlockSpec((LANES, LANES), lambda i: (0, 0)),
            pl.BlockSpec((1, LANES), lambda i: (0, 0)),
        ],
        out_specs=pl.BlockSpec((B, LANES), lambda i: (0, 0)),
        compiler_params=pltpu.CompilerParams(
            dimension_semantics=("arbitrary",)),
    )(xf, wf1p, bf1p, wf2p, bf2p)


# --------------------------------- forward ----------------------------------


@jax.jit
def inner_cnn_forward(x, p):
    """x: (B, 1, 28, 28) f32 NCHW -> logits (B, 10) f32."""
    B = x.shape[0]

    # layer 1: tiny layout glue (zero-pad + even/odd W split of the raw image),
    # then fused conv1+ReLU+pool Pallas kernel.
    img = x.reshape(B, 28, 28)
    imgp = jnp.pad(img, ((0, 0), (1, 1), (1, 3)))                  # (B,30,32)
    x1 = jnp.stack([imgp[:, :, 0::2], imgp[:, :, 1::2]], axis=1)   # (B,2,30,16)
    x1 = x1[..., None]                                             # (B,2,30,16,1)
    p1 = conv1_pool(x1, p["w1p"], p["b1p"])                        # (B,14,14,128) bf16

    # layer 2: same small glue on the (<=100 KB/image) pooled activations,
    # then fused conv2+ReLU+pool Pallas kernel.
    p1p = jnp.pad(p1, ((0, 0), (1, 1), (1, 3), (0, 0)))            # (B,16,18,128)
    x2 = jnp.stack([p1p[:, :, 0::2, :], p1p[:, :, 1::2, :]], axis=1)  # (B,2,16,9,128)
    p2 = conv2_pool(x2, p["w2p"], p["b2p"])                        # (B,7,8,128) bf16

    # fc1 + ReLU + fc2 fused kernel; torch's .view flatten order was absorbed
    # into the host-side fc1 weight permutation, so this is a pure reshape.
    xf = p2.reshape(B, 7 * 8 * LANES)                              # (B,7168)
    out = fc_fused(xf, p["wf1p"], p["bf1p"], p["wf2p"], p["bf2p"])  # (B,128)
    return out[:, :10]


# --------------------------- host-side weight prep ---------------------------


def prepare_params(raw):
    """One-time host-side repack of the PyTorch-layout parameters."""
    w1, b1 = raw["w1"], raw["b1"]          # (32,1,3,3), (32,)
    w2, b2 = raw["w2"], raw["b2"]          # (64,32,3,3), (64,)
    wf1, bf1 = raw["wf1"], raw["bf1"]      # (128, 3136), (128,)
    wf2, bf2 = raw["wf2"], raw["bf2"]      # (10, 128), (10,)

    # conv1: (oc, 1, kh, kw) -> (tap, oc) with oc padded to 128.
    w1p = jnp.zeros((9, LANES), jnp.float32).at[:, :32].set(w1.reshape(32, 9).T)
    b1p = jnp.zeros((1, LANES), jnp.float32).at[0, :32].set(b1)

    # conv2: (oc, ic, kh, kw) -> (tap, ic, oc), channels padded to 128, bf16.
    w2t = jnp.transpose(w2, (2, 3, 1, 0))                          # (3,3,32,64)
    w2p = jnp.zeros((3, 3, LANES, LANES), jnp.float32).at[:, :, :32, :64].set(w2t)
    w2p = w2p.reshape(9, LANES, LANES).astype(jnp.bfloat16)
    b2p = jnp.zeros((1, LANES), jnp.float32).at[0, :64].set(b2)

    # fc1: (out, c*49 + h*7 + w) -> ((h, w_pad, c_pad) flattened, out), bf16.
    # Matches the (B,7,8,128) channel-last activation flatten (dummy column 7
    # and channels >=64 get zero weights), so no activation transpose needed.
    wf1t = jnp.transpose(wf1.reshape(128, 64, 7, 7), (2, 3, 1, 0))  # (7,7,64,128)
    wf1p = jnp.zeros((7, 8, LANES, 128), jnp.float32).at[:, :7, :64, :].set(wf1t)
    wf1p = wf1p.reshape(7 * 8 * LANES, 128).astype(jnp.bfloat16)
    bf1p = bf1.reshape(1, 128).astype(jnp.float32)

    # fc2: (10, 128) -> (128, 128) with zero-padded output columns, bf16.
    wf2p = jnp.zeros((128, LANES), jnp.float32).at[:, :10].set(wf2.T)
    wf2p = wf2p.astype(jnp.bfloat16)
    bf2p = jnp.zeros((1, LANES), jnp.float32).at[0, :10].set(bf2)

    return dict(w1p=w1p, b1p=b1p, w2p=w2p, b2p=b2p,
                wf1p=wf1p, bf1p=bf1p, wf2p=wf2p, bf2p=bf2p)


# ------------------------------ reference ------------------------------------


def reference_forward(x, raw):
    def conv(x, w, b):
        y = lax.conv_general_dilated(
            x, w, window_strides=(1, 1), padding=((1, 1), (1, 1)),
            dimension_numbers=("NCHW", "OIHW", "NCHW"))
        return jnp.maximum(y + b[None, :, None, None], 0.0)

    def pool(x):
        return lax.reduce_window(
            x, -jnp.inf, lax.max, (1, 1, 2, 2), (1, 1, 2, 2), "VALID")

    x = pool(conv(x, raw["w1"], raw["b1"]))
    x = pool(conv(x, raw["w2"], raw["b2"]))
    x = x.reshape(x.shape[0], 64 * 7 * 7)
    x = jnp.maximum(x @ raw["wf1"].T + raw["bf1"], 0.0)
    return x @ raw["wf2"].T + raw["bf2"]


# ------------------------------ params init ----------------------------------


def init_params(key):
    ks = jax.random.split(key, 8)

    def u(k, shape, fan_in):
        bound = 1.0 / jnp.sqrt(fan_in)
        return jax.random.uniform(k, shape, jnp.float32, -bound, bound)

    return {
        "w1": u(ks[0], (32, 1, 3, 3), 1 * 9),
        "b1": u(ks[1], (32,), 1 * 9),
        "w2": u(ks[2], (64, 32, 3, 3), 32 * 9),
        "b2": u(ks[3], (64,), 32 * 9),
        "wf1": u(ks[4], (128, 64 * 7 * 7), 64 * 7 * 7),  # PyTorch Linear (out, in)
        "bf1": u(ks[5], (128,), 64 * 7 * 7),
        "wf2": u(ks[6], (10, 128), 128),
        "bf2": u(ks[7], (10,), 128),
    }


# --------------------------------- main ---------------------------------------


if __name__ == "__main__":
    key = jax.random.PRNGKey(0)
    k_x, k_p = jax.random.split(key)
    # fc1 = Linear(64*7*7, 128) implies 28x28 single-channel input.
    x = jax.random.normal(k_x, (2, 1, 28, 28), jnp.float32)
    raw = init_params(k_p)
    params = prepare_params(raw)

    out = jax.block_until_ready(inner_cnn_forward(x, params))
    assert out.shape == (2, 10) and out.dtype == jnp.float32

    ref = jax.block_until_ready(reference_forward(x, raw))
    err = float(jnp.max(jnp.abs(out - ref)))
    scale = float(jnp.max(jnp.abs(ref))) + 1.0
    assert err <= 1e-2 * scale, f"mismatch: max abs err {err} vs ref scale {scale}"

    print("KERNEL_OK")
</pallas_src>

<mosaic_0001>
module attributes {stable_mosaic.version = 11 : i64} {
  func.func @_conv1_pool_kernel(%arg0: i32, %arg1: memref<1x2x30x16x1xf32, #tpu.memory_space<vmem>>, %arg2: memref<9x128xf32, #tpu.memory_space<vmem>>, %arg3: memref<1x128xf32, #tpu.memory_space<vmem>>, %arg4: memref<1x14x14x128xbf16, #tpu.memory_space<vmem>>) attributes {dimension_semantics = [#tpu.dimension_semantics<parallel>], iteration_bounds = array<i64: 2>, scalar_prefetch = 0 : i64, scratch_operands = 0 : i64, tpu.core_type = #tpu.core_type<tc>, window_params = [{transform_indices = @transform_0, window_bounds = array<i64: 1, 2, 30, 16, 1>}, {pipeline_mode = #tpu.pipeline_mode<synchronous>, transform_indices = @transform_1, window_bounds = array<i64: 9, 128>}, {pipeline_mode = #tpu.pipeline_mode<synchronous>, transform_indices = @transform_2, window_bounds = array<i64: 1, 128>}, {transform_indices = @transform_3, window_bounds = array<i64: 1, 14, 14, 128>}]} {
    %c0 = arith.constant 0 : index
    %c0_0 = arith.constant 0 : index
    %0 = vector.load %arg3[%c0, %c0_0] : memref<1x128xf32, #tpu.memory_space<vmem>>, vector<1x128xf32>
    %c0_i32 = arith.constant 0 : i32
    %c14_i32 = arith.constant 14 : i32
    %1 = arith.addi %c0_i32, %c14_i32 : i32
    %c1_i32 = arith.constant 1 : i32
    scf.for %arg5 = %c0_i32 to %1 step %c1_i32  : i32 {
      %c2_i32 = arith.constant 2 : i32
      %2 = arith.muli %c2_i32, %arg5 : i32
      %cst = arith.constant 0.000000e+00 : f32
      %3 = vector.broadcast %cst : f32 to vector<14x128xf32>
      %cst_2 = arith.constant 0.000000e+00 : f32
      %4 = vector.broadcast %cst_2 : f32 to vector<14x128xf32>
      %c0_i32_3 = arith.constant 0 : i32
      %5 = arith.addi %2, %c0_i32_3 : i32
      %c0_4 = arith.constant 0 : index
      %c0_5 = arith.constant 0 : index
      %6 = arith.index_cast %5 : i32 to index
      %c0_6 = arith.constant 0 : index
      %c0_7 = arith.constant 0 : index
      %7 = vector.load %arg1[%c0_4, %c0_5, %6, %c0_6, %c0_7] : memref<1x2x30x16x1xf32, #tpu.memory_space<vmem>>, vector<1x1x1x16x1xf32>
      %8 = vector.shape_cast %7 : vector<1x1x1x16x1xf32> to vector<16x1xf32>
      %c0_i32_8 = arith.constant 0 : i32
      %9 = arith.addi %2, %c0_i32_8 : i32
      %c0_9 = arith.constant 0 : index
      %c1 = arith.constant 1 : index
      %10 = arith.index_cast %9 : i32 to index
      %c0_10 = arith.constant 0 : index
      %c0_11 = arith.constant 0 : index
      %11 = vector.load %arg1[%c0_9, %c1, %10, %c0_10, %c0_11] : memref<1x2x30x16x1xf32, #tpu.memory_space<vmem>>, vector<1x1x1x16x1xf32>
      %12 = vector.shape_cast %11 : vector<1x1x1x16x1xf32> to vector<16x1xf32>
      %13 = vector.extract_strided_slice %8 {offsets = [0, 0], sizes = [14, 1], strides = [1, 1]} : vector<16x1xf32> to vector<14x1xf32>
      %14 = vector.extract_strided_slice %8 {offsets = [1, 0], sizes = [14, 1], strides = [1, 1]} : vector<16x1xf32> to vector<14x1xf32>
      %15 = vector.extract_strided_slice %12 {offsets = [0, 0], sizes = [14, 1], strides = [1, 1]} : vector<16x1xf32> to vector<14x1xf32>
      %16 = vector.extract_strided_slice %12 {offsets = [1, 0], sizes = [14, 1], strides = [1, 1]} : vector<16x1xf32> to vector<14x1xf32>
      %c0_12 = arith.constant 0 : index
      %c0_13 = arith.constant 0 : index
      %17 = vector.load %arg2[%c0_12, %c0_13] : memref<9x128xf32, #tpu.memory_space<vmem>>, vector<1x128xf32>
      %18 = vector.shape_cast %17 : vector<1x128xf32> to vector<128xf32>
      %c1_14 = arith.constant 1 : index
      %c0_15 = arith.constant 0 : index
      %19 = vector.load %arg2[%c1_14, %c0_15] : memref<9x128xf32, #tpu.memory_space<vmem>>, vector<1x128xf32>
      %20 = vector.shape_cast %19 : vector<1x128xf32> to vector<128xf32>
      %c2 = arith.constant 2 : index
      %c0_16 = arith.constant 0 : index
      %21 = vector.load %arg2[%c2, %c0_16] : memref<9x128xf32, #tpu.memory_space<vmem>>, vector<1x128xf32>
      %22 = vector.shape_cast %21 : vector<1x128xf32> to vector<128xf32>
      %23 = vector.shape_cast %18 : vector<128xf32> to vector<1x128xf32>
      %24 = vector.broadcast %13 : vector<14x1xf32> to vector<14x128xf32>
      %25 = vector.broadcast %23 : vector<1x128xf32> to vector<14x128xf32>
      %26 = arith.mulf %24, %25 : vector<14x128xf32>
      %27 = arith.addf %3, %26 : vector<14x128xf32>
      %28 = vector.shape_cast %20 : vector<128xf32> to vector<1x128xf32>
      %29 = vector.broadcast %15 : vector<14x1xf32> to vector<14x128xf32>
      %30 = vector.broadcast %28 : vector<1x128xf32> to vector<14x128xf32>
      %31 = arith.mulf %29, %30 : vector<14x128xf32>
      %32 = arith.addf %27, %31 : vector<14x128xf32>
      %33 = vector.shape_cast %22 : vector<128xf32> to vector<1x128xf32>
      %34 = vector.broadcast %14 : vector<14x1xf32> to vector<14x128xf32>
      %35 = vector.broadcast %33 : vector<1x128xf32> to vector<14x128xf32>
      %36 = arith.mulf %34, %35 : vector<14x128xf32>
      %37 = arith.addf %32, %36 : vector<14x128xf32>
      %38 = vector.shape_cast %18 : vector<128xf32> to vector<1x128xf32>
      %39 = vector.broadcast %15 : vector<14x1xf32> to vector<14x128xf32>
      %40 = vector.broadcast %38 : vector<1x128xf32> to vector<14x128xf32>
      %41 = arith.mulf %39, %40 : vector<14x128xf32>
      %42 = arith.addf %4, %41 : vector<14x128xf32>
      %43 = vector.shape_cast %20 : vector<128xf32> to vector<1x128xf32>
      %44 = vector.broadcast %14 : vector<14x1xf32> to vector<14x128xf32>
      %45 = vector.broadcast %43 : vector<1x128xf32> to vector<14x128xf32>
      %46 = arith.mulf %44, %45 : vector<14x128xf32>
      %47 = arith.addf %42, %46 : vector<14x128xf32>
      %48 = vector.shape_cast %22 : vector<128xf32> to vector<1x128xf32>
      %49 = vector.broadcast %16 : vector<14x1xf32> to vector<14x128xf32>
      %50 = vector.broadcast %48 : vector<1x128xf32> to vector<14x128xf32>
      %51 = arith.mulf %49, %50 : vector<14x128xf32>
      %52 = arith.addf %47, %51 : vector<14x128xf32>
      %c1_i32_17 = arith.constant 1 : i32
      %53 = arith.addi %2, %c1_i32_17 : i32
      %c0_18 = arith.constant 0 : index
      %c0_19 = arith.constant 0 : index
      %54 = arith.index_cast %53 : i32 to index
      %c0_20 = arith.constant 0 : index
      %c0_21 = arith.constant 0 : index
      %55 = vector.load %arg1[%c0_18, %c0_19, %54, %c0_20, %c0_21] : memref<1x2x30x16x1xf32, #tpu.memory_space<vmem>>, vector<1x1x1x16x1xf32>
      %56 = vector.shape_cast %55 : vector<1x1x1x16x1xf32> to vector<16x1xf32>
      %c1_i32_22 = arith.constant 1 : i32
      %57 = arith.addi %2, %c1_i32_22 : i32
      %c0_23 = arith.constant 0 : index
      %c1_24 = arith.constant 1 : index
      %58 = arith.index_cast %57 : i32 to index
      %c0_25 = arith.constant 0 : index
      %c0_26 = arith.constant 0 : index
      %59 = vector.load %arg1[%c0_23, %c1_24, %58, %c0_25, %c0_26] : memref<1x2x30x16x1xf32, #tpu.memory_space<vmem>>, vector<1x1x1x16x1xf32>
      %60 = vector.shape_cast %59 : vector<1x1x1x16x1xf32> to vector<16x1xf32>
      %61 = vector.extract_strided_slice %56 {offsets = [0, 0], sizes = [14, 1], strides = [1, 1]} : vector<16x1xf32> to vector<14x1xf32>
      %62 = vector.extract_strided_slice %56 {offsets = [1, 0], sizes = [14, 1], strides = [1, 1]} : vector<16x1xf32> to vector<14x1xf32>
      %63 = vector.extract_strided_slice %60 {offsets = [0, 0], sizes = [14, 1], strides = [1, 1]} : vector<16x1xf32> to vector<14x1xf32>
      %64 = vector.extract_strided_slice %60 {offsets = [1, 0], sizes = [14, 1], strides = [1, 1]} : vector<16x1xf32> to vector<14x1xf32>
      %c3 = arith.constant 3 : index
      %c0_27 = arith.constant 0 : index
      %65 = vector.load %arg2[%c3, %c0_27] : memref<9x128xf32, #tpu.memory_space<vmem>>, vector<1x128xf32>
      %66 = vector.shape_cast %65 : vector<1x128xf32> to vector<128xf32>
      %c4 = arith.constant 4 : index
      %c0_28 = arith.constant 0 : index
      %67 = vector.load %arg2[%c4, %c0_28] : memref<9x128xf32, #tpu.memory_space<vmem>>, vector<1x128xf32>
      %68 = vector.shape_cast %67 : vector<1x128xf32> to vector<128xf32>
      %c5 = arith.constant 5 : index
      %c0_29 = arith.constant 0 : index
      %69 = vector.load %arg2[%c5, %c0_29] : memref<9x128xf32, #tpu.memory_space<vmem>>, vector<1x128xf32>
      %70 = vector.shape_cast %69 : vector<1x128xf32> to vector<128xf32>
      %71 = vector.shape_cast %66 : vector<128xf32> to vector<1x128xf32>
      %72 = vector.broadcast %61 : vector<14x1xf32> to vector<14x128xf32>
      %73 = vector.broadcast %71 : vector<1x128xf32> to vector<14x128xf32>
      %74 = arith.mulf %72, %73 : vector<14x128xf32>
      %75 = arith.addf %37, %74 : vector<14x128xf32>
      %76 = vector.shape_cast %68 : vector<128xf32> to vector<1x128xf32>
      %77 = vector.broadcast %63 : vector<14x1xf32> to vector<14x128xf32>
      %78 = vector.broadcast %76 : vector<1x128xf32> to vector<14x128xf32>
      %79 = arith.mulf %77, %78 : vector<14x128xf32>
      %80 = arith.addf %75, %79 : vector<14x128xf32>
      %81 = vector.shape_cast %70 : vector<128xf32> to vector<1x128xf32>
      %82 = vector.broadcast %62 : vector<14x1xf32> to vector<14x128xf32>
      %83 = vector.broadcast %81 : vector<1x128xf32> to vector<14x128xf32>
      %84 = arith.mulf %82, %83 : vector<14x128xf32>
      %85 = arith.addf %80, %84 : vector<14x128xf32>
      %86 = vector.shape_cast %66 : vector<128xf32> to vector<1x128xf32>
      %87 = vector.broadcast %63 : vector<14x1xf32> to vector<14x128xf32>
      %88 = vector.broadcast %86 : vector<1x128xf32> to vector<14x128xf32>
      %89 = arith.mulf %87, %88 : vector<14x128xf32>
      %90 = arith.addf %52, %89 : vector<14x128xf32>
      %91 = vector.shape_cast %68 : vector<128xf32> to vector<1x128xf32>
      %92 = vector.broadcast %62 : vector<14x1xf32> to vector<14x128xf32>
      %93 = vector.broadcast %91 : vector<1x128xf32> to vector<14x128xf32>
      %94 = arith.mulf %92, %93 : vector<14x128xf32>
      %95 = arith.addf %90, %94 : vector<14x128xf32>
      %96 = vector.shape_cast %70 : vector<128xf32> to vector<1x128xf32>
      %97 = vector.broadcast %64 : vector<14x1xf32> to vector<14x128xf32>
      %98 = vector.broadcast %96 : vector<1x128xf32> to vector<14x128xf32>
      %99 = arith.mulf %97, %98 : vector<14x128xf32>
      %100 = arith.addf %95, %99 : vector<14x128xf32>
      %c2_i32_30 = arith.constant 2 : i32
      %101 = arith.addi %2, %c2_i32_30 : i32
      %c0_31 = arith.constant 0 : index
      %c0_32 = arith.constant 0 : index
      %102 = arith.index_cast %101 : i32 to index
      %c0_33 = arith.constant 0 : index
      %c0_34 = arith.constant 0 : index
      %103 = vector.load %arg1[%c0_31, %c0_32, %102, %c0_33, %c0_34] : memref<1x2x30x16x1xf32, #tpu.memory_space<vmem>>, vector<1x1x1x16x1xf32>
      %104 = vector.shape_cast %103 : vector<1x1x1x16x1xf32> to vector<16x1xf32>
      %c2_i32_35 = arith.constant 2 : i32
      %105 = arith.addi %2, %c2_i32_35 : i32
      %c0_36 = arith.constant 0 : index
      %c1_37 = arith.constant 1 : index
      %106 = arith.index_cast %105 : i32 to index
      %c0_38 = arith.constant 0 : index
      %c0_39 = arith.constant 0 : index
      %107 = vector.load %arg1[%c0_36, %c1_37, %106, %c0_38, %c0_39] : memref<1x2x30x16x1xf32, #tpu.memory_space<vmem>>, vector<1x1x1x16x1xf32>
      %108 = vector.shape_cast %107 : vector<1x1x1x16x1xf32> to vector<16x1xf32>
      %109 = vector.extract_strided_slice %104 {offsets = [0, 0], sizes = [14, 1], strides = [1, 1]} : vector<16x1xf32> to vector<14x1xf32>
      %110 = vector.extract_strided_slice %104 {offsets = [1, 0], sizes = [14, 1], strides = [1, 1]} : vector<16x1xf32> to vector<14x1xf32>
      %111 = vector.extract_strided_slice %108 {offsets = [0, 0], sizes = [14, 1], strides = [1, 1]} : vector<16x1xf32> to vector<14x1xf32>
      %112 = vector.extract_strided_slice %108 {offsets = [1, 0], sizes = [14, 1], strides = [1, 1]} : vector<16x1xf32> to vector<14x1xf32>
      %c6 = arith.constant 6 : index
      %c0_40 = arith.constant 0 : index
      %113 = vector.load %arg2[%c6, %c0_40] : memref<9x128xf32, #tpu.memory_space<vmem>>, vector<1x128xf32>
      %114 = vector.shape_cast %113 : vector<1x128xf32> to vector<128xf32>
      %c7 = arith.constant 7 : index
      %c0_41 = arith.constant 0 : index
      %115 = vector.load %arg2[%c7, %c0_41] : memref<9x128xf32, #tpu.memory_space<vmem>>, vector<1x128xf32>
      %116 = vector.shape_cast %115 : vector<1x128xf32> to vector<128xf32>
      %c8 = arith.constant 8 : index
      %c0_42 = arith.constant 0 : index
      %117 = vector.load %arg2[%c8, %c0_42] : memref<9x128xf32, #tpu.memory_space<vmem>>, vector<1x128xf32>
      %118 = vector.shape_cast %117 : vector<1x128xf32> to vector<128xf32>
      %119 = vector.shape_cast %114 : vector<128xf32> to vector<1x128xf32>
      %120 = vector.broadcast %109 : vector<14x1xf32> to vector<14x128xf32>
      %121 = vector.broadcast %119 : vector<1x128xf32> to vector<14x128xf32>
      %122 = arith.mulf %120, %121 : vector<14x128xf32>
      %123 = arith.addf %85, %122 : vector<14x128xf32>
      %124 = vector.shape_cast %116 : vector<128xf32> to vector<1x128xf32>
      %125 = vector.broadcast %111 : vector<14x1xf32> to vector<14x128xf32>
      %126 = vector.broadcast %124 : vector<1x128xf32> to vector<14x128xf32>
      %127 = arith.mulf %125, %126 : vector<14x128xf32>
      %128 = arith.addf %123, %127 : vector<14x128xf32>
      %129 = vector.shape_cast %118 : vector<128xf32> to vector<1x128xf32>
      %130 = vector.broadcast %110 : vector<14x1xf32> to vector<14x128xf32>
      %131 = vector.broadcast %129 : vector<1x128xf32> to vector<14x128xf32>
      %132 = arith.mulf %130, %131 : vector<14x128xf32>
      %133 = arith.addf %128, %132 : vector<14x128xf32>
      %134 = vector.shape_cast %114 : vector<128xf32> to vector<1x128xf32>
      %135 = vector.broadcast %111 : vector<14x1xf32> to vector<14x128xf32>
      %136 = vector.broadcast %134 : vector<1x128xf32> to vector<14x128xf32>
      %137 = arith.mulf %135, %136 : vector<14x128xf32>
      %138 = arith.addf %100, %137 : vector<14x128xf32>
      %139 = vector.shape_cast %116 : vector<128xf32> to vector<1x128xf32>
      %140 = vector.broadcast %110 : vector<14x1xf32> to vector<14x128xf32>
      %141 = vector.broadcast %139 : vector<1x128xf32> to vector<14x128xf32>
      %142 = arith.mulf %140, %141 : vector<14x128xf32>
      %143 = arith.addf %138, %142 : vector<14x128xf32>
      %144 = vector.shape_cast %118 : vector<128xf32> to vector<1x128xf32>
      %145 = vector.broadcast %112 : vector<14x1xf32> to vector<14x128xf32>
      %146 = vector.broadcast %144 : vector<1x128xf32> to vector<14x128xf32>
      %147 = arith.mulf %145, %146 : vector<14x128xf32>
      %148 = arith.addf %143, %147 : vector<14x128xf32>
      %149 = arith.maximumf %133, %148 : vector<14x128xf32>
      %150 = vector.broadcast %0 : vector<1x128xf32> to vector<14x128xf32>
      %151 = arith.addf %149, %150 : vector<14x128xf32>
      %cst_43 = arith.constant 0.000000e+00 : f32
      %152 = vector.broadcast %cst_43 : f32 to vector<14x128xf32>
      %153 = arith.maximumf %151, %152 : vector<14x128xf32>
      %c2_i32_44 = arith.constant 2 : i32
      %154 = arith.muli %c2_i32_44, %arg5 : i32
      %c1_i32_45 = arith.constant 1 : i32
      %155 = arith.addi %154, %c1_i32_45 : i32
      %cst_46 = arith.constant 0.000000e+00 : f32
      %156 = vector.broadcast %cst_46 : f32 to vector<14x128xf32>
      %cst_47 = arith.constant 0.000000e+00 : f32
      %157 = vector.broadcast %cst_47 : f32 to vector<14x128xf32>
      %c0_i32_48 = arith.constant 0 : i32
      %158 = arith.addi %155, %c0_i32_48 : i32
      %c0_49 = arith.constant 0 : index
      %c0_50 = arith.constant 0 : index
      %159 = arith.index_cast %158 : i32 to index
      %c0_51 = arith.constant 0 : index
      %c0_52 = arith.constant 0 : index
      %160 = vector.load %arg1[%c0_49, %c0_50, %159, %c0_51, %c0_52] : memref<1x2x30x16x1xf32, #tpu.memory_space<vmem>>, vector<1x1x1x16x1xf32>
      %161 = vector.shape_cast %160 : vector<1x1x1x16x1xf32> to vector<16x1xf32>
      %c0_i32_53 = arith.constant 0 : i32
      %162 = arith.addi %155, %c0_i32_53 : i32
      %c0_54 = arith.constant 0 : index
      %c1_55 = arith.constant 1 : index
      %163 = arith.index_cast %162 : i32 to index
      %c0_56 = arith.constant 0 : index
      %c0_57 = arith.constant 0 : index
      %164 = vector.load %arg1[%c0_54, %c1_55, %163, %c0_56, %c0_57] : memref<1x2x30x16x1xf32, #tpu.memory_space<vmem>>, vector<1x1x1x16x1xf32>
      %165 = vector.shape_cast %164 : vector<1x1x1x16x1xf32> to vector<16x1xf32>
      %166 = vector.extract_strided_slice %161 {offsets = [0, 0], sizes = [14, 1], strides = [1, 1]} : vector<16x1xf32> to vector<14x1xf32>
      %167 = vector.extract_strided_slice %161 {offsets = [1, 0], sizes = [14, 1], strides = [1, 1]} : vector<16x1xf32> to vector<14x1xf32>
      %168 = vector.extract_strided_slice %165 {offsets = [0, 0], sizes = [14, 1], strides = [1, 1]} : vector<16x1xf32> to vector<14x1xf32>
      %169 = vector.extract_strided_slice %165 {offsets = [1, 0], sizes = [14, 1], strides = [1, 1]} : vector<16x1xf32> to vector<14x1xf32>
      %c0_58 = arith.constant 0 : index
      %c0_59 = arith.constant 0 : index
      %170 = vector.load %arg2[%c0_58, %c0_59] : memref<9x128xf32, #tpu.memory_space<vmem>>, vector<1x128xf32>
      %171 = vector.shape_cast %170 : vector<1x128xf32> to vector<128xf32>
      %c1_60 = arith.constant 1 : index
      %c0_61 = arith.constant 0 : index
      %172 = vector.load %arg2[%c1_60, %c0_61] : memref<9x128xf32, #tpu.memory_space<vmem>>, vector<1x128xf32>
      %173 = vector.shape_cast %172 : vector<1x128xf32> to vector<128xf32>
      %c2_62 = arith.constant 2 : index
      %c0_63 = arith.constant 0 : index
      %174 = vector.load %arg2[%c2_62, %c0_63] : memref<9x128xf32, #tpu.memory_space<vmem>>, vector<1x128xf32>
      %175 = vector.shape_cast %174 : vector<1x128xf32> to vector<128xf32>
      %176 = vector.shape_cast %171 : vector<128xf32> to vector<1x128xf32>
      %177 = vector.broadcast %166 : vector<14x1xf32> to vector<14x128xf32>
      %178 = vector.broadcast %176 : vector<1x128xf32> to vector<14x128xf32>
      %179 = arith.mulf %177, %178 : vector<14x128xf32>
      %180 = arith.addf %156, %179 : vector<14x128xf32>
      %181 = vector.shape_cast %173 : vector<128xf32> to vector<1x128xf32>
      %182 = vector.broadcast %168 : vector<14x1xf32> to vector<14x128xf32>
      %183 = vector.broadcast %181 : vector<1x128xf32> to vector<14x128xf32>
      %184 = arith.mulf %182, %183 : vector<14x128xf32>
      %185 = arith.addf %180, %184 : vector<14x128xf32>
      %186 = vector.shape_cast %175 : vector<128xf32> to vector<1x128xf32>
      %187 = vector.broadcast %167 : vector<14x1xf32> to vector<14x128xf32>
      %188 = vector.broadcast %186 : vector<1x128xf32> to vector<14x128xf32>
      %189 = arith.mulf %187, %188 : vector<14x128xf32>
      %190 = arith.addf %185, %189 : vector<14x128xf32>
      %191 = vector.shape_cast %171 : vector<128xf32> to vector<1x128xf32>
      %192 = vector.broadcast %168 : vector<14x1xf32> to vector<14x128xf32>
      %193 = vector.broadcast %191 : vector<1x128xf32> to vector<14x128xf32>
      %194 = arith.mulf %192, %193 : vector<14x128xf32>
      %195 = arith.addf %157, %194 : vector<14x128xf32>
      %196 = vector.shape_cast %173 : vector<128xf32> to vector<1x128xf32>
      %197 = vector.broadcast %167 : vector<14x1xf32> to vector<14x128xf32>
      %198 = vector.broadcast %196 : vector<1x128xf32> to vector<14x128xf32>
      %199 = arith.mulf %197, %198 : vector<14x128xf32>
      %200 = arith.addf %195, %199 : vector<14x128xf32>
      %201 = vector.shape_cast %175 : vector<128xf32> to vector<1x128xf32>
      %202 = vector.broadcast %169 : vector<14x1xf32> to vector<14x128xf32>
      %203 = vector.broadcast %201 : vector<1x128xf32> to vector<14x128xf32>
      %204 = arith.mulf %202, %203 : vector<14x128xf32>
      %205 = arith.addf %200, %204 : vector<14x128xf32>
      %c1_i32_64 = arith.constant 1 : i32
      %206 = arith.addi %155, %c1_i32_64 : i32
      %c0_65 = arith.constant 0 : index
      %c0_66 = arith.constant 0 : index
      %207 = arith.index_cast %206 : i32 to index
      %c0_67 = arith.constant 0 : index
      %c0_68 = arith.constant 0 : index
      %208 = vector.load %arg1[%c0_65, %c0_66, %207, %c0_67, %c0_68] : memref<1x2x30x16x1xf32, #tpu.memory_space<vmem>>, vector<1x1x1x16x1xf32>
      %209 = vector.shape_cast %208 : vector<1x1x1x16x1xf32> to vector<16x1xf32>
      %c1_i32_69 = arith.constant 1 : i32
      %210 = arith.addi %155, %c1_i32_69 : i32
      %c0_70 = arith.constant 0 : index
      %c1_71 = arith.constant 1 : index
      %211 = arith.index_cast %210 : i32 to index
      %c0_72 = arith.constant 0 : index
      %c0_73 = arith.constant 0 : index
      %212 = vector.load %arg1[%c0_70, %c1_71, %211, %c0_72, %c0_73] : memref<1x2x30x16x1xf32, #tpu.memory_space<vmem>>, vector<1x1x1x16x1xf32>
      %213 = vector.shape_cast %212 : vector<1x1x1x16x1xf32> to vector<16x1xf32>
      %214 = vector.extract_strided_slice %209 {offsets = [0, 0], sizes = [14, 1], strides = [1, 1]} : vector<16x1xf32> to vector<14x1xf32>
      %215 = vector.extract_strided_slice %209 {offsets = [1, 0], sizes = [14, 1], strides = [1, 1]} : vector<16x1xf32> to vector<14x1xf32>
      %216 = vector.extract_strided_slice %213 {offsets = [0, 0], sizes = [14, 1], strides = [1, 1]} : vector<16x1xf32> to vector<14x1xf32>
      %217 = vector.extract_strided_slice %213 {offsets = [1, 0], sizes = [14, 1], strides = [1, 1]} : vector<16x1xf32> to vector<14x1xf32>
      %c3_74 = arith.constant 3 : index
      %c0_75 = arith.constant 0 : index
      %218 = vector.load %arg2[%c3_74, %c0_75] : memref<9x128xf32, #tpu.memory_space<vmem>>, vector<1x128xf32>
      %219 = vector.shape_cast %218 : vector<1x128xf32> to vector<128xf32>
      %c4_76 = arith.constant 4 : index
      %c0_77 = arith.constant 0 : index
      %220 = vector.load %arg2[%c4_76, %c0_77] : memref<9x128xf32, #tpu.memory_space<vmem>>, vector<1x128xf32>
      %221 = vector.shape_cast %220 : vector<1x128xf32> to vector<128xf32>
      %c5_78 = arith.constant 5 : index
      %c0_79 = arith.constant 0 : index
      %222 = vector.load %arg2[%c5_78, %c0_79] : memref<9x128xf32, #tpu.memory_space<vmem>>, vector<1x128xf32>
      %223 = vector.shape_cast %222 : vector<1x128xf32> to vector<128xf32>
      %224 = vector.shape_cast %219 : vector<128xf32> to vector<1x128xf32>
      %225 = vector.broadcast %214 : vector<14x1xf32> to vector<14x128xf32>
      %226 = vector.broadcast %224 : vector<1x128xf32> to vector<14x128xf32>
      %227 = arith.mulf %225, %226 : vector<14x128xf32>
      %228 = arith.addf %190, %227 : vector<14x128xf32>
      %229 = vector.shape_cast %221 : vector<128xf32> to vector<1x128xf32>
      %230 = vector.broadcast %216 : vector<14x1xf32> to vector<14x128xf32>
      %231 = vector.broadcast %229 : vector<1x128xf32> to vector<14x128xf32>
      %232 = arith.mulf %230, %231 : vector<14x128xf32>
      %233 = arith.addf %228, %232 : vector<14x128xf32>
      %234 = vector.shape_cast %223 : vector<128xf32> to vector<1x128xf32>
      %235 = vector.broadcast %215 : vector<14x1xf32> to vector<14x128xf32>
      %236 = vector.broadcast %234 : vector<1x128xf32> to vector<14x128xf32>
      %237 = arith.mulf %235, %236 : vector<14x128xf32>
      %238 = arith.addf %233, %237 : vector<14x128xf32>
      %239 = vector.shape_cast %219 : vector<128xf32> to vector<1x128xf32>
      %240 = vector.broadcast %216 : vector<14x1xf32> to vector<14x128xf32>
      %241 = vector.broadcast %239 : vector<1x128xf32> to vector<14x128xf32>
      %242 = arith.mulf %240, %241 : vector<14x128xf32>
      %243 = arith.addf %205, %242 : vector<14x128xf32>
      %244 = vector.shape_cast %221 : vector<128xf32> to vector<1x128xf32>
      %245 = vector.broadcast %215 : vector<14x1xf32> to vector<14x128xf32>
      %246 = vector.broadcast %244 : vector<1x128xf32> to vector<14x128xf32>
      %247 = arith.mulf %245, %246 : vector<14x128xf32>
      %248 = arith.addf %243, %247 : vector<14x128xf32>
      %249 = vector.shape_cast %223 : vector<128xf32> to vector<1x128xf32>
      %250 = vector.broadcast %217 : vector<14x1xf32> to vector<14x128xf32>
      %251 = vector.broadcast %249 : vector<1x128xf32> to vector<14x128xf32>
      %252 = arith.mulf %250, %251 : vector<14x128xf32>
      %253 = arith.addf %248, %252 : vector<14x128xf32>
      %c2_i32_80 = arith.constant 2 : i32
      %254 = arith.addi %155, %c2_i32_80 : i32
      %c0_81 = arith.constant 0 : index
      %c0_82 = arith.constant 0 : index
      %255 = arith.index_cast %254 : i32 to index
      %c0_83 = arith.constant 0 : index
      %c0_84 = arith.constant 0 : index
      %256 = vector.load %arg1[%c0_81, %c0_82, %255, %c0_83, %c0_84] : memref<1x2x30x16x1xf32, #tpu.memory_space<vmem>>, vector<1x1x1x16x1xf32>
      %257 = vector.shape_cast %256 : vector<1x1x1x16x1xf32> to vector<16x1xf32>
      %c2_i32_85 = arith.constant 2 : i32
      %258 = arith.addi %155, %c2_i32_85 : i32
      %c0_86 = arith.constant 0 : index
      %c1_87 = arith.constant 1 : index
      %259 = arith.index_cast %258 : i32 to index
      %c0_88 = arith.constant 0 : index
      %c0_89 = arith.constant 0 : index
      %260 = vector.load %arg1[%c0_86, %c1_87, %259, %c0_88, %c0_89] : memref<1x2x30x16x1xf32, #tpu.memory_space<vmem>>, vector<1x1x1x16x1xf32>
      %261 = vector.shape_cast %260 : vector<1x1x1x16x1xf32> to vector<16x1xf32>
      %262 = vector.extract_strided_slice %257 {offsets = [0, 0], sizes = [14, 1], strides = [1, 1]} : vector<16x1xf32> to vector<14x1xf32>
      %263 = vector.extract_strided_slice %257 {offsets = [1, 0], sizes = [14, 1], strides = [1, 1]} : vector<16x1xf32> to vector<14x1xf32>
      %264 = vector.extract_strided_slice %261 {offsets = [0, 0], sizes = [14, 1], strides = [1, 1]} : vector<16x1xf32> to vector<14x1xf32>
      %265 = vector.extract_strided_slice %261 {offsets = [1, 0], sizes = [14, 1], strides = [1, 1]} : vector<16x1xf32> to vector<14x1xf32>
      %c6_90 = arith.constant 6 : index
      %c0_91 = arith.constant 0 : index
      %266 = vector.load %arg2[%c6_90, %c0_91] : memref<9x128xf32, #tpu.memory_space<vmem>>, vector<1x128xf32>
      %267 = vector.shape_cast %266 : vector<1x128xf32> to vector<128xf32>
      %c7_92 = arith.constant 7 : index
      %c0_93 = arith.constant 0 : index
      %268 = vector.load %arg2[%c7_92, %c0_93] : memref<9x128xf32, #tpu.memory_space<vmem>>, vector<1x128xf32>
      %269 = vector.shape_cast %268 : vector<1x128xf32> to vector<128xf32>
      %c8_94 = arith.constant 8 : index
      %c0_95 = arith.constant 0 : index
      %270 = vector.load %arg2[%c8_94, %c0_95] : memref<9x128xf32, #tpu.memory_space<vmem>>, vector<1x128xf32>
      %271 = vector.shape_cast %270 : vector<1x128xf32> to vector<128xf32>
      %272 = vector.shape_cast %267 : vector<128xf32> to vector<1x128xf32>
      %273 = vector.broadcast %262 : vector<14x1xf32> to vector<14x128xf32>
      %274 = vector.broadcast %272 : vector<1x128xf32> to vector<14x128xf32>
      %275 = arith.mulf %273, %274 : vector<14x128xf32>
      %276 = arith.addf %238, %275 : vector<14x128xf32>
      %277 = vector.shape_cast %269 : vector<128xf32> to vector<1x128xf32>
      %278 = vector.broadcast %264 : vector<14x1xf32> to vector<14x128xf32>
      %279 = vector.broadcast %277 : vector<1x128xf32> to vector<14x128xf32>
      %280 = arith.mulf %278, %279 : vector<14x128xf32>
      %281 = arith.addf %276, %280 : vector<14x128xf32>
      %282 = vector.shape_cast %271 : vector<128xf32> to vector<1x128xf32>
      %283 = vector.broadcast %263 : vector<14x1xf32> to vector<14x128xf32>
      %284 = vector.broadcast %282 : vector<1x128xf32> to vector<14x128xf32>
      %285 = arith.mulf %283, %284 : vector<14x128xf32>
      %286 = arith.addf %281, %285 : vector<14x128xf32>
      %287 = vector.shape_cast %267 : vector<128xf32> to vector<1x128xf32>
      %288 = vector.broadcast %264 : vector<14x1xf32> to vector<14x128xf32>
      %289 = vector.broadcast %287 : vector<1x128xf32> to vector<14x128xf32>
      %290 = arith.mulf %288, %289 : vector<14x128xf32>
      %291 = arith.addf %253, %290 : vector<14x128xf32>
      %292 = vector.shape_cast %269 : vector<128xf32> to vector<1x128xf32>
      %293 = vector.broadcast %263 : vector<14x1xf32> to vector<14x128xf32>
      %294 = vector.broadcast %292 : vector<1x128xf32> to vector<14x128xf32>
      %295 = arith.mulf %293, %294 : vector<14x128xf32>
      %296 = arith.addf %291, %295 : vector<14x128xf32>
      %297 = vector.shape_cast %271 : vector<128xf32> to vector<1x128xf32>
      %298 = vector.broadcast %265 : vector<14x1xf32> to vector<14x128xf32>
      %299 = vector.broadcast %297 : vector<1x128xf32> to vector<14x128xf32>
      %300 = arith.mulf %298, %299 : vector<14x128xf32>
      %301 = arith.addf %296, %300 : vector<14x128xf32>
      %302 = arith.maximumf %286, %301 : vector<14x128xf32>
      %303 = vector.broadcast %0 : vector<1x128xf32> to vector<14x128xf32>
      %304 = arith.addf %302, %303 : vector<14x128xf32>
      %cst_96 = arith.constant 0.000000e+00 : f32
      %305 = vector.broadcast %cst_96 : f32 to vector<14x128xf32>
      %306 = arith.maximumf %304, %305 : vector<14x128xf32>
      %307 = arith.maximumf %153, %306 : vector<14x128xf32>
      %308 = arith.truncf %307 : vector<14x128xf32> to vector<14x128xbf16>
      %c0_97 = arith.constant 0 : index
      %309 = arith.index_cast %arg5 : i32 to index
      %c0_98 = arith.constant 0 : index
      %c0_99 = arith.constant 0 : index
      %310 = vector.load %arg4[%c0_97, %309, %c0_98, %c0_99] : memref<1x14x14x128xbf16, #tpu.memory_space<vmem>>, vector<1x1x14x128xbf16>
      %311 = vector.shape_cast %310 : vector<1x1x14x128xbf16> to vector<14x128xbf16>
      %312 = vector.shape_cast %308 : vector<14x128xbf16> to vector<1x1x14x128xbf16>
      tpu.vector_store %arg4[%c0_97, %309, %c0_98, %c0_99], %312 {strides = array<i32>} : memref<1x14x14x128xbf16, #tpu.memory_space<vmem>>, vector<1x1x14x128xbf16>,
    }
    %c14_i32_1 = arith.constant 14 : i32
    return
  }
  func.func @transform_0(%arg0: i32) -> (i32, i32, i32, i32, i32) {
    %c0_i32 = arith.constant 0 : i32
    %c0_i32_0 = arith.constant 0 : i32
    %c0_i32_1 = arith.constant 0 : i32
    %c0_i32_2 = arith.constant 0 : i32
    %c0_i32_3 = arith.constant 0 : i32
    return %arg0, %c0_i32, %c0_i32_0, %c0_i32_1, %c0_i32_2 : i32, i32, i32, i32, i32
  }
  func.func @transform_1(%arg0: i32) -> (i32, i32) {
    %c0_i32 = arith.constant 0 : i32
    %c0_i32_0 = arith.constant 0 : i32
    %c0_i32_1 = arith.constant 0 : i32
    return %c0_i32, %c0_i32_0 : i32, i32
  }
  func.func @transform_2(%arg0: i32) -> (i32, i32) {
    %c0_i32 = arith.constant 0 : i32
    %c0_i32_0 = arith.constant 0 : i32
    %c0_i32_1 = arith.constant 0 : i32
    return %c0_i32, %c0_i32_0 : i32, i32
  }
  func.func @transform_3(%arg0: i32) -> (i32, i32, i32, i32) {
    %c0_i32 = arith.constant 0 : i32
    %c0_i32_0 = arith.constant 0 : i32
    %c0_i32_1 = arith.constant 0 : i32
    %c0_i32_2 = arith.constant 0 : i32
    return %arg0, %c0_i32, %c0_i32_0, %c0_i32_1 : i32, i32, i32, i32
  }
}

module attributes {stable_mosaic.version = 11 : i64} {
  func.func @_conv2_pool_kernel(%arg0: i32, %arg1: memref<1x2x16x9x128xbf16, #tpu.memory_space<vmem>>, %arg2: memref<9x128x128xbf16, #tpu.memory_space<vmem>>, %arg3: memref<1x128xf32, #tpu.memory_space<vmem>>, %arg4: memref<1x7x8x128xbf16, #tpu.memory_space<vmem>>) attributes {dimension_semantics = [#tpu.dimension_semantics<parallel>], iteration_bounds = array<i64: 2>, scalar_prefetch = 0 : i64, scratch_operands = 0 : i64, tpu.core_type = #tpu.core_type<tc>, window_params = [{transform_indices = @transform_0, window_bounds = array<i64: 1, 2, 16, 9, 128>}, {pipeline_mode = #tpu.pipeline_mode<synchronous>, transform_indices = @transform_1, window_bounds = array<i64: 9, 128, 128>}, {pipeline_mode = #tpu.pipeline_mode<synchronous>, transform_indices = @transform_2, window_bounds = array<i64: 1, 128>}, {transform_indices = @transform_3, window_bounds = array<i64: 1, 7, 8, 128>}]} {
    %c0 = arith.constant 0 : index
    %c0_0 = arith.constant 0 : index
    %0 = vector.load %arg3[%c0, %c0_0] : memref<1x128xf32, #tpu.memory_space<vmem>>, vector<1x128xf32>
    %c0_i32 = arith.constant 0 : i32
    %c7_i32 = arith.constant 7 : i32
    %1 = arith.addi %c0_i32, %c7_i32 : i32
    %c1_i32 = arith.constant 1 : i32
    scf.for %arg5 = %c0_i32 to %1 step %c1_i32  : i32 {
      %c2_i32 = arith.constant 2 : i32
      %2 = arith.muli %c2_i32, %arg5 : i32
      %cst = arith.constant 0.000000e+00 : f32
      %3 = vector.broadcast %cst : f32 to vector<8x128xf32>
      %cst_2 = arith.constant 0.000000e+00 : f32
      %4 = vector.broadcast %cst_2 : f32 to vector<8x128xf32>
      %c0_i32_3 = arith.constant 0 : i32
      %5 = arith.addi %2, %c0_i32_3 : i32
      %c0_4 = arith.constant 0 : index
      %c0_5 = arith.constant 0 : index
      %6 = arith.index_cast %5 : i32 to index
      %c0_6 = arith.constant 0 : index
      %c0_7 = arith.constant 0 : index
      %7 = vector.load %arg1[%c0_4, %c0_5, %6, %c0_6, %c0_7] : memref<1x2x16x9x128xbf16, #tpu.memory_space<vmem>>, vector<1x1x1x9x128xbf16>
      %8 = vector.shape_cast %7 : vector<1x1x1x9x128xbf16> to vector<9x128xbf16>
      %9 = arith.extf %8 : vector<9x128xbf16> to vector<9x128xf32>
      %c0_i32_8 = arith.constant 0 : i32
      %10 = arith.addi %2, %c0_i32_8 : i32
      %c0_9 = arith.constant 0 : index
      %c1 = arith.constant 1 : index
      %11 = arith.index_cast %10 : i32 to index
      %c0_10 = arith.constant 0 : index
      %c0_11 = arith.constant 0 : index
      %12 = vector.load %arg1[%c0_9, %c1, %11, %c0_10, %c0_11] : memref<1x2x16x9x128xbf16, #tpu.memory_space<vmem>>, vector<1x1x1x9x128xbf16>
      %13 = vector.shape_cast %12 : vector<1x1x1x9x128xbf16> to vector<9x128xbf16>
      %14 = arith.extf %13 : vector<9x128xbf16> to vector<9x128xf32>
      %15 = vector.extract_strided_slice %9 {offsets = [0, 0], sizes = [8, 128], strides = [1, 1]} : vector<9x128xf32> to vector<8x128xf32>
      %16 = arith.truncf %15 : vector<8x128xf32> to vector<8x128xbf16>
      %17 = vector.extract_strided_slice %9 {offsets = [1, 0], sizes = [8, 128], strides = [1, 1]} : vector<9x128xf32> to vector<8x128xf32>
      %18 = arith.truncf %17 : vector<8x128xf32> to vector<8x128xbf16>
      %19 = vector.extract_strided_slice %14 {offsets = [0, 0], sizes = [8, 128], strides = [1, 1]} : vector<9x128xf32> to vector<8x128xf32>
      %20 = arith.truncf %19 : vector<8x128xf32> to vector<8x128xbf16>
      %21 = vector.extract_strided_slice %14 {offsets = [1, 0], sizes = [8, 128], strides = [1, 1]} : vector<9x128xf32> to vector<8x128xf32>
      %22 = arith.truncf %21 : vector<8x128xf32> to vector<8x128xbf16>
      %c0_12 = arith.constant 0 : index
      %c0_13 = arith.constant 0 : index
      %c0_14 = arith.constant 0 : index
      %23 = vector.load %arg2[%c0_12, %c0_13, %c0_14] : memref<9x128x128xbf16, #tpu.memory_space<vmem>>, vector<1x128x128xbf16>
      %24 = vector.shape_cast %23 : vector<1x128x128xbf16> to vector<128x128xbf16>
      %c1_15 = arith.constant 1 : index
      %c0_16 = arith.constant 0 : index
      %c0_17 = arith.constant 0 : index
      %25 = vector.load %arg2[%c1_15, %c0_16, %c0_17] : memref<9x128x128xbf16, #tpu.memory_space<vmem>>, vector<1x128x128xbf16>
      %26 = vector.shape_cast %25 : vector<1x128x128xbf16> to vector<128x128xbf16>
      %c2 = arith.constant 2 : index
      %c0_18 = arith.constant 0 : index
      %c0_19 = arith.constant 0 : index
      %27 = vector.load %arg2[%c2, %c0_18, %c0_19] : memref<9x128x128xbf16, #tpu.memory_space<vmem>>, vector<1x128x128xbf16>
      %28 = vector.shape_cast %27 : vector<1x128x128xbf16> to vector<128x128xbf16>
      %cst_20 = arith.constant dense<0.000000e+00> : vector<8x128xf32>
      %29 = tpu.matmul %16, %24, %cst_20 {dimension_numbers = #tpu.dot_dimension_numbers<[1], [0], [0], [1], [0, 0, 1, 1], [], []>} : vector<8x128xbf16>, vector<128x128xbf16>, vector<8x128xf32> -> vector<8x128xf32>
      %30 = arith.addf %3, %29 : vector<8x128xf32>
      %cst_21 = arith.constant dense<0.000000e+00> : vector<8x128xf32>
      %31 = tpu.matmul %20, %26, %cst_21 {dimension_numbers = #tpu.dot_dimension_numbers<[1], [0], [0], [1], [0, 0, 1, 1], [], []>} : vector<8x128xbf16>, vector<128x128xbf16>, vector<8x128xf32> -> vector<8x128xf32>
      %32 = arith.addf %30, %31 : vector<8x128xf32>
      %cst_22 = arith.constant dense<0.000000e+00> : vector<8x128xf32>
      %33 = tpu.matmul %18, %28, %cst_22 {dimension_numbers = #tpu.dot_dimension_numbers<[1], [0], [0], [1], [0, 0, 1, 1], [], []>} : vector<8x128xbf16>, vector<128x128xbf16>, vector<8x128xf32> -> vector<8x128xf32>
      %34 = arith.addf %32, %33 : vector<8x128xf32>
      %cst_23 = arith.constant dense<0.000000e+00> : vector<8x128xf32>
      %35 = tpu.matmul %20, %24, %cst_23 {dimension_numbers = #tpu.dot_dimension_numbers<[1], [0], [0], [1], [0, 0, 1, 1], [], []>} : vector<8x128xbf16>, vector<128x128xbf16>, vector<8x128xf32> -> vector<8x128xf32>
      %36 = arith.addf %4, %35 : vector<8x128xf32>
      %cst_24 = arith.constant dense<0.000000e+00> : vector<8x128xf32>
      %37 = tpu.matmul %18, %26, %cst_24 {dimension_numbers = #tpu.dot_dimension_numbers<[1], [0], [0], [1], [0, 0, 1, 1], [], []>} : vector<8x128xbf16>, vector<128x128xbf16>, vector<8x128xf32> -> vector<8x128xf32>
      %38 = arith.addf %36, %37 : vector<8x128xf32>
      %cst_25 = arith.constant dense<0.000000e+00> : vector<8x128xf32>
      %39 = tpu.matmul %22, %28, %cst_25 {dimension_numbers = #tpu.dot_dimension_numbers<[1], [0], [0], [1], [0, 0, 1, 1], [], []>} : vector<8x128xbf16>, vector<128x128xbf16>, vector<8x128xf32> -> vector<8x128xf32>
      %40 = arith.addf %38, %39 : vector<8x128xf32>
      %c1_i32_26 = arith.constant 1 : i32
      %41 = arith.addi %2, %c1_i32_26 : i32
      %c0_27 = arith.constant 0 : index
      %c0_28 = arith.constant 0 : index
      %42 = arith.index_cast %41 : i32 to index
      %c0_29 = arith.constant 0 : index
      %c0_30 = arith.constant 0 : index
      %43 = vector.load %arg1[%c0_27, %c0_28, %42, %c0_29, %c0_30] : memref<1x2x16x9x128xbf16, #tpu.memory_space<vmem>>, vector<1x1x1x9x128xbf16>
      %44 = vector.shape_cast %43 : vector<1x1x1x9x128xbf16> to vector<9x128xbf16>
      %45 = arith.extf %44 : vector<9x128xbf16> to vector<9x128xf32>
      %c1_i32_31 = arith.constant 1 : i32
      %46 = arith.addi %2, %c1_i32_31 : i32
      %c0_32 = arith.constant 0 : index
      %c1_33 = arith.constant 1 : index
      %47 = arith.index_cast %46 : i32 to index
      %c0_34 = arith.constant 0 : index
      %c0_35 = arith.constant 0 : index
      %48 = vector.load %arg1[%c0_32, %c1_33, %47, %c0_34, %c0_35] : memref<1x2x16x9x128xbf16, #tpu.memory_space<vmem>>, vector<1x1x1x9x128xbf16>
      %49 = vector.shape_cast %48 : vector<1x1x1x9x128xbf16> to vector<9x128xbf16>
      %50 = arith.extf %49 : vector<9x128xbf16> to vector<9x128xf32>
      %51 = vector.extract_strided_slice %45 {offsets = [0, 0], sizes = [8, 128], strides = [1, 1]} : vector<9x128xf32> to vector<8x128xf32>
      %52 = arith.truncf %51 : vector<8x128xf32> to vector<8x128xbf16>
      %53 = vector.extract_strided_slice %45 {offsets = [1, 0], sizes = [8, 128], strides = [1, 1]} : vector<9x128xf32> to vector<8x128xf32>
      %54 = arith.truncf %53 : vector<8x128xf32> to vector<8x128xbf16>
      %55 = vector.extract_strided_slice %50 {offsets = [0, 0], sizes = [8, 128], strides = [1, 1]} : vector<9x128xf32> to vector<8x128xf32>
      %56 = arith.truncf %55 : vector<8x128xf32> to vector<8x128xbf16>
      %57 = vector.extract_strided_slice %50 {offsets = [1, 0], sizes = [8, 128], strides = [1, 1]} : vector<9x128xf32> to vector<8x128xf32>
      %58 = arith.truncf %57 : vector<8x128xf32> to vector<8x128xbf16>
      %c3 = arith.constant 3 : index
      %c0_36 = arith.constant 0 : index
      %c0_37 = arith.constant 0 : index
      %59 = vector.load %arg2[%c3, %c0_36, %c0_37] : memref<9x128x128xbf16, #tpu.memory_space<vmem>>, vector<1x128x128xbf16>
      %60 = vector.shape_cast %59 : vector<1x128x128xbf16> to vector<128x128xbf16>
      %c4 = arith.constant 4 : index
      %c0_38 = arith.constant 0 : index
      %c0_39 = arith.constant 0 : index
      %61 = vector.load %arg2[%c4, %c0_38, %c0_39] : memref<9x128x128xbf16, #tpu.memory_space<vmem>>, vector<1x128x128xbf16>
      %62 = vector.shape_cast %61 : vector<1x128x128xbf16> to vector<128x128xbf16>
      %c5 = arith.constant 5 : index
      %c0_40 = arith.constant 0 : index
      %c0_41 = arith.constant 0 : index
      %63 = vector.load %arg2[%c5, %c0_40, %c0_41] : memref<9x128x128xbf16, #tpu.memory_space<vmem>>, vector<1x128x128xbf16>
      %64 = vector.shape_cast %63 : vector<1x128x128xbf16> to vector<128x128xbf16>
      %cst_42 = arith.constant dense<0.000000e+00> : vector<8x128xf32>
      %65 = tpu.matmul %52, %60, %cst_42 {dimension_numbers = #tpu.dot_dimension_numbers<[1], [0], [0], [1], [0, 0, 1, 1], [], []>} : vector<8x128xbf16>, vector<128x128xbf16>, vector<8x128xf32> -> vector<8x128xf32>
      %66 = arith.addf %34, %65 : vector<8x128xf32>
      %cst_43 = arith.constant dense<0.000000e+00> : vector<8x128xf32>
      %67 = tpu.matmul %56, %62, %cst_43 {dimension_numbers = #tpu.dot_dimension_numbers<[1], [0], [0], [1], [0, 0, 1, 1], [], []>} : vector<8x128xbf16>, vector<128x128xbf16>, vector<8x128xf32> -> vector<8x128xf32>
      %68 = arith.addf %66, %67 : vector<8x128xf32>
      %cst_44 = arith.constant dense<0.000000e+00> : vector<8x128xf32>
      %69 = tpu.matmul %54, %64, %cst_44 {dimension_numbers = #tpu.dot_dimension_numbers<[1], [0], [0], [1], [0, 0, 1, 1], [], []>} : vector<8x128xbf16>, vector<128x128xbf16>, vector<8x128xf32> -> vector<8x128xf32>
      %70 = arith.addf %68, %69 : vector<8x128xf32>
      %cst_45 = arith.constant dense<0.000000e+00> : vector<8x128xf32>
      %71 = tpu.matmul %56, %60, %cst_45 {dimension_numbers = #tpu.dot_dimension_numbers<[1], [0], [0], [1], [0, 0, 1, 1], [], []>} : vector<8x128xbf16>, vector<128x128xbf16>, vector<8x128xf32> -> vector<8x128xf32>
      %72 = arith.addf %40, %71 : vector<8x128xf32>
      %cst_46 = arith.constant dense<0.000000e+00> : vector<8x128xf32>
      %73 = tpu.matmul %54, %62, %cst_46 {dimension_numbers = #tpu.dot_dimension_numbers<[1], [0], [0], [1], [0, 0, 1, 1], [], []>} : vector<8x128xbf16>, vector<128x128xbf16>, vector<8x128xf32> -> vector<8x128xf32>
      %74 = arith.addf %72, %73 : vector<8x128xf32>
      %cst_47 = arith.constant dense<0.000000e+00> : vector<8x128xf32>
      %75 = tpu.matmul %58, %64, %cst_47 {dimension_numbers = #tpu.dot_dimension_numbers<[1], [0], [0], [1], [0, 0, 1, 1], [], []>} : vector<8x128xbf16>, vector<128x128xbf16>, vector<8x128xf32> -> vector<8x128xf32>
      %76 = arith.addf %74, %75 : vector<8x128xf32>
      %c2_i32_48 = arith.constant 2 : i32
      %77 = arith.addi %2, %c2_i32_48 : i32
      %c0_49 = arith.constant 0 : index
      %c0_50 = arith.constant 0 : index
      %78 = arith.index_cast %77 : i32 to index
      %c0_51 = arith.constant 0 : index
      %c0_52 = arith.constant 0 : index
      %79 = vector.load %arg1[%c0_49, %c0_50, %78, %c0_51, %c0_52] : memref<1x2x16x9x128xbf16, #tpu.memory_space<vmem>>, vector<1x1x1x9x128xbf16>
      %80 = vector.shape_cast %79 : vector<1x1x1x9x128xbf16> to vector<9x128xbf16>
      %81 = arith.extf %80 : vector<9x128xbf16> to vector<9x128xf32>
      %c2_i32_53 = arith.constant 2 : i32
      %82 = arith.addi %2, %c2_i32_53 : i32
      %c0_54 = arith.constant 0 : index
      %c1_55 = arith.constant 1 : index
      %83 = arith.index_cast %82 : i32 to index
      %c0_56 = arith.constant 0 : index
      %c0_57 = arith.constant 0 : index
      %84 = vector.load %arg1[%c0_54, %c1_55, %83, %c0_56, %c0_57] : memref<1x2x16x9x128xbf16, #tpu.memory_space<vmem>>, vector<1x1x1x9x128xbf16>
      %85 = vector.shape_cast %84 : vector<1x1x1x9x128xbf16> to vector<9x128xbf16>
      %86 = arith.extf %85 : vector<9x128xbf16> to vector<9x128xf32>
      %87 = vector.extract_strided_slice %81 {offsets = [0, 0], sizes = [8, 128], strides = [1, 1]} : vector<9x128xf32> to vector<8x128xf32>
      %88 = arith.truncf %87 : vector<8x128xf32> to vector<8x128xbf16>
      %89 = vector.extract_strided_slice %81 {offsets = [1, 0], sizes = [8, 128], strides = [1, 1]} : vector<9x128xf32> to vector<8x128xf32>
      %90 = arith.truncf %89 : vector<8x128xf32> to vector<8x128xbf16>
      %91 = vector.extract_strided_slice %86 {offsets = [0, 0], sizes = [8, 128], strides = [1, 1]} : vector<9x128xf32> to vector<8x128xf32>
      %92 = arith.truncf %91 : vector<8x128xf32> to vector<8x128xbf16>
      %93 = vector.extract_strided_slice %86 {offsets = [1, 0], sizes = [8, 128], strides = [1, 1]} : vector<9x128xf32> to vector<8x128xf32>
      %94 = arith.truncf %93 : vector<8x128xf32> to vector<8x128xbf16>
      %c6 = arith.constant 6 : index
      %c0_58 = arith.constant 0 : index
      %c0_59 = arith.constant 0 : index
      %95 = vector.load %arg2[%c6, %c0_58, %c0_59] : memref<9x128x128xbf16, #tpu.memory_space<vmem>>, vector<1x128x128xbf16>
      %96 = vector.shape_cast %95 : vector<1x128x128xbf16> to vector<128x128xbf16>
      %c7 = arith.constant 7 : index
      %c0_60 = arith.constant 0 : index
      %c0_61 = arith.constant 0 : index
      %97 = vector.load %arg2[%c7, %c0_60, %c0_61] : memref<9x128x128xbf16, #tpu.memory_space<vmem>>, vector<1x128x128xbf16>
      %98 = vector.shape_cast %97 : vector<1x128x128xbf16> to vector<128x128xbf16>
      %c8 = arith.constant 8 : index
      %c0_62 = arith.constant 0 : index
      %c0_63 = arith.constant 0 : index
      %99 = vector.load %arg2[%c8, %c0_62, %c0_63] : memref<9x128x128xbf16, #tpu.memory_space<vmem>>, vector<1x128x128xbf16>
      %100 = vector.shape_cast %99 : vector<1x128x128xbf16> to vector<128x128xbf16>
      %cst_64 = arith.constant dense<0.000000e+00> : vector<8x128xf32>
      %101 = tpu.matmul %88, %96, %cst_64 {dimension_numbers = #tpu.dot_dimension_numbers<[1], [0], [0], [1], [0, 0, 1, 1], [], []>} : vector<8x128xbf16>, vector<128x128xbf16>, vector<8x128xf32> -> vector<8x128xf32>
      %102 = arith.addf %70, %101 : vector<8x128xf32>
      %cst_65 = arith.constant dense<0.000000e+00> : vector<8x128xf32>
      %103 = tpu.matmul %92, %98, %cst_65 {dimension_numbers = #tpu.dot_dimension_numbers<[1], [0], [0], [1], [0, 0, 1, 1], [], []>} : vector<8x128xbf16>, vector<128x128xbf16>, vector<8x128xf32> -> vector<8x128xf32>
      %104 = arith.addf %102, %103 : vector<8x128xf32>
      %cst_66 = arith.constant dense<0.000000e+00> : vector<8x128xf32>
      %105 = tpu.matmul %90, %100, %cst_66 {dimension_numbers = #tpu.dot_dimension_numbers<[1], [0], [0], [1], [0, 0, 1, 1], [], []>} : vector<8x128xbf16>, vector<128x128xbf16>, vector<8x128xf32> -> vector<8x128xf32>
      %106 = arith.addf %104, %105 : vector<8x128xf32>
      %cst_67 = arith.constant dense<0.000000e+00> : vector<8x128xf32>
      %107 = tpu.matmul %92, %96, %cst_67 {dimension_numbers = #tpu.dot_dimension_numbers<[1], [0], [0], [1], [0, 0, 1, 1], [], []>} : vector<8x128xbf16>, vector<128x128xbf16>, vector<8x128xf32> -> vector<8x128xf32>
      %108 = arith.addf %76, %107 : vector<8x128xf32>
      %cst_68 = arith.constant dense<0.000000e+00> : vector<8x128xf32>
      %109 = tpu.matmul %90, %98, %cst_68 {dimension_numbers = #tpu.dot_dimension_numbers<[1], [0], [0], [1], [0, 0, 1, 1], [], []>} : vector<8x128xbf16>, vector<128x128xbf16>, vector<8x128xf32> -> vector<8x128xf32>
      %110 = arith.addf %108, %109 : vector<8x128xf32>
      %cst_69 = arith.constant dense<0.000000e+00> : vector<8x128xf32>
      %111 = tpu.matmul %94, %100, %cst_69 {dimension_numbers = #tpu.dot_dimension_numbers<[1], [0], [0], [1], [0, 0, 1, 1], [], []>} : vector<8x128xbf16>, vector<128x128xbf16>, vector<8x128xf32> -> vector<8x128xf32>
      %112 = arith.addf %110, %111 : vector<8x128xf32>
      %113 = arith.maximumf %106, %112 : vector<8x128xf32>
      %114 = vector.broadcast %0 : vector<1x128xf32> to vector<8x128xf32>
      %115 = arith.addf %113, %114 : vector<8x128xf32>
      %cst_70 = arith.constant 0.000000e+00 : f32
      %116 = vector.broadcast %cst_70 : f32 to vector<8x128xf32>
      %117 = arith.maximumf %115, %116 : vector<8x128xf32>
      %c2_i32_71 = arith.constant 2 : i32
      %118 = arith.muli %c2_i32_71, %arg5 : i32
      %c1_i32_72 = arith.constant 1 : i32
      %119 = arith.addi %118, %c1_i32_72 : i32
      %cst_73 = arith.constant 0.000000e+00 : f32
      %120 = vector.broadcast %cst_73 : f32 to vector<8x128xf32>
      %cst_74 = arith.constant 0.000000e+00 : f32
      %121 = vector.broadcast %cst_74 : f32 to vector<8x128xf32>
      %c0_i32_75 = arith.constant 0 : i32
      %122 = arith.addi %119, %c0_i32_75 : i32
      %c0_76 = arith.constant 0 : index
      %c0_77 = arith.constant 0 : index
      %123 = arith.index_cast %122 : i32 to index
      %c0_78 = arith.constant 0 : index
      %c0_79 = arith.constant 0 : index
      %124 = vector.load %arg1[%c0_76, %c0_77, %123, %c0_78, %c0_79] : memref<1x2x16x9x128xbf16, #tpu.memory_space<vmem>>, vector<1x1x1x9x128xbf16>
      %125 = vector.shape_cast %124 : vector<1x1x1x9x128xbf16> to vector<9x128xbf16>
      %126 = arith.extf %125 : vector<9x128xbf16> to vector<9x128xf32>
      %c0_i32_80 = arith.constant 0 : i32
      %127 = arith.addi %119, %c0_i32_80 : i32
      %c0_81 = arith.constant 0 : index
      %c1_82 = arith.constant 1 : index
      %128 = arith.index_cast %127 : i32 to index
      %c0_83 = arith.constant 0 : index
      %c0_84 = arith.constant 0 : index
      %129 = vector.load %arg1[%c0_81, %c1_82, %128, %c0_83, %c0_84] : memref<1x2x16x9x128xbf16, #tpu.memory_space<vmem>>, vector<1x1x1x9x128xbf16>
      %130 = vector.shape_cast %129 : vector<1x1x1x9x128xbf16> to vector<9x128xbf16>
      %131 = arith.extf %130 : vector<9x128xbf16> to vector<9x128xf32>
      %132 = vector.extract_strided_slice %126 {offsets = [0, 0], sizes = [8, 128], strides = [1, 1]} : vector<9x128xf32> to vector<8x128xf32>
      %133 = arith.truncf %132 : vector<8x128xf32> to vector<8x128xbf16>
      %134 = vector.extract_strided_slice %126 {offsets = [1, 0], sizes = [8, 128], strides = [1, 1]} : vector<9x128xf32> to vector<8x128xf32>
      %135 = arith.truncf %134 : vector<8x128xf32> to vector<8x128xbf16>
      %136 = vector.extract_strided_slice %131 {offsets = [0, 0], sizes = [8, 128], strides = [1, 1]} : vector<9x128xf32> to vector<8x128xf32>
      %137 = arith.truncf %136 : vector<8x128xf32> to vector<8x128xbf16>
      %138 = vector.extract_strided_slice %131 {offsets = [1, 0], sizes = [8, 128], strides = [1, 1]} : vector<9x128xf32> to vector<8x128xf32>
      %139 = arith.truncf %138 : vector<8x128xf32> to vector<8x128xbf16>
      %c0_85 = arith.constant 0 : index
      %c0_86 = arith.constant 0 : index
      %c0_87 = arith.constant 0 : index
      %140 = vector.load %arg2[%c0_85, %c0_86, %c0_87] : memref<9x128x128xbf16, #tpu.memory_space<vmem>>, vector<1x128x128xbf16>
      %141 = vector.shape_cast %140 : vector<1x128x128xbf16> to vector<128x128xbf16>
      %c1_88 = arith.constant 1 : index
      %c0_89 = arith.constant 0 : index
      %c0_90 = arith.constant 0 : index
      %142 = vector.load %arg2[%c1_88, %c0_89, %c0_90] : memref<9x128x128xbf16, #tpu.memory_space<vmem>>, vector<1x128x128xbf16>
      %143 = vector.shape_cast %142 : vector<1x128x128xbf16> to vector<128x128xbf16>
      %c2_91 = arith.constant 2 : index
      %c0_92 = arith.constant 0 : index
      %c0_93 = arith.constant 0 : index
      %144 = vector.load %arg2[%c2_91, %c0_92, %c0_93] : memref<9x128x128xbf16, #tpu.memory_space<vmem>>, vector<1x128x128xbf16>
      %145 = vector.shape_cast %144 : vector<1x128x128xbf16> to vector<128x128xbf16>
      %cst_94 = arith.constant dense<0.000000e+00> : vector<8x128xf32>
      %146 = tpu.matmul %133, %141, %cst_94 {dimension_numbers = #tpu.dot_dimension_numbers<[1], [0], [0], [1], [0, 0, 1, 1], [], []>} : vector<8x128xbf16>, vector<128x128xbf16>, vector<8x128xf32> -> vector<8x128xf32>
      %147 = arith.addf %120, %146 : vector<8x128xf32>
      %cst_95 = arith.constant dense<0.000000e+00> : vector<8x128xf32>
      %148 = tpu.matmul %137, %143, %cst_95 {dimension_numbers = #tpu.dot_dimension_numbers<[1], [0], [0], [1], [0, 0, 1, 1], [], []>} : vector<8x128xbf16>, vector<128x128xbf16>, vector<8x128xf32> -> vector<8x128xf32>
      %149 = arith.addf %147, %148 : vector<8x128xf32>
      %cst_96 = arith.constant dense<0.000000e+00> : vector<8x128xf32>
      %150 = tpu.matmul %135, %145, %cst_96 {dimension_numbers = #tpu.dot_dimension_numbers<[1], [0], [0], [1], [0, 0, 1, 1], [], []>} : vector<8x128xbf16>, vector<128x128xbf16>, vector<8x128xf32> -> vector<8x128xf32>
      %151 = arith.addf %149, %150 : vector<8x128xf32>
      %cst_97 = arith.constant dense<0.000000e+00> : vector<8x128xf32>
      %152 = tpu.matmul %137, %141, %cst_97 {dimension_numbers = #tpu.dot_dimension_numbers<[1], [0], [0], [1], [0, 0, 1, 1], [], []>} : vector<8x128xbf16>, vector<128x128xbf16>, vector<8x128xf32> -> vector<8x128xf32>
      %153 = arith.addf %121, %152 : vector<8x128xf32>
      %cst_98 = arith.constant dense<0.000000e+00> : vector<8x128xf32>
      %154 = tpu.matmul %135, %143, %cst_98 {dimension_numbers = #tpu.dot_dimension_numbers<[1], [0], [0], [1], [0, 0, 1, 1], [], []>} : vector<8x128xbf16>, vector<128x128xbf16>, vector<8x128xf32> -> vector<8x128xf32>
      %155 = arith.addf %153, %154 : vector<8x128xf32>
      %cst_99 = arith.constant dense<0.000000e+00> : vector<8x128xf32>
      %156 = tpu.matmul %139, %145, %cst_99 {dimension_numbers = #tpu.dot_dimension_numbers<[1], [0], [0], [1], [0, 0, 1, 1], [], []>} : vector<8x128xbf16>, vector<128x128xbf16>, vector<8x128xf32> -> vector<8x128xf32>
      %157 = arith.addf %155, %156 : vector<8x128xf32>
      %c1_i32_100 = arith.constant 1 : i32
      %158 = arith.addi %119, %c1_i32_100 : i32
      %c0_101 = arith.constant 0 : index
      %c0_102 = arith.constant 0 : index
      %159 = arith.index_cast %158 : i32 to index
      %c0_103 = arith.constant 0 : index
      %c0_104 = arith.constant 0 : index
      %160 = vector.load %arg1[%c0_101, %c0_102, %159, %c0_103, %c0_104] : memref<1x2x16x9x128xbf16, #tpu.memory_space<vmem>>, vector<1x1x1x9x128xbf16>
      %161 = vector.shape_cast %160 : vector<1x1x1x9x128xbf16> to vector<9x128xbf16>
      %162 = arith.extf %161 : vector<9x128xbf16> to vector<9x128xf32>
      %c1_i32_105 = arith.constant 1 : i32
      %163 = arith.addi %119, %c1_i32_105 : i32
      %c0_106 = arith.constant 0 : index
      %c1_107 = arith.constant 1 : index
      %164 = arith.index_cast %163 : i32 to index
      %c0_108 = arith.constant 0 : index
      %c0_109 = arith.constant 0 : index
      %165 = vector.load %arg1[%c0_106, %c1_107, %164, %c0_108, %c0_109] : memref<1x2x16x9x128xbf16, #tpu.memory_space<vmem>>, vector<1x1x1x9x128xbf16>
      %166 = vector.shape_cast %165 : vector<1x1x1x9x128xbf16> to vector<9x128xbf16>
      %167 = arith.extf %166 : vector<9x128xbf16> to vector<9x128xf32>
      %168 = vector.extract_strided_slice %162 {offsets = [0, 0], sizes = [8, 128], strides = [1, 1]} : vector<9x128xf32> to vector<8x128xf32>
      %169 = arith.truncf %168 : vector<8x128xf32> to vector<8x128xbf16>
      %170 = vector.extract_strided_slice %162 {offsets = [1, 0], sizes = [8, 128], strides = [1, 1]} : vector<9x128xf32> to vector<8x128xf32>
      %171 = arith.truncf %170 : vector<8x128xf32> to vector<8x128xbf16>
      %172 = vector.extract_strided_slice %167 {offsets = [0, 0], sizes = [8, 128], strides = [1, 1]} : vector<9x128xf32> to vector<8x128xf32>
      %173 = arith.truncf %172 : vector<8x128xf32> to vector<8x128xbf16>
      %174 = vector.extract_strided_slice %167 {offsets = [1, 0], sizes = [8, 128], strides = [1, 1]} : vector<9x128xf32> to vector<8x128xf32>
      %175 = arith.truncf %174 : vector<8x128xf32> to vector<8x128xbf16>
      %c3_110 = arith.constant 3 : index
      %c0_111 = arith.constant 0 : index
      %c0_112 = arith.constant 0 : index
      %176 = vector.load %arg2[%c3_110, %c0_111, %c0_112] : memref<9x128x128xbf16, #tpu.memory_space<vmem>>, vector<1x128x128xbf16>
      %177 = vector.shape_cast %176 : vector<1x128x128xbf16> to vector<128x128xbf16>
      %c4_113 = arith.constant 4 : index
      %c0_114 = arith.constant 0 : index
      %c0_115 = arith.constant 0 : index
      %178 = vector.load %arg2[%c4_113, %c0_114, %c0_115] : memref<9x128x128xbf16, #tpu.memory_space<vmem>>, vector<1x128x128xbf16>
      %179 = vector.shape_cast %178 : vector<1x128x128xbf16> to vector<128x128xbf16>
      %c5_116 = arith.constant 5 : index
      %c0_117 = arith.constant 0 : index
      %c0_118 = arith.constant 0 : index
      %180 = vector.load %arg2[%c5_116, %c0_117, %c0_118] : memref<9x128x128xbf16, #tpu.memory_space<vmem>>, vector<1x128x128xbf16>
      %181 = vector.shape_cast %180 : vector<1x128x128xbf16> to vector<128x128xbf16>
      %cst_119 = arith.constant dense<0.000000e+00> : vector<8x128xf32>
      %182 = tpu.matmul %169, %177, %cst_119 {dimension_numbers = #tpu.dot_dimension_numbers<[1], [0], [0], [1], [0, 0, 1, 1], [], []>} : vector<8x128xbf16>, vector<128x128xbf16>, vector<8x128xf32> -> vector<8x128xf32>
      %183 = arith.addf %151, %182 : vector<8x128xf32>
      %cst_120 = arith.constant dense<0.000000e+00> : vector<8x128xf32>
      %184 = tpu.matmul %173, %179, %cst_120 {dimension_numbers = #tpu.dot_dimension_numbers<[1], [0], [0], [1], [0, 0, 1, 1], [], []>} : vector<8x128xbf16>, vector<128x128xbf16>, vector<8x128xf32> -> vector<8x128xf32>
      %185 = arith.addf %183, %184 : vector<8x128xf32>
      %cst_121 = arith.constant dense<0.000000e+00> : vector<8x128xf32>
      %186 = tpu.matmul %171, %181, %cst_121 {dimension_numbers = #tpu.dot_dimension_numbers<[1], [0], [0], [1], [0, 0, 1, 1], [], []>} : vector<8x128xbf16>, vector<128x128xbf16>, vector<8x128xf32> -> vector<8x128xf32>
      %187 = arith.addf %185, %186 : vector<8x128xf32>
      %cst_122 = arith.constant dense<0.000000e+00> : vector<8x128xf32>
      %188 = tpu.matmul %173, %177, %cst_122 {dimension_numbers = #tpu.dot_dimension_numbers<[1], [0], [0], [1], [0, 0, 1, 1], [], []>} : vector<8x128xbf16>, vector<128x128xbf16>, vector<8x128xf32> -> vector<8x128xf32>
      %189 = arith.addf %157, %188 : vector<8x128xf32>
      %cst_123 = arith.constant dense<0.000000e+00> : vector<8x128xf32>
      %190 = tpu.matmul %171, %179, %cst_123 {dimension_numbers = #tpu.dot_dimension_numbers<[1], [0], [0], [1], [0, 0, 1, 1], [], []>} : vector<8x128xbf16>, vector<128x128xbf16>, vector<8x128xf32> -> vector<8x128xf32>
      %191 = arith.addf %189, %190 : vector<8x128xf32>
      %cst_124 = arith.constant dense<0.000000e+00> : vector<8x128xf32>
      %192 = tpu.matmul %175, %181, %cst_124 {dimension_numbers = #tpu.dot_dimension_numbers<[1], [0], [0], [1], [0, 0, 1, 1], [], []>} : vector<8x128xbf16>, vector<128x128xbf16>, vector<8x128xf32> -> vector<8x128xf32>
      %193 = arith.addf %191, %192 : vector<8x128xf32>
      %c2_i32_125 = arith.constant 2 : i32
      %194 = arith.addi %119, %c2_i32_125 : i32
      %c0_126 = arith.constant 0 : index
      %c0_127 = arith.constant 0 : index
      %195 = arith.index_cast %194 : i32 to index
      %c0_128 = arith.constant 0 : index
      %c0_129 = arith.constant 0 : index
      %196 = vector.load %arg1[%c0_126, %c0_127, %195, %c0_128, %c0_129] : memref<1x2x16x9x128xbf16, #tpu.memory_space<vmem>>, vector<1x1x1x9x128xbf16>
      %197 = vector.shape_cast %196 : vector<1x1x1x9x128xbf16> to vector<9x128xbf16>
      %198 = arith.extf %197 : vector<9x128xbf16> to vector<9x128xf32>
      %c2_i32_130 = arith.constant 2 : i32
      %199 = arith.addi %119, %c2_i32_130 : i32
      %c0_131 = arith.constant 0 : index
      %c1_132 = arith.constant 1 : index
      %200 = arith.index_cast %199 : i32 to index
      %c0_133 = arith.constant 0 : index
      %c0_134 = arith.constant 0 : index
      %201 = vector.load %arg1[%c0_131, %c1_132, %200, %c0_133, %c0_134] : memref<1x2x16x9x128xbf16, #tpu.memory_space<vmem>>, vector<1x1x1x9x128xbf16>
      %202 = vector.shape_cast %201 : vector<1x1x1x9x128xbf16> to vector<9x128xbf16>
      %203 = arith.extf %202 : vector<9x128xbf16> to vector<9x128xf32>
      %204 = vector.extract_strided_slice %198 {offsets = [0, 0], sizes = [8, 128], strides = [1, 1]} : vector<9x128xf32> to vector<8x128xf32>
      %205 = arith.truncf %204 : vector<8x128xf32> to vector<8x128xbf16>
      %206 = vector.extract_strided_slice %198 {offsets = [1, 0], sizes = [8, 128], strides = [1, 1]} : vector<9x128xf32> to vector<8x128xf32>
      %207 = arith.truncf %206 : vector<8x128xf32> to vector<8x128xbf16>
      %208 = vector.extract_strided_slice %203 {offsets = [0, 0], sizes = [8, 128], strides = [1, 1]} : vector<9x128xf32> to vector<8x128xf32>
      %209 = arith.truncf %208 : vector<8x128xf32> to vector<8x128xbf16>
      %210 = vector.extract_strided_slice %203 {offsets = [1, 0], sizes = [8, 128], strides = [1, 1]} : vector<9x128xf32> to vector<8x128xf32>
      %211 = arith.truncf %210 : vector<8x128xf32> to vector<8x128xbf16>
      %c6_135 = arith.constant 6 : index
      %c0_136 = arith.constant 0 : index
      %c0_137 = arith.constant 0 : index
      %212 = vector.load %arg2[%c6_135, %c0_136, %c0_137] : memref<9x128x128xbf16, #tpu.memory_space<vmem>>, vector<1x128x128xbf16>
      %213 = vector.shape_cast %212 : vector<1x128x128xbf16> to vector<128x128xbf16>
      %c7_138 = arith.constant 7 : index
      %c0_139 = arith.constant 0 : index
      %c0_140 = arith.constant 0 : index
      %214 = vector.load %arg2[%c7_138, %c0_139, %c0_140] : memref<9x128x128xbf16, #tpu.memory_space<vmem>>, vector<1x128x128xbf16>
      %215 = vector.shape_cast %214 : vector<1x128x128xbf16> to vector<128x128xbf16>
      %c8_141 = arith.constant 8 : index
      %c0_142 = arith.constant 0 : index
      %c0_143 = arith.constant 0 : index
      %216 = vector.load %arg2[%c8_141, %c0_142, %c0_143] : memref<9x128x128xbf16, #tpu.memory_space<vmem>>, vector<1x128x128xbf16>
      %217 = vector.shape_cast %216 : vector<1x128x128xbf16> to vector<128x128xbf16>
      %cst_144 = arith.constant dense<0.000000e+00> : vector<8x128xf32>
      %218 = tpu.matmul %205, %213, %cst_144 {dimension_numbers = #tpu.dot_dimension_numbers<[1], [0], [0], [1], [0, 0, 1, 1], [], []>} : vector<8x128xbf16>, vector<128x128xbf16>, vector<8x128xf32> -> vector<8x128xf32>
      %219 = arith.addf %187, %218 : vector<8x128xf32>
      %cst_145 = arith.constant dense<0.000000e+00> : vector<8x128xf32>
      %220 = tpu.matmul %209, %215, %cst_145 {dimension_numbers = #tpu.dot_dimension_numbers<[1], [0], [0], [1], [0, 0, 1, 1], [], []>} : vector<8x128xbf16>, vector<128x128xbf16>, vector<8x128xf32> -> vector<8x128xf32>
      %221 = arith.addf %219, %220 : vector<8x128xf32>
      %cst_146 = arith.constant dense<0.000000e+00> : vector<8x128xf32>
      %222 = tpu.matmul %207, %217, %cst_146 {dimension_numbers = #tpu.dot_dimension_numbers<[1], [0], [0], [1], [0, 0, 1, 1], [], []>} : vector<8x128xbf16>, vector<128x128xbf16>, vector<8x128xf32> -> vector<8x128xf32>
      %223 = arith.addf %221, %222 : vector<8x128xf32>
      %cst_147 = arith.constant dense<0.000000e+00> : vector<8x128xf32>
      %224 = tpu.matmul %209, %213, %cst_147 {dimension_numbers = #tpu.dot_dimension_numbers<[1], [0], [0], [1], [0, 0, 1, 1], [], []>} : vector<8x128xbf16>, vector<128x128xbf16>, vector<8x128xf32> -> vector<8x128xf32>
      %225 = arith.addf %193, %224 : vector<8x128xf32>
      %cst_148 = arith.constant dense<0.000000e+00> : vector<8x128xf32>
      %226 = tpu.matmul %207, %215, %cst_148 {dimension_numbers = #tpu.dot_dimension_numbers<[1], [0], [0], [1], [0, 0, 1, 1], [], []>} : vector<8x128xbf16>, vector<128x128xbf16>, vector<8x128xf32> -> vector<8x128xf32>
      %227 = arith.addf %225, %226 : vector<8x128xf32>
      %cst_149 = arith.constant dense<0.000000e+00> : vector<8x128xf32>
      %228 = tpu.matmul %211, %217, %cst_149 {dimension_numbers = #tpu.dot_dimension_numbers<[1], [0], [0], [1], [0, 0, 1, 1], [], []>} : vector<8x128xbf16>, vector<128x128xbf16>, vector<8x128xf32> -> vector<8x128xf32>
      %229 = arith.addf %227, %228 : vector<8x128xf32>
      %230 = arith.maximumf %223, %229 : vector<8x128xf32>
      %231 = vector.broadcast %0 : vector<1x128xf32> to vector<8x128xf32>
      %232 = arith.addf %230, %231 : vector<8x128xf32>
      %cst_150 = arith.constant 0.000000e+00 : f32
      %233 = vector.broadcast %cst_150 : f32 to vector<8x128xf32>
      %234 = arith.maximumf %232, %233 : vector<8x128xf32>
      %235 = arith.maximumf %117, %234 : vector<8x128xf32>
      %236 = arith.truncf %235 : vector<8x128xf32> to vector<8x128xbf16>
      %c0_151 = arith.constant 0 : index
      %237 = arith.index_cast %arg5 : i32 to index
      %c0_152 = arith.constant 0 : index
      %c0_153 = arith.constant 0 : index
      %238 = vector.load %arg4[%c0_151, %237, %c0_152, %c0_153] : memref<1x7x8x128xbf16, #tpu.memory_space<vmem>>, vector<1x1x8x128xbf16>
      %239 = vector.shape_cast %238 : vector<1x1x8x128xbf16> to vector<8x128xbf16>
      %240 = vector.shape_cast %236 : vector<8x128xbf16> to vector<1x1x8x128xbf16>
      tpu.vector_store %arg4[%c0_151, %237, %c0_152, %c0_153], %240 {strides = array<i32>} : memref<1x7x8x128xbf16, #tpu.memory_space<vmem>>, vector<1x1x8x128xbf16>,
    }
    %c7_i32_1 = arith.constant 7 : i32
    return
  }
  func.func @transform_0(%arg0: i32) -> (i32, i32, i32, i32, i32) {
    %c0_i32 = arith.constant 0 : i32
    %c0_i32_0 = arith.constant 0 : i32
    %c0_i32_1 = arith.constant 0 : i32
    %c0_i32_2 = arith.constant 0 : i32
    %c0_i32_3 = arith.constant 0 : i32
    return %arg0, %c0_i32, %c0_i32_0, %c0_i32_1, %c0_i32_2 : i32, i32, i32, i32, i32
  }
  func.func @transform_1(%arg0: i32) -> (i32, i32, i32) {
    %c0_i32 = arith.constant 0 : i32
    %c0_i32_0 = arith.constant 0 : i32
    %c0_i32_1 = arith.constant 0 : i32
    %c0_i32_2 = arith.constant 0 : i32
    return %c0_i32, %c0_i32_0, %c0_i32_1 : i32, i32, i32
  }
  func.func @transform_2(%arg0: i32) -> (i32, i32) {
    %c0_i32 = arith.constant 0 : i32
    %c0_i32_0 = arith.constant 0 : i32
    %c0_i32_1 = arith.constant 0 : i32
    return %c0_i32, %c0_i32_0 : i32, i32
  }
  func.func @transform_3(%arg0: i32) -> (i32, i32, i32, i32) {
    %c0_i32 = arith.constant 0 : i32
    %c0_i32_0 = arith.constant 0 : i32
    %c0_i32_1 = arith.constant 0 : i32
    %c0_i32_2 = arith.constant 0 : i32
    return %arg0, %c0_i32, %c0_i32_0, %c0_i32_1 : i32, i32, i32, i32
  }
}

module attributes {stable_mosaic.version = 11 : i64} {
  func.func @_fc_fused_kernel(%arg0: i32, %arg1: memref<2x7168xbf16, #tpu.memory_space<vmem>>, %arg2: memref<7168x128xbf16, #tpu.memory_space<vmem>>, %arg3: memref<1x128xf32, #tpu.memory_space<vmem>>, %arg4: memref<128x128xbf16, #tpu.memory_space<vmem>>, %arg5: memref<1x128xf32, #tpu.memory_space<vmem>>, %arg6: memref<2x128xf32, #tpu.memory_space<vmem>>) attributes {dimension_semantics = [#tpu.dimension_semantics<arbitrary>], iteration_bounds = array<i64: 1>, scalar_prefetch = 0 : i64, scratch_operands = 0 : i64, tpu.core_type = #tpu.core_type<tc>, window_params = [{pipeline_mode = #tpu.pipeline_mode<synchronous>, transform_indices = @transform_0, window_bounds = array<i64: 2, 7168>}, {pipeline_mode = #tpu.pipeline_mode<synchronous>, transform_indices = @transform_1, window_bounds = array<i64: 7168, 128>}, {pipeline_mode = #tpu.pipeline_mode<synchronous>, transform_indices = @transform_2, window_bounds = array<i64: 1, 128>}, {pipeline_mode = #tpu.pipeline_mode<synchronous>, transform_indices = @transform_3, window_bounds = array<i64: 128, 128>}, {pipeline_mode = #tpu.pipeline_mode<synchronous>, transform_indices = @transform_4, window_bounds = array<i64: 1, 128>}, {pipeline_mode = #tpu.pipeline_mode<synchronous>, transform_indices = @transform_5, window_bounds = array<i64: 2, 128>}]} {
    %c0 = arith.constant 0 : index
    %c0_0 = arith.constant 0 : index
    %0 = vector.load %arg1[%c0, %c0_0] : memref<2x7168xbf16, #tpu.memory_space<vmem>>, vector<2x7168xbf16>
    %c0_1 = arith.constant 0 : index
    %c0_2 = arith.constant 0 : index
    %1 = vector.load %arg2[%c0_1, %c0_2] : memref<7168x128xbf16, #tpu.memory_space<vmem>>, vector<7168x128xbf16>
    %cst = arith.constant dense<0.000000e+00> : vector<2x128xf32>
    %2 = tpu.matmul %0, %1, %cst {dimension_numbers = #tpu.dot_dimension_numbers<[1], [0], [0], [1], [0, 0, 1, 1], [], []>} : vector<2x7168xbf16>, vector<7168x128xbf16>, vector<2x128xf32> -> vector<2x128xf32>
    %c0_3 = arith.constant 0 : index
    %c0_4 = arith.constant 0 : index
    %3 = vector.load %arg3[%c0_3, %c0_4] : memref<1x128xf32, #tpu.memory_space<vmem>>, vector<1x128xf32>
    %4 = vector.broadcast %3 : vector<1x128xf32> to vector<2x128xf32>
    %5 = arith.addf %2, %4 : vector<2x128xf32>
    %cst_5 = arith.constant 0.000000e+00 : f32
    %6 = vector.broadcast %cst_5 : f32 to vector<2x128xf32>
    %7 = arith.maximumf %5, %6 : vector<2x128xf32>
    %8 = arith.truncf %7 : vector<2x128xf32> to vector<2x128xbf16>
    %c0_6 = arith.constant 0 : index
    %c0_7 = arith.constant 0 : index
    %9 = vector.load %arg4[%c0_6, %c0_7] : memref<128x128xbf16, #tpu.memory_space<vmem>>, vector<128x128xbf16>
    %cst_8 = arith.constant dense<0.000000e+00> : vector<2x128xf32>
    %10 = tpu.matmul %8, %9, %cst_8 {dimension_numbers = #tpu.dot_dimension_numbers<[1], [0], [0], [1], [0, 0, 1, 1], [], []>} : vector<2x128xbf16>, vector<128x128xbf16>, vector<2x128xf32> -> vector<2x128xf32>
    %c0_9 = arith.constant 0 : index
    %c0_10 = arith.constant 0 : index
    %11 = vector.load %arg5[%c0_9, %c0_10] : memref<1x128xf32, #tpu.memory_space<vmem>>, vector<1x128xf32>
    %12 = vector.broadcast %11 : vector<1x128xf32> to vector<2x128xf32>
    %13 = arith.addf %10, %12 : vector<2x128xf32>
    %c0_11 = arith.constant 0 : index
    %c0_12 = arith.constant 0 : index
    %14 = vector.load %arg6[%c0_11, %c0_12] : memref<2x128xf32, #tpu.memory_space<vmem>>, vector<2x128xf32>
    tpu.vector_store %arg6[%c0_11, %c0_12], %13 {strides = array<i32>} : memref<2x128xf32, #tpu.memory_space<vmem>>, vector<2x128xf32>,
    return
  }
  func.func @transform_0(%arg0: i32) -> (i32, i32) {
    %c0_i32 = arith.constant 0 : i32
    %c0_i32_0 = arith.constant 0 : i32
    %c0_i32_1 = arith.constant 0 : i32
    return %c0_i32, %c0_i32_0 : i32, i32
  }
  func.func @transform_1(%arg0: i32) -> (i32, i32) {
    %c0_i32 = arith.constant 0 : i32
    %c0_i32_0 = arith.constant 0 : i32
    %c0_i32_1 = arith.constant 0 : i32
    return %c0_i32, %c0_i32_0 : i32, i32
  }
  func.func @transform_2(%arg0: i32) -> (i32, i32) {
    %c0_i32 = arith.constant 0 : i32
    %c0_i32_0 = arith.constant 0 : i32
    %c0_i32_1 = arith.constant 0 : i32
    return %c0_i32, %c0_i32_0 : i32, i32
  }
  func.func @transform_3(%arg0: i32) -> (i32, i32) {
    %c0_i32 = arith.constant 0 : i32
    %c0_i32_0 = arith.constant 0 : i32
    %c0_i32_1 = arith.constant 0 : i32
    return %c0_i32, %c0_i32_0 : i32, i32
  }
  func.func @transform_4(%arg0: i32) -> (i32, i32) {
    %c0_i32 = arith.constant 0 : i32
    %c0_i32_0 = arith.constant 0 : i32
    %c0_i32_1 = arith.constant 0 : i32
    return %c0_i32, %c0_i32_0 : i32, i32
  }
  func.func @transform_5(%arg0: i32) -> (i32, i32) {
    %c0_i32 = arith.constant 0 : i32
    %c0_i32_0 = arith.constant 0 : i32
    %c0_i32_1 = arith.constant 0 : i32
    return %c0_i32, %c0_i32_0 : i32, i32
  }
}

</mosaic_0001>

<llo_original>
// kernel: inner_cnn_forward.3
$region0: #{inner_cnn_forward.3}
  #allocation0 [shape = 'u32[]', space=smem, size = 0x4, offset = 0x4, fixed_abs, tag = 'smem constant byte address 0x4 - core index']
  #allocation1 [shape = 'u32[144,128]{1,0:T(1,128)}', space=vmem, size = 0x12000, scoped, tag = 'internal scratch']
  %s0 = inlined_call_operand.vmem [shape: f32[2,2,30,16,1], index: 0, kind: input, shape index: {}]
  %s1 = inlined_call_operand.hbm [shape: f32[9,128], index: 1, kind: input, shape index: {}]
  %s2 = inlined_call_operand.hbm [shape: f32[1,128], index: 2, kind: input, shape index: {}]
  %s3 = inlined_call_operand.vmem [shape: bf16[2,14,14,128], index: 3, kind: output, shape index: {}]
  %s4 = sld [smem:[#allocation0]]
  $region60: #{inner_cnn_forward.3} parent=0
    _
  %s6 = ssub.s32 1, %s4
  %s7 = scalar_select 0, %s6, %s4
  $region1: #{inner_cnn_forward.3} parent=0
    #allocation2 [shape = 'u8[8192]{0}', space=vmem, size = 0x2000, scoped, tag = 'input window, operand 1, single buffered']
    #allocation3 [shape = 's32[2]{0}', space=sflag, size = 0x8, scoped, tag = 'scoped memory for inner_cnn_forward.3']
    #allocation4 [shape = 'u8[512]{0}', space=vmem, size = 0x400, scoped, tag = 'input window, operand 2, single buffered']
    #allocation5 [shape = 's32[1]{0}', space=sflag, size = 0x4, scoped, tag = 'scoped memory for inner_cnn_forward.3']
    %8 = vsyncpa [#allocation3], 0
    %9 = vsyncpa [#allocation5], 0
    loop: start=0, step=1, limit=4
    $region2: #{inner_cnn_forward.3} parent=1 // loop_pre_header
      _
    $region3: #{inner_cnn_forward.3} parent=1 // loop_header
      %s11 = sphi 0, %s15
      %p12 = scmp.ge.s32.totalorder %s11, 4
      %s21 = sphi 0, %s23
      %s24 = sphi 0, %s21
      %s25 = sphi 0, %s24
      %s41 = sphi 0, %s25
      %s45 = sphi 0, %s45
      %s47 = sphi 0, %s45
      %s48 = sphi 0, %s47
      %s62 = sphi 0, %s48
      %s66 = sphi 0, %s66
      %s68 = sphi 0, %s66
      %s69 = sphi 0, %s68
      %s83 = sphi 0, %s69
      %s89 = sphi 0, %s91
      %s92 = sphi 0, %s89
      %s93 = sphi 0, %s92
      %s109 = sphi 0, %s93
    $region4: #{inner_cnn_forward.3} parent=1 // loop_header_branch
      %14 = sbr.rel (%p12) target = $region8
    $region5: #{inner_cnn_forward.3} parent=1 // loop_body
      %s16 = ssub.s32 %s11, 1
      %s17 = ssub.s32 %s11, 2
      %s18 = sadd.s32 %s11, 1
      %s19 = ssub.s32 %s11, %s18
      %p20 = scmp.eq.s32.totalorder %s19, 0
      %s22 = sadd.s32 %s21, 1
      %s23 = scalar_select %p20, %s21, %s22
      %p26 = pneg %p20
      %p27 = scmp.eq.s32.totalorder %s11, 1
      %p28 = por %p26, %p27
      %p29 = scmp.ne.s32.totalorder %s21, %s24
      %p30 = scmp.eq.s32.totalorder %s11, 0
      %p31 = por %p29, %p30
      %p32 = scmp.ne.s32.totalorder %s21, %s24
      %p33 = scmp.eq.s32.totalorder %s16, 1
      %p34 = por %p32, %p33
      %p35 = scmp.ne.s32.totalorder %s24, %s25
      %p36 = scmp.eq.s32.totalorder %s16, 0
      %p37 = por %p35, %p36
      %p38 = scmp.ne.s32.totalorder %s24, %s25
      %p39 = scmp.eq.s32.totalorder %s17, 1
      %p40 = por %p38, %p39
      %p42 = scmp.ne.s32.totalorder %s25, %s41
      %p43 = scmp.eq.s32.totalorder %s17, 0
      %p44 = por %p42, %p43
      %s46 = sadd.s32 %s45, 1
      %p49 = scmp.eq.s32.totalorder %s11, 1
      %p50 = scmp.ne.s32.totalorder %s45, %s47
      %p51 = scmp.eq.s32.totalorder %s11, 0
      %p52 = por %p50, %p51
      %p53 = scmp.ne.s32.totalorder %s45, %s47
      %p54 = scmp.eq.s32.totalorder %s16, 1
      %p55 = por %p53, %p54
      %p56 = scmp.ne.s32.totalorder %s47, %s48
      %p57 = scmp.eq.s32.totalorder %s16, 0
      %p58 = por %p56, %p57
      %p59 = scmp.ne.s32.totalorder %s47, %s48
      %p60 = scmp.eq.s32.totalorder %s17, 1
      %p61 = por %p59, %p60
      %p63 = scmp.ne.s32.totalorder %s48, %s62
      %p64 = scmp.eq.s32.totalorder %s17, 0
      %p65 = por %p63, %p64
      %s67 = sadd.s32 %s66, 1
      %p70 = scmp.eq.s32.totalorder %s11, 1
      %p71 = scmp.ne.s32.totalorder %s66, %s68
      %p72 = scmp.eq.s32.totalorder %s11, 0
      %p73 = por %p71, %p72
      %p74 = scmp.ne.s32.totalorder %s66, %s68
      %p75 = scmp.eq.s32.totalorder %s16, 1
      %p76 = por %p74, %p75
      %p77 = scmp.ne.s32.totalorder %s68, %s69
      %p78 = scmp.eq.s32.totalorder %s16, 0
      %p79 = por %p77, %p78
      %p80 = scmp.ne.s32.totalorder %s68, %s69
      %p81 = scmp.eq.s32.totalorder %s17, 1
      %p82 = por %p80, %p81
      %p84 = scmp.ne.s32.totalorder %s69, %s83
      %p85 = scmp.eq.s32.totalorder %s17, 0
      %p86 = por %p84, %p85
      %s87 = ssub.s32 %s11, %s18
      %p88 = scmp.eq.s32.totalorder %s87, 0
      %s90 = sadd.s32 %s89, 1
      %s91 = scalar_select %p88, %s89, %s90
      %p94 = pneg %p88
      %p95 = scmp.eq.s32.totalorder %s11, 1
      %p96 = por %p94, %p95
      %p97 = scmp.ne.s32.totalorder %s89, %s92
      %p98 = scmp.eq.s32.totalorder %s11, 0
      %p99 = por %p97, %p98
      %p100 = scmp.ne.s32.totalorder %s89, %s92
      %p101 = scmp.eq.s32.totalorder %s16, 1
      %p102 = por %p100, %p101
      %p103 = scmp.ne.s32.totalorder %s92, %s93
      %p104 = scmp.eq.s32.totalorder %s16, 0
      %p105 = por %p103, %p104
      %p106 = scmp.ne.s32.totalorder %s92, %s93
      %p107 = scmp.eq.s32.totalorder %s17, 1
      %p108 = por %p106, %p107
      %p110 = scmp.ne.s32.totalorder %s93, %s109
      %p111 = scmp.eq.s32.totalorder %s17, 0
      %p112 = por %p110, %p111
      %p113 = scmp.le.s32.totalorder 1, %s11
      %p114 = scmp.lt.s32.totalorder %s11, 3
      %p115 = pnand %p113, %p114
      %p116 = pneg %p115
      // Predicated region
      $region9: #{inner_cnn_forward.3} parent=5 // pred_check
        _
      $region10: #{inner_cnn_forward.3} parent=5 // pred_check_branch
        %118 = sbr.rel (%p115) target = $region12
      $region11: #{inner_cnn_forward.3} parent=5 // pred_region
        %s119 = ssub.s32 %s11, 1
        // Predicated region
        $region13: #{inner_cnn_forward.3} parent=11 // pred_check
          %p120 = pneg %p58
        $region14: #{inner_cnn_forward.3} parent=11 // pred_check_branch
          %122 = sbr.rel (%p120) target = $region16
        $region15: #{inner_cnn_forward.3} parent=11 // pred_region
          %s124 = ssub.s32 256, 256
          %125 = vsyncadd [#allocation3], %s124
          %s126 = sshll.u32 [#allocation2], 4
          %s127 = int_to_ptr.vmem [resolvable:$true] %s126
          %132 = dma.hbm_to_vmem [thread:$0]  %s1, 256, %s127, [#allocation3], 128, 128, 8
        $region16: #{inner_cnn_forward.3} parent=11 // pred_fallthru
          _
        // Predicated region
        $region17: #{inner_cnn_forward.3} parent=11 // pred_check
          %p133 = pneg %p79
        $region18: #{inner_cnn_forward.3} parent=11 // pred_check_branch
          %135 = sbr.rel (%p133) target = $region20
        $region19: #{inner_cnn_forward.3} parent=11 // pred_region
          %s137 = ssub.s32 16, 16
          %138 = vsyncadd [#allocation5], %s137
          %s140 = sshll.u32 [#allocation4], 4
          %s141 = int_to_ptr.vmem [resolvable:$true] %s140
          %143 = dma.hbm_to_vmem [thread:$0]  %s2, 16, %s141, [#allocation5]
        $region20: #{inner_cnn_forward.3} parent=11 // pred_fallthru
          _
      $region12: #{inner_cnn_forward.3} parent=5 // pred_fallthru
        _
      %p144 = scmp.lt.s32.totalorder %s11, 2
      // Predicated region
      $region21: #{inner_cnn_forward.3} parent=5 // pred_check
        %p145 = pneg %p144
      $region22: #{inner_cnn_forward.3} parent=5 // pred_check_branch
        %147 = sbr.rel (%p145) target = $region24
      $region23: #{inner_cnn_forward.3} parent=5 // pred_region
        // Predicated region
        $region25: #{inner_cnn_forward.3} parent=23 // pred_check
          %p148 = pneg %p31
        $region26: #{inner_cnn_forward.3} parent=23 // pred_check_branch
          %150 = sbr.rel (%p148) target = $region28
        $region27: #{inner_cnn_forward.3} parent=23 // pred_region
          %p151 = scmp.lt.s32.totalorder %s11, 1
          %s152 = scalar_select %p151, %s11, 1
          %s153 = smul.addr %s152, 120
          %s154 = smul.addr %s153, 8
          %s155 = scalar_lea.vmem %s0, %s154
        $region28: #{inner_cnn_forward.3} parent=23 // pred_fallthru
          _
      $region24: #{inner_cnn_forward.3} parent=5 // pred_fallthru
        _
      %p156 = scmp.le.s32.totalorder 1, %s11
      %p157 = scmp.lt.s32.totalorder %s11, 3
      %p158 = pnand %p156, %p157
      %p159 = pneg %p158
      // Predicated region
      $region29: #{inner_cnn_forward.3} parent=5 // pred_check
        _
      $region30: #{inner_cnn_forward.3} parent=5 // pred_check_branch
        %161 = sbr.rel (%p158) target = $region32
      $region31: #{inner_cnn_forward.3} parent=5 // pred_region
        %s162 = ssub.s32 %s11, 1
        // Predicated region
        $region33: #{inner_cnn_forward.3} parent=31 // pred_check
          %p163 = pneg %p58
        $region34: #{inner_cnn_forward.3} parent=31 // pred_check_branch
          %165 = sbr.rel (%p163) target = $region36
        $region35: #{inner_cnn_forward.3} parent=31 // pred_region
          %166 = dma.done [#allocation3], 256
        $region36: #{inner_cnn_forward.3} parent=31 // pred_fallthru
          _
        // Predicated region
        $region37: #{inner_cnn_forward.3} parent=31 // pred_check
          %p167 = pneg %p79
        $region38: #{inner_cnn_forward.3} parent=31 // pred_check_branch
          %169 = sbr.rel (%p167) target = $region40
        $region39: #{inner_cnn_forward.3} parent=31 // pred_region
          %170 = dma.done [#allocation5], 16
        $region40: #{inner_cnn_forward.3} parent=31 // pred_fallthru
          _
        %p171 = scmp.lt.s32.totalorder %s16, 1
        %s172 = scalar_select %p171, %s16, 1
        %s173 = smul.addr %s172, 120
        %s174 = smul.addr %s173, 8
        %s175 = scalar_lea.vmem %s0, %s174
        %p176 = pneg %p37
        %p177 = pneg %p34
        %p178 = pneg %p58
        %p179 = pneg %p55
        %p180 = pneg %p79
        %p181 = pneg %p76
        %p182 = pneg %p105
        %p183 = pneg %p102
        %p184 = scmp.lt.s32.totalorder %s16, 1
        %s185 = scalar_select %p184, %s16, 1
        %s186 = smul.addr %s185, 28
        %s187 = smul.addr %s186, 4
        %s188 = scalar_lea.vmem %s3, %s187
        %p189 = scmp.lt.s32.totalorder %s16, 1
        %s190 = scalar_select %p189, %s16, 1
        %s191 = smul.addr %s190, 120
        %s192 = smul.addr %s191, 8
        %s193 = scalar_lea.vmem %s0, %s192
        %p194 = scmp.lt.s32.totalorder %s16, 1
        %s195 = scalar_select %p194, %s16, 1
        %s196 = smul.addr %s195, 28
        %s197 = smul.addr %s196, 4
        %s198 = scalar_lea.vmem %s3, %s197
        %v199 = vld [vmem:[#allocation4] sm:$0x1]
        loop: start=0, step=1, limit=14
        $region41: #{inner_cnn_forward.3} parent=31 // loop_pre_header
          _
        $region42: #{inner_cnn_forward.3} parent=31 // loop_header
          %s201 = sphi 0, %s205
          %p202 = scmp.ge.s32.totalorder %s201, 14
        $region43: #{inner_cnn_forward.3} parent=31 // loop_header_branch
          %204 = sbr.rel (%p202) target = $region47
        $region44: #{inner_cnn_forward.3} parent=31 // loop_body
          %s206 = smul.u32 %s201, 2
          %s207 = smul.u32 %s206, 16
          %s208 = scalar_lea.vmem %s193, %s207
          %v209 = vld [vmem:[%s208] sm:$0xff]
          %v210 = vld [vmem:[%s208 + $0x8] sm:$0xff]
          %s211 = sadd.s32 %s207, 480
          %s212 = scalar_lea.vmem %s193, %s211
          %v213 = vld [vmem:[%s212] sm:$0xff]
          %v214 = vld [vmem:[%s212 + $0x8] sm:$0xff]
          %v215 = vld [vmem:[#allocation2] sm:$0x1]
          %v216 = vld [vmem:[#allocation2 + $0x1] sm:$0x1]
          %v217 = vld [vmem:[#allocation2 + $0x2] sm:$0x1]
          %219 = vset.pattern.permute.xlu0 0
          %220 = vperm.xlu0 %219, %v209
          %v221 = vpop.permute.xlu0 %220
          %224 = vset.pattern.permute.xlu0 0
          %225 = vperm.xlu0 %224, %v210
          %v226 = vpop.permute.xlu0 %225
          %v228 = vlaneseq
          %v229 = vshrl.u32 %v228, 7
          %v230 = vsub.s32 0, %v229
          %v231 = vrot.slane %v215, %v230
          %v232 = vmul.f32 %v221, %v231
          %v233 = vmul.f32 %v226, %v231
          %v234 = vadd.f32 %v232, 0.0
          %v235 = vadd.f32 %v233, 0.0
          %237 = vset.pattern.permute.xlu0 0
          %238 = vperm.xlu0 %237, %v213
          %v239 = vpop.permute.xlu0 %238
          %242 = vset.pattern.permute.xlu0 0
          %243 = vperm.xlu0 %242, %v214
          %v244 = vpop.permute.xlu0 %243
          %v246 = vlaneseq
          %v247 = vshrl.u32 %v246, 7
          %v248 = vsub.s32 0, %v247
          %v249 = vrot.slane %v216, %v248
          %v250 = vmul.f32 %v239, %v249
          %v251 = vmul.f32 %v244, %v249
          %v252 = vadd.f32 %v234, %v250
          %v253 = vadd.f32 %v235, %v251
          %v254 = vlaneseq
          %v255 = vshrl.u32 %v254, 7
          %v256 = vsub.s32 0, %v255
          %v257 = vrot.slane %v217, %v256
          %v258 = vmul.f32 %v221, %v257
          %v259 = vmul.f32 %v226, %v257
          %vm262 = vcmask 1046528
          %v263 = vrot.slane %v258, 1
          %v264 = vrot.slane %v259, 1
          %v265 = vsel %vm262, %v263, %v264
          %v268 = vadd.f32 %v252, %v265
          %v269 = vadd.f32 %v253, %v264
          %v270 = vmul.f32 %v239, %v231
          %v271 = vmul.f32 %v244, %v231
          %v272 = vadd.f32 %v270, 0.0
          %v273 = vadd.f32 %v271, 0.0
          %v274 = vmul.f32 %v221, %v249
          %v275 = vmul.f32 %v226, %v249
          %v278 = vrot.slane %v274, 1
          %v279 = vrot.slane %v275, 1
          %v280 = vsel %vm262, %v278, %v279
          %v283 = vadd.f32 %v272, %v280
          %v284 = vadd.f32 %v273, %v279
          %v285 = vmul.f32 %v239, %v257
          %v286 = vmul.f32 %v244, %v257
          %v289 = vrot.slane %v285, 1
          %v290 = vrot.slane %v286, 1
          %v291 = vsel %vm262, %v289, %v290
          %v294 = vadd.f32 %v283, %v291
          %v295 = vadd.f32 %v284, %v290
          %s296 = sadd.s32 %s206, 1
          %s297 = smul.u32 %s296, 16
          %s298 = scalar_lea.vmem %s193, %s297
          %v299 = vld [vmem:[%s298] sm:$0xff]
          %v300 = vld [vmem:[%s298 + $0x8] sm:$0xff]
          %s301 = sadd.s32 %s297, 480
          %s302 = scalar_lea.vmem %s193, %s301
          %v303 = vld [vmem:[%s302] sm:$0xff]
          %v304 = vld [vmem:[%s302 + $0x8] sm:$0xff]
          %v305 = vld [vmem:[#allocation2 + $0x3] sm:$0x1]
          %v306 = vld [vmem:[#allocation2 + $0x4] sm:$0x1]
          %v307 = vld [vmem:[#allocation2 + $0x5] sm:$0x1]
          %309 = vset.pattern.permute.xlu0 0
          %310 = vperm.xlu0 %309, %v299
          %v311 = vpop.permute.xlu0 %310
          %314 = vset.pattern.permute.xlu0 0
          %315 = vperm.xlu0 %314, %v300
          %v316 = vpop.permute.xlu0 %315
          %v318 = vlaneseq
          %v319 = vshrl.u32 %v318, 7
          %v320 = vsub.s32 0, %v319
          %v321 = vrot.slane %v305, %v320
          %v322 = vmul.f32 %v311, %v321
          %v323 = vmul.f32 %v316, %v321
          %v324 = vadd.f32 %v268, %v322
          %v325 = vadd.f32 %v269, %v323
          %327 = vset.pattern.permute.xlu0 0
          %328 = vperm.xlu0 %327, %v303
          %v329 = vpop.permute.xlu0 %328
          %332 = vset.pattern.permute.xlu0 0
          %333 = vperm.xlu0 %332, %v304
          %v334 = vpop.permute.xlu0 %333
          %v336 = vlaneseq
          %v337 = vshrl.u32 %v336, 7
          %v338 = vsub.s32 0, %v337
          %v339 = vrot.slane %v306, %v338
          %v340 = vmul.f32 %v329, %v339
          %v341 = vmul.f32 %v334, %v339
          %v342 = vadd.f32 %v324, %v340
          %v343 = vadd.f32 %v325, %v341
          %v344 = vlaneseq
          %v345 = vshrl.u32 %v344, 7
          %v346 = vsub.s32 0, %v345
          %v347 = vrot.slane %v307, %v346
          %v348 = vmul.f32 %v311, %v347
          %v349 = vmul.f32 %v316, %v347
          %v352 = vrot.slane %v348, 1
          %v353 = vrot.slane %v349, 1
          %v354 = vsel %vm262, %v352, %v353
          %v357 = vadd.f32 %v342, %v354
          %v358 = vadd.f32 %v343, %v353
          %v359 = vmul.f32 %v329, %v321
          %v360 = vmul.f32 %v334, %v321
          %v361 = vadd.f32 %v294, %v359
          %v362 = vadd.f32 %v295, %v360
          %v363 = vmul.f32 %v311, %v339
          %v364 = vmul.f32 %v316, %v339
          %v367 = vrot.slane %v363, 1
          %v368 = vrot.slane %v364, 1
          %v369 = vsel %vm262, %v367, %v368
          %v372 = vadd.f32 %v361, %v369
          %v373 = vadd.f32 %v362, %v368
          %v374 = vmul.f32 %v329, %v347
          %v375 = vmul.f32 %v334, %v347
          %v378 = vrot.slane %v374, 1
          %v379 = vrot.slane %v375, 1
          %v380 = vsel %vm262, %v378, %v379
          %v383 = vadd.f32 %v372, %v380
          %v384 = vadd.f32 %v373, %v379
          %s385 = sadd.s32 %s206, 2
          %s386 = smul.u32 %s385, 16
          %s387 = scalar_lea.vmem %s193, %s386
          %v388 = vld [vmem:[%s387] sm:$0xff]
          %v389 = vld [vmem:[%s387 + $0x8] sm:$0xff]
          %s390 = sadd.s32 %s386, 480
          %s391 = scalar_lea.vmem %s193, %s390
          %v392 = vld [vmem:[%s391] sm:$0xff]
          %v393 = vld [vmem:[%s391 + $0x8] sm:$0xff]
          %v394 = vld [vmem:[#allocation2 + $0x6] sm:$0x1]
          %v395 = vld [vmem:[#allocation2 + $0x7] sm:$0x1]
          %v396 = vld [vmem:[#allocation2 + $0x8] sm:$0x1]
          %398 = vset.pattern.permute.xlu0 0
          %399 = vperm.xlu0 %398, %v388
          %v400 = vpop.permute.xlu0 %399
          %403 = vset.pattern.permute.xlu0 0
          %404 = vperm.xlu0 %403, %v389
          %v405 = vpop.permute.xlu0 %404
          %v407 = vlaneseq
          %v408 = vshrl.u32 %v407, 7
          %v409 = vsub.s32 0, %v408
          %v410 = vrot.slane %v394, %v409
          %v411 = vmul.f32 %v400, %v410
          %v412 = vmul.f32 %v405, %v410
          %v413 = vadd.f32 %v357, %v411
          %v414 = vadd.f32 %v358, %v412
          %416 = vset.pattern.permute.xlu0 0
          %417 = vperm.xlu0 %416, %v392
          %v418 = vpop.permute.xlu0 %417
          %421 = vset.pattern.permute.xlu0 0
          %422 = vperm.xlu0 %421, %v393
          %v423 = vpop.permute.xlu0 %422
          %v425 = vlaneseq
          %v426 = vshrl.u32 %v425, 7
          %v427 = vsub.s32 0, %v426
          %v428 = vrot.slane %v395, %v427
          %v429 = vmul.f32 %v418, %v428
          %v430 = vmul.f32 %v423, %v428
          %v431 = vadd.f32 %v413, %v429
          %v432 = vadd.f32 %v414, %v430
          %v433 = vlaneseq
          %v434 = vshrl.u32 %v433, 7
          %v435 = vsub.s32 0, %v434
          %v436 = vrot.slane %v396, %v435
          %v437 = vmul.f32 %v400, %v436
          %v438 = vmul.f32 %v405, %v436
          %v441 = vrot.slane %v437, 1
          %v442 = vrot.slane %v438, 1
          %v443 = vsel %vm262, %v441, %v442
          %v446 = vadd.f32 %v431, %v443
          %v447 = vadd.f32 %v432, %v442
          %v448 = vmul.f32 %v418, %v410
          %v449 = vmul.f32 %v423, %v410
          %v450 = vadd.f32 %v383, %v448
          %v451 = vadd.f32 %v384, %v449
          %v452 = vmul.f32 %v400, %v428
          %v453 = vmul.f32 %v405, %v428
          %v456 = vrot.slane %v452, 1
          %v457 = vrot.slane %v453, 1
          %v458 = vsel %vm262, %v456, %v457
          %v461 = vadd.f32 %v450, %v458
          %v462 = vadd.f32 %v451, %v457
          %v463 = vmul.f32 %v418, %v436
          %v464 = vmul.f32 %v423, %v436
          %v467 = vrot.slane %v463, 1
          %v468 = vrot.slane %v464, 1
          %v469 = vsel %vm262, %v467, %v468
          %v472 = vadd.f32 %v461, %v469
          %v473 = vadd.f32 %v462, %v468
          %v474 = vmax.f32 %v446, %v472
          %v475 = vmax.f32 %v447, %v473
          %v477 = vlaneseq
          %v478 = vshrl.u32 %v477, 7
          %v479 = vsub.s32 0, %v478
          %v480 = vrot.slane %v199, %v479
          %v482 = vadd.f32 %v474, %v480
          %v483 = vadd.f32 %v475, %v480
          %v484 = vmax.f32 %v482, 0.0
          %v485 = vmax.f32 %v483, 0.0
          %v486 = vmul.f32 %v311, %v231
          %v487 = vmul.f32 %v316, %v231
          %v488 = vadd.f32 %v486, 0.0
          %v489 = vadd.f32 %v487, 0.0
          %v490 = vmul.f32 %v329, %v249
          %v491 = vmul.f32 %v334, %v249
          %v492 = vadd.f32 %v488, %v490
          %v493 = vadd.f32 %v489, %v491
          %v494 = vmul.f32 %v311, %v257
          %v495 = vmul.f32 %v316, %v257
          %v498 = vrot.slane %v494, 1
          %v499 = vrot.slane %v495, 1
          %v500 = vsel %vm262, %v498, %v499
          %v503 = vadd.f32 %v492, %v500
          %v504 = vadd.f32 %v493, %v499
          %v505 = vmul.f32 %v329, %v231
          %v506 = vmul.f32 %v334, %v231
          %v507 = vadd.f32 %v505, 0.0
          %v508 = vadd.f32 %v506, 0.0
          %v509 = vmul.f32 %v311, %v249
          %v510 = vmul.f32 %v316, %v249
          %v513 = vrot.slane %v509, 1
          %v514 = vrot.slane %v510, 1
          %v515 = vsel %vm262, %v513, %v514
          %v518 = vadd.f32 %v507, %v515
          %v519 = vadd.f32 %v508, %v514
          %v520 = vmul.f32 %v329, %v257
          %v521 = vmul.f32 %v334, %v257
          %v524 = vrot.slane %v520, 1
          %v525 = vrot.slane %v521, 1
          %v526 = vsel %vm262, %v524, %v525
          %v529 = vadd.f32 %v518, %v526
          %v530 = vadd.f32 %v519, %v525
          %v531 = vmul.f32 %v400, %v321
          %v532 = vmul.f32 %v405, %v321
          %v533 = vadd.f32 %v503, %v531
          %v534 = vadd.f32 %v504, %v532
          %v535 = vmul.f32 %v418, %v339
          %v536 = vmul.f32 %v423, %v339
          %v537 = vadd.f32 %v533, %v535
          %v538 = vadd.f32 %v534, %v536
          %v539 = vmul.f32 %v400, %v347
          %v540 = vmul.f32 %v405, %v347
          %v543 = vrot.slane %v539, 1
          %v544 = vrot.slane %v540, 1
          %v545 = vsel %vm262, %v543, %v544
          %v548 = vadd.f32 %v537, %v545
          %v549 = vadd.f32 %v538, %v544
          %v550 = vmul.f32 %v418, %v321
          %v551 = vmul.f32 %v423, %v321
          %v552 = vadd.f32 %v529, %v550
          %v553 = vadd.f32 %v530, %v551
          %v554 = vmul.f32 %v400, %v339
          %v555 = vmul.f32 %v405, %v339
          %v558 = vrot.slane %v554, 1
          %v559 = vrot.slane %v555, 1
          %v560 = vsel %vm262, %v558, %v559
          %v563 = vadd.f32 %v552, %v560
          %v564 = vadd.f32 %v553, %v559
          %v565 = vmul.f32 %v418, %v347
          %v566 = vmul.f32 %v423, %v347
          %v569 = vrot.slane %v565, 1
          %v570 = vrot.slane %v566, 1
          %v571 = vsel %vm262, %v569, %v570
          %v574 = vadd.f32 %v563, %v571
          %v575 = vadd.f32 %v564, %v570
          %s576 = sadd.s32 %s206, 3
          %s577 = smul.u32 %s576, 16
          %s578 = scalar_lea.vmem %s193, %s577
          %v579 = vld [vmem:[%s578] sm:$0xff]
          %v580 = vld [vmem:[%s578 + $0x8] sm:$0xff]
          %s581 = sadd.s32 %s577, 480
          %s582 = scalar_lea.vmem %s193, %s581
          %v583 = vld [vmem:[%s582] sm:$0xff]
          %v584 = vld [vmem:[%s582 + $0x8] sm:$0xff]
          %586 = vset.pattern.permute.xlu0 0
          %587 = vperm.xlu0 %586, %v579
          %v588 = vpop.permute.xlu0 %587
          %591 = vset.pattern.permute.xlu0 0
          %592 = vperm.xlu0 %591, %v580
          %v593 = vpop.permute.xlu0 %592
          %v595 = vmul.f32 %v588, %v410
          %v596 = vmul.f32 %v593, %v410
          %v597 = vadd.f32 %v548, %v595
          %v598 = vadd.f32 %v549, %v596
          %600 = vset.pattern.permute.xlu0 0
          %601 = vperm.xlu0 %600, %v583
          %v602 = vpop.permute.xlu0 %601
          %605 = vset.pattern.permute.xlu0 0
          %606 = vperm.xlu0 %605, %v584
          %v607 = vpop.permute.xlu0 %606
          %v609 = vmul.f32 %v602, %v428
          %v610 = vmul.f32 %v607, %v428
          %v611 = vadd.f32 %v597, %v609
          %v612 = vadd.f32 %v598, %v610
          %v613 = vmul.f32 %v588, %v436
          %v614 = vmul.f32 %v593, %v436
          %v617 = vrot.slane %v613, 1
          %v618 = vrot.slane %v614, 1
          %v619 = vsel %vm262, %v617, %v618
          %v622 = vadd.f32 %v611, %v619
          %v623 = vadd.f32 %v612, %v618
          %v624 = vmul.f32 %v602, %v410
          %v625 = vmul.f32 %v607, %v410
          %v626 = vadd.f32 %v574, %v624
          %v627 = vadd.f32 %v575, %v625
          %v628 = vmul.f32 %v588, %v428
          %v629 = vmul.f32 %v593, %v428
          %v632 = vrot.slane %v628, 1
          %v633 = vrot.slane %v629, 1
          %v634 = vsel %vm262, %v632, %v633
          %v637 = vadd.f32 %v626, %v634
          %v638 = vadd.f32 %v627, %v633
          %v639 = vmul.f32 %v602, %v436
          %v640 = vmul.f32 %v607, %v436
          %v643 = vrot.slane %v639, 1
          %v644 = vrot.slane %v640, 1
          %v645 = vsel %vm262, %v643, %v644
          %v648 = vadd.f32 %v637, %v645
          %v649 = vadd.f32 %v638, %v644
          %v650 = vmax.f32 %v622, %v648
          %v651 = vmax.f32 %v623, %v649
          %v652 = vadd.f32 %v650, %v480
          %v653 = vadd.f32 %v651, %v480
          %v654 = vmax.f32 %v652, 0.0
          %v655 = vmax.f32 %v653, 0.0
          %v656 = vmax.f32 %v484, %v654
          %v657 = vmax.f32 %v485, %v655
          %v658 = vpack.c.bf16 %v657, %v656
          %v660 = vunpack.c.l.b16 %v658
          %v661 = vunpack.c.h.b16 %v658
          %v662 = vpack.c.b16 %v660, %v660
          %v663 = vpack.c.b16 %v661, %v661
          %s666 = smul.addr %s206, 4
          %s667 = scalar_lea.vmem %s198, %s666
          %668 = vst [vmem:[%s667] sm:$0xf] %v662
          %669 = vst [vmem:[%s667 + $0x4] sm:$0x7] %v663
        $region45: #{inner_cnn_forward.3} parent=31 // loop_footer
          %s205 = sadd.s32 1, %s201
        $region46: #{inner_cnn_forward.3} parent=31 // loop_footer_branch
          %200 = sbr.rel target = $region42
        $region47: #{inner_cnn_forward.3} parent=31 // loop_exit
          _
        %p670 = scmp.lt.s32.totalorder %s16, 1
        %s671 = scalar_select %p670, %s16, 1
        %s672 = smul.addr %s671, 28
        %s673 = smul.addr %s672, 4
        %s674 = scalar_lea.vmem %s3, %s673
        // Predicated region
        $region48: #{inner_cnn_forward.3} parent=31 // pred_check
          %p675 = pneg %p102
        $region49: #{inner_cnn_forward.3} parent=31 // pred_check_branch
          %677 = sbr.rel (%p675) target = $region51
        $region50: #{inner_cnn_forward.3} parent=31 // pred_region
          _
        $region51: #{inner_cnn_forward.3} parent=31 // pred_fallthru
          _
      $region32: #{inner_cnn_forward.3} parent=5 // pred_fallthru
        _
      %p678 = scmp.le.s32.totalorder 2, %s11
      // Predicated region
      $region52: #{inner_cnn_forward.3} parent=5 // pred_check
        %p679 = pneg %p678
      $region53: #{inner_cnn_forward.3} parent=5 // pred_check_branch
        %681 = sbr.rel (%p679) target = $region55
      $region54: #{inner_cnn_forward.3} parent=5 // pred_region
        %s682 = ssub.s32 %s11, 2
        // Predicated region
        $region56: #{inner_cnn_forward.3} parent=54 // pred_check
          %p683 = pneg %p108
        $region57: #{inner_cnn_forward.3} parent=54 // pred_check_branch
          %685 = sbr.rel (%p683) target = $region59
        $region58: #{inner_cnn_forward.3} parent=54 // pred_region
          %p686 = scmp.lt.s32.totalorder %s17, 1
          %s687 = scalar_select %p686, %s17, 1
          %s688 = smul.addr %s687, 28
          %s689 = smul.addr %s688, 4
          %s690 = scalar_lea.vmem %s3, %s689
        $region59: #{inner_cnn_forward.3} parent=54 // pred_fallthru
          _
      $region55: #{inner_cnn_forward.3} parent=5 // pred_fallthru
        _
    $region6: #{inner_cnn_forward.3} parent=1 // loop_footer
      %s15 = sadd.s32 1, %s11
    $region7: #{inner_cnn_forward.3} parent=1 // loop_footer_branch
      %10 = sbr.rel target = $region3
    $region8: #{inner_cnn_forward.3} parent=1 // loop_exit
      _
    %691 = vsyncpa [#allocation3], 1
    %s692 = scalar_lea.sflag [#allocation3], 1
    %693 = vsyncpa %s692, 1
    %694 = vsyncpa [#allocation5], 1

// kernel: inner_cnn_forward.4
$region0: #{inner_cnn_forward.4}
  #allocation0 [shape = 'u32[]', space=smem, size = 0x4, offset = 0x4, fixed_abs, tag = 'smem constant byte address 0x4 - core index']
  #allocation1 [shape = 'u32[144,128]{1,0:T(1,128)}', space=vmem, size = 0x12000, scoped, tag = 'internal scratch']
  %s0 = inlined_call_operand.vmem [shape: bf16[2,2,16,9,128], index: 0, kind: input, shape index: {}]
  %s1 = inlined_call_operand.vmem [shape: bf16[9,128,128], index: 1, kind: input, shape index: {}]
  %s2 = inlined_call_operand.vmem [shape: f32[1,128], index: 2, kind: input, shape index: {}]
  %s3 = inlined_call_operand.vmem [shape: bf16[2,7,8,128], index: 3, kind: output, shape index: {}]
  %s4 = sld [smem:[#allocation0]]
  $region52: #{inner_cnn_forward.4} parent=0
    _
  %s6 = ssub.s32 1, %s4
  %s7 = scalar_select 0, %s6, %s4
  loop: start=0, step=1, limit=4
  $region2: #{inner_cnn_forward.4} parent=0 // loop_pre_header
    _
  $region3: #{inner_cnn_forward.4} parent=0 // loop_header
    %s9 = sphi 0, %s13
    %p10 = scmp.ge.s32.totalorder %s9, 4
    %s19 = sphi 0, %s21
    %s22 = sphi 0, %s19
    %s23 = sphi 0, %s22
    %s39 = sphi 0, %s23
    %s43 = sphi 0, %s43
    %s45 = sphi 0, %s43
    %s46 = sphi 0, %s45
    %s60 = sphi 0, %s46
    %s64 = sphi 0, %s64
    %s66 = sphi 0, %s64
    %s67 = sphi 0, %s66
    %s81 = sphi 0, %s67
    %s87 = sphi 0, %s89
    %s90 = sphi 0, %s87
    %s91 = sphi 0, %s90
    %s107 = sphi 0, %s91
  $region4: #{inner_cnn_forward.4} parent=0 // loop_header_branch
    %12 = sbr.rel (%p10) target = $region8
  $region5: #{inner_cnn_forward.4} parent=0 // loop_body
    %s14 = ssub.s32 %s9, 1
    %s15 = ssub.s32 %s9, 2
    %s16 = sadd.s32 %s9, 1
    %s17 = ssub.s32 %s9, %s16
    %p18 = scmp.eq.s32.totalorder %s17, 0
    %s20 = sadd.s32 %s19, 1
    %s21 = scalar_select %p18, %s19, %s20
    %p24 = pneg %p18
    %p25 = scmp.eq.s32.totalorder %s9, 1
    %p26 = por %p24, %p25
    %p27 = scmp.ne.s32.totalorder %s19, %s22
    %p28 = scmp.eq.s32.totalorder %s9, 0
    %p29 = por %p27, %p28
    %p30 = scmp.ne.s32.totalorder %s19, %s22
    %p31 = scmp.eq.s32.totalorder %s14, 1
    %p32 = por %p30, %p31
    %p33 = scmp.ne.s32.totalorder %s22, %s23
    %p34 = scmp.eq.s32.totalorder %s14, 0
    %p35 = por %p33, %p34
    %p36 = scmp.ne.s32.totalorder %s22, %s23
    %p37 = scmp.eq.s32.totalorder %s15, 1
    %p38 = por %p36, %p37
    %p40 = scmp.ne.s32.totalorder %s23, %s39
    %p41 = scmp.eq.s32.totalorder %s15, 0
    %p42 = por %p40, %p41
    %s44 = sadd.s32 %s43, 1
    %p47 = scmp.eq.s32.totalorder %s9, 1
    %p48 = scmp.ne.s32.totalorder %s43, %s45
    %p49 = scmp.eq.s32.totalorder %s9, 0
    %p50 = por %p48, %p49
    %p51 = scmp.ne.s32.totalorder %s43, %s45
    %p52 = scmp.eq.s32.totalorder %s14, 1
    %p53 = por %p51, %p52
    %p54 = scmp.ne.s32.totalorder %s45, %s46
    %p55 = scmp.eq.s32.totalorder %s14, 0
    %p56 = por %p54, %p55
    %p57 = scmp.ne.s32.totalorder %s45, %s46
    %p58 = scmp.eq.s32.totalorder %s15, 1
    %p59 = por %p57, %p58
    %p61 = scmp.ne.s32.totalorder %s46, %s60
    %p62 = scmp.eq.s32.totalorder %s15, 0
    %p63 = por %p61, %p62
    %s65 = sadd.s32 %s64, 1
    %p68 = scmp.eq.s32.totalorder %s9, 1
    %p69 = scmp.ne.s32.totalorder %s64, %s66
    %p70 = scmp.eq.s32.totalorder %s9, 0
    %p71 = por %p69, %p70
    %p72 = scmp.ne.s32.totalorder %s64, %s66
    %p73 = scmp.eq.s32.totalorder %s14, 1
    %p74 = por %p72, %p73
    %p75 = scmp.ne.s32.totalorder %s66, %s67
    %p76 = scmp.eq.s32.totalorder %s14, 0
    %p77 = por %p75, %p76
    %p78 = scmp.ne.s32.totalorder %s66, %s67
    %p79 = scmp.eq.s32.totalorder %s15, 1
    %p80 = por %p78, %p79
    %p82 = scmp.ne.s32.totalorder %s67, %s81
    %p83 = scmp.eq.s32.totalorder %s15, 0
    %p84 = por %p82, %p83
    %s85 = ssub.s32 %s9, %s16
    %p86 = scmp.eq.s32.totalorder %s85, 0
    %s88 = sadd.s32 %s87, 1
    %s89 = scalar_select %p86, %s87, %s88
    %p92 = pneg %p86
    %p93 = scmp.eq.s32.totalorder %s9, 1
    %p94 = por %p92, %p93
    %p95 = scmp.ne.s32.totalorder %s87, %s90
    %p96 = scmp.eq.s32.totalorder %s9, 0
    %p97 = por %p95, %p96
    %p98 = scmp.ne.s32.totalorder %s87, %s90
    %p99 = scmp.eq.s32.totalorder %s14, 1
    %p100 = por %p98, %p99
    %p101 = scmp.ne.s32.totalorder %s90, %s91
    %p102 = scmp.eq.s32.totalorder %s14, 0
    %p103 = por %p101, %p102
    %p104 = scmp.ne.s32.totalorder %s90, %s91
    %p105 = scmp.eq.s32.totalorder %s15, 1
    %p106 = por %p104, %p105
    %p108 = scmp.ne.s32.totalorder %s91, %s107
    %p109 = scmp.eq.s32.totalorder %s15, 0
    %p110 = por %p108, %p109
    %p111 = scmp.le.s32.totalorder 1, %s9
    %p112 = scmp.lt.s32.totalorder %s9, 3
    %p113 = pnand %p111, %p112
    %p114 = pneg %p113
    // Predicated region
    $region9: #{inner_cnn_forward.4} parent=5 // pred_check
      _
    $region10: #{inner_cnn_forward.4} parent=5 // pred_check_branch
      %116 = sbr.rel (%p113) target = $region12
    $region11: #{inner_cnn_forward.4} parent=5 // pred_region
      %s117 = ssub.s32 %s9, 1
      // Predicated region
      $region13: #{inner_cnn_forward.4} parent=11 // pred_check
        %p118 = pneg %p56
      $region14: #{inner_cnn_forward.4} parent=11 // pred_check_branch
        %120 = sbr.rel (%p118) target = $region16
      $region15: #{inner_cnn_forward.4} parent=11 // pred_region
        _
      $region16: #{inner_cnn_forward.4} parent=11 // pred_fallthru
        _
      // Predicated region
      $region17: #{inner_cnn_forward.4} parent=11 // pred_check
        %p121 = pneg %p77
      $region18: #{inner_cnn_forward.4} parent=11 // pred_check_branch
        %123 = sbr.rel (%p121) target = $region20
      $region19: #{inner_cnn_forward.4} parent=11 // pred_region
        _
      $region20: #{inner_cnn_forward.4} parent=11 // pred_fallthru
        _
    $region12: #{inner_cnn_forward.4} parent=5 // pred_fallthru
      _
    %p124 = scmp.lt.s32.totalorder %s9, 2
    // Predicated region
    $region21: #{inner_cnn_forward.4} parent=5 // pred_check
      %p125 = pneg %p124
    $region22: #{inner_cnn_forward.4} parent=5 // pred_check_branch
      %127 = sbr.rel (%p125) target = $region24
    $region23: #{inner_cnn_forward.4} parent=5 // pred_region
      // Predicated region
      $region25: #{inner_cnn_forward.4} parent=23 // pred_check
        %p128 = pneg %p29
      $region26: #{inner_cnn_forward.4} parent=23 // pred_check_branch
        %130 = sbr.rel (%p128) target = $region28
      $region27: #{inner_cnn_forward.4} parent=23 // pred_region
        %p131 = scmp.lt.s32.totalorder %s9, 1
        %s132 = scalar_select %p131, %s9, 1
        %s133 = smul.addr %s132, 64
        %s134 = smul.addr %s133, 4
        %s135 = scalar_lea.vmem %s0, %s134
      $region28: #{inner_cnn_forward.4} parent=23 // pred_fallthru
        _
    $region24: #{inner_cnn_forward.4} parent=5 // pred_fallthru
      _
    %p136 = scmp.le.s32.totalorder 1, %s9
    %p137 = scmp.lt.s32.totalorder %s9, 3
    %p138 = pnand %p136, %p137
    %p139 = pneg %p138
    // Predicated region
    $region29: #{inner_cnn_forward.4} parent=5 // pred_check
      _
    $region30: #{inner_cnn_forward.4} parent=5 // pred_check_branch
      %141 = sbr.rel (%p138) target = $region32
    $region31: #{inner_cnn_forward.4} parent=5 // pred_region
      %s142 = ssub.s32 %s9, 1
      %p143 = scmp.lt.s32.totalorder %s14, 1
      %s144 = scalar_select %p143, %s14, 1
      %s145 = smul.addr %s144, 64
      %s146 = smul.addr %s145, 4
      %s147 = scalar_lea.vmem %s0, %s146
      %p148 = pneg %p35
      %p149 = pneg %p32
      %p150 = pneg %p56
      %p151 = pneg %p53
      %p152 = pneg %p77
      %p153 = pneg %p74
      %p154 = pneg %p103
      %p155 = pneg %p100
      %p156 = scmp.lt.s32.totalorder %s14, 1
      %s157 = scalar_select %p156, %s14, 1
      %s158 = smul.addr %s157, 7
      %s159 = smul.addr %s158, 4
      %s160 = scalar_lea.vmem %s3, %s159
      %p161 = scmp.lt.s32.totalorder %s14, 1
      %s162 = scalar_select %p161, %s14, 1
      %s163 = smul.addr %s162, 64
      %s164 = smul.addr %s163, 4
      %s165 = scalar_lea.vmem %s0, %s164
      %p166 = scmp.lt.s32.totalorder %s14, 1
      %s167 = scalar_select %p166, %s14, 1
      %s168 = smul.addr %s167, 7
      %s169 = smul.addr %s168, 4
      %s170 = scalar_lea.vmem %s3, %s169
      %v172 = vld [vmem:[%s2] sm:$0x1]
      loop: start=0, step=1, limit=7
      $region33: #{inner_cnn_forward.4} parent=31 // loop_pre_header
        _
      $region34: #{inner_cnn_forward.4} parent=31 // loop_header
        %s174 = sphi 0, %s178
        %p175 = scmp.ge.s32.totalorder %s174, 7
      $region35: #{inner_cnn_forward.4} parent=31 // loop_header_branch
        %177 = sbr.rel (%p175) target = $region39
      $region36: #{inner_cnn_forward.4} parent=31 // loop_body
        %s179 = smul.u32 %s174, 2
        %s180 = smul.u32 %s179, 2
        %s181 = smul.addr %s180, 4
        %s182 = scalar_lea.vmem %s165, %s181
        %v183 = vld [vmem:[%s182] sm:$0xf]
        %v184 = vld [vmem:[%s182 + $0x4] sm:$0x1]
        %v185 = vunpack.c.l.bf16 %v183
        %v186 = vunpack.c.l.bf16 %v184
        %s187 = sadd.s32 %s180, 32
        %s188 = smul.addr %s187, 4
        %s189 = scalar_lea.vmem %s165, %s188
        %v190 = vld [vmem:[%s189] sm:$0xf]
        %v191 = vld [vmem:[%s189 + $0x4] sm:$0x1]
        %v192 = vunpack.c.l.bf16 %v190
        %v193 = vunpack.c.l.bf16 %v191
        %v194 = vpack.c.bf16 %v185, %v185
        %v195 = vpack.c.bf16 %v186, %v185
        %v196 = vpack.c.bf16 %v192, %v192
        %v197 = vpack.c.bf16 %v193, %v192
        %v198 = vld [vmem:[%s1] sm:$0xf]
        %v199 = vld [vmem:[%s1 + $0x4] sm:$0xf]
        %v200 = vld [vmem:[%s1 + $0x8] sm:$0xf]
        %v201 = vld [vmem:[%s1 + $0xc] sm:$0xf]
        %v202 = vld [vmem:[%s1 + $0x10] sm:$0xf]
        %v203 = vld [vmem:[%s1 + $0x14] sm:$0xf]
        %v204 = vld [vmem:[%s1 + $0x18] sm:$0xf]
        %v205 = vld [vmem:[%s1 + $0x1c] sm:$0xf]
        %v206 = vld [vmem:[%s1 + $0x20] sm:$0xf]
        %v207 = vld [vmem:[%s1 + $0x24] sm:$0xf]
        %v208 = vld [vmem:[%s1 + $0x28] sm:$0xf]
        %v209 = vld [vmem:[%s1 + $0x2c] sm:$0xf]
        %v210 = vld [vmem:[%s1 + $0x30] sm:$0xf]
        %v211 = vld [vmem:[%s1 + $0x34] sm:$0xf]
        %v212 = vld [vmem:[%s1 + $0x38] sm:$0xf]
        %v213 = vld [vmem:[%s1 + $0x3c] sm:$0xf]
        %s214 = scalar_lea.vmem %s1, 64
        %v215 = vld [vmem:[%s214] sm:$0xf]
        %v216 = vld [vmem:[%s214 + $0x4] sm:$0xf]
        %v217 = vld [vmem:[%s214 + $0x8] sm:$0xf]
        %v218 = vld [vmem:[%s214 + $0xc] sm:$0xf]
        %v219 = vld [vmem:[%s214 + $0x10] sm:$0xf]
        %v220 = vld [vmem:[%s214 + $0x14] sm:$0xf]
        %v221 = vld [vmem:[%s214 + $0x18] sm:$0xf]
        %v222 = vld [vmem:[%s214 + $0x1c] sm:$0xf]
        %v223 = vld [vmem:[%s214 + $0x20] sm:$0xf]
        %v224 = vld [vmem:[%s214 + $0x24] sm:$0xf]
        %v225 = vld [vmem:[%s214 + $0x28] sm:$0xf]
        %v226 = vld [vmem:[%s214 + $0x2c] sm:$0xf]
        %v227 = vld [vmem:[%s214 + $0x30] sm:$0xf]
        %v228 = vld [vmem:[%s214 + $0x34] sm:$0xf]
        %v229 = vld [vmem:[%s214 + $0x38] sm:$0xf]
        %v230 = vld [vmem:[%s214 + $0x3c] sm:$0xf]
        %s231 = scalar_lea.vmem %s1, 128
        %v232 = vld [vmem:[%s231] sm:$0xf]
        %v233 = vld [vmem:[%s231 + $0x4] sm:$0xf]
        %v234 = vld [vmem:[%s231 + $0x8] sm:$0xf]
        %v235 = vld [vmem:[%s231 + $0xc] sm:$0xf]
        %v236 = vld [vmem:[%s231 + $0x10] sm:$0xf]
        %v237 = vld [vmem:[%s231 + $0x14] sm:$0xf]
        %v238 = vld [vmem:[%s231 + $0x18] sm:$0xf]
        %v239 = vld [vmem:[%s231 + $0x1c] sm:$0xf]
        %v240 = vld [vmem:[%s231 + $0x20] sm:$0xf]
        %v241 = vld [vmem:[%s231 + $0x24] sm:$0xf]
        %v242 = vld [vmem:[%s231 + $0x28] sm:$0xf]
        %v243 = vld [vmem:[%s231 + $0x2c] sm:$0xf]
        %v244 = vld [vmem:[%s231 + $0x30] sm:$0xf]
        %v245 = vld [vmem:[%s231 + $0x34] sm:$0xf]
        %v246 = vld [vmem:[%s231 + $0x38] sm:$0xf]
        %v247 = vld [vmem:[%s231 + $0x3c] sm:$0xf]
        %v264 = vunpack.c.l.b16 %v215
        %v265 = vunpack.c.l.b16 %v216
        %v266 = vunpack.c.l.b16 %v217
        %v267 = vunpack.c.l.b16 %v218
        %v268 = vunpack.c.l.b16 %v219
        %v269 = vunpack.c.l.b16 %v220
        %v270 = vunpack.c.l.b16 %v221
        %v271 = vunpack.c.l.b16 %v222
        %v272 = vunpack.c.l.b16 %v223
        %v273 = vunpack.c.l.b16 %v224
        %v274 = vunpack.c.l.b16 %v225
        %v275 = vunpack.c.l.b16 %v226
        %v276 = vunpack.c.l.b16 %v227
        %v277 = vunpack.c.l.b16 %v228
        %v278 = vunpack.c.l.b16 %v229
        %v279 = vunpack.c.l.b16 %v230
        %v280 = vpack.c.b16 %v265, %v264
        %v281 = vpack.c.b16 %v267, %v266
        %v282 = vpack.c.b16 %v269, %v268
        %v283 = vpack.c.b16 %v271, %v270
        %v284 = vpack.c.b16 %v273, %v272
        %v285 = vpack.c.b16 %v275, %v274
        %v286 = vpack.c.b16 %v277, %v276
        %v287 = vpack.c.b16 %v279, %v278
        %296 = vmatprep.subr.bf16.mxu0 0
        %297 = vmatpush1.bf16.msra.mxu0 %v280
        %298 = vmatprep.subr.bf16.mxu0 0
        %299 = vmatpush1.bf16.msra.mxu0 %v281
        %300 = vmatprep.subr.bf16.mxu0 0
        %301 = vmatpush1.bf16.msra.mxu0 %v282
        %302 = vmatprep.subr.bf16.mxu0 0
        %303 = vmatpush1.bf16.msra.mxu0 %v283
        %304 = vmatprep.subr.bf16.mxu0 0
        %305 = vmatpush1.bf16.msra.mxu0 %v284
        %306 = vmatprep.subr.bf16.mxu0 0
        %307 = vmatpush1.bf16.msra.mxu0 %v285
        %308 = vmatprep.subr.bf16.mxu0 0
        %309 = vmatpush1.bf16.msra.mxu0 %v286
        %310 = vmatprep.subr.bf16.mxu0 0
        %311 = vmatpush1.bf16.msra.mxu0 %v287
        %312 = vmatprep.subr.bf16.mxu0 0
        %313 = vmatpush1.bf16.msra.mxu0 0
        %314 = vmatprep.subr.bf16.mxu0 0
        %315 = vmatpush1.bf16.msra.mxu0 0
        %316 = vmatprep.subr.bf16.mxu0 0
        %317 = vmatpush1.bf16.msra.mxu0 0
        %318 = vmatprep.subr.bf16.mxu0 0
        %319 = vmatpush1.bf16.msra.mxu0 0
        %320 = vmatprep.subr.bf16.mxu0 0
        %321 = vmatpush1.bf16.msra.mxu0 0
        %322 = vmatprep.subr.bf16.mxu0 0
        %323 = vmatpush1.bf16.msra.mxu0 0
        %324 = vmatprep.subr.bf16.mxu0 0
        %325 = vmatpush1.bf16.msra.mxu0 0
        %326 = vmatprep.subr.bf16.mxu0 0
        %327 = vmatpush1.bf16.msra.mxu0 0
        %328 = vmatprep.mubr.bf16.mxu0 0
        %329 = vmatmul.mubr.bf16.gmra.mrb[0].mxu0 %v196
        %v330 = vpop.f32.mrb[0].mxu0
        %v331 = vadd.f32 0.0, %v330
        %v332 = vpop.f32.mrb[0].mxu0
        %v333 = vpop.f32.mrb[0].mxu0
        %v334 = vpop.f32.mrb[0].mxu0
        %335 = vdwg.mxu0
        %v352 = vunpack.c.l.b16 %v198
        %v353 = vunpack.c.l.b16 %v199
        %v354 = vunpack.c.l.b16 %v200
        %v355 = vunpack.c.l.b16 %v201
        %v356 = vunpack.c.l.b16 %v202
        %v357 = vunpack.c.l.b16 %v203
        %v358 = vunpack.c.l.b16 %v204
        %v359 = vunpack.c.l.b16 %v205
        %v360 = vunpack.c.l.b16 %v206
        %v361 = vunpack.c.l.b16 %v207
        %v362 = vunpack.c.l.b16 %v208
        %v363 = vunpack.c.l.b16 %v209
        %v364 = vunpack.c.l.b16 %v210
        %v365 = vunpack.c.l.b16 %v211
        %v366 = vunpack.c.l.b16 %v212
        %v367 = vunpack.c.l.b16 %v213
        %v368 = vpack.c.b16 %v353, %v352
        %v369 = vpack.c.b16 %v355, %v354
        %v370 = vpack.c.b16 %v357, %v356
        %v371 = vpack.c.b16 %v359, %v358
        %v372 = vpack.c.b16 %v361, %v360
        %v373 = vpack.c.b16 %v363, %v362
        %v374 = vpack.c.b16 %v365, %v364
        %v375 = vpack.c.b16 %v367, %v366
        %384 = vmatprep.subr.bf16.mxu0 0
        %385 = vmatpush1.bf16.msra.mxu0 %v368
        %386 = vmatprep.subr.bf16.mxu0 0
        %387 = vmatpush1.bf16.msra.mxu0 %v369
        %388 = vmatprep.subr.bf16.mxu0 0
        %389 = vmatpush1.bf16.msra.mxu0 %v370
        %390 = vmatprep.subr.bf16.mxu0 0
        %391 = vmatpush1.bf16.msra.mxu0 %v371
        %392 = vmatprep.subr.bf16.mxu0 0
        %393 = vmatpush1.bf16.msra.mxu0 %v372
        %394 = vmatprep.subr.bf16.mxu0 0
        %395 = vmatpush1.bf16.msra.mxu0 %v373
        %396 = vmatprep.subr.bf16.mxu0 0
        %397 = vmatpush1.bf16.msra.mxu0 %v374
        %398 = vmatprep.subr.bf16.mxu0 0
        %399 = vmatpush1.bf16.msra.mxu0 %v375
        %400 = vmatprep.subr.bf16.mxu0 0
        %401 = vmatpush1.bf16.msra.mxu0 0
        %402 = vmatprep.subr.bf16.mxu0 0
        %403 = vmatpush1.bf16.msra.mxu0 0
        %404 = vmatprep.subr.bf16.mxu0 0
        %405 = vmatpush1.bf16.msra.mxu0 0
        %406 = vmatprep.subr.bf16.mxu0 0
        %407 = vmatpush1.bf16.msra.mxu0 0
        %408 = vmatprep.subr.bf16.mxu0 0
        %409 = vmatpush1.bf16.msra.mxu0 0
        %410 = vmatprep.subr.bf16.mxu0 0
        %411 = vmatpush1.bf16.msra.mxu0 0
        %412 = vmatprep.subr.bf16.mxu0 0
        %413 = vmatpush1.bf16.msra.mxu0 0
        %414 = vmatprep.subr.bf16.mxu0 0
        %415 = vmatpush1.bf16.msra.mxu0 0
        %416 = vmatprep.mubr.bf16.mxu0 0
        %417 = vmatmul.mubr.bf16.gmra.mrb[0].mxu0 %v194
        %v418 = vpop.f32.mrb[0].mxu0
        %v419 = vadd.f32 %v331, %v418
        %v420 = vpop.f32.mrb[0].mxu0
        %v421 = vpop.f32.mrb[0].mxu0
        %v422 = vpop.f32.mrb[0].mxu0
        %423 = vdwg.mxu0
        %v425 = vshrl.u32 %v195, 16
        %v427 = vshll.u32 %v195, 16
        %v429 = vrot.slane %v427, 1
        %v430 = vor.u32 %v425, %v429
        %v448 = vunpack.c.l.b16 %v232
        %v449 = vunpack.c.l.b16 %v233
        %v450 = vunpack.c.l.b16 %v234
        %v451 = vunpack.c.l.b16 %v235
        %v452 = vunpack.c.l.b16 %v236
        %v453 = vunpack.c.l.b16 %v237
        %v454 = vunpack.c.l.b16 %v238
        %v455 = vunpack.c.l.b16 %v239
        %v456 = vunpack.c.l.b16 %v240
        %v457 = vunpack.c.l.b16 %v241
        %v458 = vunpack.c.l.b16 %v242
        %v459 = vunpack.c.l.b16 %v243
        %v460 = vunpack.c.l.b16 %v244
        %v461 = vunpack.c.l.b16 %v245
        %v462 = vunpack.c.l.b16 %v246
        %v463 = vunpack.c.l.b16 %v247
        %v464 = vpack.c.b16 %v449, %v448
        %v465 = vpack.c.b16 %v451, %v450
        %v466 = vpack.c.b16 %v453, %v452
        %v467 = vpack.c.b16 %v455, %v454
        %v468 = vpack.c.b16 %v457, %v456
        %v469 = vpack.c.b16 %v459, %v458
        %v470 = vpack.c.b16 %v461, %v460
        %v471 = vpack.c.b16 %v463, %v462
        %480 = vmatprep.subr.bf16.mxu0 0
        %481 = vmatpush1.bf16.msra.mxu0 %v464
        %482 = vmatprep.subr.bf16.mxu0 0
        %483 = vmatpush1.bf16.msra.mxu0 %v465
        %484 = vmatprep.subr.bf16.mxu0 0
        %485 = vmatpush1.bf16.msra.mxu0 %v466
        %486 = vmatprep.subr.bf16.mxu0 0
        %487 = vmatpush1.bf16.msra.mxu0 %v467
        %488 = vmatprep.subr.bf16.mxu0 0
        %489 = vmatpush1.bf16.msra.mxu0 %v468
        %490 = vmatprep.subr.bf16.mxu0 0
        %491 = vmatpush1.bf16.msra.mxu0 %v469
        %492 = vmatprep.subr.bf16.mxu0 0
        %493 = vmatpush1.bf16.msra.mxu0 %v470
        %494 = vmatprep.subr.bf16.mxu0 0
        %495 = vmatpush1.bf16.msra.mxu0 %v471
        %496 = vmatprep.subr.bf16.mxu0 0
        %497 = vmatpush1.bf16.msra.mxu0 0
        %498 = vmatprep.subr.bf16.mxu0 0
        %499 = vmatpush1.bf16.msra.mxu0 0
        %500 = vmatprep.subr.bf16.mxu0 0
        %501 = vmatpush1.bf16.msra.mxu0 0
        %502 = vmatprep.subr.bf16.mxu0 0
        %503 = vmatpush1.bf16.msra.mxu0 0
        %504 = vmatprep.subr.bf16.mxu0 0
        %505 = vmatpush1.bf16.msra.mxu0 0
        %506 = vmatprep.subr.bf16.mxu0 0
        %507 = vmatpush1.bf16.msra.mxu0 0
        %508 = vmatprep.subr.bf16.mxu0 0
        %509 = vmatpush1.bf16.msra.mxu0 0
        %510 = vmatprep.subr.bf16.mxu0 0
        %511 = vmatpush1.bf16.msra.mxu0 0
        %512 = vmatprep.mubr.bf16.mxu0 0
        %513 = vmatmul.mubr.bf16.gmra.mrb[0].mxu0 %v430
        %v514 = vpop.f32.mrb[0].mxu0
        %v515 = vadd.f32 0.0, %v514
        %v516 = vpop.f32.mrb[0].mxu0
        %v517 = vpop.f32.mrb[0].mxu0
        %v518 = vpop.f32.mrb[0].mxu0
        %519 = vdwg.mxu0
        %v520 = vadd.f32 %v419, %v515
        %521 = vmatprep.subr.bf16.mxu0 0
        %522 = vmatpush1.bf16.msra.mxu0 %v280
        %523 = vmatprep.subr.bf16.mxu0 0
        %524 = vmatpush1.bf16.msra.mxu0 %v281
        %525 = vmatprep.subr.bf16.mxu0 0
        %526 = vmatpush1.bf16.msra.mxu0 %v282
        %527 = vmatprep.subr.bf16.mxu0 0
        %528 = vmatpush1.bf16.msra.mxu0 %v283
        %529 = vmatprep.subr.bf16.mxu0 0
        %530 = vmatpush1.bf16.msra.mxu0 %v284
        %531 = vmatprep.subr.bf16.mxu0 0
        %532 = vmatpush1.bf16.msra.mxu0 %v285
        %533 = vmatprep.subr.bf16.mxu0 0
        %534 = vmatpush1.bf16.msra.mxu0 %v286
        %535 = vmatprep.subr.bf16.mxu0 0
        %536 = vmatpush1.bf16.msra.mxu0 %v287
        %537 = vmatprep.subr.bf16.mxu0 0
        %538 = vmatpush1.bf16.msra.mxu0 0
        %539 = vmatprep.subr.bf16.mxu0 0
        %540 = vmatpush1.bf16.msra.mxu0 0
        %541 = vmatprep.subr.bf16.mxu0 0
        %542 = vmatpush1.bf16.msra.mxu0 0
        %543 = vmatprep.subr.bf16.mxu0 0
        %544 = vmatpush1.bf16.msra.mxu0 0
        %545 = vmatprep.subr.bf16.mxu0 0
        %546 = vmatpush1.bf16.msra.mxu0 0
        %547 = vmatprep.subr.bf16.mxu0 0
        %548 = vmatpush1.bf16.msra.mxu0 0
        %549 = vmatprep.subr.bf16.mxu0 0
        %550 = vmatpush1.bf16.msra.mxu0 0
        %551 = vmatprep.subr.bf16.mxu0 0
        %552 = vmatpush1.bf16.msra.mxu0 0
        %553 = vmatprep.mubr.bf16.mxu0 0
        %554 = vmatmul.mubr.bf16.gmra.mrb[0].mxu0 %v430
        %v555 = vpop.f32.mrb[0].mxu0
        %v556 = vadd.f32 0.0, %v555
        %v557 = vpop.f32.mrb[0].mxu0
        %v558 = vpop.f32.mrb[0].mxu0
        %v559 = vpop.f32.mrb[0].mxu0
        %560 = vdwg.mxu0
        %561 = vmatprep.subr.bf16.mxu0 0
        %562 = vmatpush1.bf16.msra.mxu0 %v368
        %563 = vmatprep.subr.bf16.mxu0 0
        %564 = vmatpush1.bf16.msra.mxu0 %v369
        %565 = vmatprep.subr.bf16.mxu0 0
        %566 = vmatpush1.bf16.msra.mxu0 %v370
        %567 = vmatprep.subr.bf16.mxu0 0
        %568 = vmatpush1.bf16.msra.mxu0 %v371
        %569 = vmatprep.subr.bf16.mxu0 0
        %570 = vmatpush1.bf16.msra.mxu0 %v372
        %571 = vmatprep.subr.bf16.mxu0 0
        %572 = vmatpush1.bf16.msra.mxu0 %v373
        %573 = vmatprep.subr.bf16.mxu0 0
        %574 = vmatpush1.bf16.msra.mxu0 %v374
        %575 = vmatprep.subr.bf16.mxu0 0
        %576 = vmatpush1.bf16.msra.mxu0 %v375
        %577 = vmatprep.subr.bf16.mxu0 0
        %578 = vmatpush1.bf16.msra.mxu0 0
        %579 = vmatprep.subr.bf16.mxu0 0
        %580 = vmatpush1.bf16.msra.mxu0 0
        %581 = vmatprep.subr.bf16.mxu0 0
        %582 = vmatpush1.bf16.msra.mxu0 0
        %583 = vmatprep.subr.bf16.mxu0 0
        %584 = vmatpush1.bf16.msra.mxu0 0
        %585 = vmatprep.subr.bf16.mxu0 0
        %586 = vmatpush1.bf16.msra.mxu0 0
        %587 = vmatprep.subr.bf16.mxu0 0
        %588 = vmatpush1.bf16.msra.mxu0 0
        %589 = vmatprep.subr.bf16.mxu0 0
        %590 = vmatpush1.bf16.msra.mxu0 0
        %591 = vmatprep.subr.bf16.mxu0 0
        %592 = vmatpush1.bf16.msra.mxu0 0
        %593 = vmatprep.mubr.bf16.mxu0 0
        %594 = vmatmul.mubr.bf16.gmra.mrb[0].mxu0 %v196
        %v595 = vpop.f32.mrb[0].mxu0
        %v596 = vadd.f32 %v556, %v595
        %v597 = vpop.f32.mrb[0].mxu0
        %v598 = vpop.f32.mrb[0].mxu0
        %v599 = vpop.f32.mrb[0].mxu0
        %600 = vdwg.mxu0
        %v602 = vshrl.u32 %v197, 16
        %v604 = vshll.u32 %v197, 16
        %v606 = vrot.slane %v604, 1
        %v607 = vor.u32 %v602, %v606
        %609 = vmatprep.subr.bf16.mxu0 0
        %610 = vmatpush1.bf16.msra.mxu0 %v464
        %611 = vmatprep.subr.bf16.mxu0 0
        %612 = vmatpush1.bf16.msra.mxu0 %v465
        %613 = vmatprep.subr.bf16.mxu0 0
        %614 = vmatpush1.bf16.msra.mxu0 %v466
        %615 = vmatprep.subr.bf16.mxu0 0
        %616 = vmatpush1.bf16.msra.mxu0 %v467
        %617 = vmatprep.subr.bf16.mxu0 0
        %618 = vmatpush1.bf16.msra.mxu0 %v468
        %619 = vmatprep.subr.bf16.mxu0 0
        %620 = vmatpush1.bf16.msra.mxu0 %v469
        %621 = vmatprep.subr.bf16.mxu0 0
        %622 = vmatpush1.bf16.msra.mxu0 %v470
        %623 = vmatprep.subr.bf16.mxu0 0
        %624 = vmatpush1.bf16.msra.mxu0 %v471
        %625 = vmatprep.subr.bf16.mxu0 0
        %626 = vmatpush1.bf16.msra.mxu0 0
        %627 = vmatprep.subr.bf16.mxu0 0
        %628 = vmatpush1.bf16.msra.mxu0 0
        %629 = vmatprep.subr.bf16.mxu0 0
        %630 = vmatpush1.bf16.msra.mxu0 0
        %631 = vmatprep.subr.bf16.mxu0 0
        %632 = vmatpush1.bf16.msra.mxu0 0
        %633 = vmatprep.subr.bf16.mxu0 0
        %634 = vmatpush1.bf16.msra.mxu0 0
        %635 = vmatprep.subr.bf16.mxu0 0
        %636 = vmatpush1.bf16.msra.mxu0 0
        %637 = vmatprep.subr.bf16.mxu0 0
        %638 = vmatpush1.bf16.msra.mxu0 0
        %639 = vmatprep.subr.bf16.mxu0 0
        %640 = vmatpush1.bf16.msra.mxu0 0
        %641 = vmatprep.mubr.bf16.mxu0 0
        %642 = vmatmul.mubr.bf16.gmra.mrb[0].mxu0 %v607
        %v643 = vpop.f32.mrb[0].mxu0
        %v644 = vadd.f32 0.0, %v643
        %v645 = vpop.f32.mrb[0].mxu0
        %v646 = vpop.f32.mrb[0].mxu0
        %v647 = vpop.f32.mrb[0].mxu0
        %648 = vdwg.mxu0
        %v649 = vadd.f32 %v596, %v644
        %s650 = sadd.s32 %s179, 1
        %s651 = smul.u32 %s650, 2
        %s652 = smul.addr %s651, 4
        %s653 = scalar_lea.vmem %s165, %s652
        %v654 = vld [vmem:[%s653] sm:$0xf]
        %v655 = vld [vmem:[%s653 + $0x4] sm:$0x1]
        %v656 = vunpack.c.l.bf16 %v654
        %v657 = vunpack.c.l.bf16 %v655
        %s658 = sadd.s32 %s651, 32
        %s659 = smul.addr %s658, 4
        %s660 = scalar_lea.vmem %s165, %s659
        %v661 = vld [vmem:[%s660] sm:$0xf]
        %v662 = vld [vmem:[%s660 + $0x4] sm:$0x1]
        %v663 = vunpack.c.l.bf16 %v661
        %v664 = vunpack.c.l.bf16 %v662
        %v665 = vpack.c.bf16 %v656, %v656
        %v666 = vpack.c.bf16 %v657, %v656
        %v667 = vpack.c.bf16 %v663, %v663
        %v668 = vpack.c.bf16 %v664, %v663
        %s669 = scalar_lea.vmem %s1, 192
        %v670 = vld [vmem:[%s669] sm:$0xf]
        %v671 = vld [vmem:[%s669 + $0x4] sm:$0xf]
        %v672 = vld [vmem:[%s669 + $0x8] sm:$0xf]
        %v673 = vld [vmem:[%s669 + $0xc] sm:$0xf]
        %v674 = vld [vmem:[%s669 + $0x10] sm:$0xf]
        %v675 = vld [vmem:[%s669 + $0x14] sm:$0xf]
        %v676 = vld [vmem:[%s669 + $0x18] sm:$0xf]
        %v677 = vld [vmem:[%s669 + $0x1c] sm:$0xf]
        %v678 = vld [vmem:[%s669 + $0x20] sm:$0xf]
        %v679 = vld [vmem:[%s669 + $0x24] sm:$0xf]
        %v680 = vld [vmem:[%s669 + $0x28] sm:$0xf]
        %v681 = vld [vmem:[%s669 + $0x2c] sm:$0xf]
        %v682 = vld [vmem:[%s669 + $0x30] sm:$0xf]
        %v683 = vld [vmem:[%s669 + $0x34] sm:$0xf]
        %v684 = vld [vmem:[%s669 + $0x38] sm:$0xf]
        %v685 = vld [vmem:[%s669 + $0x3c] sm:$0xf]
        %s686 = scalar_lea.vmem %s1, 256
        %v687 = vld [vmem:[%s686] sm:$0xf]
        %v688 = vld [vmem:[%s686 + $0x4] sm:$0xf]
        %v689 = vld [vmem:[%s686 + $0x8] sm:$0xf]
        %v690 = vld [vmem:[%s686 + $0xc] sm:$0xf]
        %v691 = vld [vmem:[%s686 + $0x10] sm:$0xf]
        %v692 = vld [vmem:[%s686 + $0x14] sm:$0xf]
        %v693 = vld [vmem:[%s686 + $0x18] sm:$0xf]
        %v694 = vld [vmem:[%s686 + $0x1c] sm:$0xf]
        %v695 = vld [vmem:[%s686 + $0x20] sm:$0xf]
        %v696 = vld [vmem:[%s686 + $0x24] sm:$0xf]
        %v697 = vld [vmem:[%s686 + $0x28] sm:$0xf]
        %v698 = vld [vmem:[%s686 + $0x2c] sm:$0xf]
        %v699 = vld [vmem:[%s686 + $0x30] sm:$0xf]
        %v700 = vld [vmem:[%s686 + $0x34] sm:$0xf]
        %v701 = vld [vmem:[%s686 + $0x38] sm:$0xf]
        %v702 = vld [vmem:[%s686 + $0x3c] sm:$0xf]
        %s703 = scalar_lea.vmem %s1, 320
        %v704 = vld [vmem:[%s703] sm:$0xf]
        %v705 = vld [vmem:[%s703 + $0x4] sm:$0xf]
        %v706 = vld [vmem:[%s703 + $0x8] sm:$0xf]
        %v707 = vld [vmem:[%s703 + $0xc] sm:$0xf]
        %v708 = vld [vmem:[%s703 + $0x10] sm:$0xf]
        %v709 = vld [vmem:[%s703 + $0x14] sm:$0xf]
        %v710 = vld [vmem:[%s703 + $0x18] sm:$0xf]
        %v711 = vld [vmem:[%s703 + $0x1c] sm:$0xf]
        %v712 = vld [vmem:[%s703 + $0x20] sm:$0xf]
        %v713 = vld [vmem:[%s703 + $0x24] sm:$0xf]
        %v714 = vld [vmem:[%s703 + $0x28] sm:$0xf]
        %v715 = vld [vmem:[%s703 + $0x2c] sm:$0xf]
        %v716 = vld [vmem:[%s703 + $0x30] sm:$0xf]
        %v717 = vld [vmem:[%s703 + $0x34] sm:$0xf]
        %v718 = vld [vmem:[%s703 + $0x38] sm:$0xf]
        %v719 = vld [vmem:[%s703 + $0x3c] sm:$0xf]
        %v736 = vunpack.c.l.b16 %v670
        %v737 = vunpack.c.l.b16 %v671
        %v738 = vunpack.c.l.b16 %v672
        %v739 = vunpack.c.l.b16 %v673
        %v740 = vunpack.c.l.b16 %v674
        %v741 = vunpack.c.l.b16 %v675
        %v742 = vunpack.c.l.b16 %v676
        %v743 = vunpack.c.l.b16 %v677
        %v744 = vunpack.c.l.b16 %v678
        %v745 = vunpack.c.l.b16 %v679
        %v746 = vunpack.c.l.b16 %v680
        %v747 = vunpack.c.l.b16 %v681
        %v748 = vunpack.c.l.b16 %v682
        %v749 = vunpack.c.l.b16 %v683
        %v750 = vunpack.c.l.b16 %v684
        %v751 = vunpack.c.l.b16 %v685
        %v752 = vpack.c.b16 %v737, %v736
        %v753 = vpack.c.b16 %v739, %v738
        %v754 = vpack.c.b16 %v741, %v740
        %v755 = vpack.c.b16 %v743, %v742
        %v756 = vpack.c.b16 %v745, %v744
        %v757 = vpack.c.b16 %v747, %v746
        %v758 = vpack.c.b16 %v749, %v748
        %v759 = vpack.c.b16 %v751, %v750
        %768 = vmatprep.subr.bf16.mxu0 0
        %769 = vmatpush1.bf16.msra.mxu0 %v752
        %770 = vmatprep.subr.bf16.mxu0 0
        %771 = vmatpush1.bf16.msra.mxu0 %v753
        %772 = vmatprep.subr.bf16.mxu0 0
        %773 = vmatpush1.bf16.msra.mxu0 %v754
        %774 = vmatprep.subr.bf16.mxu0 0
        %775 = vmatpush1.bf16.msra.mxu0 %v755
        %776 = vmatprep.subr.bf16.mxu0 0
        %777 = vmatpush1.bf16.msra.mxu0 %v756
        %778 = vmatprep.subr.bf16.mxu0 0
        %779 = vmatpush1.bf16.msra.mxu0 %v757
        %780 = vmatprep.subr.bf16.mxu0 0
        %781 = vmatpush1.bf16.msra.mxu0 %v758
        %782 = vmatprep.subr.bf16.mxu0 0
        %783 = vmatpush1.bf16.msra.mxu0 %v759
        %784 = vmatprep.subr.bf16.mxu0 0
        %785 = vmatpush1.bf16.msra.mxu0 0
        %786 = vmatprep.subr.bf16.mxu0 0
        %787 = vmatpush1.bf16.msra.mxu0 0
        %788 = vmatprep.subr.bf16.mxu0 0
        %789 = vmatpush1.bf16.msra.mxu0 0
        %790 = vmatprep.subr.bf16.mxu0 0
        %791 = vmatpush1.bf16.msra.mxu0 0
        %792 = vmatprep.subr.bf16.mxu0 0
        %793 = vmatpush1.bf16.msra.mxu0 0
        %794 = vmatprep.subr.bf16.mxu0 0
        %795 = vmatpush1.bf16.msra.mxu0 0
        %796 = vmatprep.subr.bf16.mxu0 0
        %797 = vmatpush1.bf16.msra.mxu0 0
        %798 = vmatprep.subr.bf16.mxu0 0
        %799 = vmatpush1.bf16.msra.mxu0 0
        %800 = vmatprep.mubr.bf16.mxu0 0
        %801 = vmatmul.mubr.bf16.gmra.mrb[0].mxu0 %v665
        %v802 = vpop.f32.mrb[0].mxu0
        %v803 = vadd.f32 0.0, %v802
        %v804 = vpop.f32.mrb[0].mxu0
        %v805 = vpop.f32.mrb[0].mxu0
        %v806 = vpop.f32.mrb[0].mxu0
        %807 = vdwg.mxu0
        %v808 = vadd.f32 %v520, %v803
        %v825 = vunpack.c.l.b16 %v687
        %v826 = vunpack.c.l.b16 %v688
        %v827 = vunpack.c.l.b16 %v689
        %v828 = vunpack.c.l.b16 %v690
        %v829 = vunpack.c.l.b16 %v691
        %v830 = vunpack.c.l.b16 %v692
        %v831 = vunpack.c.l.b16 %v693
        %v832 = vunpack.c.l.b16 %v694
        %v833 = vunpack.c.l.b16 %v695
        %v834 = vunpack.c.l.b16 %v696
        %v835 = vunpack.c.l.b16 %v697
        %v836 = vunpack.c.l.b16 %v698
        %v837 = vunpack.c.l.b16 %v699
        %v838 = vunpack.c.l.b16 %v700
        %v839 = vunpack.c.l.b16 %v701
        %v840 = vunpack.c.l.b16 %v702
        %v841 = vpack.c.b16 %v826, %v825
        %v842 = vpack.c.b16 %v828, %v827
        %v843 = vpack.c.b16 %v830, %v829
        %v844 = vpack.c.b16 %v832, %v831
        %v845 = vpack.c.b16 %v834, %v833
        %v846 = vpack.c.b16 %v836, %v835
        %v847 = vpack.c.b16 %v838, %v837
        %v848 = vpack.c.b16 %v840, %v839
        %857 = vmatprep.subr.bf16.mxu0 0
        %858 = vmatpush1.bf16.msra.mxu0 %v841
        %859 = vmatprep.subr.bf16.mxu0 0
        %860 = vmatpush1.bf16.msra.mxu0 %v842
        %861 = vmatprep.subr.bf16.mxu0 0
        %862 = vmatpush1.bf16.msra.mxu0 %v843
        %863 = vmatprep.subr.bf16.mxu0 0
        %864 = vmatpush1.bf16.msra.mxu0 %v844
        %865 = vmatprep.subr.bf16.mxu0 0
        %866 = vmatpush1.bf16.msra.mxu0 %v845
        %867 = vmatprep.subr.bf16.mxu0 0
        %868 = vmatpush1.bf16.msra.mxu0 %v846
        %869 = vmatprep.subr.bf16.mxu0 0
        %870 = vmatpush1.bf16.msra.mxu0 %v847
        %871 = vmatprep.subr.bf16.mxu0 0
        %872 = vmatpush1.bf16.msra.mxu0 %v848
        %873 = vmatprep.subr.bf16.mxu0 0
        %874 = vmatpush1.bf16.msra.mxu0 0
        %875 = vmatprep.subr.bf16.mxu0 0
        %876 = vmatpush1.bf16.msra.mxu0 0
        %877 = vmatprep.subr.bf16.mxu0 0
        %878 = vmatpush1.bf16.msra.mxu0 0
        %879 = vmatprep.subr.bf16.mxu0 0
        %880 = vmatpush1.bf16.msra.mxu0 0
        %881 = vmatprep.subr.bf16.mxu0 0
        %882 = vmatpush1.bf16.msra.mxu0 0
        %883 = vmatprep.subr.bf16.mxu0 0
        %884 = vmatpush1.bf16.msra.mxu0 0
        %885 = vmatprep.subr.bf16.mxu0 0
        %886 = vmatpush1.bf16.msra.mxu0 0
        %887 = vmatprep.subr.bf16.mxu0 0
        %888 = vmatpush1.bf16.msra.mxu0 0
        %889 = vmatprep.mubr.bf16.mxu0 0
        %890 = vmatmul.mubr.bf16.gmra.mrb[0].mxu0 %v667
        %v891 = vpop.f32.mrb[0].mxu0
        %v892 = vadd.f32 0.0, %v891
        %v893 = vpop.f32.mrb[0].mxu0
        %v894 = vpop.f32.mrb[0].mxu0
        %v895 = vpop.f32.mrb[0].mxu0
        %896 = vdwg.mxu0
        %v897 = vadd.f32 %v808, %v892
        %v899 = vshrl.u32 %v666, 16
        %v901 = vshll.u32 %v666, 16
        %v903 = vrot.slane %v901, 1
        %v904 = vor.u32 %v899, %v903
        %v922 = vunpack.c.l.b16 %v704
        %v923 = vunpack.c.l.b16 %v705
        %v924 = vunpack.c.l.b16 %v706
        %v925 = vunpack.c.l.b16 %v707
        %v926 = vunpack.c.l.b16 %v708
        %v927 = vunpack.c.l.b16 %v709
        %v928 = vunpack.c.l.b16 %v710
        %v929 = vunpack.c.l.b16 %v711
        %v930 = vunpack.c.l.b16 %v712
        %v931 = vunpack.c.l.b16 %v713
        %v932 = vunpack.c.l.b16 %v714
        %v933 = vunpack.c.l.b16 %v715
        %v934 = vunpack.c.l.b16 %v716
        %v935 = vunpack.c.l.b16 %v717
        %v936 = vunpack.c.l.b16 %v718
        %v937 = vunpack.c.l.b16 %v719
        %v938 = vpack.c.b16 %v923, %v922
        %v939 = vpack.c.b16 %v925, %v924
        %v940 = vpack.c.b16 %v927, %v926
        %v941 = vpack.c.b16 %v929, %v928
        %v942 = vpack.c.b16 %v931, %v930
        %v943 = vpack.c.b16 %v933, %v932
        %v944 = vpack.c.b16 %v935, %v934
        %v945 = vpack.c.b16 %v937, %v936
        %954 = vmatprep.subr.bf16.mxu0 0
        %955 = vmatpush1.bf16.msra.mxu0 %v938
        %956 = vmatprep.subr.bf16.mxu0 0
        %957 = vmatpush1.bf16.msra.mxu0 %v939
        %958 = vmatprep.subr.bf16.mxu0 0
        %959 = vmatpush1.bf16.msra.mxu0 %v940
        %960 = vmatprep.subr.bf16.mxu0 0
        %961 = vmatpush1.bf16.msra.mxu0 %v941
        %962 = vmatprep.subr.bf16.mxu0 0
        %963 = vmatpush1.bf16.msra.mxu0 %v942
        %964 = vmatprep.subr.bf16.mxu0 0
        %965 = vmatpush1.bf16.msra.mxu0 %v943
        %966 = vmatprep.subr.bf16.mxu0 0
        %967 = vmatpush1.bf16.msra.mxu0 %v944
        %968 = vmatprep.subr.bf16.mxu0 0
        %969 = vmatpush1.bf16.msra.mxu0 %v945
        %970 = vmatprep.subr.bf16.mxu0 0
        %971 = vmatpush1.bf16.msra.mxu0 0
        %972 = vmatprep.subr.bf16.mxu0 0
        %973 = vmatpush1.bf16.msra.mxu0 0
        %974 = vmatprep.subr.bf16.mxu0 0
        %975 = vmatpush1.bf16.msra.mxu0 0
        %976 = vmatprep.subr.bf16.mxu0 0
        %977 = vmatpush1.bf16.msra.mxu0 0
        %978 = vmatprep.subr.bf16.mxu0 0
        %979 = vmatpush1.bf16.msra.mxu0 0
        %980 = vmatprep.subr.bf16.mxu0 0
        %981 = vmatpush1.bf16.msra.mxu0 0
        %982 = vmatprep.subr.bf16.mxu0 0
        %983 = vmatpush1.bf16.msra.mxu0 0
        %984 = vmatprep.subr.bf16.mxu0 0
        %985 = vmatpush1.bf16.msra.mxu0 0
        %986 = vmatprep.mubr.bf16.mxu0 0
        %987 = vmatmul.mubr.bf16.gmra.mrb[0].mxu0 %v904
        %v988 = vpop.f32.mrb[0].mxu0
        %v989 = vadd.f32 0.0, %v988
        %v990 = vpop.f32.mrb[0].mxu0
        %v991 = vpop.f32.mrb[0].mxu0
        %v992 = vpop.f32.mrb[0].mxu0
        %993 = vdwg.mxu0
        %v994 = vadd.f32 %v897, %v989
        %995 = vmatprep.subr.bf16.mxu0 0
        %996 = vmatpush1.bf16.msra.mxu0 %v752
        %997 = vmatprep.subr.bf16.mxu0 0
        %998 = vmatpush1.bf16.msra.mxu0 %v753
        %999 = vmatprep.subr.bf16.mxu0 0
        %1000 = vmatpush1.bf16.msra.mxu0 %v754
        %1001 = vmatprep.subr.bf16.mxu0 0
        %1002 = vmatpush1.bf16.msra.mxu0 %v755
        %1003 = vmatprep.subr.bf16.mxu0 0
        %1004 = vmatpush1.bf16.msra.mxu0 %v756
        %1005 = vmatprep.subr.bf16.mxu0 0
        %1006 = vmatpush1.bf16.msra.mxu0 %v757
        %1007 = vmatprep.subr.bf16.mxu0 0
        %1008 = vmatpush1.bf16.msra.mxu0 %v758
        %1009 = vmatprep.subr.bf16.mxu0 0
        %1010 = vmatpush1.bf16.msra.mxu0 %v759
        %1011 = vmatprep.subr.bf16.mxu0 0
        %1012 = vmatpush1.bf16.msra.mxu0 0
        %1013 = vmatprep.subr.bf16.mxu0 0
        %1014 = vmatpush1.bf16.msra.mxu0 0
        %1015 = vmatprep.subr.bf16.mxu0 0
        %1016 = vmatpush1.bf16.msra.mxu0 0
        %1017 = vmatprep.subr.bf16.mxu0 0
        %1018 = vmatpush1.bf16.msra.mxu0 0
        %1019 = vmatprep.subr.bf16.mxu0 0
        %1020 = vmatpush1.bf16.msra.mxu0 0
        %1021 = vmatprep.subr.bf16.mxu0 0
        %1022 = vmatpush1.bf16.msra.mxu0 0
        %1023 = vmatprep.subr.bf16.mxu0 0
        %1024 = vmatpush1.bf16.msra.mxu0 0
        %1025 = vmatprep.subr.bf16.mxu0 0
        %1026 = vmatpush1.bf16.msra.mxu0 0
        %1027 = vmatprep.mubr.bf16.mxu0 0
        %1028 = vmatmul.mubr.bf16.gmra.mrb[0].mxu0 %v667
        %v1029 = vpop.f32.mrb[0].mxu0
        %v1030 = vadd.f32 0.0, %v1029
        %v1031 = vpop.f32.mrb[0].mxu0
        %v1032 = vpop.f32.mrb[0].mxu0
        %v1033 = vpop.f32.mrb[0].mxu0
        %1034 = vdwg.mxu0
        %v1035 = vadd.f32 %v649, %v1030
        %1036 = vmatprep.subr.bf16.mxu0 0
        %1037 = vmatpush1.bf16.msra.mxu0 %v841
        %1038 = vmatprep.subr.bf16.mxu0 0
        %1039 = vmatpush1.bf16.msra.mxu0 %v842
        %1040 = vmatprep.subr.bf16.mxu0 0
        %1041 = vmatpush1.bf16.msra.mxu0 %v843
        %1042 = vmatprep.subr.bf16.mxu0 0
        %1043 = vmatpush1.bf16.msra.mxu0 %v844
        %1044 = vmatprep.subr.bf16.mxu0 0
        %1045 = vmatpush1.bf16.msra.mxu0 %v845
        %1046 = vmatprep.subr.bf16.mxu0 0
        %1047 = vmatpush1.bf16.msra.mxu0 %v846
        %1048 = vmatprep.subr.bf16.mxu0 0
        %1049 = vmatpush1.bf16.msra.mxu0 %v847
        %1050 = vmatprep.subr.bf16.mxu0 0
        %1051 = vmatpush1.bf16.msra.mxu0 %v848
        %1052 = vmatprep.subr.bf16.mxu0 0
        %1053 = vmatpush1.bf16.msra.mxu0 0
        %1054 = vmatprep.subr.bf16.mxu0 0
        %1055 = vmatpush1.bf16.msra.mxu0 0
        %1056 = vmatprep.subr.bf16.mxu0 0
        %1057 = vmatpush1.bf16.msra.mxu0 0
        %1058 = vmatprep.subr.bf16.mxu0 0
        %1059 = vmatpush1.bf16.msra.mxu0 0
        %1060 = vmatprep.subr.bf16.mxu0 0
        %1061 = vmatpush1.bf16.msra.mxu0 0
        %1062 = vmatprep.subr.bf16.mxu0 0
        %1063 = vmatpush1.bf16.msra.mxu0 0
        %1064 = vmatprep.subr.bf16.mxu0 0
        %1065 = vmatpush1.bf16.msra.mxu0 0
        %1066 = vmatprep.subr.bf16.mxu0 0
        %1067 = vmatpush1.bf16.msra.mxu0 0
        %1068 = vmatprep.mubr.bf16.mxu0 0
        %1069 = vmatmul.mubr.bf16.gmra.mrb[0].mxu0 %v904
        %v1070 = vpop.f32.mrb[0].mxu0
        %v1071 = vadd.f32 0.0, %v1070
        %v1072 = vpop.f32.mrb[0].mxu0
        %v1073 = vpop.f32.mrb[0].mxu0
        %v1074 = vpop.f32.mrb[0].mxu0
        %1075 = vdwg.mxu0
        %v1076 = vadd.f32 %v1035, %v1071
        %v1078 = vshrl.u32 %v668, 16
        %v1080 = vshll.u32 %v668, 16
        %v1082 = vrot.slane %v1080, 1
        %v1083 = vor.u32 %v1078, %v1082
        %1085 = vmatprep.subr.bf16.mxu0 0
        %1086 = vmatpush1.bf16.msra.mxu0 %v938
        %1087 = vmatprep.subr.bf16.mxu0 0
        %1088 = vmatpush1.bf16.msra.mxu0 %v939
        %1089 = vmatprep.subr.bf16.mxu0 0
        %1090 = vmatpush1.bf16.msra.mxu0 %v940
        %1091 = vmatprep.subr.bf16.mxu0 0
        %1092 = vmatpush1.bf16.msra.mxu0 %v941
        %1093 = vmatprep.subr.bf16.mxu0 0
        %1094 = vmatpush1.bf16.msra.mxu0 %v942
        %1095 = vmatprep.subr.bf16.mxu0 0
        %1096 = vmatpush1.bf16.msra.mxu0 %v943
        %1097 = vmatprep.subr.bf16.mxu0 0
        %1098 = vmatpush1.bf16.msra.mxu0 %v944
        %1099 = vmatprep.subr.bf16.mxu0 0
        %1100 = vmatpush1.bf16.msra.mxu0 %v945
        %1101 = vmatprep.subr.bf16.mxu0 0
        %1102 = vmatpush1.bf16.msra.mxu0 0
        %1103 = vmatprep.subr.bf16.mxu0 0
        %1104 = vmatpush1.bf16.msra.mxu0 0
        %1105 = vmatprep.subr.bf16.mxu0 0
        %1106 = vmatpush1.bf16.msra.mxu0 0
        %1107 = vmatprep.subr.bf16.mxu0 0
        %1108 = vmatpush1.bf16.msra.mxu0 0
        %1109 = vmatprep.subr.bf16.mxu0 0
        %1110 = vmatpush1.bf16.msra.mxu0 0
        %1111 = vmatprep.subr.bf16.mxu0 0
        %1112 = vmatpush1.bf16.msra.mxu0 0
        %1113 = vmatprep.subr.bf16.mxu0 0
        %1114 = vmatpush1.bf16.msra.mxu0 0
        %1115 = vmatprep.subr.bf16.mxu0 0
        %1116 = vmatpush1.bf16.msra.mxu0 0
        %1117 = vmatprep.mubr.bf16.mxu0 0
        %1118 = vmatmul.mubr.bf16.gmra.mrb[0].mxu0 %v1083
        %v1119 = vpop.f32.mrb[0].mxu0
        %v1120 = vadd.f32 0.0, %v1119
        %v1121 = vpop.f32.mrb[0].mxu0
        %v1122 = vpop.f32.mrb[0].mxu0
        %v1123 = vpop.f32.mrb[0].mxu0
        %1124 = vdwg.mxu0
        %v1125 = vadd.f32 %v1076, %v1120
        %s1126 = sadd.s32 %s179, 2
        %s1127 = smul.u32 %s1126, 2
        %s1128 = smul.addr %s1127, 4
        %s1129 = scalar_lea.vmem %s165, %s1128
        %v1130 = vld [vmem:[%s1129] sm:$0xf]
        %v1131 = vld [vmem:[%s1129 + $0x4] sm:$0x1]
        %v1132 = vunpack.c.l.bf16 %v1130
        %v1133 = vunpack.c.l.bf16 %v1131
        %s1134 = sadd.s32 %s1127, 32
        %s1135 = smul.addr %s1134, 4
        %s1136 = scalar_lea.vmem %s165, %s1135
        %v1137 = vld [vmem:[%s1136] sm:$0xf]
        %v1138 = vld [vmem:[%s1136 + $0x4] sm:$0x1]
        %v1139 = vunpack.c.l.bf16 %v1137
        %v1140 = vunpack.c.l.bf16 %v1138
        %v1141 = vpack.c.bf16 %v1132, %v1132
        %v1142 = vpack.c.bf16 %v1133, %v1132
        %v1143 = vpack.c.bf16 %v1139, %v1139
        %v1144 = vpack.c.bf16 %v1140, %v1139
        %s1145 = scalar_lea.vmem %s1, 384
        %v1146 = vld [vmem:[%s1145] sm:$0xf]
        %v1147 = vld [vmem:[%s1145 + $0x4] sm:$0xf]
        %v1148 = vld [vmem:[%s1145 + $0x8] sm:$0xf]
        %v1149 = vld [vmem:[%s1145 + $0xc] sm:$0xf]
        %v1150 = vld [vmem:[%s1145 + $0x10] sm:$0xf]
        %v1151 = vld [vmem:[%s1145 + $0x14] sm:$0xf]
        %v1152 = vld [vmem:[%s1145 + $0x18] sm:$0xf]
        %v1153 = vld [vmem:[%s1145 + $0x1c] sm:$0xf]
        %v1154 = vld [vmem:[%s1145 + $0x20] sm:$0xf]
        %v1155 = vld [vmem:[%s1145 + $0x24] sm:$0xf]
        %v1156 = vld [vmem:[%s1145 + $0x28] sm:$0xf]
        %v1157 = vld [vmem:[%s1145 + $0x2c] sm:$0xf]
        %v1158 = vld [vmem:[%s1145 + $0x30] sm:$0xf]
        %v1159 = vld [vmem:[%s1145 + $0x34] sm:$0xf]
        %v1160 = vld [vmem:[%s1145 + $0x38] sm:$0xf]
        %v1161 = vld [vmem:[%s1145 + $0x3c] sm:$0xf]
        %s1162 = scalar_lea.vmem %s1, 448
        %v1163 = vld [vmem:[%s1162] sm:$0xf]
        %v1164 = vld [vmem:[%s1162 + $0x4] sm:$0xf]
        %v1165 = vld [vmem:[%s1162 + $0x8] sm:$0xf]
        %v1166 = vld [vmem:[%s1162 + $0xc] sm:$0xf]
        %v1167 = vld [vmem:[%s1162 + $0x10] sm:$0xf]
        %v1168 = vld [vmem:[%s1162 + $0x14] sm:$0xf]
        %v1169 = vld [vmem:[%s1162 + $0x18] sm:$0xf]
        %v1170 = vld [vmem:[%s1162 + $0x1c] sm:$0xf]
        %v1171 = vld [vmem:[%s1162 + $0x20] sm:$0xf]
        %v1172 = vld [vmem:[%s1162 + $0x24] sm:$0xf]
        %v1173 = vld [vmem:[%s1162 + $0x28] sm:$0xf]
        %v1174 = vld [vmem:[%s1162 + $0x2c] sm:$0xf]
        %v1175 = vld [vmem:[%s1162 + $0x30] sm:$0xf]
        %v1176 = vld [vmem:[%s1162 + $0x34] sm:$0xf]
        %v1177 = vld [vmem:[%s1162 + $0x38] sm:$0xf]
        %v1178 = vld [vmem:[%s1162 + $0x3c] sm:$0xf]
        %s1179 = scalar_lea.vmem %s1, 512
        %v1180 = vld [vmem:[%s1179] sm:$0xf]
        %v1181 = vld [vmem:[%s1179 + $0x4] sm:$0xf]
        %v1182 = vld [vmem:[%s1179 + $0x8] sm:$0xf]
        %v1183 = vld [vmem:[%s1179 + $0xc] sm:$0xf]
        %v1184 = vld [vmem:[%s1179 + $0x10] sm:$0xf]
        %v1185 = vld [vmem:[%s1179 + $0x14] sm:$0xf]
        %v1186 = vld [vmem:[%s1179 + $0x18] sm:$0xf]
        %v1187 = vld [vmem:[%s1179 + $0x1c] sm:$0xf]
        %v1188 = vld [vmem:[%s1179 + $0x20] sm:$0xf]
        %v1189 = vld [vmem:[%s1179 + $0x24] sm:$0xf]
        %v1190 = vld [vmem:[%s1179 + $0x28] sm:$0xf]
        %v1191 = vld [vmem:[%s1179 + $0x2c] sm:$0xf]
        %v1192 = vld [vmem:[%s1179 + $0x30] sm:$0xf]
        %v1193 = vld [vmem:[%s1179 + $0x34] sm:$0xf]
        %v1194 = vld [vmem:[%s1179 + $0x38] sm:$0xf]
        %v1195 = vld [vmem:[%s1179 + $0x3c] sm:$0xf]
        %v1212 = vunpack.c.l.b16 %v1146
        %v1213 = vunpack.c.l.b16 %v1147
        %v1214 = vunpack.c.l.b16 %v1148
        %v1215 = vunpack.c.l.b16 %v1149
        %v1216 = vunpack.c.l.b16 %v1150
        %v1217 = vunpack.c.l.b16 %v1151
        %v1218 = vunpack.c.l.b16 %v1152
        %v1219 = vunpack.c.l.b16 %v1153
        %v1220 = vunpack.c.l.b16 %v1154
        %v1221 = vunpack.c.l.b16 %v1155
        %v1222 = vunpack.c.l.b16 %v1156
        %v1223 = vunpack.c.l.b16 %v1157
        %v1224 = vunpack.c.l.b16 %v1158
        %v1225 = vunpack.c.l.b16 %v1159
        %v1226 = vunpack.c.l.b16 %v1160
        %v1227 = vunpack.c.l.b16 %v1161
        %v1228 = vpack.c.b16 %v1213, %v1212
        %v1229 = vpack.c.b16 %v1215, %v1214
        %v1230 = vpack.c.b16 %v1217, %v1216
        %v1231 = vpack.c.b16 %v1219, %v1218
        %v1232 = vpack.c.b16 %v1221, %v1220
        %v1233 = vpack.c.b16 %v1223, %v1222
        %v1234 = vpack.c.b16 %v1225, %v1224
        %v1235 = vpack.c.b16 %v1227, %v1226
        %1244 = vmatprep.subr.bf16.mxu0 0
        %1245 = vmatpush1.bf16.msra.mxu0 %v1228
        %1246 = vmatprep.subr.bf16.mxu0 0
        %1247 = vmatpush1.bf16.msra.mxu0 %v1229
        %1248 = vmatprep.subr.bf16.mxu0 0
        %1249 = vmatpush1.bf16.msra.mxu0 %v1230
        %1250 = vmatprep.subr.bf16.mxu0 0
        %1251 = vmatpush1.bf16.msra.mxu0 %v1231
        %1252 = vmatprep.subr.bf16.mxu0 0
        %1253 = vmatpush1.bf16.msra.mxu0 %v1232
        %1254 = vmatprep.subr.bf16.mxu0 0
        %1255 = vmatpush1.bf16.msra.mxu0 %v1233
        %1256 = vmatprep.subr.bf16.mxu0 0
        %1257 = vmatpush1.bf16.msra.mxu0 %v1234
        %1258 = vmatprep.subr.bf16.mxu0 0
        %1259 = vmatpush1.bf16.msra.mxu0 %v1235
        %1260 = vmatprep.subr.bf16.mxu0 0
        %1261 = vmatpush1.bf16.msra.mxu0 0
        %1262 = vmatprep.subr.bf16.mxu0 0
        %1263 = vmatpush1.bf16.msra.mxu0 0
        %1264 = vmatprep.subr.bf16.mxu0 0
        %1265 = vmatpush1.bf16.msra.mxu0 0
        %1266 = vmatprep.subr.bf16.mxu0 0
        %1267 = vmatpush1.bf16.msra.mxu0 0
        %1268 = vmatprep.subr.bf16.mxu0 0
        %1269 = vmatpush1.bf16.msra.mxu0 0
        %1270 = vmatprep.subr.bf16.mxu0 0
        %1271 = vmatpush1.bf16.msra.mxu0 0
        %1272 = vmatprep.subr.bf16.mxu0 0
        %1273 = vmatpush1.bf16.msra.mxu0 0
        %1274 = vmatprep.subr.bf16.mxu0 0
        %1275 = vmatpush1.bf16.msra.mxu0 0
        %1276 = vmatprep.mubr.bf16.mxu0 0
        %1277 = vmatmul.mubr.bf16.gmra.mrb[0].mxu0 %v1141
        %v1278 = vpop.f32.mrb[0].mxu0
        %v1279 = vadd.f32 0.0, %v1278
        %v1280 = vpop.f32.mrb[0].mxu0
        %v1281 = vpop.f32.mrb[0].mxu0
        %v1282 = vpop.f32.mrb[0].mxu0
        %1283 = vdwg.mxu0
        %v1284 = vadd.f32 %v994, %v1279
        %v1301 = vunpack.c.l.b16 %v1163
        %v1302 = vunpack.c.l.b16 %v1164
        %v1303 = vunpack.c.l.b16 %v1165
        %v1304 = vunpack.c.l.b16 %v1166
        %v1305 = vunpack.c.l.b16 %v1167
        %v1306 = vunpack.c.l.b16 %v1168
        %v1307 = vunpack.c.l.b16 %v1169
        %v1308 = vunpack.c.l.b16 %v1170
        %v1309 = vunpack.c.l.b16 %v1171
        %v1310 = vunpack.c.l.b16 %v1172
        %v1311 = vunpack.c.l.b16 %v1173
        %v1312 = vunpack.c.l.b16 %v1174
        %v1313 = vunpack.c.l.b16 %v1175
        %v1314 = vunpack.c.l.b16 %v1176
        %v1315 = vunpack.c.l.b16 %v1177
        %v1316 = vunpack.c.l.b16 %v1178
        %v1317 = vpack.c.b16 %v1302, %v1301
        %v1318 = vpack.c.b16 %v1304, %v1303
        %v1319 = vpack.c.b16 %v1306, %v1305
        %v1320 = vpack.c.b16 %v1308, %v1307
        %v1321 = vpack.c.b16 %v1310, %v1309
        %v1322 = vpack.c.b16 %v1312, %v1311
        %v1323 = vpack.c.b16 %v1314, %v1313
        %v1324 = vpack.c.b16 %v1316, %v1315
        %1333 = vmatprep.subr.bf16.mxu0 0
        %1334 = vmatpush1.bf16.msra.mxu0 %v1317
        %1335 = vmatprep.subr.bf16.mxu0 0
        %1336 = vmatpush1.bf16.msra.mxu0 %v1318
        %1337 = vmatprep.subr.bf16.mxu0 0
        %1338 = vmatpush1.bf16.msra.mxu0 %v1319
        %1339 = vmatprep.subr.bf16.mxu0 0
        %1340 = vmatpush1.bf16.msra.mxu0 %v1320
        %1341 = vmatprep.subr.bf16.mxu0 0
        %1342 = vmatpush1.bf16.msra.mxu0 %v1321
        %1343 = vmatprep.subr.bf16.mxu0 0
        %1344 = vmatpush1.bf16.msra.mxu0 %v1322
        %1345 = vmatprep.subr.bf16.mxu0 0
        %1346 = vmatpush1.bf16.msra.mxu0 %v1323
        %1347 = vmatprep.subr.bf16.mxu0 0
        %1348 = vmatpush1.bf16.msra.mxu0 %v1324
        %1349 = vmatprep.subr.bf16.mxu0 0
        %1350 = vmatpush1.bf16.msra.mxu0 0
        %1351 = vmatprep.subr.bf16.mxu0 0
        %1352 = vmatpush1.bf16.msra.mxu0 0
        %1353 = vmatprep.subr.bf16.mxu0 0
        %1354 = vmatpush1.bf16.msra.mxu0 0
        %1355 = vmatprep.subr.bf16.mxu0 0
        %1356 = vmatpush1.bf16.msra.mxu0 0
        %1357 = vmatprep.subr.bf16.mxu0 0
        %1358 = vmatpush1.bf16.msra.mxu0 0
        %1359 = vmatprep.subr.bf16.mxu0 0
        %1360 = vmatpush1.bf16.msra.mxu0 0
        %1361 = vmatprep.subr.bf16.mxu0 0
        %1362 = vmatpush1.bf16.msra.mxu0 0
        %1363 = vmatprep.subr.bf16.mxu0 0
        %1364 = vmatpush1.bf16.msra.mxu0 0
        %1365 = vmatprep.mubr.bf16.mxu0 0
        %1366 = vmatmul.mubr.bf16.gmra.mrb[0].mxu0 %v1143
        %v1367 = vpop.f32.mrb[0].mxu0
        %v1368 = vadd.f32 0.0, %v1367
        %v1369 = vpop.f32.mrb[0].mxu0
        %v1370 = vpop.f32.mrb[0].mxu0
        %v1371 = vpop.f32.mrb[0].mxu0
        %1372 = vdwg.mxu0
        %v1373 = vadd.f32 %v1284, %v1368
        %v1375 = vshrl.u32 %v1142, 16
        %v1377 = vshll.u32 %v1142, 16
        %v1379 = vrot.slane %v1377, 1
        %v1380 = vor.u32 %v1375, %v1379
        %v1398 = vunpack.c.l.b16 %v1180
        %v1399 = vunpack.c.l.b16 %v1181
        %v1400 = vunpack.c.l.b16 %v1182
        %v1401 = vunpack.c.l.b16 %v1183
        %v1402 = vunpack.c.l.b16 %v1184
        %v1403 = vunpack.c.l.b16 %v1185
        %v1404 = vunpack.c.l.b16 %v1186
        %v1405 = vunpack.c.l.b16 %v1187
        %v1406 = vunpack.c.l.b16 %v1188
        %v1407 = vunpack.c.l.b16 %v1189
        %v1408 = vunpack.c.l.b16 %v1190
        %v1409 = vunpack.c.l.b16 %v1191
        %v1410 = vunpack.c.l.b16 %v1192
        %v1411 = vunpack.c.l.b16 %v1193
        %v1412 = vunpack.c.l.b16 %v1194
        %v1413 = vunpack.c.l.b16 %v1195
        %v1414 = vpack.c.b16 %v1399, %v1398
        %v1415 = vpack.c.b16 %v1401, %v1400
        %v1416 = vpack.c.b16 %v1403, %v1402
        %v1417 = vpack.c.b16 %v1405, %v1404
        %v1418 = vpack.c.b16 %v1407, %v1406
        %v1419 = vpack.c.b16 %v1409, %v1408
        %v1420 = vpack.c.b16 %v1411, %v1410
        %v1421 = vpack.c.b16 %v1413, %v1412
        %1430 = vmatprep.subr.bf16.mxu0 0
        %1431 = vmatpush1.bf16.msra.mxu0 %v1414
        %1432 = vmatprep.subr.bf16.mxu0 0
        %1433 = vmatpush1.bf16.msra.mxu0 %v1415
        %1434 = vmatprep.subr.bf16.mxu0 0
        %1435 = vmatpush1.bf16.msra.mxu0 %v1416
        %1436 = vmatprep.subr.bf16.mxu0 0
        %1437 = vmatpush1.bf16.msra.mxu0 %v1417
        %1438 = vmatprep.subr.bf16.mxu0 0
        %1439 = vmatpush1.bf16.msra.mxu0 %v1418
        %1440 = vmatprep.subr.bf16.mxu0 0
        %1441 = vmatpush1.bf16.msra.mxu0 %v1419
        %1442 = vmatprep.subr.bf16.mxu0 0
        %1443 = vmatpush1.bf16.msra.mxu0 %v1420
        %1444 = vmatprep.subr.bf16.mxu0 0
        %1445 = vmatpush1.bf16.msra.mxu0 %v1421
        %1446 = vmatprep.subr.bf16.mxu0 0
        %1447 = vmatpush1.bf16.msra.mxu0 0
        %1448 = vmatprep.subr.bf16.mxu0 0
        %1449 = vmatpush1.bf16.msra.mxu0 0
        %1450 = vmatprep.subr.bf16.mxu0 0
        %1451 = vmatpush1.bf16.msra.mxu0 0
        %1452 = vmatprep.subr.bf16.mxu0 0
        %1453 = vmatpush1.bf16.msra.mxu0 0
        %1454 = vmatprep.subr.bf16.mxu0 0
        %1455 = vmatpush1.bf16.msra.mxu0 0
        %1456 = vmatprep.subr.bf16.mxu0 0
        %1457 = vmatpush1.bf16.msra.mxu0 0
        %1458 = vmatprep.subr.bf16.mxu0 0
        %1459 = vmatpush1.bf16.msra.mxu0 0
        %1460 = vmatprep.subr.bf16.mxu0 0
        %1461 = vmatpush1.bf16.msra.mxu0 0
        %1462 = vmatprep.mubr.bf16.mxu0 0
        %1463 = vmatmul.mubr.bf16.gmra.mrb[0].mxu0 %v1380
        %v1464 = vpop.f32.mrb[0].mxu0
        %v1465 = vadd.f32 0.0, %v1464
        %v1466 = vpop.f32.mrb[0].mxu0
        %v1467 = vpop.f32.mrb[0].mxu0
        %v1468 = vpop.f32.mrb[0].mxu0
        %1469 = vdwg.mxu0
        %v1470 = vadd.f32 %v1373, %v1465
        %1471 = vmatprep.subr.bf16.mxu0 0
        %1472 = vmatpush1.bf16.msra.mxu0 %v1228
        %1473 = vmatprep.subr.bf16.mxu0 0
        %1474 = vmatpush1.bf16.msra.mxu0 %v1229
        %1475 = vmatprep.subr.bf16.mxu0 0
        %1476 = vmatpush1.bf16.msra.mxu0 %v1230
        %1477 = vmatprep.subr.bf16.mxu0 0
        %1478 = vmatpush1.bf16.msra.mxu0 %v1231
        %1479 = vmatprep.subr.bf16.mxu0 0
        %1480 = vmatpush1.bf16.msra.mxu0 %v1232
        %1481 = vmatprep.subr.bf16.mxu0 0
        %1482 = vmatpush1.bf16.msra.mxu0 %v1233
        %1483 = vmatprep.subr.bf16.mxu0 0
        %1484 = vmatpush1.bf16.msra.mxu0 %v1234
        %1485 = vmatprep.subr.bf16.mxu0 0
        %1486 = vmatpush1.bf16.msra.mxu0 %v1235
        %1487 = vmatprep.subr.bf16.mxu0 0
        %1488 = vmatpush1.bf16.msra.mxu0 0
        %1489 = vmatprep.subr.bf16.mxu0 0
        %1490 = vmatpush1.bf16.msra.mxu0 0
        %1491 = vmatprep.subr.bf16.mxu0 0
        %1492 = vmatpush1.bf16.msra.mxu0 0
        %1493 = vmatprep.subr.bf16.mxu0 0
        %1494 = vmatpush1.bf16.msra.mxu0 0
        %1495 = vmatprep.subr.bf16.mxu0 0
        %1496 = vmatpush1.bf16.msra.mxu0 0
        %1497 = vmatprep.subr.bf16.mxu0 0
        %1498 = vmatpush1.bf16.msra.mxu0 0
        %1499 = vmatprep.subr.bf16.mxu0 0
        %1500 = vmatpush1.bf16.msra.mxu0 0
        %1501 = vmatprep.subr.bf16.mxu0 0
        %1502 = vmatpush1.bf16.msra.mxu0 0
        %1503 = vmatprep.mubr.bf16.mxu0 0
        %1504 = vmatmul.mubr.bf16.gmra.mrb[0].mxu0 %v1143
        %v1505 = vpop.f32.mrb[0].mxu0
        %v1506 = vadd.f32 0.0, %v1505
        %v1507 = vpop.f32.mrb[0].mxu0
        %v1508 = vpop.f32.mrb[0].mxu0
        %v1509 = vpop.f32.mrb[0].mxu0
        %1510 = vdwg.mxu0
        %v1511 = vadd.f32 %v1125, %v1506
        %1512 = vmatprep.subr.bf16.mxu0 0
        %1513 = vmatpush1.bf16.msra.mxu0 %v1317
        %1514 = vmatprep.subr.bf16.mxu0 0
        %1515 = vmatpush1.bf16.msra.mxu0 %v1318
        %1516 = vmatprep.subr.bf16.mxu0 0
        %1517 = vmatpush1.bf16.msra.mxu0 %v1319
        %1518 = vmatprep.subr.bf16.mxu0 0
        %1519 = vmatpush1.bf16.msra.mxu0 %v1320
        %1520 = vmatprep.subr.bf16.mxu0 0
        %1521 = vmatpush1.bf16.msra.mxu0 %v1321
        %1522 = vmatprep.subr.bf16.mxu0 0
        %1523 = vmatpush1.bf16.msra.mxu0 %v1322
        %1524 = vmatprep.subr.bf16.mxu0 0
        %1525 = vmatpush1.bf16.msra.mxu0 %v1323
        %1526 = vmatprep.subr.bf16.mxu0 0
        %1527 = vmatpush1.bf16.msra.mxu0 %v1324
        %1528 = vmatprep.subr.bf16.mxu0 0
        %1529 = vmatpush1.bf16.msra.mxu0 0
        %1530 = vmatprep.subr.bf16.mxu0 0
        %1531 = vmatpush1.bf16.msra.mxu0 0
        %1532 = vmatprep.subr.bf16.mxu0 0
        %1533 = vmatpush1.bf16.msra.mxu0 0
        %1534 = vmatprep.subr.bf16.mxu0 0
        %1535 = vmatpush1.bf16.msra.mxu0 0
        %1536 = vmatprep.subr.bf16.mxu0 0
        %1537 = vmatpush1.bf16.msra.mxu0 0
        %1538 = vmatprep.subr.bf16.mxu0 0
        %1539 = vmatpush1.bf16.msra.mxu0 0
        %1540 = vmatprep.subr.bf16.mxu0 0
        %1541 = vmatpush1.bf16.msra.mxu0 0
        %1542 = vmatprep.subr.bf16.mxu0 0
        %1543 = vmatpush1.bf16.msra.mxu0 0
        %1544 = vmatprep.mubr.bf16.mxu0 0
        %1545 = vmatmul.mubr.bf16.gmra.mrb[0].mxu0 %v1380
        %v1546 = vpop.f32.mrb[0].mxu0
        %v1547 = vadd.f32 0.0, %v1546
        %v1548 = vpop.f32.mrb[0].mxu0
        %v1549 = vpop.f32.mrb[0].mxu0
        %v1550 = vpop.f32.mrb[0].mxu0
        %1551 = vdwg.mxu0
        %v1552 = vadd.f32 %v1511, %v1547
        %v1554 = vshrl.u32 %v1144, 16
        %v1556 = vshll.u32 %v1144, 16
        %v1558 = vrot.slane %v1556, 1
        %v1559 = vor.u32 %v1554, %v1558
        %1561 = vmatprep.subr.bf16.mxu0 0
        %1562 = vmatpush1.bf16.msra.mxu0 %v1414
        %1563 = vmatprep.subr.bf16.mxu0 0
        %1564 = vmatpush1.bf16.msra.mxu0 %v1415
        %1565 = vmatprep.subr.bf16.mxu0 0
        %1566 = vmatpush1.bf16.msra.mxu0 %v1416
        %1567 = vmatprep.subr.bf16.mxu0 0
        %1568 = vmatpush1.bf16.msra.mxu0 %v1417
        %1569 = vmatprep.subr.bf16.mxu0 0
        %1570 = vmatpush1.bf16.msra.mxu0 %v1418
        %1571 = vmatprep.subr.bf16.mxu0 0
        %1572 = vmatpush1.bf16.msra.mxu0 %v1419
        %1573 = vmatprep.subr.bf16.mxu0 0
        %1574 = vmatpush1.bf16.msra.mxu0 %v1420
        %1575 = vmatprep.subr.bf16.mxu0 0
        %1576 = vmatpush1.bf16.msra.mxu0 %v1421
        %1577 = vmatprep.subr.bf16.mxu0 0
        %1578 = vmatpush1.bf16.msra.mxu0 0
        %1579 = vmatprep.subr.bf16.mxu0 0
        %1580 = vmatpush1.bf16.msra.mxu0 0
        %1581 = vmatprep.subr.bf16.mxu0 0
        %1582 = vmatpush1.bf16.msra.mxu0 0
        %1583 = vmatprep.subr.bf16.mxu0 0
        %1584 = vmatpush1.bf16.msra.mxu0 0
        %1585 = vmatprep.subr.bf16.mxu0 0
        %1586 = vmatpush1.bf16.msra.mxu0 0
        %1587 = vmatprep.subr.bf16.mxu0 0
        %1588 = vmatpush1.bf16.msra.mxu0 0
        %1589 = vmatprep.subr.bf16.mxu0 0
        %1590 = vmatpush1.bf16.msra.mxu0 0
        %1591 = vmatprep.subr.bf16.mxu0 0
        %1592 = vmatpush1.bf16.msra.mxu0 0
        %1593 = vmatprep.mubr.bf16.mxu0 0
        %1594 = vmatmul.mubr.bf16.gmra.mrb[0].mxu0 %v1559
        %v1595 = vpop.f32.mrb[0].mxu0
        %v1596 = vadd.f32 0.0, %v1595
        %v1597 = vpop.f32.mrb[0].mxu0
        %v1598 = vpop.f32.mrb[0].mxu0
        %v1599 = vpop.f32.mrb[0].mxu0
        %1600 = vdwg.mxu0
        %v1601 = vadd.f32 %v1552, %v1596
        %v1602 = vmax.f32 %v1470, %v1601
        %v1604 = vlaneseq
        %v1605 = vshrl.u32 %v1604, 7
        %v1606 = vsub.s32 0, %v1605
        %v1607 = vrot.slane %v172, %v1606
        %v1609 = vadd.f32 %v1602, %v1607
        %v1610 = vmax.f32 %v1609, 0.0
        %1611 = vmatprep.subr.bf16.mxu0 0
        %1612 = vmatpush1.bf16.msra.mxu0 %v280
        %1613 = vmatprep.subr.bf16.mxu0 0
        %1614 = vmatpush1.bf16.msra.mxu0 %v281
        %1615 = vmatprep.subr.bf16.mxu0 0
        %1616 = vmatpush1.bf16.msra.mxu0 %v282
        %1617 = vmatprep.subr.bf16.mxu0 0
        %1618 = vmatpush1.bf16.msra.mxu0 %v283
        %1619 = vmatprep.subr.bf16.mxu0 0
        %1620 = vmatpush1.bf16.msra.mxu0 %v284
        %1621 = vmatprep.subr.bf16.mxu0 0
        %1622 = vmatpush1.bf16.msra.mxu0 %v285
        %1623 = vmatprep.subr.bf16.mxu0 0
        %1624 = vmatpush1.bf16.msra.mxu0 %v286
        %1625 = vmatprep.subr.bf16.mxu0 0
        %1626 = vmatpush1.bf16.msra.mxu0 %v287
        %1627 = vmatprep.subr.bf16.mxu0 0
        %1628 = vmatpush1.bf16.msra.mxu0 0
        %1629 = vmatprep.subr.bf16.mxu0 0
        %1630 = vmatpush1.bf16.msra.mxu0 0
        %1631 = vmatprep.subr.bf16.mxu0 0
        %1632 = vmatpush1.bf16.msra.mxu0 0
        %1633 = vmatprep.subr.bf16.mxu0 0
        %1634 = vmatpush1.bf16.msra.mxu0 0
        %1635 = vmatprep.subr.bf16.mxu0 0
        %1636 = vmatpush1.bf16.msra.mxu0 0
        %1637 = vmatprep.subr.bf16.mxu0 0
        %1638 = vmatpush1.bf16.msra.mxu0 0
        %1639 = vmatprep.subr.bf16.mxu0 0
        %1640 = vmatpush1.bf16.msra.mxu0 0
        %1641 = vmatprep.subr.bf16.mxu0 0
        %1642 = vmatpush1.bf16.msra.mxu0 0
        %1643 = vmatprep.mubr.bf16.mxu0 0
        %1644 = vmatmul.mubr.bf16.gmra.mrb[0].mxu0 %v667
        %v1645 = vpop.f32.mrb[0].mxu0
        %v1646 = vadd.f32 0.0, %v1645
        %v1647 = vpop.f32.mrb[0].mxu0
        %v1648 = vpop.f32.mrb[0].mxu0
        %v1649 = vpop.f32.mrb[0].mxu0
        %1650 = vdwg.mxu0
        %1651 = vmatprep.subr.bf16.mxu0 0
        %1652 = vmatpush1.bf16.msra.mxu0 %v368
        %1653 = vmatprep.subr.bf16.mxu0 0
        %1654 = vmatpush1.bf16.msra.mxu0 %v369
        %1655 = vmatprep.subr.bf16.mxu0 0
        %1656 = vmatpush1.bf16.msra.mxu0 %v370
        %1657 = vmatprep.subr.bf16.mxu0 0
        %1658 = vmatpush1.bf16.msra.mxu0 %v371
        %1659 = vmatprep.subr.bf16.mxu0 0
        %1660 = vmatpush1.bf16.msra.mxu0 %v372
        %1661 = vmatprep.subr.bf16.mxu0 0
        %1662 = vmatpush1.bf16.msra.mxu0 %v373
        %1663 = vmatprep.subr.bf16.mxu0 0
        %1664 = vmatpush1.bf16.msra.mxu0 %v374
        %1665 = vmatprep.subr.bf16.mxu0 0
        %1666 = vmatpush1.bf16.msra.mxu0 %v375
        %1667 = vmatprep.subr.bf16.mxu0 0
        %1668 = vmatpush1.bf16.msra.mxu0 0
        %1669 = vmatprep.subr.bf16.mxu0 0
        %1670 = vmatpush1.bf16.msra.mxu0 0
        %1671 = vmatprep.subr.bf16.mxu0 0
        %1672 = vmatpush1.bf16.msra.mxu0 0
        %1673 = vmatprep.subr.bf16.mxu0 0
        %1674 = vmatpush1.bf16.msra.mxu0 0
        %1675 = vmatprep.subr.bf16.mxu0 0
        %1676 = vmatpush1.bf16.msra.mxu0 0
        %1677 = vmatprep.subr.bf16.mxu0 0
        %1678 = vmatpush1.bf16.msra.mxu0 0
        %1679 = vmatprep.subr.bf16.mxu0 0
        %1680 = vmatpush1.bf16.msra.mxu0 0
        %1681 = vmatprep.subr.bf16.mxu0 0
        %1682 = vmatpush1.bf16.msra.mxu0 0
        %1683 = vmatprep.mubr.bf16.mxu0 0
        %1684 = vmatmul.mubr.bf16.gmra.mrb[0].mxu0 %v665
        %v1685 = vpop.f32.mrb[0].mxu0
        %v1686 = vadd.f32 %v1646, %v1685
        %v1687 = vpop.f32.mrb[0].mxu0
        %v1688 = vpop.f32.mrb[0].mxu0
        %v1689 = vpop.f32.mrb[0].mxu0
        %1690 = vdwg.mxu0
        %1691 = vmatprep.subr.bf16.mxu0 0
        %1692 = vmatpush1.bf16.msra.mxu0 %v464
        %1693 = vmatprep.subr.bf16.mxu0 0
        %1694 = vmatpush1.bf16.msra.mxu0 %v465
        %1695 = vmatprep.subr.bf16.mxu0 0
        %1696 = vmatpush1.bf16.msra.mxu0 %v466
        %1697 = vmatprep.subr.bf16.mxu0 0
        %1698 = vmatpush1.bf16.msra.mxu0 %v467
        %1699 = vmatprep.subr.bf16.mxu0 0
        %1700 = vmatpush1.bf16.msra.mxu0 %v468
        %1701 = vmatprep.subr.bf16.mxu0 0
        %1702 = vmatpush1.bf16.msra.mxu0 %v469
        %1703 = vmatprep.subr.bf16.mxu0 0
        %1704 = vmatpush1.bf16.msra.mxu0 %v470
        %1705 = vmatprep.subr.bf16.mxu0 0
        %1706 = vmatpush1.bf16.msra.mxu0 %v471
        %1707 = vmatprep.subr.bf16.mxu0 0
        %1708 = vmatpush1.bf16.msra.mxu0 0
        %1709 = vmatprep.subr.bf16.mxu0 0
        %1710 = vmatpush1.bf16.msra.mxu0 0
        %1711 = vmatprep.subr.bf16.mxu0 0
        %1712 = vmatpush1.bf16.msra.mxu0 0
        %1713 = vmatprep.subr.bf16.mxu0 0
        %1714 = vmatpush1.bf16.msra.mxu0 0
        %1715 = vmatprep.subr.bf16.mxu0 0
        %1716 = vmatpush1.bf16.msra.mxu0 0
        %1717 = vmatprep.subr.bf16.mxu0 0
        %1718 = vmatpush1.bf16.msra.mxu0 0
        %1719 = vmatprep.subr.bf16.mxu0 0
        %1720 = vmatpush1.bf16.msra.mxu0 0
        %1721 = vmatprep.subr.bf16.mxu0 0
        %1722 = vmatpush1.bf16.msra.mxu0 0
        %1723 = vmatprep.mubr.bf16.mxu0 0
        %1724 = vmatmul.mubr.bf16.gmra.mrb[0].mxu0 %v904
        %v1725 = vpop.f32.mrb[0].mxu0
        %v1726 = vadd.f32 0.0, %v1725
        %v1727 = vpop.f32.mrb[0].mxu0
        %v1728 = vpop.f32.mrb[0].mxu0
        %v1729 = vpop.f32.mrb[0].mxu0
        %1730 = vdwg.mxu0
        %v1731 = vadd.f32 %v1686, %v1726
        %1732 = vmatprep.subr.bf16.mxu0 0
        %1733 = vmatpush1.bf16.msra.mxu0 %v280
        %1734 = vmatprep.subr.bf16.mxu0 0
        %1735 = vmatpush1.bf16.msra.mxu0 %v281
        %1736 = vmatprep.subr.bf16.mxu0 0
        %1737 = vmatpush1.bf16.msra.mxu0 %v282
        %1738 = vmatprep.subr.bf16.mxu0 0
        %1739 = vmatpush1.bf16.msra.mxu0 %v283
        %1740 = vmatprep.subr.bf16.mxu0 0
        %1741 = vmatpush1.bf16.msra.mxu0 %v284
        %1742 = vmatprep.subr.bf16.mxu0 0
        %1743 = vmatpush1.bf16.msra.mxu0 %v285
        %1744 = vmatprep.subr.bf16.mxu0 0
        %1745 = vmatpush1.bf16.msra.mxu0 %v286
        %1746 = vmatprep.subr.bf16.mxu0 0
        %1747 = vmatpush1.bf16.msra.mxu0 %v287
        %1748 = vmatprep.subr.bf16.mxu0 0
        %1749 = vmatpush1.bf16.msra.mxu0 0
        %1750 = vmatprep.subr.bf16.mxu0 0
        %1751 = vmatpush1.bf16.msra.mxu0 0
        %1752 = vmatprep.subr.bf16.mxu0 0
        %1753 = vmatpush1.bf16.msra.mxu0 0
        %1754 = vmatprep.subr.bf16.mxu0 0
        %1755 = vmatpush1.bf16.msra.mxu0 0
        %1756 = vmatprep.subr.bf16.mxu0 0
        %1757 = vmatpush1.bf16.msra.mxu0 0
        %1758 = vmatprep.subr.bf16.mxu0 0
        %1759 = vmatpush1.bf16.msra.mxu0 0
        %1760 = vmatprep.subr.bf16.mxu0 0
        %1761 = vmatpush1.bf16.msra.mxu0 0
        %1762 = vmatprep.subr.bf16.mxu0 0
        %1763 = vmatpush1.bf16.msra.mxu0 0
        %1764 = vmatprep.mubr.bf16.mxu0 0
        %1765 = vmatmul.mubr.bf16.gmra.mrb[0].mxu0 %v904
        %v1766 = vpop.f32.mrb[0].mxu0
        %v1767 = vadd.f32 0.0, %v1766
        %v1768 = vpop.f32.mrb[0].mxu0
        %v1769 = vpop.f32.mrb[0].mxu0
        %v1770 = vpop.f32.mrb[0].mxu0
        %1771 = vdwg.mxu0
        %1772 = vmatprep.subr.bf16.mxu0 0
        %1773 = vmatpush1.bf16.msra.mxu0 %v368
        %1774 = vmatprep.subr.bf16.mxu0 0
        %1775 = vmatpush1.bf16.msra.mxu0 %v369
        %1776 = vmatprep.subr.bf16.mxu0 0
        %1777 = vmatpush1.bf16.msra.mxu0 %v370
        %1778 = vmatprep.subr.bf16.mxu0 0
        %1779 = vmatpush1.bf16.msra.mxu0 %v371
        %1780 = vmatprep.subr.bf16.mxu0 0
        %1781 = vmatpush1.bf16.msra.mxu0 %v372
        %1782 = vmatprep.subr.bf16.mxu0 0
        %1783 = vmatpush1.bf16.msra.mxu0 %v373
        %1784 = vmatprep.subr.bf16.mxu0 0
        %1785 = vmatpush1.bf16.msra.mxu0 %v374
        %1786 = vmatprep.subr.bf16.mxu0 0
        %1787 = vmatpush1.bf16.msra.mxu0 %v375
        %1788 = vmatprep.subr.bf16.mxu0 0
        %1789 = vmatpush1.bf16.msra.mxu0 0
        %1790 = vmatprep.subr.bf16.mxu0 0
        %1791 = vmatpush1.bf16.msra.mxu0 0
        %1792 = vmatprep.subr.bf16.mxu0 0
        %1793 = vmatpush1.bf16.msra.mxu0 0
        %1794 = vmatprep.subr.bf16.mxu0 0
        %1795 = vmatpush1.bf16.msra.mxu0 0
        %1796 = vmatprep.subr.bf16.mxu0 0
        %1797 = vmatpush1.bf16.msra.mxu0 0
        %1798 = vmatprep.subr.bf16.mxu0 0
        %1799 = vmatpush1.bf16.msra.mxu0 0
        %1800 = vmatprep.subr.bf16.mxu0 0
        %1801 = vmatpush1.bf16.msra.mxu0 0
        %1802 = vmatprep.subr.bf16.mxu0 0
        %1803 = vmatpush1.bf16.msra.mxu0 0
        %1804 = vmatprep.mubr.bf16.mxu0 0
        %1805 = vmatmul.mubr.bf16.gmra.mrb[0].mxu0 %v667
        %v1806 = vpop.f32.mrb[0].mxu0
        %v1807 = vadd.f32 %v1767, %v1806
        %v1808 = vpop.f32.mrb[0].mxu0
        %v1809 = vpop.f32.mrb[0].mxu0
        %v1810 = vpop.f32.mrb[0].mxu0
        %1811 = vdwg.mxu0
        %1812 = vmatprep.subr.bf16.mxu0 0
        %1813 = vmatpush1.bf16.msra.mxu0 %v464
        %1814 = vmatprep.subr.bf16.mxu0 0
        %1815 = vmatpush1.bf16.msra.mxu0 %v465
        %1816 = vmatprep.subr.bf16.mxu0 0
        %1817 = vmatpush1.bf16.msra.mxu0 %v466
        %1818 = vmatprep.subr.bf16.mxu0 0
        %1819 = vmatpush1.bf16.msra.mxu0 %v467
        %1820 = vmatprep.subr.bf16.mxu0 0
        %1821 = vmatpush1.bf16.msra.mxu0 %v468
        %1822 = vmatprep.subr.bf16.mxu0 0
        %1823 = vmatpush1.bf16.msra.mxu0 %v469
        %1824 = vmatprep.subr.bf16.mxu0 0
        %1825 = vmatpush1.bf16.msra.mxu0 %v470
        %1826 = vmatprep.subr.bf16.mxu0 0
        %1827 = vmatpush1.bf16.msra.mxu0 %v471
        %1828 = vmatprep.subr.bf16.mxu0 0
        %1829 = vmatpush1.bf16.msra.mxu0 0
        %1830 = vmatprep.subr.bf16.mxu0 0
        %1831 = vmatpush1.bf16.msra.mxu0 0
        %1832 = vmatprep.subr.bf16.mxu0 0
        %1833 = vmatpush1.bf16.msra.mxu0 0
        %1834 = vmatprep.subr.bf16.mxu0 0
        %1835 = vmatpush1.bf16.msra.mxu0 0
        %1836 = vmatprep.subr.bf16.mxu0 0
        %1837 = vmatpush1.bf16.msra.mxu0 0
        %1838 = vmatprep.subr.bf16.mxu0 0
        %1839 = vmatpush1.bf16.msra.mxu0 0
        %1840 = vmatprep.subr.bf16.mxu0 0
        %1841 = vmatpush1.bf16.msra.mxu0 0
        %1842 = vmatprep.subr.bf16.mxu0 0
        %1843 = vmatpush1.bf16.msra.mxu0 0
        %1844 = vmatprep.mubr.bf16.mxu0 0
        %1845 = vmatmul.mubr.bf16.gmra.mrb[0].mxu0 %v1083
        %v1846 = vpop.f32.mrb[0].mxu0
        %v1847 = vadd.f32 0.0, %v1846
        %v1848 = vpop.f32.mrb[0].mxu0
        %v1849 = vpop.f32.mrb[0].mxu0
        %v1850 = vpop.f32.mrb[0].mxu0
        %1851 = vdwg.mxu0
        %v1852 = vadd.f32 %v1807, %v1847
        %1853 = vmatprep.subr.bf16.mxu0 0
        %1854 = vmatpush1.bf16.msra.mxu0 %v752
        %1855 = vmatprep.subr.bf16.mxu0 0
        %1856 = vmatpush1.bf16.msra.mxu0 %v753
        %1857 = vmatprep.subr.bf16.mxu0 0
        %1858 = vmatpush1.bf16.msra.mxu0 %v754
        %1859 = vmatprep.subr.bf16.mxu0 0
        %1860 = vmatpush1.bf16.msra.mxu0 %v755
        %1861 = vmatprep.subr.bf16.mxu0 0
        %1862 = vmatpush1.bf16.msra.mxu0 %v756
        %1863 = vmatprep.subr.bf16.mxu0 0
        %1864 = vmatpush1.bf16.msra.mxu0 %v757
        %1865 = vmatprep.subr.bf16.mxu0 0
        %1866 = vmatpush1.bf16.msra.mxu0 %v758
        %1867 = vmatprep.subr.bf16.mxu0 0
        %1868 = vmatpush1.bf16.msra.mxu0 %v759
        %1869 = vmatprep.subr.bf16.mxu0 0
        %1870 = vmatpush1.bf16.msra.mxu0 0
        %1871 = vmatprep.subr.bf16.mxu0 0
        %1872 = vmatpush1.bf16.msra.mxu0 0
        %1873 = vmatprep.subr.bf16.mxu0 0
        %1874 = vmatpush1.bf16.msra.mxu0 0
        %1875 = vmatprep.subr.bf16.mxu0 0
        %1876 = vmatpush1.bf16.msra.mxu0 0
        %1877 = vmatprep.subr.bf16.mxu0 0
        %1878 = vmatpush1.bf16.msra.mxu0 0
        %1879 = vmatprep.subr.bf16.mxu0 0
        %1880 = vmatpush1.bf16.msra.mxu0 0
        %1881 = vmatprep.subr.bf16.mxu0 0
        %1882 = vmatpush1.bf16.msra.mxu0 0
        %1883 = vmatprep.subr.bf16.mxu0 0
        %1884 = vmatpush1.bf16.msra.mxu0 0
        %1885 = vmatprep.mubr.bf16.mxu0 0
        %1886 = vmatmul.mubr.bf16.gmra.mrb[0].mxu0 %v1141
        %v1887 = vpop.f32.mrb[0].mxu0
        %v1888 = vadd.f32 0.0, %v1887
        %v1889 = vpop.f32.mrb[0].mxu0
        %v1890 = vpop.f32.mrb[0].mxu0
        %v1891 = vpop.f32.mrb[0].mxu0
        %1892 = vdwg.mxu0
        %v1893 = vadd.f32 %v1731, %v1888
        %1894 = vmatprep.subr.bf16.mxu0 0
        %1895 = vmatpush1.bf16.msra.mxu0 %v841
        %1896 = vmatprep.subr.bf16.mxu0 0
        %1897 = vmatpush1.bf16.msra.mxu0 %v842
        %1898 = vmatprep.subr.bf16.mxu0 0
        %1899 = vmatpush1.bf16.msra.mxu0 %v843
        %1900 = vmatprep.subr.bf16.mxu0 0
        %1901 = vmatpush1.bf16.msra.mxu0 %v844
        %1902 = vmatprep.subr.bf16.mxu0 0
        %1903 = vmatpush1.bf16.msra.mxu0 %v845
        %1904 = vmatprep.subr.bf16.mxu0 0
        %1905 = vmatpush1.bf16.msra.mxu0 %v846
        %1906 = vmatprep.subr.bf16.mxu0 0
        %1907 = vmatpush1.bf16.msra.mxu0 %v847
        %1908 = vmatprep.subr.bf16.mxu0 0
        %1909 = vmatpush1.bf16.msra.mxu0 %v848
        %1910 = vmatprep.subr.bf16.mxu0 0
        %1911 = vmatpush1.bf16.msra.mxu0 0
        %1912 = vmatprep.subr.bf16.mxu0 0
        %1913 = vmatpush1.bf16.msra.mxu0 0
        %1914 = vmatprep.subr.bf16.mxu0 0
        %1915 = vmatpush1.bf16.msra.mxu0 0
        %1916 = vmatprep.subr.bf16.mxu0 0
        %1917 = vmatpush1.bf16.msra.mxu0 0
        %1918 = vmatprep.subr.bf16.mxu0 0
        %1919 = vmatpush1.bf16.msra.mxu0 0
        %1920 = vmatprep.subr.bf16.mxu0 0
        %1921 = vmatpush1.bf16.msra.mxu0 0
        %1922 = vmatprep.subr.bf16.mxu0 0
        %1923 = vmatpush1.bf16.msra.mxu0 0
        %1924 = vmatprep.subr.bf16.mxu0 0
        %1925 = vmatpush1.bf16.msra.mxu0 0
        %1926 = vmatprep.mubr.bf16.mxu0 0
        %1927 = vmatmul.mubr.bf16.gmra.mrb[0].mxu0 %v1143
        %v1928 = vpop.f32.mrb[0].mxu0
        %v1929 = vadd.f32 0.0, %v1928
        %v1930 = vpop.f32.mrb[0].mxu0
        %v1931 = vpop.f32.mrb[0].mxu0
        %v1932 = vpop.f32.mrb[0].mxu0
        %1933 = vdwg.mxu0
        %v1934 = vadd.f32 %v1893, %v1929
        %1935 = vmatprep.subr.bf16.mxu0 0
        %1936 = vmatpush1.bf16.msra.mxu0 %v938
        %1937 = vmatprep.subr.bf16.mxu0 0
        %1938 = vmatpush1.bf16.msra.mxu0 %v939
        %1939 = vmatprep.subr.bf16.mxu0 0
        %1940 = vmatpush1.bf16.msra.mxu0 %v940
        %1941 = vmatprep.subr.bf16.mxu0 0
        %1942 = vmatpush1.bf16.msra.mxu0 %v941
        %1943 = vmatprep.subr.bf16.mxu0 0
        %1944 = vmatpush1.bf16.msra.mxu0 %v942
        %1945 = vmatprep.subr.bf16.mxu0 0
        %1946 = vmatpush1.bf16.msra.mxu0 %v943
        %1947 = vmatprep.subr.bf16.mxu0 0
        %1948 = vmatpush1.bf16.msra.mxu0 %v944
        %1949 = vmatprep.subr.bf16.mxu0 0
        %1950 = vmatpush1.bf16.msra.mxu0 %v945
        %1951 = vmatprep.subr.bf16.mxu0 0
        %1952 = vmatpush1.bf16.msra.mxu0 0
        %1953 = vmatprep.subr.bf16.mxu0 0
        %1954 = vmatpush1.bf16.msra.mxu0 0
        %1955 = vmatprep.subr.bf16.mxu0 0
        %1956 = vmatpush1.bf16.msra.mxu0 0
        %1957 = vmatprep.subr.bf16.mxu0 0
        %1958 = vmatpush1.bf16.msra.mxu0 0
        %1959 = vmatprep.subr.bf16.mxu0 0
        %1960 = vmatpush1.bf16.msra.mxu0 0
        %1961 = vmatprep.subr.bf16.mxu0 0
        %1962 = vmatpush1.bf16.msra.mxu0 0
        %1963 = vmatprep.subr.bf16.mxu0 0
        %1964 = vmatpush1.bf16.msra.mxu0 0
        %1965 = vmatprep.subr.bf16.mxu0 0
        %1966 = vmatpush1.bf16.msra.mxu0 0
        %1967 = vmatprep.mubr.bf16.mxu0 0
        %1968 = vmatmul.mubr.bf16.gmra.mrb[0].mxu0 %v1380
        %v1969 = vpop.f32.mrb[0].mxu0
        %v1970 = vadd.f32 0.0, %v1969
        %v1971 = vpop.f32.mrb[0].mxu0
        %v1972 = vpop.f32.mrb[0].mxu0
        %v1973 = vpop.f32.mrb[0].mxu0
        %1974 = vdwg.mxu0
        %v1975 = vadd.f32 %v1934, %v1970
        %1976 = vmatprep.subr.bf16.mxu0 0
        %1977 = vmatpush1.bf16.msra.mxu0 %v752
        %1978 = vmatprep.subr.bf16.mxu0 0
        %1979 = vmatpush1.bf16.msra.mxu0 %v753
        %1980 = vmatprep.subr.bf16.mxu0 0
        %1981 = vmatpush1.bf16.msra.mxu0 %v754
        %1982 = vmatprep.subr.bf16.mxu0 0
        %1983 = vmatpush1.bf16.msra.mxu0 %v755
        %1984 = vmatprep.subr.bf16.mxu0 0
        %1985 = vmatpush1.bf16.msra.mxu0 %v756
        %1986 = vmatprep.subr.bf16.mxu0 0
        %1987 = vmatpush1.bf16.msra.mxu0 %v757
        %1988 = vmatprep.subr.bf16.mxu0 0
        %1989 = vmatpush1.bf16.msra.mxu0 %v758
        %1990 = vmatprep.subr.bf16.mxu0 0
        %1991 = vmatpush1.bf16.msra.mxu0 %v759
        %1992 = vmatprep.subr.bf16.mxu0 0
        %1993 = vmatpush1.bf16.msra.mxu0 0
        %1994 = vmatprep.subr.bf16.mxu0 0
        %1995 = vmatpush1.bf16.msra.mxu0 0
        %1996 = vmatprep.subr.bf16.mxu0 0
        %1997 = vmatpush1.bf16.msra.mxu0 0
        %1998 = vmatprep.subr.bf16.mxu0 0
        %1999 = vmatpush1.bf16.msra.mxu0 0
        %2000 = vmatprep.subr.bf16.mxu0 0
        %2001 = vmatpush1.bf16.msra.mxu0 0
        %2002 = vmatprep.subr.bf16.mxu0 0
        %2003 = vmatpush1.bf16.msra.mxu0 0
        %2004 = vmatprep.subr.bf16.mxu0 0
        %2005 = vmatpush1.bf16.msra.mxu0 0
        %2006 = vmatprep.subr.bf16.mxu0 0
        %2007 = vmatpush1.bf16.msra.mxu0 0
        %2008 = vmatprep.mubr.bf16.mxu0 0
        %2009 = vmatmul.mubr.bf16.gmra.mrb[0].mxu0 %v1143
        %v2010 = vpop.f32.mrb[0].mxu0
        %v2011 = vadd.f32 0.0, %v2010
        %v2012 = vpop.f32.mrb[0].mxu0
        %v2013 = vpop.f32.mrb[0].mxu0
        %v2014 = vpop.f32.mrb[0].mxu0
        %2015 = vdwg.mxu0
        %v2016 = vadd.f32 %v1852, %v2011
        %2017 = vmatprep.subr.bf16.mxu0 0
        %2018 = vmatpush1.bf16.msra.mxu0 %v841
        %2019 = vmatprep.subr.bf16.mxu0 0
        %2020 = vmatpush1.bf16.msra.mxu0 %v842
        %2021 = vmatprep.subr.bf16.mxu0 0
        %2022 = vmatpush1.bf16.msra.mxu0 %v843
        %2023 = vmatprep.subr.bf16.mxu0 0
        %2024 = vmatpush1.bf16.msra.mxu0 %v844
        %2025 = vmatprep.subr.bf16.mxu0 0
        %2026 = vmatpush1.bf16.msra.mxu0 %v845
        %2027 = vmatprep.subr.bf16.mxu0 0
        %2028 = vmatpush1.bf16.msra.mxu0 %v846
        %2029 = vmatprep.subr.bf16.mxu0 0
        %2030 = vmatpush1.bf16.msra.mxu0 %v847
        %2031 = vmatprep.subr.bf16.mxu0 0
        %2032 = vmatpush1.bf16.msra.mxu0 %v848
        %2033 = vmatprep.subr.bf16.mxu0 0
        %2034 = vmatpush1.bf16.msra.mxu0 0
        %2035 = vmatprep.subr.bf16.mxu0 0
        %2036 = vmatpush1.bf16.msra.mxu0 0
        %2037 = vmatprep.subr.bf16.mxu0 0
        %2038 = vmatpush1.bf16.msra.mxu0 0
        %2039 = vmatprep.subr.bf16.mxu0 0
        %2040 = vmatpush1.bf16.msra.mxu0 0
        %2041 = vmatprep.subr.bf16.mxu0 0
        %2042 = vmatpush1.bf16.msra.mxu0 0
        %2043 = vmatprep.subr.bf16.mxu0 0
        %2044 = vmatpush1.bf16.msra.mxu0 0
        %2045 = vmatprep.subr.bf16.mxu0 0
        %2046 = vmatpush1.bf16.msra.mxu0 0
        %2047 = vmatprep.subr.bf16.mxu0 0
        %2048 = vmatpush1.bf16.msra.mxu0 0
        %2049 = vmatprep.mubr.bf16.mxu0 0
        %2050 = vmatmul.mubr.bf16.gmra.mrb[0].mxu0 %v1380
        %v2051 = vpop.f32.mrb[0].mxu0
        %v2052 = vadd.f32 0.0, %v2051
        %v2053 = vpop.f32.mrb[0].mxu0
        %v2054 = vpop.f32.mrb[0].mxu0
        %v2055 = vpop.f32.mrb[0].mxu0
        %2056 = vdwg.mxu0
        %v2057 = vadd.f32 %v2016, %v2052
        %2058 = vmatprep.subr.bf16.mxu0 0
        %2059 = vmatpush1.bf16.msra.mxu0 %v938
        %2060 = vmatprep.subr.bf16.mxu0 0
        %2061 = vmatpush1.bf16.msra.mxu0 %v939
        %2062 = vmatprep.subr.bf16.mxu0 0
        %2063 = vmatpush1.bf16.msra.mxu0 %v940
        %2064 = vmatprep.subr.bf16.mxu0 0
        %2065 = vmatpush1.bf16.msra.mxu0 %v941
        %2066 = vmatprep.subr.bf16.mxu0 0
        %2067 = vmatpush1.bf16.msra.mxu0 %v942
        %2068 = vmatprep.subr.bf16.mxu0 0
        %2069 = vmatpush1.bf16.msra.mxu0 %v943
        %2070 = vmatprep.subr.bf16.mxu0 0
        %2071 = vmatpush1.bf16.msra.mxu0 %v944
        %2072 = vmatprep.subr.bf16.mxu0 0
        %2073 = vmatpush1.bf16.msra.mxu0 %v945
        %2074 = vmatprep.subr.bf16.mxu0 0
        %2075 = vmatpush1.bf16.msra.mxu0 0
        %2076 = vmatprep.subr.bf16.mxu0 0
        %2077 = vmatpush1.bf16.msra.mxu0 0
        %2078 = vmatprep.subr.bf16.mxu0 0
        %2079 = vmatpush1.bf16.msra.mxu0 0
        %2080 = vmatprep.subr.bf16.mxu0 0
        %2081 = vmatpush1.bf16.msra.mxu0 0
        %2082 = vmatprep.subr.bf16.mxu0 0
        %2083 = vmatpush1.bf16.msra.mxu0 0
        %2084 = vmatprep.subr.bf16.mxu0 0
        %2085 = vmatpush1.bf16.msra.mxu0 0
        %2086 = vmatprep.subr.bf16.mxu0 0
        %2087 = vmatpush1.bf16.msra.mxu0 0
        %2088 = vmatprep.subr.bf16.mxu0 0
        %2089 = vmatpush1.bf16.msra.mxu0 0
        %2090 = vmatprep.mubr.bf16.mxu0 0
        %2091 = vmatmul.mubr.bf16.gmra.mrb[0].mxu0 %v1559
        %v2092 = vpop.f32.mrb[0].mxu0
        %v2093 = vadd.f32 0.0, %v2092
        %v2094 = vpop.f32.mrb[0].mxu0
        %v2095 = vpop.f32.mrb[0].mxu0
        %v2096 = vpop.f32.mrb[0].mxu0
        %2097 = vdwg.mxu0
        %v2098 = vadd.f32 %v2057, %v2093
        %s2099 = sadd.s32 %s179, 3
        %s2100 = smul.u32 %s2099, 2
        %s2101 = smul.addr %s2100, 4
        %s2102 = scalar_lea.vmem %s165, %s2101
        %v2103 = vld [vmem:[%s2102] sm:$0xf]
        %v2104 = vld [vmem:[%s2102 + $0x4] sm:$0x1]
        %v2105 = vunpack.c.l.bf16 %v2103
        %v2106 = vunpack.c.l.bf16 %v2104
        %s2107 = sadd.s32 %s2100, 32
        %s2108 = smul.addr %s2107, 4
        %s2109 = scalar_lea.vmem %s165, %s2108
        %v2110 = vld [vmem:[%s2109] sm:$0xf]
        %v2111 = vld [vmem:[%s2109 + $0x4] sm:$0x1]
        %v2112 = vunpack.c.l.bf16 %v2110
        %v2113 = vunpack.c.l.bf16 %v2111
        %v2114 = vpack.c.bf16 %v2105, %v2105
        %v2115 = vpack.c.bf16 %v2106, %v2105
        %v2116 = vpack.c.bf16 %v2112, %v2112
        %v2117 = vpack.c.bf16 %v2113, %v2112
        %2118 = vmatprep.subr.bf16.mxu0 0
        %2119 = vmatpush1.bf16.msra.mxu0 %v1228
        %2120 = vmatprep.subr.bf16.mxu0 0
        %2121 = vmatpush1.bf16.msra.mxu0 %v1229
        %2122 = vmatprep.subr.bf16.mxu0 0
        %2123 = vmatpush1.bf16.msra.mxu0 %v1230
        %2124 = vmatprep.subr.bf16.mxu0 0
        %2125 = vmatpush1.bf16.msra.mxu0 %v1231
        %2126 = vmatprep.subr.bf16.mxu0 0
        %2127 = vmatpush1.bf16.msra.mxu0 %v1232
        %2128 = vmatprep.subr.bf16.mxu0 0
        %2129 = vmatpush1.bf16.msra.mxu0 %v1233
        %2130 = vmatprep.subr.bf16.mxu0 0
        %2131 = vmatpush1.bf16.msra.mxu0 %v1234
        %2132 = vmatprep.subr.bf16.mxu0 0
        %2133 = vmatpush1.bf16.msra.mxu0 %v1235
        %2134 = vmatprep.subr.bf16.mxu0 0
        %2135 = vmatpush1.bf16.msra.mxu0 0
        %2136 = vmatprep.subr.bf16.mxu0 0
        %2137 = vmatpush1.bf16.msra.mxu0 0
        %2138 = vmatprep.subr.bf16.mxu0 0
        %2139 = vmatpush1.bf16.msra.mxu0 0
        %2140 = vmatprep.subr.bf16.mxu0 0
        %2141 = vmatpush1.bf16.msra.mxu0 0
        %2142 = vmatprep.subr.bf16.mxu0 0
        %2143 = vmatpush1.bf16.msra.mxu0 0
        %2144 = vmatprep.subr.bf16.mxu0 0
        %2145 = vmatpush1.bf16.msra.mxu0 0
        %2146 = vmatprep.subr.bf16.mxu0 0
        %2147 = vmatpush1.bf16.msra.mxu0 0
        %2148 = vmatprep.subr.bf16.mxu0 0
        %2149 = vmatpush1.bf16.msra.mxu0 0
        %2150 = vmatprep.mubr.bf16.mxu0 0
        %2151 = vmatmul.mubr.bf16.gmra.mrb[0].mxu0 %v2114
        %v2152 = vpop.f32.mrb[0].mxu0
        %v2153 = vadd.f32 0.0, %v2152
        %v2154 = vpop.f32.mrb[0].mxu0
        %v2155 = vpop.f32.mrb[0].mxu0
        %v2156 = vpop.f32.mrb[0].mxu0
        %2157 = vdwg.mxu0
        %v2158 = vadd.f32 %v1975, %v2153
        %2159 = vmatprep.subr.bf16.mxu0 0
        %2160 = vmatpush1.bf16.msra.mxu0 %v1317
        %2161 = vmatprep.subr.bf16.mxu0 0
        %2162 = vmatpush1.bf16.msra.mxu0 %v1318
        %2163 = vmatprep.subr.bf16.mxu0 0
        %2164 = vmatpush1.bf16.msra.mxu0 %v1319
        %2165 = vmatprep.subr.bf16.mxu0 0
        %2166 = vmatpush1.bf16.msra.mxu0 %v1320
        %2167 = vmatprep.subr.bf16.mxu0 0
        %2168 = vmatpush1.bf16.msra.mxu0 %v1321
        %2169 = vmatprep.subr.bf16.mxu0 0
        %2170 = vmatpush1.bf16.msra.mxu0 %v1322
        %2171 = vmatprep.subr.bf16.mxu0 0
        %2172 = vmatpush1.bf16.msra.mxu0 %v1323
        %2173 = vmatprep.subr.bf16.mxu0 0
        %2174 = vmatpush1.bf16.msra.mxu0 %v1324
        %2175 = vmatprep.subr.bf16.mxu0 0
        %2176 = vmatpush1.bf16.msra.mxu0 0
        %2177 = vmatprep.subr.bf16.mxu0 0
        %2178 = vmatpush1.bf16.msra.mxu0 0
        %2179 = vmatprep.subr.bf16.mxu0 0
        %2180 = vmatpush1.bf16.msra.mxu0 0
        %2181 = vmatprep.subr.bf16.mxu0 0
        %2182 = vmatpush1.bf16.msra.mxu0 0
        %2183 = vmatprep.subr.bf16.mxu0 0
        %2184 = vmatpush1.bf16.msra.mxu0 0
        %2185 = vmatprep.subr.bf16.mxu0 0
        %2186 = vmatpush1.bf16.msra.mxu0 0
        %2187 = vmatprep.subr.bf16.mxu0 0
        %2188 = vmatpush1.bf16.msra.mxu0 0
        %2189 = vmatprep.subr.bf16.mxu0 0
        %2190 = vmatpush1.bf16.msra.mxu0 0
        %2191 = vmatprep.mubr.bf16.mxu0 0
        %2192 = vmatmul.mubr.bf16.gmra.mrb[0].mxu0 %v2116
        %v2193 = vpop.f32.mrb[0].mxu0
        %v2194 = vadd.f32 0.0, %v2193
        %v2195 = vpop.f32.mrb[0].mxu0
        %v2196 = vpop.f32.mrb[0].mxu0
        %v2197 = vpop.f32.mrb[0].mxu0
        %2198 = vdwg.mxu0
        %v2199 = vadd.f32 %v2158, %v2194
        %v2201 = vshrl.u32 %v2115, 16
        %v2203 = vshll.u32 %v2115, 16
        %v2205 = vrot.slane %v2203, 1
        %v2206 = vor.u32 %v2201, %v2205
        %2208 = vmatprep.subr.bf16.mxu0 0
        %2209 = vmatpush1.bf16.msra.mxu0 %v1414
        %2210 = vmatprep.subr.bf16.mxu0 0
        %2211 = vmatpush1.bf16.msra.mxu0 %v1415
        %2212 = vmatprep.subr.bf16.mxu0 0
        %2213 = vmatpush1.bf16.msra.mxu0 %v1416
        %2214 = vmatprep.subr.bf16.mxu0 0
        %2215 = vmatpush1.bf16.msra.mxu0 %v1417
        %2216 = vmatprep.subr.bf16.mxu0 0
        %2217 = vmatpush1.bf16.msra.mxu0 %v1418
        %2218 = vmatprep.subr.bf16.mxu0 0
        %2219 = vmatpush1.bf16.msra.mxu0 %v1419
        %2220 = vmatprep.subr.bf16.mxu0 0
        %2221 = vmatpush1.bf16.msra.mxu0 %v1420
        %2222 = vmatprep.subr.bf16.mxu0 0
        %2223 = vmatpush1.bf16.msra.mxu0 %v1421
        %2224 = vmatprep.subr.bf16.mxu0 0
        %2225 = vmatpush1.bf16.msra.mxu0 0
        %2226 = vmatprep.subr.bf16.mxu0 0
        %2227 = vmatpush1.bf16.msra.mxu0 0
        %2228 = vmatprep.subr.bf16.mxu0 0
        %2229 = vmatpush1.bf16.msra.mxu0 0
        %2230 = vmatprep.subr.bf16.mxu0 0
        %2231 = vmatpush1.bf16.msra.mxu0 0
        %2232 = vmatprep.subr.bf16.mxu0 0
        %2233 = vmatpush1.bf16.msra.mxu0 0
        %2234 = vmatprep.subr.bf16.mxu0 0
        %2235 = vmatpush1.bf16.msra.mxu0 0
        %2236 = vmatprep.subr.bf16.mxu0 0
        %2237 = vmatpush1.bf16.msra.mxu0 0
        %2238 = vmatprep.subr.bf16.mxu0 0
        %2239 = vmatpush1.bf16.msra.mxu0 0
        %2240 = vmatprep.mubr.bf16.mxu0 0
        %2241 = vmatmul.mubr.bf16.gmra.mrb[0].mxu0 %v2206
        %v2242 = vpop.f32.mrb[0].mxu0
        %v2243 = vadd.f32 0.0, %v2242
        %v2244 = vpop.f32.mrb[0].mxu0
        %v2245 = vpop.f32.mrb[0].mxu0
        %v2246 = vpop.f32.mrb[0].mxu0
        %2247 = vdwg.mxu0
        %v2248 = vadd.f32 %v2199, %v2243
        %2249 = vmatprep.subr.bf16.mxu0 0
        %2250 = vmatpush1.bf16.msra.mxu0 %v1228
        %2251 = vmatprep.subr.bf16.mxu0 0
        %2252 = vmatpush1.bf16.msra.mxu0 %v1229
        %2253 = vmatprep.subr.bf16.mxu0 0
        %2254 = vmatpush1.bf16.msra.mxu0 %v1230
        %2255 = vmatprep.subr.bf16.mxu0 0
        %2256 = vmatpush1.bf16.msra.mxu0 %v1231
        %2257 = vmatprep.subr.bf16.mxu0 0
        %2258 = vmatpush1.bf16.msra.mxu0 %v1232
        %2259 = vmatprep.subr.bf16.mxu0 0
        %2260 = vmatpush1.bf16.msra.mxu0 %v1233
        %2261 = vmatprep.subr.bf16.mxu0 0
        %2262 = vmatpush1.bf16.msra.mxu0 %v1234
        %2263 = vmatprep.subr.bf16.mxu0 0
        %2264 = vmatpush1.bf16.msra.mxu0 %v1235
        %2265 = vmatprep.subr.bf16.mxu0 0
        %2266 = vmatpush1.bf16.msra.mxu0 0
        %2267 = vmatprep.subr.bf16.mxu0 0
        %2268 = vmatpush1.bf16.msra.mxu0 0
        %2269 = vmatprep.subr.bf16.mxu0 0
        %2270 = vmatpush1.bf16.msra.mxu0 0
        %2271 = vmatprep.subr.bf16.mxu0 0
        %2272 = vmatpush1.bf16.msra.mxu0 0
        %2273 = vmatprep.subr.bf16.mxu0 0
        %2274 = vmatpush1.bf16.msra.mxu0 0
        %2275 = vmatprep.subr.bf16.mxu0 0
        %2276 = vmatpush1.bf16.msra.mxu0 0
        %2277 = vmatprep.subr.bf16.mxu0 0
        %2278 = vmatpush1.bf16.msra.mxu0 0
        %2279 = vmatprep.subr.bf16.mxu0 0
        %2280 = vmatpush1.bf16.msra.mxu0 0
        %2281 = vmatprep.mubr.bf16.mxu0 0
        %2282 = vmatmul.mubr.bf16.gmra.mrb[0].mxu0 %v2116
        %v2283 = vpop.f32.mrb[0].mxu0
        %v2284 = vadd.f32 0.0, %v2283
        %v2285 = vpop.f32.mrb[0].mxu0
        %v2286 = vpop.f32.mrb[0].mxu0
        %v2287 = vpop.f32.mrb[0].mxu0
        %2288 = vdwg.mxu0
        %v2289 = vadd.f32 %v2098, %v2284
        %2290 = vmatprep.subr.bf16.mxu0 0
        %2291 = vmatpush1.bf16.msra.mxu0 %v1317
        %2292 = vmatprep.subr.bf16.mxu0 0
        %2293 = vmatpush1.bf16.msra.mxu0 %v1318
        %2294 = vmatprep.subr.bf16.mxu0 0
        %2295 = vmatpush1.bf16.msra.mxu0 %v1319
        %2296 = vmatprep.subr.bf16.mxu0 0
        %2297 = vmatpush1.bf16.msra.mxu0 %v1320
        %2298 = vmatprep.subr.bf16.mxu0 0
        %2299 = vmatpush1.bf16.msra.mxu0 %v1321
        %2300 = vmatprep.subr.bf16.mxu0 0
        %2301 = vmatpush1.bf16.msra.mxu0 %v1322
        %2302 = vmatprep.subr.bf16.mxu0 0
        %2303 = vmatpush1.bf16.msra.mxu0 %v1323
        %2304 = vmatprep.subr.bf16.mxu0 0
        %2305 = vmatpush1.bf16.msra.mxu0 %v1324
        %2306 = vmatprep.subr.bf16.mxu0 0
        %2307 = vmatpush1.bf16.msra.mxu0 0
        %2308 = vmatprep.subr.bf16.mxu0 0
        %2309 = vmatpush1.bf16.msra.mxu0 0
        %2310 = vmatprep.subr.bf16.mxu0 0
        %2311 = vmatpush1.bf16.msra.mxu0 0
        %2312 = vmatprep.subr.bf16.mxu0 0
        %2313 = vmatpush1.bf16.msra.mxu0 0
        %2314 = vmatprep.subr.bf16.mxu0 0
        %2315 = vmatpush1.bf16.msra.mxu0 0
        %2316 = vmatprep.subr.bf16.mxu0 0
        %2317 = vmatpush1.bf16.msra.mxu0 0
        %2318 = vmatprep.subr.bf16.mxu0 0
        %2319 = vmatpush1.bf16.msra.mxu0 0
        %2320 = vmatprep.subr.bf16.mxu0 0
        %2321 = vmatpush1.bf16.msra.mxu0 0
        %2322 = vmatprep.mubr.bf16.mxu0 0
        %2323 = vmatmul.mubr.bf16.gmra.mrb[0].mxu0 %v2206
        %v2324 = vpop.f32.mrb[0].mxu0
        %v2325 = vadd.f32 0.0, %v2324
        %v2326 = vpop.f32.mrb[0].mxu0
        %v2327 = vpop.f32.mrb[0].mxu0
        %v2328 = vpop.f32.mrb[0].mxu0
        %2329 = vdwg.mxu0
        %v2330 = vadd.f32 %v2289, %v2325
        %v2332 = vshrl.u32 %v2117, 16
        %v2334 = vshll.u32 %v2117, 16
        %v2336 = vrot.slane %v2334, 1
        %v2337 = vor.u32 %v2332, %v2336
        %2339 = vmatprep.subr.bf16.mxu0 0
        %2340 = vmatpush1.bf16.msra.mxu0 %v1414
        %2341 = vmatprep.subr.bf16.mxu0 0
        %2342 = vmatpush1.bf16.msra.mxu0 %v1415
        %2343 = vmatprep.subr.bf16.mxu0 0
        %2344 = vmatpush1.bf16.msra.mxu0 %v1416
        %2345 = vmatprep.subr.bf16.mxu0 0
        %2346 = vmatpush1.bf16.msra.mxu0 %v1417
        %2347 = vmatprep.subr.bf16.mxu0 0
        %2348 = vmatpush1.bf16.msra.mxu0 %v1418
        %2349 = vmatprep.subr.bf16.mxu0 0
        %2350 = vmatpush1.bf16.msra.mxu0 %v1419
        %2351 = vmatprep.subr.bf16.mxu0 0
        %2352 = vmatpush1.bf16.msra.mxu0 %v1420
        %2353 = vmatprep.subr.bf16.mxu0 0
        %2354 = vmatpush1.bf16.msra.mxu0 %v1421
        %2355 = vmatprep.subr.bf16.mxu0 0
        %2356 = vmatpush1.bf16.msra.mxu0 0
        %2357 = vmatprep.subr.bf16.mxu0 0
        %2358 = vmatpush1.bf16.msra.mxu0 0
        %2359 = vmatprep.subr.bf16.mxu0 0
        %2360 = vmatpush1.bf16.msra.mxu0 0
        %2361 = vmatprep.subr.bf16.mxu0 0
        %2362 = vmatpush1.bf16.msra.mxu0 0
        %2363 = vmatprep.subr.bf16.mxu0 0
        %2364 = vmatpush1.bf16.msra.mxu0 0
        %2365 = vmatprep.subr.bf16.mxu0 0
        %2366 = vmatpush1.bf16.msra.mxu0 0
        %2367 = vmatprep.subr.bf16.mxu0 0
        %2368 = vmatpush1.bf16.msra.mxu0 0
        %2369 = vmatprep.subr.bf16.mxu0 0
        %2370 = vmatpush1.bf16.msra.mxu0 0
        %2371 = vmatprep.mubr.bf16.mxu0 0
        %2372 = vmatmul.mubr.bf16.gmra.mrb[0].mxu0 %v2337
        %v2373 = vpop.f32.mrb[0].mxu0
        %v2374 = vadd.f32 0.0, %v2373
        %v2375 = vpop.f32.mrb[0].mxu0
        %v2376 = vpop.f32.mrb[0].mxu0
        %v2377 = vpop.f32.mrb[0].mxu0
        %2378 = vdwg.mxu0
        %v2379 = vadd.f32 %v2330, %v2374
        %v2380 = vmax.f32 %v2248, %v2379
        %v2381 = vadd.f32 %v2380, %v1607
        %v2382 = vmax.f32 %v2381, 0.0
        %v2383 = vmax.f32 %v1610, %v2382
        %v2384 = vpack.c.bf16 %v2383, %v2383
        %s2385 = smul.addr %s174, 4
        %s2386 = scalar_lea.vmem %s170, %s2385
        %2387 = vst [vmem:[%s2386] sm:$0xf] %v2384
      $region37: #{inner_cnn_forward.4} parent=31 // loop_footer
        %s178 = sadd.s32 1, %s174
      $region38: #{inner_cnn_forward.4} parent=31 // loop_footer_branch
        %173 = sbr.rel target = $region34
      $region39: #{inner_cnn_forward.4} parent=31 // loop_exit
        _
      %p2388 = scmp.lt.s32.totalorder %s14, 1
      %s2389 = scalar_select %p2388, %s14, 1
      %s2390 = smul.addr %s2389, 7
      %s2391 = smul.addr %s2390, 4
      %s2392 = scalar_lea.vmem %s3, %s2391
      // Predicated region
      $region40: #{inner_cnn_forward.4} parent=31 // pred_check
        %p2393 = pneg %p100
      $region41: #{inner_cnn_forward.4} parent=31 // pred_check_branch
        %2395 = sbr.rel (%p2393) target = $region43
      $region42: #{inner_cnn_forward.4} parent=31 // pred_region
        _
      $region43: #{inner_cnn_forward.4} parent=31 // pred_fallthru
        _
    $region32: #{inner_cnn_forward.4} parent=5 // pred_fallthru
      _
    %p2396 = scmp.le.s32.totalorder 2, %s9
    // Predicated region
    $region44: #{inner_cnn_forward.4} parent=5 // pred_check
      %p2397 = pneg %p2396
    $region45: #{inner_cnn_forward.4} parent=5 // pred_check_branch
      %2399 = sbr.rel (%p2397) target = $region47
    $region46: #{inner_cnn_forward.4} parent=5 // pred_region
      %s2400 = ssub.s32 %s9, 2
      // Predicated region
      $region48: #{inner_cnn_forward.4} parent=46 // pred_check
        %p2401 = pneg %p106
      $region49: #{inner_cnn_forward.4} parent=46 // pred_check_branch
        %2403 = sbr.rel (%p2401) target = $region51
      $region50: #{inner_cnn_forward.4} parent=46 // pred_region
        %p2404 = scmp.lt.s32.totalorder %s15, 1
        %s2405 = scalar_select %p2404, %s15, 1
        %s2406 = smul.addr %s2405, 7
        %s2407 = smul.addr %s2406, 4
        %s2408 = scalar_lea.vmem %s3, %s2407
      $region51: #{inner_cnn_forward.4} parent=46 // pred_fallthru
        _
    $region47: #{inner_cnn_forward.4} parent=5 // pred_fallthru
      _
  $region6: #{inner_cnn_forward.4} parent=0 // loop_footer
    %s13 = sadd.s32 1, %s9
  $region7: #{inner_cnn_forward.4} parent=0 // loop_footer_branch
    %8 = sbr.rel target = $region3
  $region8: #{inner_cnn_forward.4} parent=0 // loop_exit
    _

// kernel: inner_cnn_forward.5
$region0: #{inner_cnn_forward.5}
  #allocation0 [shape = 'u32[]', space=smem, size = 0x4, offset = 0x4, fixed_abs, tag = 'smem constant byte address 0x4 - core index']
  #allocation1 [shape = 'u32[144,128]{1,0:T(1,128)}', space=vmem, size = 0x12000, scoped, tag = 'internal scratch']
  %s0 = inlined_call_operand.vmem [shape: bf16[2,7168], index: 0, kind: input, shape index: {}]
  %s1 = inlined_call_operand.vmem [shape: bf16[7168,128], index: 1, kind: input, shape index: {}]
  %s2 = inlined_call_operand.vmem [shape: f32[1,128], index: 2, kind: input, shape index: {}]
  %s3 = inlined_call_operand.vmem [shape: bf16[128,128], index: 3, kind: input, shape index: {}]
  %s4 = inlined_call_operand.vmem [shape: f32[1,128], index: 4, kind: input, shape index: {}]
  %s5 = inlined_call_operand.hbm [shape: f32[2,128], index: 5, kind: output, shape index: {}]
  %s6 = sld [smem:[#allocation0]]
  $region30: #{inner_cnn_forward.5} parent=0
    _
  %s8 = ssub.s32 1, %s6
  %s9 = scalar_select 0, %s8, %s6
  $region1: #{inner_cnn_forward.5} parent=0
    #allocation2 [shape = 'u8[1024]{0}', space=vmem, size = 0x400, scoped, tag = 'output window, operand 0, single buffered']
    #allocation3 [shape = 's32[1]{0}', space=sflag, size = 0x4, scoped, tag = 'scoped memory for inner_cnn_forward.5']
    %10 = vsyncpa [#allocation3], 0
    // Predicated region
    $region2: #{inner_cnn_forward.5} parent=1 // pred_check
      _
    $region3: #{inner_cnn_forward.5} parent=1 // pred_check_branch
      %12 = sbr.rel (0) target = $region5
    $region4: #{inner_cnn_forward.5} parent=1 // pred_region
      _
    $region5: #{inner_cnn_forward.5} parent=1 // pred_fallthru
      _
    // Predicated region
    $region6: #{inner_cnn_forward.5} parent=1 // pred_check
      _
    $region7: #{inner_cnn_forward.5} parent=1 // pred_check_branch
      %14 = sbr.rel (0) target = $region9
    $region8: #{inner_cnn_forward.5} parent=1 // pred_region
      _
    $region9: #{inner_cnn_forward.5} parent=1 // pred_fallthru
      _
    // Predicated region
    $region10: #{inner_cnn_forward.5} parent=1 // pred_check
      _
    $region11: #{inner_cnn_forward.5} parent=1 // pred_check_branch
      %16 = sbr.rel (0) target = $region13
    $region12: #{inner_cnn_forward.5} parent=1 // pred_region
      _
    $region13: #{inner_cnn_forward.5} parent=1 // pred_fallthru
      _
    // Predicated region
    $region14: #{inner_cnn_forward.5} parent=1 // pred_check
      _
    $region15: #{inner_cnn_forward.5} parent=1 // pred_check_branch
      %18 = sbr.rel (0) target = $region17
    $region16: #{inner_cnn_forward.5} parent=1 // pred_region
      _
    $region17: #{inner_cnn_forward.5} parent=1 // pred_fallthru
      _
    // Predicated region
    $region18: #{inner_cnn_forward.5} parent=1 // pred_check
      _
    $region19: #{inner_cnn_forward.5} parent=1 // pred_check_branch
      %20 = sbr.rel (0) target = $region21
    $region20: #{inner_cnn_forward.5} parent=1 // pred_region
      _
    $region21: #{inner_cnn_forward.5} parent=1 // pred_fallthru
      _
    %v22 = vld [vmem:[%s0] sm:$0xff]
    %v23 = vld [vmem:[%s0 + $0x8] sm:$0xff]
    %v24 = vld [vmem:[%s0 + $0x10] sm:$0xff]
    %v25 = vld [vmem:[%s0 + $0x18] sm:$0xff]
    %v26 = vld [vmem:[%s0 + $0x20] sm:$0xff]
    %v27 = vld [vmem:[%s0 + $0x28] sm:$0xff]
    %v28 = vld [vmem:[%s0 + $0x30] sm:$0xff]
    %v29 = vld [vmem:[%s1] sm:$0xf]
    %v30 = vld [vmem:[%s1 + $0x4] sm:$0xf]
    %v31 = vld [vmem:[%s1 + $0x8] sm:$0xf]
    %v32 = vld [vmem:[%s1 + $0xc] sm:$0xf]
    %v33 = vld [vmem:[%s1 + $0x10] sm:$0xf]
    %v34 = vld [vmem:[%s1 + $0x14] sm:$0xf]
    %v35 = vld [vmem:[%s1 + $0x18] sm:$0xf]
    %v36 = vld [vmem:[%s1 + $0x1c] sm:$0xf]
    %v37 = vld [vmem:[%s1 + $0x20] sm:$0xf]
    %v38 = vld [vmem:[%s1 + $0x24] sm:$0xf]
    %v39 = vld [vmem:[%s1 + $0x28] sm:$0xf]
    %v40 = vld [vmem:[%s1 + $0x2c] sm:$0xf]
    %v41 = vld [vmem:[%s1 + $0x30] sm:$0xf]
    %v42 = vld [vmem:[%s1 + $0x34] sm:$0xf]
    %v43 = vld [vmem:[%s1 + $0x38] sm:$0xf]
    %v44 = vld [vmem:[%s1 + $0x3c] sm:$0xf]
    %v45 = vld [vmem:[%s1 + $0x40] sm:$0xf]
    %v46 = vld [vmem:[%s1 + $0x44] sm:$0xf]
    %v47 = vld [vmem:[%s1 + $0x48] sm:$0xf]
    %v48 = vld [vmem:[%s1 + $0x4c] sm:$0xf]
    %v49 = vld [vmem:[%s1 + $0x50] sm:$0xf]
    %v50 = vld [vmem:[%s1 + $0x54] sm:$0xf]
    %v51 = vld [vmem:[%s1 + $0x58] sm:$0xf]
    %v52 = vld [vmem:[%s1 + $0x5c] sm:$0xf]
    %v53 = vld [vmem:[%s1 + $0x60] sm:$0xf]
    %v54 = vld [vmem:[%s1 + $0x64] sm:$0xf]
    %v55 = vld [vmem:[%s1 + $0x68] sm:$0xf]
    %v56 = vld [vmem:[%s1 + $0x6c] sm:$0xf]
    %v57 = vld [vmem:[%s1 + $0x70] sm:$0xf]
    %v58 = vld [vmem:[%s1 + $0x74] sm:$0xf]
    %v59 = vld [vmem:[%s1 + $0x78] sm:$0xf]
    %v60 = vld [vmem:[%s1 + $0x7c] sm:$0xf]
    %v61 = vld [vmem:[%s1 + $0x80] sm:$0xf]
    %v62 = vld [vmem:[%s1 + $0x84] sm:$0xf]
    %v63 = vld [vmem:[%s1 + $0x88] sm:$0xf]
    %v64 = vld [vmem:[%s1 + $0x8c] sm:$0xf]
    %v65 = vld [vmem:[%s1 + $0x90] sm:$0xf]
    %v66 = vld [vmem:[%s1 + $0x94] sm:$0xf]
    %v67 = vld [vmem:[%s1 + $0x98] sm:$0xf]
    %v68 = vld [vmem:[%s1 + $0x9c] sm:$0xf]
    %v69 = vld [vmem:[%s1 + $0xa0] sm:$0xf]
    %v70 = vld [vmem:[%s1 + $0xa4] sm:$0xf]
    %v71 = vld [vmem:[%s1 + $0xa8] sm:$0xf]
    %v72 = vld [vmem:[%s1 + $0xac] sm:$0xf]
    %v73 = vld [vmem:[%s1 + $0xb0] sm:$0xf]
    %v74 = vld [vmem:[%s1 + $0xb4] sm:$0xf]
    %v75 = vld [vmem:[%s1 + $0xb8] sm:$0xf]
    %v76 = vld [vmem:[%s1 + $0xbc] sm:$0xf]
    %v77 = vld [vmem:[%s1 + $0xc0] sm:$0xf]
    %v78 = vld [vmem:[%s1 + $0xc4] sm:$0xf]
    %v79 = vld [vmem:[%s1 + $0xc8] sm:$0xf]
    %v80 = vld [vmem:[%s1 + $0xcc] sm:$0xf]
    %v81 = vld [vmem:[%s1 + $0xd0] sm:$0xf]
    %v82 = vld [vmem:[%s1 + $0xd4] sm:$0xf]
    %v83 = vld [vmem:[%s1 + $0xd8] sm:$0xf]
    %v84 = vld [vmem:[%s1 + $0xdc] sm:$0xf]
    %v85 = vld [vmem:[%s1 + $0xe0] sm:$0xf]
    %v86 = vld [vmem:[%s1 + $0xe4] sm:$0xf]
    %v87 = vld [vmem:[%s1 + $0xe8] sm:$0xf]
    %v88 = vld [vmem:[%s1 + $0xec] sm:$0xf]
    %v89 = vld [vmem:[%s1 + $0xf0] sm:$0xf]
    %v90 = vld [vmem:[%s1 + $0xf4] sm:$0xf]
    %v91 = vld [vmem:[%s1 + $0xf8] sm:$0xf]
    %v92 = vld [vmem:[%s1 + $0xfc] sm:$0xf]
    %v93 = vld [vmem:[%s1 + $0x100] sm:$0xf]
    %v94 = vld [vmem:[%s1 + $0x104] sm:$0xf]
    %v95 = vld [vmem:[%s1 + $0x108] sm:$0xf]
    %v96 = vld [vmem:[%s1 + $0x10c] sm:$0xf]
    %v97 = vld [vmem:[%s1 + $0x110] sm:$0xf]
    %v98 = vld [vmem:[%s1 + $0x114] sm:$0xf]
    %v99 = vld [vmem:[%s1 + $0x118] sm:$0xf]
    %v100 = vld [vmem:[%s1 + $0x11c] sm:$0xf]
    %v101 = vld [vmem:[%s1 + $0x120] sm:$0xf]
    %v102 = vld [vmem:[%s1 + $0x124] sm:$0xf]
    %v103 = vld [vmem:[%s1 + $0x128] sm:$0xf]
    %v104 = vld [vmem:[%s1 + $0x12c] sm:$0xf]
    %v105 = vld [vmem:[%s1 + $0x130] sm:$0xf]
    %v106 = vld [vmem:[%s1 + $0x134] sm:$0xf]
    %v107 = vld [vmem:[%s1 + $0x138] sm:$0xf]
    %v108 = vld [vmem:[%s1 + $0x13c] sm:$0xf]
    %v109 = vld [vmem:[%s1 + $0x140] sm:$0xf]
    %v110 = vld [vmem:[%s1 + $0x144] sm:$0xf]
    %v111 = vld [vmem:[%s1 + $0x148] sm:$0xf]
    %v112 = vld [vmem:[%s1 + $0x14c] sm:$0xf]
    %v113 = vld [vmem:[%s1 + $0x150] sm:$0xf]
    %v114 = vld [vmem:[%s1 + $0x154] sm:$0xf]
    %v115 = vld [vmem:[%s1 + $0x158] sm:$0xf]
    %v116 = vld [vmem:[%s1 + $0x15c] sm:$0xf]
    %v117 = vld [vmem:[%s1 + $0x160] sm:$0xf]
    %v118 = vld [vmem:[%s1 + $0x164] sm:$0xf]
    %v119 = vld [vmem:[%s1 + $0x168] sm:$0xf]
    %v120 = vld [vmem:[%s1 + $0x16c] sm:$0xf]
    %v121 = vld [vmem:[%s1 + $0x170] sm:$0xf]
    %v122 = vld [vmem:[%s1 + $0x174] sm:$0xf]
    %v123 = vld [vmem:[%s1 + $0x178] sm:$0xf]
    %v124 = vld [vmem:[%s1 + $0x17c] sm:$0xf]
    %v125 = vld [vmem:[%s1 + $0x180] sm:$0xf]
    %v126 = vld [vmem:[%s1 + $0x184] sm:$0xf]
    %v127 = vld [vmem:[%s1 + $0x188] sm:$0xf]
    %v128 = vld [vmem:[%s1 + $0x18c] sm:$0xf]
    %v129 = vld [vmem:[%s1 + $0x190] sm:$0xf]
    %v130 = vld [vmem:[%s1 + $0x194] sm:$0xf]
    %v131 = vld [vmem:[%s1 + $0x198] sm:$0xf]
    %v132 = vld [vmem:[%s1 + $0x19c] sm:$0xf]
    %v133 = vld [vmem:[%s1 + $0x1a0] sm:$0xf]
    %v134 = vld [vmem:[%s1 + $0x1a4] sm:$0xf]
    %v135 = vld [vmem:[%s1 + $0x1a8] sm:$0xf]
    %v136 = vld [vmem:[%s1 + $0x1ac] sm:$0xf]
    %v137 = vld [vmem:[%s1 + $0x1b0] sm:$0xf]
    %v138 = vld [vmem:[%s1 + $0x1b4] sm:$0xf]
    %v139 = vld [vmem:[%s1 + $0x1b8] sm:$0xf]
    %v140 = vld [vmem:[%s1 + $0x1bc] sm:$0xf]
    %v141 = vld [vmem:[%s1 + $0x1c0] sm:$0xf]
    %v142 = vld [vmem:[%s1 + $0x1c4] sm:$0xf]
    %v143 = vld [vmem:[%s1 + $0x1c8] sm:$0xf]
    %v144 = vld [vmem:[%s1 + $0x1cc] sm:$0xf]
    %v145 = vld [vmem:[%s1 + $0x1d0] sm:$0xf]
    %v146 = vld [vmem:[%s1 + $0x1d4] sm:$0xf]
    %v147 = vld [vmem:[%s1 + $0x1d8] sm:$0xf]
    %v148 = vld [vmem:[%s1 + $0x1dc] sm:$0xf]
    %v149 = vld [vmem:[%s1 + $0x1e0] sm:$0xf]
    %v150 = vld [vmem:[%s1 + $0x1e4] sm:$0xf]
    %v151 = vld [vmem:[%s1 + $0x1e8] sm:$0xf]
    %v152 = vld [vmem:[%s1 + $0x1ec] sm:$0xf]
    %v153 = vld [vmem:[%s1 + $0x1f0] sm:$0xf]
    %v154 = vld [vmem:[%s1 + $0x1f4] sm:$0xf]
    %v155 = vld [vmem:[%s1 + $0x1f8] sm:$0xf]
    %v156 = vld [vmem:[%s1 + $0x1fc] sm:$0xf]
    %v157 = vld [vmem:[%s1 + $0x200] sm:$0xf]
    %v158 = vld [vmem:[%s1 + $0x204] sm:$0xf]
    %v159 = vld [vmem:[%s1 + $0x208] sm:$0xf]
    %v160 = vld [vmem:[%s1 + $0x20c] sm:$0xf]
    %v161 = vld [vmem:[%s1 + $0x210] sm:$0xf]
    %v162 = vld [vmem:[%s1 + $0x214] sm:$0xf]
    %v163 = vld [vmem:[%s1 + $0x218] sm:$0xf]
    %v164 = vld [vmem:[%s1 + $0x21c] sm:$0xf]
    %v165 = vld [vmem:[%s1 + $0x220] sm:$0xf]
    %v166 = vld [vmem:[%s1 + $0x224] sm:$0xf]
    %v167 = vld [vmem:[%s1 + $0x228] sm:$0xf]
    %v168 = vld [vmem:[%s1 + $0x22c] sm:$0xf]
    %v169 = vld [vmem:[%s1 + $0x230] sm:$0xf]
    %v170 = vld [vmem:[%s1 + $0x234] sm:$0xf]
    %v171 = vld [vmem:[%s1 + $0x238] sm:$0xf]
    %v172 = vld [vmem:[%s1 + $0x23c] sm:$0xf]
    %v173 = vld [vmem:[%s1 + $0x240] sm:$0xf]
    %v174 = vld [vmem:[%s1 + $0x244] sm:$0xf]
    %v175 = vld [vmem:[%s1 + $0x248] sm:$0xf]
    %v176 = vld [vmem:[%s1 + $0x24c] sm:$0xf]
    %v177 = vld [vmem:[%s1 + $0x250] sm:$0xf]
    %v178 = vld [vmem:[%s1 + $0x254] sm:$0xf]
    %v179 = vld [vmem:[%s1 + $0x258] sm:$0xf]
    %v180 = vld [vmem:[%s1 + $0x25c] sm:$0xf]
    %v181 = vld [vmem:[%s1 + $0x260] sm:$0xf]
    %v182 = vld [vmem:[%s1 + $0x264] sm:$0xf]
    %v183 = vld [vmem:[%s1 + $0x268] sm:$0xf]
    %v184 = vld [vmem:[%s1 + $0x26c] sm:$0xf]
    %v185 = vld [vmem:[%s1 + $0x270] sm:$0xf]
    %v186 = vld [vmem:[%s1 + $0x274] sm:$0xf]
    %v187 = vld [vmem:[%s1 + $0x278] sm:$0xf]
    %v188 = vld [vmem:[%s1 + $0x27c] sm:$0xf]
    %v189 = vld [vmem:[%s1 + $0x280] sm:$0xf]
    %v190 = vld [vmem:[%s1 + $0x284] sm:$0xf]
    %v191 = vld [vmem:[%s1 + $0x288] sm:$0xf]
    %v192 = vld [vmem:[%s1 + $0x28c] sm:$0xf]
    %v193 = vld [vmem:[%s1 + $0x290] sm:$0xf]
    %v194 = vld [vmem:[%s1 + $0x294] sm:$0xf]
    %v195 = vld [vmem:[%s1 + $0x298] sm:$0xf]
    %v196 = vld [vmem:[%s1 + $0x29c] sm:$0xf]
    %v197 = vld [vmem:[%s1 + $0x2a0] sm:$0xf]
    %v198 = vld [vmem:[%s1 + $0x2a4] sm:$0xf]
    %v199 = vld [vmem:[%s1 + $0x2a8] sm:$0xf]
    %v200 = vld [vmem:[%s1 + $0x2ac] sm:$0xf]
    %v201 = vld [vmem:[%s1 + $0x2b0] sm:$0xf]
    %v202 = vld [vmem:[%s1 + $0x2b4] sm:$0xf]
    %v203 = vld [vmem:[%s1 + $0x2b8] sm:$0xf]
    %v204 = vld [vmem:[%s1 + $0x2bc] sm:$0xf]
    %v205 = vld [vmem:[%s1 + $0x2c0] sm:$0xf]
    %v206 = vld [vmem:[%s1 + $0x2c4] sm:$0xf]
    %v207 = vld [vmem:[%s1 + $0x2c8] sm:$0xf]
    %v208 = vld [vmem:[%s1 + $0x2cc] sm:$0xf]
    %v209 = vld [vmem:[%s1 + $0x2d0] sm:$0xf]
    %v210 = vld [vmem:[%s1 + $0x2d4] sm:$0xf]
    %v211 = vld [vmem:[%s1 + $0x2d8] sm:$0xf]
    %v212 = vld [vmem:[%s1 + $0x2dc] sm:$0xf]
    %v213 = vld [vmem:[%s1 + $0x2e0] sm:$0xf]
    %v214 = vld [vmem:[%s1 + $0x2e4] sm:$0xf]
    %v215 = vld [vmem:[%s1 + $0x2e8] sm:$0xf]
    %v216 = vld [vmem:[%s1 + $0x2ec] sm:$0xf]
    %v217 = vld [vmem:[%s1 + $0x2f0] sm:$0xf]
    %v218 = vld [vmem:[%s1 + $0x2f4] sm:$0xf]
    %v219 = vld [vmem:[%s1 + $0x2f8] sm:$0xf]
    %v220 = vld [vmem:[%s1 + $0x2fc] sm:$0xf]
    %v221 = vld [vmem:[%s1 + $0x300] sm:$0xf]
    %v222 = vld [vmem:[%s1 + $0x304] sm:$0xf]
    %v223 = vld [vmem:[%s1 + $0x308] sm:$0xf]
    %v224 = vld [vmem:[%s1 + $0x30c] sm:$0xf]
    %v225 = vld [vmem:[%s1 + $0x310] sm:$0xf]
    %v226 = vld [vmem:[%s1 + $0x314] sm:$0xf]
    %v227 = vld [vmem:[%s1 + $0x318] sm:$0xf]
    %v228 = vld [vmem:[%s1 + $0x31c] sm:$0xf]
    %v229 = vld [vmem:[%s1 + $0x320] sm:$0xf]
    %v230 = vld [vmem:[%s1 + $0x324] sm:$0xf]
    %v231 = vld [vmem:[%s1 + $0x328] sm:$0xf]
    %v232 = vld [vmem:[%s1 + $0x32c] sm:$0xf]
    %v233 = vld [vmem:[%s1 + $0x330] sm:$0xf]
    %v234 = vld [vmem:[%s1 + $0x334] sm:$0xf]
    %v235 = vld [vmem:[%s1 + $0x338] sm:$0xf]
    %v236 = vld [vmem:[%s1 + $0x33c] sm:$0xf]
    %v237 = vld [vmem:[%s1 + $0x340] sm:$0xf]
    %v238 = vld [vmem:[%s1 + $0x344] sm:$0xf]
    %v239 = vld [vmem:[%s1 + $0x348] sm:$0xf]
    %v240 = vld [vmem:[%s1 + $0x34c] sm:$0xf]
    %v241 = vld [vmem:[%s1 + $0x350] sm:$0xf]
    %v242 = vld [vmem:[%s1 + $0x354] sm:$0xf]
    %v243 = vld [vmem:[%s1 + $0x358] sm:$0xf]
    %v244 = vld [vmem:[%s1 + $0x35c] sm:$0xf]
    %v245 = vld [vmem:[%s1 + $0x360] sm:$0xf]
    %v246 = vld [vmem:[%s1 + $0x364] sm:$0xf]
    %v247 = vld [vmem:[%s1 + $0x368] sm:$0xf]
    %v248 = vld [vmem:[%s1 + $0x36c] sm:$0xf]
    %v249 = vld [vmem:[%s1 + $0x370] sm:$0xf]
    %v250 = vld [vmem:[%s1 + $0x374] sm:$0xf]
    %v251 = vld [vmem:[%s1 + $0x378] sm:$0xf]
    %v252 = vld [vmem:[%s1 + $0x37c] sm:$0xf]
    %v253 = vld [vmem:[%s1 + $0x380] sm:$0xf]
    %v254 = vld [vmem:[%s1 + $0x384] sm:$0xf]
    %v255 = vld [vmem:[%s1 + $0x388] sm:$0xf]
    %v256 = vld [vmem:[%s1 + $0x38c] sm:$0xf]
    %v257 = vld [vmem:[%s1 + $0x390] sm:$0xf]
    %v258 = vld [vmem:[%s1 + $0x394] sm:$0xf]
    %v259 = vld [vmem:[%s1 + $0x398] sm:$0xf]
    %v260 = vld [vmem:[%s1 + $0x39c] sm:$0xf]
    %v261 = vld [vmem:[%s1 + $0x3a0] sm:$0xf]
    %v262 = vld [vmem:[%s1 + $0x3a4] sm:$0xf]
    %v263 = vld [vmem:[%s1 + $0x3a8] sm:$0xf]
    %v264 = vld [vmem:[%s1 + $0x3ac] sm:$0xf]
    %v265 = vld [vmem:[%s1 + $0x3b0] sm:$0xf]
    %v266 = vld [vmem:[%s1 + $0x3b4] sm:$0xf]
    %v267 = vld [vmem:[%s1 + $0x3b8] sm:$0xf]
    %v268 = vld [vmem:[%s1 + $0x3bc] sm:$0xf]
    %v269 = vld [vmem:[%s1 + $0x3c0] sm:$0xf]
    %v270 = vld [vmem:[%s1 + $0x3c4] sm:$0xf]
    %v271 = vld [vmem:[%s1 + $0x3c8] sm:$0xf]
    %v272 = vld [vmem:[%s1 + $0x3cc] sm:$0xf]
    %v273 = vld [vmem:[%s1 + $0x3d0] sm:$0xf]
    %v274 = vld [vmem:[%s1 + $0x3d4] sm:$0xf]
    %v275 = vld [vmem:[%s1 + $0x3d8] sm:$0xf]
    %v276 = vld [vmem:[%s1 + $0x3dc] sm:$0xf]
    %v277 = vld [vmem:[%s1 + $0x3e0] sm:$0xf]
    %v278 = vld [vmem:[%s1 + $0x3e4] sm:$0xf]
    %v279 = vld [vmem:[%s1 + $0x3e8] sm:$0xf]
    %v280 = vld [vmem:[%s1 + $0x3ec] sm:$0xf]
    %v281 = vld [vmem:[%s1 + $0x3f0] sm:$0xf]
    %v282 = vld [vmem:[%s1 + $0x3f4] sm:$0xf]
    %v283 = vld [vmem:[%s1 + $0x3f8] sm:$0xf]
    %v284 = vld [vmem:[%s1 + $0x3fc] sm:$0xf]
    %v285 = vld [vmem:[%s1 + $0x400] sm:$0xf]
    %v286 = vld [vmem:[%s1 + $0x404] sm:$0xf]
    %v287 = vld [vmem:[%s1 + $0x408] sm:$0xf]
    %v288 = vld [vmem:[%s1 + $0x40c] sm:$0xf]
    %v289 = vld [vmem:[%s1 + $0x410] sm:$0xf]
    %v290 = vld [vmem:[%s1 + $0x414] sm:$0xf]
    %v291 = vld [vmem:[%s1 + $0x418] sm:$0xf]
    %v292 = vld [vmem:[%s1 + $0x41c] sm:$0xf]
    %v293 = vld [vmem:[%s1 + $0x420] sm:$0xf]
    %v294 = vld [vmem:[%s1 + $0x424] sm:$0xf]
    %v295 = vld [vmem:[%s1 + $0x428] sm:$0xf]
    %v296 = vld [vmem:[%s1 + $0x42c] sm:$0xf]
    %v297 = vld [vmem:[%s1 + $0x430] sm:$0xf]
    %v298 = vld [vmem:[%s1 + $0x434] sm:$0xf]
    %v299 = vld [vmem:[%s1 + $0x438] sm:$0xf]
    %v300 = vld [vmem:[%s1 + $0x43c] sm:$0xf]
    %v301 = vld [vmem:[%s1 + $0x440] sm:$0xf]
    %v302 = vld [vmem:[%s1 + $0x444] sm:$0xf]
    %v303 = vld [vmem:[%s1 + $0x448] sm:$0xf]
    %v304 = vld [vmem:[%s1 + $0x44c] sm:$0xf]
    %v305 = vld [vmem:[%s1 + $0x450] sm:$0xf]
    %v306 = vld [vmem:[%s1 + $0x454] sm:$0xf]
    %v307 = vld [vmem:[%s1 + $0x458] sm:$0xf]
    %v308 = vld [vmem:[%s1 + $0x45c] sm:$0xf]
    %v309 = vld [vmem:[%s1 + $0x460] sm:$0xf]
    %v310 = vld [vmem:[%s1 + $0x464] sm:$0xf]
    %v311 = vld [vmem:[%s1 + $0x468] sm:$0xf]
    %v312 = vld [vmem:[%s1 + $0x46c] sm:$0xf]
    %v313 = vld [vmem:[%s1 + $0x470] sm:$0xf]
    %v314 = vld [vmem:[%s1 + $0x474] sm:$0xf]
    %v315 = vld [vmem:[%s1 + $0x478] sm:$0xf]
    %v316 = vld [vmem:[%s1 + $0x47c] sm:$0xf]
    %v317 = vld [vmem:[%s1 + $0x480] sm:$0xf]
    %v318 = vld [vmem:[%s1 + $0x484] sm:$0xf]
    %v319 = vld [vmem:[%s1 + $0x488] sm:$0xf]
    %v320 = vld [vmem:[%s1 + $0x48c] sm:$0xf]
    %v321 = vld [vmem:[%s1 + $0x490] sm:$0xf]
    %v322 = vld [vmem:[%s1 + $0x494] sm:$0xf]
    %v323 = vld [vmem:[%s1 + $0x498] sm:$0xf]
    %v324 = vld [vmem:[%s1 + $0x49c] sm:$0xf]
    %v325 = vld [vmem:[%s1 + $0x4a0] sm:$0xf]
    %v326 = vld [vmem:[%s1 + $0x4a4] sm:$0xf]
    %v327 = vld [vmem:[%s1 + $0x4a8] sm:$0xf]
    %v328 = vld [vmem:[%s1 + $0x4ac] sm:$0xf]
    %v329 = vld [vmem:[%s1 + $0x4b0] sm:$0xf]
    %v330 = vld [vmem:[%s1 + $0x4b4] sm:$0xf]
    %v331 = vld [vmem:[%s1 + $0x4b8] sm:$0xf]
    %v332 = vld [vmem:[%s1 + $0x4bc] sm:$0xf]
    %v333 = vld [vmem:[%s1 + $0x4c0] sm:$0xf]
    %v334 = vld [vmem:[%s1 + $0x4c4] sm:$0xf]
    %v335 = vld [vmem:[%s1 + $0x4c8] sm:$0xf]
    %v336 = vld [vmem:[%s1 + $0x4cc] sm:$0xf]
    %v337 = vld [vmem:[%s1 + $0x4d0] sm:$0xf]
    %v338 = vld [vmem:[%s1 + $0x4d4] sm:$0xf]
    %v339 = vld [vmem:[%s1 + $0x4d8] sm:$0xf]
    %v340 = vld [vmem:[%s1 + $0x4dc] sm:$0xf]
    %v341 = vld [vmem:[%s1 + $0x4e0] sm:$0xf]
    %v342 = vld [vmem:[%s1 + $0x4e4] sm:$0xf]
    %v343 = vld [vmem:[%s1 + $0x4e8] sm:$0xf]
    %v344 = vld [vmem:[%s1 + $0x4ec] sm:$0xf]
    %v345 = vld [vmem:[%s1 + $0x4f0] sm:$0xf]
    %v346 = vld [vmem:[%s1 + $0x4f4] sm:$0xf]
    %v347 = vld [vmem:[%s1 + $0x4f8] sm:$0xf]
    %v348 = vld [vmem:[%s1 + $0x4fc] sm:$0xf]
    %v349 = vld [vmem:[%s1 + $0x500] sm:$0xf]
    %v350 = vld [vmem:[%s1 + $0x504] sm:$0xf]
    %v351 = vld [vmem:[%s1 + $0x508] sm:$0xf]
    %v352 = vld [vmem:[%s1 + $0x50c] sm:$0xf]
    %v353 = vld [vmem:[%s1 + $0x510] sm:$0xf]
    %v354 = vld [vmem:[%s1 + $0x514] sm:$0xf]
    %v355 = vld [vmem:[%s1 + $0x518] sm:$0xf]
    %v356 = vld [vmem:[%s1 + $0x51c] sm:$0xf]
    %v357 = vld [vmem:[%s1 + $0x520] sm:$0xf]
    %v358 = vld [vmem:[%s1 + $0x524] sm:$0xf]
    %v359 = vld [vmem:[%s1 + $0x528] sm:$0xf]
    %v360 = vld [vmem:[%s1 + $0x52c] sm:$0xf]
    %v361 = vld [vmem:[%s1 + $0x530] sm:$0xf]
    %v362 = vld [vmem:[%s1 + $0x534] sm:$0xf]
    %v363 = vld [vmem:[%s1 + $0x538] sm:$0xf]
    %v364 = vld [vmem:[%s1 + $0x53c] sm:$0xf]
    %v365 = vld [vmem:[%s1 + $0x540] sm:$0xf]
    %v366 = vld [vmem:[%s1 + $0x544] sm:$0xf]
    %v367 = vld [vmem:[%s1 + $0x548] sm:$0xf]
    %v368 = vld [vmem:[%s1 + $0x54c] sm:$0xf]
    %v369 = vld [vmem:[%s1 + $0x550] sm:$0xf]
    %v370 = vld [vmem:[%s1 + $0x554] sm:$0xf]
    %v371 = vld [vmem:[%s1 + $0x558] sm:$0xf]
    %v372 = vld [vmem:[%s1 + $0x55c] sm:$0xf]
    %v373 = vld [vmem:[%s1 + $0x560] sm:$0xf]
    %v374 = vld [vmem:[%s1 + $0x564] sm:$0xf]
    %v375 = vld [vmem:[%s1 + $0x568] sm:$0xf]
    %v376 = vld [vmem:[%s1 + $0x56c] sm:$0xf]
    %v377 = vld [vmem:[%s1 + $0x570] sm:$0xf]
    %v378 = vld [vmem:[%s1 + $0x574] sm:$0xf]
    %v379 = vld [vmem:[%s1 + $0x578] sm:$0xf]
    %v380 = vld [vmem:[%s1 + $0x57c] sm:$0xf]
    %v381 = vld [vmem:[%s1 + $0x580] sm:$0xf]
    %v382 = vld [vmem:[%s1 + $0x584] sm:$0xf]
    %v383 = vld [vmem:[%s1 + $0x588] sm:$0xf]
    %v384 = vld [vmem:[%s1 + $0x58c] sm:$0xf]
    %v385 = vld [vmem:[%s1 + $0x590] sm:$0xf]
    %v386 = vld [vmem:[%s1 + $0x594] sm:$0xf]
    %v387 = vld [vmem:[%s1 + $0x598] sm:$0xf]
    %v388 = vld [vmem:[%s1 + $0x59c] sm:$0xf]
    %v389 = vld [vmem:[%s1 + $0x5a0] sm:$0xf]
    %v390 = vld [vmem:[%s1 + $0x5a4] sm:$0xf]
    %v391 = vld [vmem:[%s1 + $0x5a8] sm:$0xf]
    %v392 = vld [vmem:[%s1 + $0x5ac] sm:$0xf]
    %v393 = vld [vmem:[%s1 + $0x5b0] sm:$0xf]
    %v394 = vld [vmem:[%s1 + $0x5b4] sm:$0xf]
    %v395 = vld [vmem:[%s1 + $0x5b8] sm:$0xf]
    %v396 = vld [vmem:[%s1 + $0x5bc] sm:$0xf]
    %v397 = vld [vmem:[%s1 + $0x5c0] sm:$0xf]
    %v398 = vld [vmem:[%s1 + $0x5c4] sm:$0xf]
    %v399 = vld [vmem:[%s1 + $0x5c8] sm:$0xf]
    %v400 = vld [vmem:[%s1 + $0x5cc] sm:$0xf]
    %v401 = vld [vmem:[%s1 + $0x5d0] sm:$0xf]
    %v402 = vld [vmem:[%s1 + $0x5d4] sm:$0xf]
    %v403 = vld [vmem:[%s1 + $0x5d8] sm:$0xf]
    %v404 = vld [vmem:[%s1 + $0x5dc] sm:$0xf]
    %v405 = vld [vmem:[%s1 + $0x5e0] sm:$0xf]
    %v406 = vld [vmem:[%s1 + $0x5e4] sm:$0xf]
    %v407 = vld [vmem:[%s1 + $0x5e8] sm:$0xf]
    %v408 = vld [vmem:[%s1 + $0x5ec] sm:$0xf]
    %v409 = vld [vmem:[%s1 + $0x5f0] sm:$0xf]
    %v410 = vld [vmem:[%s1 + $0x5f4] sm:$0xf]
    %v411 = vld [vmem:[%s1 + $0x5f8] sm:$0xf]
    %v412 = vld [vmem:[%s1 + $0x5fc] sm:$0xf]
    %v413 = vld [vmem:[%s1 + $0x600] sm:$0xf]
    %v414 = vld [vmem:[%s1 + $0x604] sm:$0xf]
    %v415 = vld [vmem:[%s1 + $0x608] sm:$0xf]
    %v416 = vld [vmem:[%s1 + $0x60c] sm:$0xf]
    %v417 = vld [vmem:[%s1 + $0x610] sm:$0xf]
    %v418 = vld [vmem:[%s1 + $0x614] sm:$0xf]
    %v419 = vld [vmem:[%s1 + $0x618] sm:$0xf]
    %v420 = vld [vmem:[%s1 + $0x61c] sm:$0xf]
    %v421 = vld [vmem:[%s1 + $0x620] sm:$0xf]
    %v422 = vld [vmem:[%s1 + $0x624] sm:$0xf]
    %v423 = vld [vmem:[%s1 + $0x628] sm:$0xf]
    %v424 = vld [vmem:[%s1 + $0x62c] sm:$0xf]
    %v425 = vld [vmem:[%s1 + $0x630] sm:$0xf]
    %v426 = vld [vmem:[%s1 + $0x634] sm:$0xf]
    %v427 = vld [vmem:[%s1 + $0x638] sm:$0xf]
    %v428 = vld [vmem:[%s1 + $0x63c] sm:$0xf]
    %v429 = vld [vmem:[%s1 + $0x640] sm:$0xf]
    %v430 = vld [vmem:[%s1 + $0x644] sm:$0xf]
    %v431 = vld [vmem:[%s1 + $0x648] sm:$0xf]
    %v432 = vld [vmem:[%s1 + $0x64c] sm:$0xf]
    %v433 = vld [vmem:[%s1 + $0x650] sm:$0xf]
    %v434 = vld [vmem:[%s1 + $0x654] sm:$0xf]
    %v435 = vld [vmem:[%s1 + $0x658] sm:$0xf]
    %v436 = vld [vmem:[%s1 + $0x65c] sm:$0xf]
    %v437 = vld [vmem:[%s1 + $0x660] sm:$0xf]
    %v438 = vld [vmem:[%s1 + $0x664] sm:$0xf]
    %v439 = vld [vmem:[%s1 + $0x668] sm:$0xf]
    %v440 = vld [vmem:[%s1 + $0x66c] sm:$0xf]
    %v441 = vld [vmem:[%s1 + $0x670] sm:$0xf]
    %v442 = vld [vmem:[%s1 + $0x674] sm:$0xf]
    %v443 = vld [vmem:[%s1 + $0x678] sm:$0xf]
    %v444 = vld [vmem:[%s1 + $0x67c] sm:$0xf]
    %v445 = vld [vmem:[%s1 + $0x680] sm:$0xf]
    %v446 = vld [vmem:[%s1 + $0x684] sm:$0xf]
    %v447 = vld [vmem:[%s1 + $0x688] sm:$0xf]
    %v448 = vld [vmem:[%s1 + $0x68c] sm:$0xf]
    %v449 = vld [vmem:[%s1 + $0x690] sm:$0xf]
    %v450 = vld [vmem:[%s1 + $0x694] sm:$0xf]
    %v451 = vld [vmem:[%s1 + $0x698] sm:$0xf]
    %v452 = vld [vmem:[%s1 + $0x69c] sm:$0xf]
    %v453 = vld [vmem:[%s1 + $0x6a0] sm:$0xf]
    %v454 = vld [vmem:[%s1 + $0x6a4] sm:$0xf]
    %v455 = vld [vmem:[%s1 + $0x6a8] sm:$0xf]
    %v456 = vld [vmem:[%s1 + $0x6ac] sm:$0xf]
    %v457 = vld [vmem:[%s1 + $0x6b0] sm:$0xf]
    %v458 = vld [vmem:[%s1 + $0x6b4] sm:$0xf]
    %v459 = vld [vmem:[%s1 + $0x6b8] sm:$0xf]
    %v460 = vld [vmem:[%s1 + $0x6bc] sm:$0xf]
    %v461 = vld [vmem:[%s1 + $0x6c0] sm:$0xf]
    %v462 = vld [vmem:[%s1 + $0x6c4] sm:$0xf]
    %v463 = vld [vmem:[%s1 + $0x6c8] sm:$0xf]
    %v464 = vld [vmem:[%s1 + $0x6cc] sm:$0xf]
    %v465 = vld [vmem:[%s1 + $0x6d0] sm:$0xf]
    %v466 = vld [vmem:[%s1 + $0x6d4] sm:$0xf]
    %v467 = vld [vmem:[%s1 + $0x6d8] sm:$0xf]
    %v468 = vld [vmem:[%s1 + $0x6dc] sm:$0xf]
    %v469 = vld [vmem:[%s1 + $0x6e0] sm:$0xf]
    %v470 = vld [vmem:[%s1 + $0x6e4] sm:$0xf]
    %v471 = vld [vmem:[%s1 + $0x6e8] sm:$0xf]
    %v472 = vld [vmem:[%s1 + $0x6ec] sm:$0xf]
    %v473 = vld [vmem:[%s1 + $0x6f0] sm:$0xf]
    %v474 = vld [vmem:[%s1 + $0x6f4] sm:$0xf]
    %v475 = vld [vmem:[%s1 + $0x6f8] sm:$0xf]
    %v476 = vld [vmem:[%s1 + $0x6fc] sm:$0xf]
    %v477 = vld [vmem:[%s1 + $0x700] sm:$0xf]
    %v478 = vld [vmem:[%s1 + $0x704] sm:$0xf]
    %v479 = vld [vmem:[%s1 + $0x708] sm:$0xf]
    %v480 = vld [vmem:[%s1 + $0x70c] sm:$0xf]
    %v481 = vld [vmem:[%s1 + $0x710] sm:$0xf]
    %v482 = vld [vmem:[%s1 + $0x714] sm:$0xf]
    %v483 = vld [vmem:[%s1 + $0x718] sm:$0xf]
    %v484 = vld [vmem:[%s1 + $0x71c] sm:$0xf]
    %v485 = vld [vmem:[%s1 + $0x720] sm:$0xf]
    %v486 = vld [vmem:[%s1 + $0x724] sm:$0xf]
    %v487 = vld [vmem:[%s1 + $0x728] sm:$0xf]
    %v488 = vld [vmem:[%s1 + $0x72c] sm:$0xf]
    %v489 = vld [vmem:[%s1 + $0x730] sm:$0xf]
    %v490 = vld [vmem:[%s1 + $0x734] sm:$0xf]
    %v491 = vld [vmem:[%s1 + $0x738] sm:$0xf]
    %v492 = vld [vmem:[%s1 + $0x73c] sm:$0xf]
    %v493 = vld [vmem:[%s1 + $0x740] sm:$0xf]
    %v494 = vld [vmem:[%s1 + $0x744] sm:$0xf]
    %v495 = vld [vmem:[%s1 + $0x748] sm:$0xf]
    %v496 = vld [vmem:[%s1 + $0x74c] sm:$0xf]
    %v497 = vld [vmem:[%s1 + $0x750] sm:$0xf]
    %v498 = vld [vmem:[%s1 + $0x754] sm:$0xf]
    %v499 = vld [vmem:[%s1 + $0x758] sm:$0xf]
    %v500 = vld [vmem:[%s1 + $0x75c] sm:$0xf]
    %v501 = vld [vmem:[%s1 + $0x760] sm:$0xf]
    %v502 = vld [vmem:[%s1 + $0x764] sm:$0xf]
    %v503 = vld [vmem:[%s1 + $0x768] sm:$0xf]
    %v504 = vld [vmem:[%s1 + $0x76c] sm:$0xf]
    %v505 = vld [vmem:[%s1 + $0x770] sm:$0xf]
    %v506 = vld [vmem:[%s1 + $0x774] sm:$0xf]
    %v507 = vld [vmem:[%s1 + $0x778] sm:$0xf]
    %v508 = vld [vmem:[%s1 + $0x77c] sm:$0xf]
    %v509 = vld [vmem:[%s1 + $0x780] sm:$0xf]
    %v510 = vld [vmem:[%s1 + $0x784] sm:$0xf]
    %v511 = vld [vmem:[%s1 + $0x788] sm:$0xf]
    %v512 = vld [vmem:[%s1 + $0x78c] sm:$0xf]
    %v513 = vld [vmem:[%s1 + $0x790] sm:$0xf]
    %v514 = vld [vmem:[%s1 + $0x794] sm:$0xf]
    %v515 = vld [vmem:[%s1 + $0x798] sm:$0xf]
    %v516 = vld [vmem:[%s1 + $0x79c] sm:$0xf]
    %v517 = vld [vmem:[%s1 + $0x7a0] sm:$0xf]
    %v518 = vld [vmem:[%s1 + $0x7a4] sm:$0xf]
    %v519 = vld [vmem:[%s1 + $0x7a8] sm:$0xf]
    %v520 = vld [vmem:[%s1 + $0x7ac] sm:$0xf]
    %v521 = vld [vmem:[%s1 + $0x7b0] sm:$0xf]
    %v522 = vld [vmem:[%s1 + $0x7b4] sm:$0xf]
    %v523 = vld [vmem:[%s1 + $0x7b8] sm:$0xf]
    %v524 = vld [vmem:[%s1 + $0x7bc] sm:$0xf]
    %v525 = vld [vmem:[%s1 + $0x7c0] sm:$0xf]
    %v526 = vld [vmem:[%s1 + $0x7c4] sm:$0xf]
    %v527 = vld [vmem:[%s1 + $0x7c8] sm:$0xf]
    %v528 = vld [vmem:[%s1 + $0x7cc] sm:$0xf]
    %v529 = vld [vmem:[%s1 + $0x7d0] sm:$0xf]
    %v530 = vld [vmem:[%s1 + $0x7d4] sm:$0xf]
    %v531 = vld [vmem:[%s1 + $0x7d8] sm:$0xf]
    %v532 = vld [vmem:[%s1 + $0x7dc] sm:$0xf]
    %v533 = vld [vmem:[%s1 + $0x7e0] sm:$0xf]
    %v534 = vld [vmem:[%s1 + $0x7e4] sm:$0xf]
    %v535 = vld [vmem:[%s1 + $0x7e8] sm:$0xf]
    %v536 = vld [vmem:[%s1 + $0x7ec] sm:$0xf]
    %v537 = vld [vmem:[%s1 + $0x7f0] sm:$0xf]
    %v538 = vld [vmem:[%s1 + $0x7f4] sm:$0xf]
    %v539 = vld [vmem:[%s1 + $0x7f8] sm:$0xf]
    %v540 = vld [vmem:[%s1 + $0x7fc] sm:$0xf]
    %v541 = vld [vmem:[%s1 + $0x800] sm:$0xf]
    %v542 = vld [vmem:[%s1 + $0x804] sm:$0xf]
    %v543 = vld [vmem:[%s1 + $0x808] sm:$0xf]
    %v544 = vld [vmem:[%s1 + $0x80c] sm:$0xf]
    %v545 = vld [vmem:[%s1 + $0x810] sm:$0xf]
    %v546 = vld [vmem:[%s1 + $0x814] sm:$0xf]
    %v547 = vld [vmem:[%s1 + $0x818] sm:$0xf]
    %v548 = vld [vmem:[%s1 + $0x81c] sm:$0xf]
    %v549 = vld [vmem:[%s1 + $0x820] sm:$0xf]
    %v550 = vld [vmem:[%s1 + $0x824] sm:$0xf]
    %v551 = vld [vmem:[%s1 + $0x828] sm:$0xf]
    %v552 = vld [vmem:[%s1 + $0x82c] sm:$0xf]
    %v553 = vld [vmem:[%s1 + $0x830] sm:$0xf]
    %v554 = vld [vmem:[%s1 + $0x834] sm:$0xf]
    %v555 = vld [vmem:[%s1 + $0x838] sm:$0xf]
    %v556 = vld [vmem:[%s1 + $0x83c] sm:$0xf]
    %v557 = vld [vmem:[%s1 + $0x840] sm:$0xf]
    %v558 = vld [vmem:[%s1 + $0x844] sm:$0xf]
    %v559 = vld [vmem:[%s1 + $0x848] sm:$0xf]
    %v560 = vld [vmem:[%s1 + $0x84c] sm:$0xf]
    %v561 = vld [vmem:[%s1 + $0x850] sm:$0xf]
    %v562 = vld [vmem:[%s1 + $0x854] sm:$0xf]
    %v563 = vld [vmem:[%s1 + $0x858] sm:$0xf]
    %v564 = vld [vmem:[%s1 + $0x85c] sm:$0xf]
    %v565 = vld [vmem:[%s1 + $0x860] sm:$0xf]
    %v566 = vld [vmem:[%s1 + $0x864] sm:$0xf]
    %v567 = vld [vmem:[%s1 + $0x868] sm:$0xf]
    %v568 = vld [vmem:[%s1 + $0x86c] sm:$0xf]
    %v569 = vld [vmem:[%s1 + $0x870] sm:$0xf]
    %v570 = vld [vmem:[%s1 + $0x874] sm:$0xf]
    %v571 = vld [vmem:[%s1 + $0x878] sm:$0xf]
    %v572 = vld [vmem:[%s1 + $0x87c] sm:$0xf]
    %v573 = vld [vmem:[%s1 + $0x880] sm:$0xf]
    %v574 = vld [vmem:[%s1 + $0x884] sm:$0xf]
    %v575 = vld [vmem:[%s1 + $0x888] sm:$0xf]
    %v576 = vld [vmem:[%s1 + $0x88c] sm:$0xf]
    %v577 = vld [vmem:[%s1 + $0x890] sm:$0xf]
    %v578 = vld [vmem:[%s1 + $0x894] sm:$0xf]
    %v579 = vld [vmem:[%s1 + $0x898] sm:$0xf]
    %v580 = vld [vmem:[%s1 + $0x89c] sm:$0xf]
    %v581 = vld [vmem:[%s1 + $0x8a0] sm:$0xf]
    %v582 = vld [vmem:[%s1 + $0x8a4] sm:$0xf]
    %v583 = vld [vmem:[%s1 + $0x8a8] sm:$0xf]
    %v584 = vld [vmem:[%s1 + $0x8ac] sm:$0xf]
    %v585 = vld [vmem:[%s1 + $0x8b0] sm:$0xf]
    %v586 = vld [vmem:[%s1 + $0x8b4] sm:$0xf]
    %v587 = vld [vmem:[%s1 + $0x8b8] sm:$0xf]
    %v588 = vld [vmem:[%s1 + $0x8bc] sm:$0xf]
    %v589 = vld [vmem:[%s1 + $0x8c0] sm:$0xf]
    %v590 = vld [vmem:[%s1 + $0x8c4] sm:$0xf]
    %v591 = vld [vmem:[%s1 + $0x8c8] sm:$0xf]
    %v592 = vld [vmem:[%s1 + $0x8cc] sm:$0xf]
    %v593 = vld [vmem:[%s1 + $0x8d0] sm:$0xf]
    %v594 = vld [vmem:[%s1 + $0x8d4] sm:$0xf]
    %v595 = vld [vmem:[%s1 + $0x8d8] sm:$0xf]
    %v596 = vld [vmem:[%s1 + $0x8dc] sm:$0xf]
    %v597 = vld [vmem:[%s1 + $0x8e0] sm:$0xf]
    %v598 = vld [vmem:[%s1 + $0x8e4] sm:$0xf]
    %v599 = vld [vmem:[%s1 + $0x8e8] sm:$0xf]
    %v600 = vld [vmem:[%s1 + $0x8ec] sm:$0xf]
    %v601 = vld [vmem:[%s1 + $0x8f0] sm:$0xf]
    %v602 = vld [vmem:[%s1 + $0x8f4] sm:$0xf]
    %v603 = vld [vmem:[%s1 + $0x8f8] sm:$0xf]
    %v604 = vld [vmem:[%s1 + $0x8fc] sm:$0xf]
    %v605 = vld [vmem:[%s1 + $0x900] sm:$0xf]
    %v606 = vld [vmem:[%s1 + $0x904] sm:$0xf]
    %v607 = vld [vmem:[%s1 + $0x908] sm:$0xf]
    %v608 = vld [vmem:[%s1 + $0x90c] sm:$0xf]
    %v609 = vld [vmem:[%s1 + $0x910] sm:$0xf]
    %v610 = vld [vmem:[%s1 + $0x914] sm:$0xf]
    %v611 = vld [vmem:[%s1 + $0x918] sm:$0xf]
    %v612 = vld [vmem:[%s1 + $0x91c] sm:$0xf]
    %v613 = vld [vmem:[%s1 + $0x920] sm:$0xf]
    %v614 = vld [vmem:[%s1 + $0x924] sm:$0xf]
    %v615 = vld [vmem:[%s1 + $0x928] sm:$0xf]
    %v616 = vld [vmem:[%s1 + $0x92c] sm:$0xf]
    %v617 = vld [vmem:[%s1 + $0x930] sm:$0xf]
    %v618 = vld [vmem:[%s1 + $0x934] sm:$0xf]
    %v619 = vld [vmem:[%s1 + $0x938] sm:$0xf]
    %v620 = vld [vmem:[%s1 + $0x93c] sm:$0xf]
    %v621 = vld [vmem:[%s1 + $0x940] sm:$0xf]
    %v622 = vld [vmem:[%s1 + $0x944] sm:$0xf]
    %v623 = vld [vmem:[%s1 + $0x948] sm:$0xf]
    %v624 = vld [vmem:[%s1 + $0x94c] sm:$0xf]
    %v625 = vld [vmem:[%s1 + $0x950] sm:$0xf]
    %v626 = vld [vmem:[%s1 + $0x954] sm:$0xf]
    %v627 = vld [vmem:[%s1 + $0x958] sm:$0xf]
    %v628 = vld [vmem:[%s1 + $0x95c] sm:$0xf]
    %v629 = vld [vmem:[%s1 + $0x960] sm:$0xf]
    %v630 = vld [vmem:[%s1 + $0x964] sm:$0xf]
    %v631 = vld [vmem:[%s1 + $0x968] sm:$0xf]
    %v632 = vld [vmem:[%s1 + $0x96c] sm:$0xf]
    %v633 = vld [vmem:[%s1 + $0x970] sm:$0xf]
    %v634 = vld [vmem:[%s1 + $0x974] sm:$0xf]
    %v635 = vld [vmem:[%s1 + $0x978] sm:$0xf]
    %v636 = vld [vmem:[%s1 + $0x97c] sm:$0xf]
    %v637 = vld [vmem:[%s1 + $0x980] sm:$0xf]
    %v638 = vld [vmem:[%s1 + $0x984] sm:$0xf]
    %v639 = vld [vmem:[%s1 + $0x988] sm:$0xf]
    %v640 = vld [vmem:[%s1 + $0x98c] sm:$0xf]
    %v641 = vld [vmem:[%s1 + $0x990] sm:$0xf]
    %v642 = vld [vmem:[%s1 + $0x994] sm:$0xf]
    %v643 = vld [vmem:[%s1 + $0x998] sm:$0xf]
    %v644 = vld [vmem:[%s1 + $0x99c] sm:$0xf]
    %v645 = vld [vmem:[%s1 + $0x9a0] sm:$0xf]
    %v646 = vld [vmem:[%s1 + $0x9a4] sm:$0xf]
    %v647 = vld [vmem:[%s1 + $0x9a8] sm:$0xf]
    %v648 = vld [vmem:[%s1 + $0x9ac] sm:$0xf]
    %v649 = vld [vmem:[%s1 + $0x9b0] sm:$0xf]
    %v650 = vld [vmem:[%s1 + $0x9b4] sm:$0xf]
    %v651 = vld [vmem:[%s1 + $0x9b8] sm:$0xf]
    %v652 = vld [vmem:[%s1 + $0x9bc] sm:$0xf]
    %v653 = vld [vmem:[%s1 + $0x9c0] sm:$0xf]
    %v654 = vld [vmem:[%s1 + $0x9c4] sm:$0xf]
    %v655 = vld [vmem:[%s1 + $0x9c8] sm:$0xf]
    %v656 = vld [vmem:[%s1 + $0x9cc] sm:$0xf]
    %v657 = vld [vmem:[%s1 + $0x9d0] sm:$0xf]
    %v658 = vld [vmem:[%s1 + $0x9d4] sm:$0xf]
    %v659 = vld [vmem:[%s1 + $0x9d8] sm:$0xf]
    %v660 = vld [vmem:[%s1 + $0x9dc] sm:$0xf]
    %v661 = vld [vmem:[%s1 + $0x9e0] sm:$0xf]
    %v662 = vld [vmem:[%s1 + $0x9e4] sm:$0xf]
    %v663 = vld [vmem:[%s1 + $0x9e8] sm:$0xf]
    %v664 = vld [vmem:[%s1 + $0x9ec] sm:$0xf]
    %v665 = vld [vmem:[%s1 + $0x9f0] sm:$0xf]
    %v666 = vld [vmem:[%s1 + $0x9f4] sm:$0xf]
    %v667 = vld [vmem:[%s1 + $0x9f8] sm:$0xf]
    %v668 = vld [vmem:[%s1 + $0x9fc] sm:$0xf]
    %v669 = vld [vmem:[%s1 + $0xa00] sm:$0xf]
    %v670 = vld [vmem:[%s1 + $0xa04] sm:$0xf]
    %v671 = vld [vmem:[%s1 + $0xa08] sm:$0xf]
    %v672 = vld [vmem:[%s1 + $0xa0c] sm:$0xf]
    %v673 = vld [vmem:[%s1 + $0xa10] sm:$0xf]
    %v674 = vld [vmem:[%s1 + $0xa14] sm:$0xf]
    %v675 = vld [vmem:[%s1 + $0xa18] sm:$0xf]
    %v676 = vld [vmem:[%s1 + $0xa1c] sm:$0xf]
    %v677 = vld [vmem:[%s1 + $0xa20] sm:$0xf]
    %v678 = vld [vmem:[%s1 + $0xa24] sm:$0xf]
    %v679 = vld [vmem:[%s1 + $0xa28] sm:$0xf]
    %v680 = vld [vmem:[%s1 + $0xa2c] sm:$0xf]
    %v681 = vld [vmem:[%s1 + $0xa30] sm:$0xf]
    %v682 = vld [vmem:[%s1 + $0xa34] sm:$0xf]
    %v683 = vld [vmem:[%s1 + $0xa38] sm:$0xf]
    %v684 = vld [vmem:[%s1 + $0xa3c] sm:$0xf]
    %v685 = vld [vmem:[%s1 + $0xa40] sm:$0xf]
    %v686 = vld [vmem:[%s1 + $0xa44] sm:$0xf]
    %v687 = vld [vmem:[%s1 + $0xa48] sm:$0xf]
    %v688 = vld [vmem:[%s1 + $0xa4c] sm:$0xf]
    %v689 = vld [vmem:[%s1 + $0xa50] sm:$0xf]
    %v690 = vld [vmem:[%s1 + $0xa54] sm:$0xf]
    %v691 = vld [vmem:[%s1 + $0xa58] sm:$0xf]
    %v692 = vld [vmem:[%s1 + $0xa5c] sm:$0xf]
    %v693 = vld [vmem:[%s1 + $0xa60] sm:$0xf]
    %v694 = vld [vmem:[%s1 + $0xa64] sm:$0xf]
    %v695 = vld [vmem:[%s1 + $0xa68] sm:$0xf]
    %v696 = vld [vmem:[%s1 + $0xa6c] sm:$0xf]
    %v697 = vld [vmem:[%s1 + $0xa70] sm:$0xf]
    %v698 = vld [vmem:[%s1 + $0xa74] sm:$0xf]
    %v699 = vld [vmem:[%s1 + $0xa78] sm:$0xf]
    %v700 = vld [vmem:[%s1 + $0xa7c] sm:$0xf]
    %v701 = vld [vmem:[%s1 + $0xa80] sm:$0xf]
    %v702 = vld [vmem:[%s1 + $0xa84] sm:$0xf]
    %v703 = vld [vmem:[%s1 + $0xa88] sm:$0xf]
    %v704 = vld [vmem:[%s1 + $0xa8c] sm:$0xf]
    %v705 = vld [vmem:[%s1 + $0xa90] sm:$0xf]
    %v706 = vld [vmem:[%s1 + $0xa94] sm:$0xf]
    %v707 = vld [vmem:[%s1 + $0xa98] sm:$0xf]
    %v708 = vld [vmem:[%s1 + $0xa9c] sm:$0xf]
    %v709 = vld [vmem:[%s1 + $0xaa0] sm:$0xf]
    %v710 = vld [vmem:[%s1 + $0xaa4] sm:$0xf]
    %v711 = vld [vmem:[%s1 + $0xaa8] sm:$0xf]
    %v712 = vld [vmem:[%s1 + $0xaac] sm:$0xf]
    %v713 = vld [vmem:[%s1 + $0xab0] sm:$0xf]
    %v714 = vld [vmem:[%s1 + $0xab4] sm:$0xf]
    %v715 = vld [vmem:[%s1 + $0xab8] sm:$0xf]
    %v716 = vld [vmem:[%s1 + $0xabc] sm:$0xf]
    %v717 = vld [vmem:[%s1 + $0xac0] sm:$0xf]
    %v718 = vld [vmem:[%s1 + $0xac4] sm:$0xf]
    %v719 = vld [vmem:[%s1 + $0xac8] sm:$0xf]
    %v720 = vld [vmem:[%s1 + $0xacc] sm:$0xf]
    %v721 = vld [vmem:[%s1 + $0xad0] sm:$0xf]
    %v722 = vld [vmem:[%s1 + $0xad4] sm:$0xf]
    %v723 = vld [vmem:[%s1 + $0xad8] sm:$0xf]
    %v724 = vld [vmem:[%s1 + $0xadc] sm:$0xf]
    %v725 = vld [vmem:[%s1 + $0xae0] sm:$0xf]
    %v726 = vld [vmem:[%s1 + $0xae4] sm:$0xf]
    %v727 = vld [vmem:[%s1 + $0xae8] sm:$0xf]
    %v728 = vld [vmem:[%s1 + $0xaec] sm:$0xf]
    %v729 = vld [vmem:[%s1 + $0xaf0] sm:$0xf]
    %v730 = vld [vmem:[%s1 + $0xaf4] sm:$0xf]
    %v731 = vld [vmem:[%s1 + $0xaf8] sm:$0xf]
    %v732 = vld [vmem:[%s1 + $0xafc] sm:$0xf]
    %v733 = vld [vmem:[%s1 + $0xb00] sm:$0xf]
    %v734 = vld [vmem:[%s1 + $0xb04] sm:$0xf]
    %v735 = vld [vmem:[%s1 + $0xb08] sm:$0xf]
    %v736 = vld [vmem:[%s1 + $0xb0c] sm:$0xf]
    %v737 = vld [vmem:[%s1 + $0xb10] sm:$0xf]
    %v738 = vld [vmem:[%s1 + $0xb14] sm:$0xf]
    %v739 = vld [vmem:[%s1 + $0xb18] sm:$0xf]
    %v740 = vld [vmem:[%s1 + $0xb1c] sm:$0xf]
    %v741 = vld [vmem:[%s1 + $0xb20] sm:$0xf]
    %v742 = vld [vmem:[%s1 + $0xb24] sm:$0xf]
    %v743 = vld [vmem:[%s1 + $0xb28] sm:$0xf]
    %v744 = vld [vmem:[%s1 + $0xb2c] sm:$0xf]
    %v745 = vld [vmem:[%s1 + $0xb30] sm:$0xf]
    %v746 = vld [vmem:[%s1 + $0xb34] sm:$0xf]
    %v747 = vld [vmem:[%s1 + $0xb38] sm:$0xf]
    %v748 = vld [vmem:[%s1 + $0xb3c] sm:$0xf]
    %v749 = vld [vmem:[%s1 + $0xb40] sm:$0xf]
    %v750 = vld [vmem:[%s1 + $0xb44] sm:$0xf]
    %v751 = vld [vmem:[%s1 + $0xb48] sm:$0xf]
    %v752 = vld [vmem:[%s1 + $0xb4c] sm:$0xf]
    %v753 = vld [vmem:[%s1 + $0xb50] sm:$0xf]
    %v754 = vld [vmem:[%s1 + $0xb54] sm:$0xf]
    %v755 = vld [vmem:[%s1 + $0xb58] sm:$0xf]
    %v756 = vld [vmem:[%s1 + $0xb5c] sm:$0xf]
    %v757 = vld [vmem:[%s1 + $0xb60] sm:$0xf]
    %v758 = vld [vmem:[%s1 + $0xb64] sm:$0xf]
    %v759 = vld [vmem:[%s1 + $0xb68] sm:$0xf]
    %v760 = vld [vmem:[%s1 + $0xb6c] sm:$0xf]
    %v761 = vld [vmem:[%s1 + $0xb70] sm:$0xf]
    %v762 = vld [vmem:[%s1 + $0xb74] sm:$0xf]
    %v763 = vld [vmem:[%s1 + $0xb78] sm:$0xf]
    %v764 = vld [vmem:[%s1 + $0xb7c] sm:$0xf]
    %v765 = vld [vmem:[%s1 + $0xb80] sm:$0xf]
    %v766 = vld [vmem:[%s1 + $0xb84] sm:$0xf]
    %v767 = vld [vmem:[%s1 + $0xb88] sm:$0xf]
    %v768 = vld [vmem:[%s1 + $0xb8c] sm:$0xf]
    %v769 = vld [vmem:[%s1 + $0xb90] sm:$0xf]
    %v770 = vld [vmem:[%s1 + $0xb94] sm:$0xf]
    %v771 = vld [vmem:[%s1 + $0xb98] sm:$0xf]
    %v772 = vld [vmem:[%s1 + $0xb9c] sm:$0xf]
    %v773 = vld [vmem:[%s1 + $0xba0] sm:$0xf]
    %v774 = vld [vmem:[%s1 + $0xba4] sm:$0xf]
    %v775 = vld [vmem:[%s1 + $0xba8] sm:$0xf]
    %v776 = vld [vmem:[%s1 + $0xbac] sm:$0xf]
    %v777 = vld [vmem:[%s1 + $0xbb0] sm:$0xf]
    %v778 = vld [vmem:[%s1 + $0xbb4] sm:$0xf]
    %v779 = vld [vmem:[%s1 + $0xbb8] sm:$0xf]
    %v780 = vld [vmem:[%s1 + $0xbbc] sm:$0xf]
    %v781 = vld [vmem:[%s1 + $0xbc0] sm:$0xf]
    %v782 = vld [vmem:[%s1 + $0xbc4] sm:$0xf]
    %v783 = vld [vmem:[%s1 + $0xbc8] sm:$0xf]
    %v784 = vld [vmem:[%s1 + $0xbcc] sm:$0xf]
    %v785 = vld [vmem:[%s1 + $0xbd0] sm:$0xf]
    %v786 = vld [vmem:[%s1 + $0xbd4] sm:$0xf]
    %v787 = vld [vmem:[%s1 + $0xbd8] sm:$0xf]
    %v788 = vld [vmem:[%s1 + $0xbdc] sm:$0xf]
    %v789 = vld [vmem:[%s1 + $0xbe0] sm:$0xf]
    %v790 = vld [vmem:[%s1 + $0xbe4] sm:$0xf]
    %v791 = vld [vmem:[%s1 + $0xbe8] sm:$0xf]
    %v792 = vld [vmem:[%s1 + $0xbec] sm:$0xf]
    %v793 = vld [vmem:[%s1 + $0xbf0] sm:$0xf]
    %v794 = vld [vmem:[%s1 + $0xbf4] sm:$0xf]
    %v795 = vld [vmem:[%s1 + $0xbf8] sm:$0xf]
    %v796 = vld [vmem:[%s1 + $0xbfc] sm:$0xf]
    %v797 = vld [vmem:[%s1 + $0xc00] sm:$0xf]
    %v798 = vld [vmem:[%s1 + $0xc04] sm:$0xf]
    %v799 = vld [vmem:[%s1 + $0xc08] sm:$0xf]
    %v800 = vld [vmem:[%s1 + $0xc0c] sm:$0xf]
    %v801 = vld [vmem:[%s1 + $0xc10] sm:$0xf]
    %v802 = vld [vmem:[%s1 + $0xc14] sm:$0xf]
    %v803 = vld [vmem:[%s1 + $0xc18] sm:$0xf]
    %v804 = vld [vmem:[%s1 + $0xc1c] sm:$0xf]
    %v805 = vld [vmem:[%s1 + $0xc20] sm:$0xf]
    %v806 = vld [vmem:[%s1 + $0xc24] sm:$0xf]
    %v807 = vld [vmem:[%s1 + $0xc28] sm:$0xf]
    %v808 = vld [vmem:[%s1 + $0xc2c] sm:$0xf]
    %v809 = vld [vmem:[%s1 + $0xc30] sm:$0xf]
    %v810 = vld [vmem:[%s1 + $0xc34] sm:$0xf]
    %v811 = vld [vmem:[%s1 + $0xc38] sm:$0xf]
    %v812 = vld [vmem:[%s1 + $0xc3c] sm:$0xf]
    %v813 = vld [vmem:[%s1 + $0xc40] sm:$0xf]
    %v814 = vld [vmem:[%s1 + $0xc44] sm:$0xf]
    %v815 = vld [vmem:[%s1 + $0xc48] sm:$0xf]
    %v816 = vld [vmem:[%s1 + $0xc4c] sm:$0xf]
    %v817 = vld [vmem:[%s1 + $0xc50] sm:$0xf]
    %v818 = vld [vmem:[%s1 + $0xc54] sm:$0xf]
    %v819 = vld [vmem:[%s1 + $0xc58] sm:$0xf]
    %v820 = vld [vmem:[%s1 + $0xc5c] sm:$0xf]
    %v821 = vld [vmem:[%s1 + $0xc60] sm:$0xf]
    %v822 = vld [vmem:[%s1 + $0xc64] sm:$0xf]
    %v823 = vld [vmem:[%s1 + $0xc68] sm:$0xf]
    %v824 = vld [vmem:[%s1 + $0xc6c] sm:$0xf]
    %v825 = vld [vmem:[%s1 + $0xc70] sm:$0xf]
    %v826 = vld [vmem:[%s1 + $0xc74] sm:$0xf]
    %v827 = vld [vmem:[%s1 + $0xc78] sm:$0xf]
    %v828 = vld [vmem:[%s1 + $0xc7c] sm:$0xf]
    %v829 = vld [vmem:[%s1 + $0xc80] sm:$0xf]
    %v830 = vld [vmem:[%s1 + $0xc84] sm:$0xf]
    %v831 = vld [vmem:[%s1 + $0xc88] sm:$0xf]
    %v832 = vld [vmem:[%s1 + $0xc8c] sm:$0xf]
    %v833 = vld [vmem:[%s1 + $0xc90] sm:$0xf]
    %v834 = vld [vmem:[%s1 + $0xc94] sm:$0xf]
    %v835 = vld [vmem:[%s1 + $0xc98] sm:$0xf]
    %v836 = vld [vmem:[%s1 + $0xc9c] sm:$0xf]
    %v837 = vld [vmem:[%s1 + $0xca0] sm:$0xf]
    %v838 = vld [vmem:[%s1 + $0xca4] sm:$0xf]
    %v839 = vld [vmem:[%s1 + $0xca8] sm:$0xf]
    %v840 = vld [vmem:[%s1 + $0xcac] sm:$0xf]
    %v841 = vld [vmem:[%s1 + $0xcb0] sm:$0xf]
    %v842 = vld [vmem:[%s1 + $0xcb4] sm:$0xf]
    %v843 = vld [vmem:[%s1 + $0xcb8] sm:$0xf]
    %v844 = vld [vmem:[%s1 + $0xcbc] sm:$0xf]
    %v845 = vld [vmem:[%s1 + $0xcc0] sm:$0xf]
    %v846 = vld [vmem:[%s1 + $0xcc4] sm:$0xf]
    %v847 = vld [vmem:[%s1 + $0xcc8] sm:$0xf]
    %v848 = vld [vmem:[%s1 + $0xccc] sm:$0xf]
    %v849 = vld [vmem:[%s1 + $0xcd0] sm:$0xf]
    %v850 = vld [vmem:[%s1 + $0xcd4] sm:$0xf]
    %v851 = vld [vmem:[%s1 + $0xcd8] sm:$0xf]
    %v852 = vld [vmem:[%s1 + $0xcdc] sm:$0xf]
    %v853 = vld [vmem:[%s1 + $0xce0] sm:$0xf]
    %v854 = vld [vmem:[%s1 + $0xce4] sm:$0xf]
    %v855 = vld [vmem:[%s1 + $0xce8] sm:$0xf]
    %v856 = vld [vmem:[%s1 + $0xcec] sm:$0xf]
    %v857 = vld [vmem:[%s1 + $0xcf0] sm:$0xf]
    %v858 = vld [vmem:[%s1 + $0xcf4] sm:$0xf]
    %v859 = vld [vmem:[%s1 + $0xcf8] sm:$0xf]
    %v860 = vld [vmem:[%s1 + $0xcfc] sm:$0xf]
    %v861 = vld [vmem:[%s1 + $0xd00] sm:$0xf]
    %v862 = vld [vmem:[%s1 + $0xd04] sm:$0xf]
    %v863 = vld [vmem:[%s1 + $0xd08] sm:$0xf]
    %v864 = vld [vmem:[%s1 + $0xd0c] sm:$0xf]
    %v865 = vld [vmem:[%s1 + $0xd10] sm:$0xf]
    %v866 = vld [vmem:[%s1 + $0xd14] sm:$0xf]
    %v867 = vld [vmem:[%s1 + $0xd18] sm:$0xf]
    %v868 = vld [vmem:[%s1 + $0xd1c] sm:$0xf]
    %v869 = vld [vmem:[%s1 + $0xd20] sm:$0xf]
    %v870 = vld [vmem:[%s1 + $0xd24] sm:$0xf]
    %v871 = vld [vmem:[%s1 + $0xd28] sm:$0xf]
    %v872 = vld [vmem:[%s1 + $0xd2c] sm:$0xf]
    %v873 = vld [vmem:[%s1 + $0xd30] sm:$0xf]
    %v874 = vld [vmem:[%s1 + $0xd34] sm:$0xf]
    %v875 = vld [vmem:[%s1 + $0xd38] sm:$0xf]
    %v876 = vld [vmem:[%s1 + $0xd3c] sm:$0xf]
    %v877 = vld [vmem:[%s1 + $0xd40] sm:$0xf]
    %v878 = vld [vmem:[%s1 + $0xd44] sm:$0xf]
    %v879 = vld [vmem:[%s1 + $0xd48] sm:$0xf]
    %v880 = vld [vmem:[%s1 + $0xd4c] sm:$0xf]
    %v881 = vld [vmem:[%s1 + $0xd50] sm:$0xf]
    %v882 = vld [vmem:[%s1 + $0xd54] sm:$0xf]
    %v883 = vld [vmem:[%s1 + $0xd58] sm:$0xf]
    %v884 = vld [vmem:[%s1 + $0xd5c] sm:$0xf]
    %v885 = vld [vmem:[%s1 + $0xd60] sm:$0xf]
    %v886 = vld [vmem:[%s1 + $0xd64] sm:$0xf]
    %v887 = vld [vmem:[%s1 + $0xd68] sm:$0xf]
    %v888 = vld [vmem:[%s1 + $0xd6c] sm:$0xf]
    %v889 = vld [vmem:[%s1 + $0xd70] sm:$0xf]
    %v890 = vld [vmem:[%s1 + $0xd74] sm:$0xf]
    %v891 = vld [vmem:[%s1 + $0xd78] sm:$0xf]
    %v892 = vld [vmem:[%s1 + $0xd7c] sm:$0xf]
    %v893 = vld [vmem:[%s1 + $0xd80] sm:$0xf]
    %v894 = vld [vmem:[%s1 + $0xd84] sm:$0xf]
    %v895 = vld [vmem:[%s1 + $0xd88] sm:$0xf]
    %v896 = vld [vmem:[%s1 + $0xd8c] sm:$0xf]
    %v897 = vld [vmem:[%s1 + $0xd90] sm:$0xf]
    %v898 = vld [vmem:[%s1 + $0xd94] sm:$0xf]
    %v899 = vld [vmem:[%s1 + $0xd98] sm:$0xf]
    %v900 = vld [vmem:[%s1 + $0xd9c] sm:$0xf]
    %v901 = vld [vmem:[%s1 + $0xda0] sm:$0xf]
    %v902 = vld [vmem:[%s1 + $0xda4] sm:$0xf]
    %v903 = vld [vmem:[%s1 + $0xda8] sm:$0xf]
    %v904 = vld [vmem:[%s1 + $0xdac] sm:$0xf]
    %v905 = vld [vmem:[%s1 + $0xdb0] sm:$0xf]
    %v906 = vld [vmem:[%s1 + $0xdb4] sm:$0xf]
    %v907 = vld [vmem:[%s1 + $0xdb8] sm:$0xf]
    %v908 = vld [vmem:[%s1 + $0xdbc] sm:$0xf]
    %v909 = vld [vmem:[%s1 + $0xdc0] sm:$0xf]
    %v910 = vld [vmem:[%s1 + $0xdc4] sm:$0xf]
    %v911 = vld [vmem:[%s1 + $0xdc8] sm:$0xf]
    %v912 = vld [vmem:[%s1 + $0xdcc] sm:$0xf]
    %v913 = vld [vmem:[%s1 + $0xdd0] sm:$0xf]
    %v914 = vld [vmem:[%s1 + $0xdd4] sm:$0xf]
    %v915 = vld [vmem:[%s1 + $0xdd8] sm:$0xf]
    %v916 = vld [vmem:[%s1 + $0xddc] sm:$0xf]
    %v917 = vld [vmem:[%s1 + $0xde0] sm:$0xf]
    %v918 = vld [vmem:[%s1 + $0xde4] sm:$0xf]
    %v919 = vld [vmem:[%s1 + $0xde8] sm:$0xf]
    %v920 = vld [vmem:[%s1 + $0xdec] sm:$0xf]
    %v921 = vld [vmem:[%s1 + $0xdf0] sm:$0xf]
    %v922 = vld [vmem:[%s1 + $0xdf4] sm:$0xf]
    %v923 = vld [vmem:[%s1 + $0xdf8] sm:$0xf]
    %v924 = vld [vmem:[%s1 + $0xdfc] sm:$0xf]
    %v925 = vld [vmem:[%s2] sm:$0x1]
    %v927 = vlaneseq
    %v928 = vshrl.u32 %v927, 7
    %v929 = vsub.s32 0, %v928
    %v930 = vrot.slane %v925, %v929
    %v939 = vcombine.high %v22, %v22
    %v941 = vunpack.c.l.s4 1966171168
    %v942 = vunpack.c.0.s8 %v941
    %v943 = vlaneseq
    %v944 = vshrl.u32 %v943, 7
    %v945 = vsub.s32 %v942, %v944
    %v946 = vrot.slane %v22, %v945
    %v948 = vunpack.c.l.s4 1966171168
    %v949 = vunpack.c.0.s8 %v948
    %v950 = vlaneseq
    %v951 = vshrl.u32 %v950, 7
    %v952 = vsub.s32 %v949, %v951
    %v953 = vrot.slane %v939, %v952
    %v954 = vcombine.high %v946, %v946
    %v955 = vcombine.high %v953, %v953
    %v957 = vunpack.c.l.s4 1966171168
    %v958 = vunpack.c.0.s8 %v957
    %v959 = vlaneseq
    %v960 = vshrl.u32 %v959, 7
    %v961 = vsub.s32 %v958, %v960
    %v962 = vrot.slane %v946, %v961
    %v964 = vunpack.c.l.s4 1966171168
    %v965 = vunpack.c.0.s8 %v964
    %v966 = vlaneseq
    %v967 = vshrl.u32 %v966, 7
    %v968 = vsub.s32 %v965, %v967
    %v969 = vrot.slane %v953, %v968
    %v971 = vunpack.c.l.s4 1966171168
    %v972 = vunpack.c.0.s8 %v971
    %v973 = vlaneseq
    %v974 = vshrl.u32 %v973, 7
    %v975 = vsub.s32 %v972, %v974
    %v976 = vrot.slane %v954, %v975
    %v978 = vunpack.c.l.s4 1966171168
    %v979 = vunpack.c.0.s8 %v978
    %v980 = vlaneseq
    %v981 = vshrl.u32 %v980, 7
    %v982 = vsub.s32 %v979, %v981
    %v983 = vrot.slane %v955, %v982
    %v984 = vcombine.high %v962, %v962
    %v985 = vcombine.high %v969, %v969
    %v986 = vcombine.high %v976, %v976
    %v987 = vcombine.high %v983, %v983
    %v988 = vcombine.high %v23, %v23
    %v990 = vunpack.c.l.s4 1966171168
    %v991 = vunpack.c.0.s8 %v990
    %v992 = vlaneseq
    %v993 = vshrl.u32 %v992, 7
    %v994 = vsub.s32 %v991, %v993
    %v995 = vrot.slane %v23, %v994
    %v997 = vunpack.c.l.s4 1966171168
    %v998 = vunpack.c.0.s8 %v997
    %v999 = vlaneseq
    %v1000 = vshrl.u32 %v999, 7
    %v1001 = vsub.s32 %v998, %v1000
    %v1002 = vrot.slane %v988, %v1001
    %v1003 = vcombine.high %v995, %v995
    %v1004 = vcombine.high %v1002, %v1002
    %v1006 = vunpack.c.l.s4 1966171168
    %v1007 = vunpack.c.0.s8 %v1006
    %v1008 = vlaneseq
    %v1009 = vshrl.u32 %v1008, 7
    %v1010 = vsub.s32 %v1007, %v1009
    %v1011 = vrot.slane %v995, %v1010
    %v1013 = vunpack.c.l.s4 1966171168
    %v1014 = vunpack.c.0.s8 %v1013
    %v1015 = vlaneseq
    %v1016 = vshrl.u32 %v1015, 7
    %v1017 = vsub.s32 %v1014, %v1016
    %v1018 = vrot.slane %v1002, %v1017
    %v1020 = vunpack.c.l.s4 1966171168
    %v1021 = vunpack.c.0.s8 %v1020
    %v1022 = vlaneseq
    %v1023 = vshrl.u32 %v1022, 7
    %v1024 = vsub.s32 %v1021, %v1023
    %v1025 = vrot.slane %v1003, %v1024
    %v1027 = vunpack.c.l.s4 1966171168
    %v1028 = vunpack.c.0.s8 %v1027
    %v1029 = vlaneseq
    %v1030 = vshrl.u32 %v1029, 7
    %v1031 = vsub.s32 %v1028, %v1030
    %v1032 = vrot.slane %v1004, %v1031
    %v1033 = vcombine.high %v1011, %v1011
    %v1034 = vcombine.high %v1018, %v1018
    %v1035 = vcombine.high %v1025, %v1025
    %v1036 = vcombine.high %v1032, %v1032
    %v1037 = vcombine.high %v24, %v24
    %v1039 = vunpack.c.l.s4 1966171168
    %v1040 = vunpack.c.0.s8 %v1039
    %v1041 = vlaneseq
    %v1042 = vshrl.u32 %v1041, 7
    %v1043 = vsub.s32 %v1040, %v1042
    %v1044 = vrot.slane %v24, %v1043
    %v1046 = vunpack.c.l.s4 1966171168
    %v1047 = vunpack.c.0.s8 %v1046
    %v1048 = vlaneseq
    %v1049 = vshrl.u32 %v1048, 7
    %v1050 = vsub.s32 %v1047, %v1049
    %v1051 = vrot.slane %v1037, %v1050
    %v1052 = vcombine.high %v1044, %v1044
    %v1053 = vcombine.high %v1051, %v1051
    %v1055 = vunpack.c.l.s4 1966171168
    %v1056 = vunpack.c.0.s8 %v1055
    %v1057 = vlaneseq
    %v1058 = vshrl.u32 %v1057, 7
    %v1059 = vsub.s32 %v1056, %v1058
    %v1060 = vrot.slane %v1044, %v1059
    %v1062 = vunpack.c.l.s4 1966171168
    %v1063 = vunpack.c.0.s8 %v1062
    %v1064 = vlaneseq
    %v1065 = vshrl.u32 %v1064, 7
    %v1066 = vsub.s32 %v1063, %v1065
    %v1067 = vrot.slane %v1051, %v1066
    %v1069 = vunpack.c.l.s4 1966171168
    %v1070 = vunpack.c.0.s8 %v1069
    %v1071 = vlaneseq
    %v1072 = vshrl.u32 %v1071, 7
    %v1073 = vsub.s32 %v1070, %v1072
    %v1074 = vrot.slane %v1052, %v1073
    %v1076 = vunpack.c.l.s4 1966171168
    %v1077 = vunpack.c.0.s8 %v1076
    %v1078 = vlaneseq
    %v1079 = vshrl.u32 %v1078, 7
    %v1080 = vsub.s32 %v1077, %v1079
    %v1081 = vrot.slane %v1053, %v1080
    %v1082 = vcombine.high %v1060, %v1060
    %v1083 = vcombine.high %v1067, %v1067
    %v1084 = vcombine.high %v1074, %v1074
    %v1085 = vcombine.high %v1081, %v1081
    %v1086 = vcombine.high %v25, %v25
    %v1088 = vunpack.c.l.s4 1966171168
    %v1089 = vunpack.c.0.s8 %v1088
    %v1090 = vlaneseq
    %v1091 = vshrl.u32 %v1090, 7
    %v1092 = vsub.s32 %v1089, %v1091
    %v1093 = vrot.slane %v25, %v1092
    %v1095 = vunpack.c.l.s4 1966171168
    %v1096 = vunpack.c.0.s8 %v1095
    %v1097 = vlaneseq
    %v1098 = vshrl.u32 %v1097, 7
    %v1099 = vsub.s32 %v1096, %v1098
    %v1100 = vrot.slane %v1086, %v1099
    %v1101 = vcombine.high %v1093, %v1093
    %v1102 = vcombine.high %v1100, %v1100
    %v1104 = vunpack.c.l.s4 1966171168
    %v1105 = vunpack.c.0.s8 %v1104
    %v1106 = vlaneseq
    %v1107 = vshrl.u32 %v1106, 7
    %v1108 = vsub.s32 %v1105, %v1107
    %v1109 = vrot.slane %v1093, %v1108
    %v1111 = vunpack.c.l.s4 1966171168
    %v1112 = vunpack.c.0.s8 %v1111
    %v1113 = vlaneseq
    %v1114 = vshrl.u32 %v1113, 7
    %v1115 = vsub.s32 %v1112, %v1114
    %v1116 = vrot.slane %v1100, %v1115
    %v1118 = vunpack.c.l.s4 1966171168
    %v1119 = vunpack.c.0.s8 %v1118
    %v1120 = vlaneseq
    %v1121 = vshrl.u32 %v1120, 7
    %v1122 = vsub.s32 %v1119, %v1121
    %v1123 = vrot.slane %v1101, %v1122
    %v1125 = vunpack.c.l.s4 1966171168
    %v1126 = vunpack.c.0.s8 %v1125
    %v1127 = vlaneseq
    %v1128 = vshrl.u32 %v1127, 7
    %v1129 = vsub.s32 %v1126, %v1128
    %v1130 = vrot.slane %v1102, %v1129
    %v1131 = vcombine.high %v1109, %v1109
    %v1132 = vcombine.high %v1116, %v1116
    %v1133 = vcombine.high %v1123, %v1123
    %v1134 = vcombine.high %v1130, %v1130
    %v1135 = vcombine.high %v26, %v26
    %v1137 = vunpack.c.l.s4 1966171168
    %v1138 = vunpack.c.0.s8 %v1137
    %v1139 = vlaneseq
    %v1140 = vshrl.u32 %v1139, 7
    %v1141 = vsub.s32 %v1138, %v1140
    %v1142 = vrot.slane %v26, %v1141
    %v1144 = vunpack.c.l.s4 1966171168
    %v1145 = vunpack.c.0.s8 %v1144
    %v1146 = vlaneseq
    %v1147 = vshrl.u32 %v1146, 7
    %v1148 = vsub.s32 %v1145, %v1147
    %v1149 = vrot.slane %v1135, %v1148
    %v1150 = vcombine.high %v1142, %v1142
    %v1151 = vcombine.high %v1149, %v1149
    %v1153 = vunpack.c.l.s4 1966171168
    %v1154 = vunpack.c.0.s8 %v1153
    %v1155 = vlaneseq
    %v1156 = vshrl.u32 %v1155, 7
    %v1157 = vsub.s32 %v1154, %v1156
    %v1158 = vrot.slane %v1142, %v1157
    %v1160 = vunpack.c.l.s4 1966171168
    %v1161 = vunpack.c.0.s8 %v1160
    %v1162 = vlaneseq
    %v1163 = vshrl.u32 %v1162, 7
    %v1164 = vsub.s32 %v1161, %v1163
    %v1165 = vrot.slane %v1149, %v1164
    %v1167 = vunpack.c.l.s4 1966171168
    %v1168 = vunpack.c.0.s8 %v1167
    %v1169 = vlaneseq
    %v1170 = vshrl.u32 %v1169, 7
    %v1171 = vsub.s32 %v1168, %v1170
    %v1172 = vrot.slane %v1150, %v1171
    %v1174 = vunpack.c.l.s4 1966171168
    %v1175 = vunpack.c.0.s8 %v1174
    %v1176 = vlaneseq
    %v1177 = vshrl.u32 %v1176, 7
    %v1178 = vsub.s32 %v1175, %v1177
    %v1179 = vrot.slane %v1151, %v1178
    %v1180 = vcombine.high %v1158, %v1158
    %v1181 = vcombine.high %v1165, %v1165
    %v1182 = vcombine.high %v1172, %v1172
    %v1183 = vcombine.high %v1179, %v1179
    %v1184 = vcombine.high %v27, %v27
    %v1186 = vunpack.c.l.s4 1966171168
    %v1187 = vunpack.c.0.s8 %v1186
    %v1188 = vlaneseq
    %v1189 = vshrl.u32 %v1188, 7
    %v1190 = vsub.s32 %v1187, %v1189
    %v1191 = vrot.slane %v27, %v1190
    %v1193 = vunpack.c.l.s4 1966171168
    %v1194 = vunpack.c.0.s8 %v1193
    %v1195 = vlaneseq
    %v1196 = vshrl.u32 %v1195, 7
    %v1197 = vsub.s32 %v1194, %v1196
    %v1198 = vrot.slane %v1184, %v1197
    %v1199 = vcombine.high %v1191, %v1191
    %v1200 = vcombine.high %v1198, %v1198
    %v1202 = vunpack.c.l.s4 1966171168
    %v1203 = vunpack.c.0.s8 %v1202
    %v1204 = vlaneseq
    %v1205 = vshrl.u32 %v1204, 7
    %v1206 = vsub.s32 %v1203, %v1205
    %v1207 = vrot.slane %v1191, %v1206
    %v1209 = vunpack.c.l.s4 1966171168
    %v1210 = vunpack.c.0.s8 %v1209
    %v1211 = vlaneseq
    %v1212 = vshrl.u32 %v1211, 7
    %v1213 = vsub.s32 %v1210, %v1212
    %v1214 = vrot.slane %v1198, %v1213
    %v1216 = vunpack.c.l.s4 1966171168
    %v1217 = vunpack.c.0.s8 %v1216
    %v1218 = vlaneseq
    %v1219 = vshrl.u32 %v1218, 7
    %v1220 = vsub.s32 %v1217, %v1219
    %v1221 = vrot.slane %v1199, %v1220
    %v1223 = vunpack.c.l.s4 1966171168
    %v1224 = vunpack.c.0.s8 %v1223
    %v1225 = vlaneseq
    %v1226 = vshrl.u32 %v1225, 7
    %v1227 = vsub.s32 %v1224, %v1226
    %v1228 = vrot.slane %v1200, %v1227
    %v1229 = vcombine.high %v1207, %v1207
    %v1230 = vcombine.high %v1214, %v1214
    %v1231 = vcombine.high %v1221, %v1221
    %v1232 = vcombine.high %v1228, %v1228
    %v1233 = vcombine.high %v28, %v28
    %v1235 = vunpack.c.l.s4 1966171168
    %v1236 = vunpack.c.0.s8 %v1235
    %v1237 = vlaneseq
    %v1238 = vshrl.u32 %v1237, 7
    %v1239 = vsub.s32 %v1236, %v1238
    %v1240 = vrot.slane %v28, %v1239
    %v1242 = vunpack.c.l.s4 1966171168
    %v1243 = vunpack.c.0.s8 %v1242
    %v1244 = vlaneseq
    %v1245 = vshrl.u32 %v1244, 7
    %v1246 = vsub.s32 %v1243, %v1245
    %v1247 = vrot.slane %v1233, %v1246
    %v1248 = vcombine.high %v1240, %v1240
    %v1249 = vcombine.high %v1247, %v1247
    %v1251 = vunpack.c.l.s4 1966171168
    %v1252 = vunpack.c.0.s8 %v1251
    %v1253 = vlaneseq
    %v1254 = vshrl.u32 %v1253, 7
    %v1255 = vsub.s32 %v1252, %v1254
    %v1256 = vrot.slane %v1240, %v1255
    %v1258 = vunpack.c.l.s4 1966171168
    %v1259 = vunpack.c.0.s8 %v1258
    %v1260 = vlaneseq
    %v1261 = vshrl.u32 %v1260, 7
    %v1262 = vsub.s32 %v1259, %v1261
    %v1263 = vrot.slane %v1247, %v1262
    %v1265 = vunpack.c.l.s4 1966171168
    %v1266 = vunpack.c.0.s8 %v1265
    %v1267 = vlaneseq
    %v1268 = vshrl.u32 %v1267, 7
    %v1269 = vsub.s32 %v1266, %v1268
    %v1270 = vrot.slane %v1248, %v1269
    %v1272 = vunpack.c.l.s4 1966171168
    %v1273 = vunpack.c.0.s8 %v1272
    %v1274 = vlaneseq
    %v1275 = vshrl.u32 %v1274, 7
    %v1276 = vsub.s32 %v1273, %v1275
    %v1277 = vrot.slane %v1249, %v1276
    %v1278 = vcombine.high %v1256, %v1256
    %v1279 = vcombine.high %v1263, %v1263
    %v1280 = vcombine.high %v1270, %v1270
    %v1281 = vcombine.high %v1277, %v1277
    %v2234 = vunpack.c.l.b16 %v29
    %v2235 = vunpack.c.l.b16 %v30
    %v2236 = vunpack.c.l.b16 %v31
    %v2237 = vunpack.c.l.b16 %v32
    %v2238 = vunpack.c.l.b16 %v33
    %v2239 = vunpack.c.l.b16 %v34
    %v2240 = vunpack.c.l.b16 %v35
    %v2241 = vunpack.c.l.b16 %v36
    %v2242 = vunpack.c.l.b16 %v37
    %v2243 = vunpack.c.l.b16 %v38
    %v2244 = vunpack.c.l.b16 %v39
    %v2245 = vunpack.c.l.b16 %v40
    %v2246 = vunpack.c.l.b16 %v41
    %v2247 = vunpack.c.l.b16 %v42
    %v2248 = vunpack.c.l.b16 %v43
    %v2249 = vunpack.c.l.b16 %v44
    %v2250 = vunpack.c.l.b16 %v45
    %v2251 = vunpack.c.l.b16 %v46
    %v2252 = vunpack.c.l.b16 %v47
    %v2253 = vunpack.c.l.b16 %v48
    %v2254 = vunpack.c.l.b16 %v49
    %v2255 = vunpack.c.l.b16 %v50
    %v2256 = vunpack.c.l.b16 %v51
    %v2257 = vunpack.c.l.b16 %v52
    %v2258 = vunpack.c.l.b16 %v53
    %v2259 = vunpack.c.l.b16 %v54
    %v2260 = vunpack.c.l.b16 %v55
    %v2261 = vunpack.c.l.b16 %v56
    %v2262 = vunpack.c.l.b16 %v57
    %v2263 = vunpack.c.l.b16 %v58
    %v2264 = vunpack.c.l.b16 %v59
    %v2265 = vunpack.c.l.b16 %v60
    %v2266 = vunpack.c.l.b16 %v61
    %v2267 = vunpack.c.l.b16 %v62
    %v2268 = vunpack.c.l.b16 %v63
    %v2269 = vunpack.c.l.b16 %v64
    %v2270 = vunpack.c.l.b16 %v65
    %v2271 = vunpack.c.l.b16 %v66
    %v2272 = vunpack.c.l.b16 %v67
    %v2273 = vunpack.c.l.b16 %v68
    %v2274 = vunpack.c.l.b16 %v69
    %v2275 = vunpack.c.l.b16 %v70
    %v2276 = vunpack.c.l.b16 %v71
    %v2277 = vunpack.c.l.b16 %v72
    %v2278 = vunpack.c.l.b16 %v73
    %v2279 = vunpack.c.l.b16 %v74
    %v2280 = vunpack.c.l.b16 %v75
    %v2281 = vunpack.c.l.b16 %v76
    %v2282 = vunpack.c.l.b16 %v77
    %v2283 = vunpack.c.l.b16 %v78
    %v2284 = vunpack.c.l.b16 %v79
    %v2285 = vunpack.c.l.b16 %v80
    %v2286 = vunpack.c.l.b16 %v81
    %v2287 = vunpack.c.l.b16 %v82
    %v2288 = vunpack.c.l.b16 %v83
    %v2289 = vunpack.c.l.b16 %v84
    %v2290 = vunpack.c.l.b16 %v85
    %v2291 = vunpack.c.l.b16 %v86
    %v2292 = vunpack.c.l.b16 %v87
    %v2293 = vunpack.c.l.b16 %v88
    %v2294 = vunpack.c.l.b16 %v89
    %v2295 = vunpack.c.l.b16 %v90
    %v2296 = vunpack.c.l.b16 %v91
    %v2297 = vunpack.c.l.b16 %v92
    %v2298 = vunpack.c.l.b16 %v93
    %v2299 = vunpack.c.l.b16 %v94
    %v2300 = vunpack.c.l.b16 %v95
    %v2301 = vunpack.c.l.b16 %v96
    %v2302 = vunpack.c.l.b16 %v97
    %v2303 = vunpack.c.l.b16 %v98
    %v2304 = vunpack.c.l.b16 %v99
    %v2305 = vunpack.c.l.b16 %v100
    %v2306 = vunpack.c.l.b16 %v101
    %v2307 = vunpack.c.l.b16 %v102
    %v2308 = vunpack.c.l.b16 %v103
    %v2309 = vunpack.c.l.b16 %v104
    %v2310 = vunpack.c.l.b16 %v105
    %v2311 = vunpack.c.l.b16 %v106
    %v2312 = vunpack.c.l.b16 %v107
    %v2313 = vunpack.c.l.b16 %v108
    %v2314 = vunpack.c.l.b16 %v109
    %v2315 = vunpack.c.l.b16 %v110
    %v2316 = vunpack.c.l.b16 %v111
    %v2317 = vunpack.c.l.b16 %v112
    %v2318 = vunpack.c.l.b16 %v113
    %v2319 = vunpack.c.l.b16 %v114
    %v2320 = vunpack.c.l.b16 %v115
    %v2321 = vunpack.c.l.b16 %v116
    %v2322 = vunpack.c.l.b16 %v117
    %v2323 = vunpack.c.l.b16 %v118
    %v2324 = vunpack.c.l.b16 %v119
    %v2325 = vunpack.c.l.b16 %v120
    %v2326 = vunpack.c.l.b16 %v121
    %v2327 = vunpack.c.l.b16 %v122
    %v2328 = vunpack.c.l.b16 %v123
    %v2329 = vunpack.c.l.b16 %v124
    %v2330 = vunpack.c.l.b16 %v125
    %v2331 = vunpack.c.l.b16 %v126
    %v2332 = vunpack.c.l.b16 %v127
    %v2333 = vunpack.c.l.b16 %v128
    %v2334 = vunpack.c.l.b16 %v129
    %v2335 = vunpack.c.l.b16 %v130
    %v2336 = vunpack.c.l.b16 %v131
    %v2337 = vunpack.c.l.b16 %v132
    %v2338 = vunpack.c.l.b16 %v133
    %v2339 = vunpack.c.l.b16 %v134
    %v2340 = vunpack.c.l.b16 %v135
    %v2341 = vunpack.c.l.b16 %v136
    %v2342 = vunpack.c.l.b16 %v137
    %v2343 = vunpack.c.l.b16 %v138
    %v2344 = vunpack.c.l.b16 %v139
    %v2345 = vunpack.c.l.b16 %v140
    %v2346 = vunpack.c.l.b16 %v141
    %v2347 = vunpack.c.l.b16 %v142
    %v2348 = vunpack.c.l.b16 %v143
    %v2349 = vunpack.c.l.b16 %v144
    %v2350 = vunpack.c.l.b16 %v145
    %v2351 = vunpack.c.l.b16 %v146
    %v2352 = vunpack.c.l.b16 %v147
    %v2353 = vunpack.c.l.b16 %v148
    %v2354 = vunpack.c.l.b16 %v149
    %v2355 = vunpack.c.l.b16 %v150
    %v2356 = vunpack.c.l.b16 %v151
    %v2357 = vunpack.c.l.b16 %v152
    %v2358 = vunpack.c.l.b16 %v153
    %v2359 = vunpack.c.l.b16 %v154
    %v2360 = vunpack.c.l.b16 %v155
    %v2361 = vunpack.c.l.b16 %v156
    %v2362 = vunpack.c.l.b16 %v157
    %v2363 = vunpack.c.l.b16 %v158
    %v2364 = vunpack.c.l.b16 %v159
    %v2365 = vunpack.c.l.b16 %v160
    %v2366 = vunpack.c.l.b16 %v161
    %v2367 = vunpack.c.l.b16 %v162
    %v2368 = vunpack.c.l.b16 %v163
    %v2369 = vunpack.c.l.b16 %v164
    %v2370 = vunpack.c.l.b16 %v165
    %v2371 = vunpack.c.l.b16 %v166
    %v2372 = vunpack.c.l.b16 %v167
    %v2373 = vunpack.c.l.b16 %v168
    %v2374 = vunpack.c.l.b16 %v169
    %v2375 = vunpack.c.l.b16 %v170
    %v2376 = vunpack.c.l.b16 %v171
    %v2377 = vunpack.c.l.b16 %v172
    %v2378 = vunpack.c.l.b16 %v173
    %v2379 = vunpack.c.l.b16 %v174
    %v2380 = vunpack.c.l.b16 %v175
    %v2381 = vunpack.c.l.b16 %v176
    %v2382 = vunpack.c.l.b16 %v177
    %v2383 = vunpack.c.l.b16 %v178
    %v2384 = vunpack.c.l.b16 %v179
    %v2385 = vunpack.c.l.b16 %v180
    %v2386 = vunpack.c.l.b16 %v181
    %v2387 = vunpack.c.l.b16 %v182
    %v2388 = vunpack.c.l.b16 %v183
    %v2389 = vunpack.c.l.b16 %v184
    %v2390 = vunpack.c.l.b16 %v185
    %v2391 = vunpack.c.l.b16 %v186
    %v2392 = vunpack.c.l.b16 %v187
    %v2393 = vunpack.c.l.b16 %v188
    %v2394 = vunpack.c.l.b16 %v189
    %v2395 = vunpack.c.l.b16 %v190
    %v2396 = vunpack.c.l.b16 %v191
    %v2397 = vunpack.c.l.b16 %v192
    %v2398 = vunpack.c.l.b16 %v193
    %v2399 = vunpack.c.l.b16 %v194
    %v2400 = vunpack.c.l.b16 %v195
    %v2401 = vunpack.c.l.b16 %v196
    %v2402 = vunpack.c.l.b16 %v197
    %v2403 = vunpack.c.l.b16 %v198
    %v2404 = vunpack.c.l.b16 %v199
    %v2405 = vunpack.c.l.b16 %v200
    %v2406 = vunpack.c.l.b16 %v201
    %v2407 = vunpack.c.l.b16 %v202
    %v2408 = vunpack.c.l.b16 %v203
    %v2409 = vunpack.c.l.b16 %v204
    %v2410 = vunpack.c.l.b16 %v205
    %v2411 = vunpack.c.l.b16 %v206
    %v2412 = vunpack.c.l.b16 %v207
    %v2413 = vunpack.c.l.b16 %v208
    %v2414 = vunpack.c.l.b16 %v209
    %v2415 = vunpack.c.l.b16 %v210
    %v2416 = vunpack.c.l.b16 %v211
    %v2417 = vunpack.c.l.b16 %v212
    %v2418 = vunpack.c.l.b16 %v213
    %v2419 = vunpack.c.l.b16 %v214
    %v2420 = vunpack.c.l.b16 %v215
    %v2421 = vunpack.c.l.b16 %v216
    %v2422 = vunpack.c.l.b16 %v217
    %v2423 = vunpack.c.l.b16 %v218
    %v2424 = vunpack.c.l.b16 %v219
    %v2425 = vunpack.c.l.b16 %v220
    %v2426 = vunpack.c.l.b16 %v221
    %v2427 = vunpack.c.l.b16 %v222
    %v2428 = vunpack.c.l.b16 %v223
    %v2429 = vunpack.c.l.b16 %v224
    %v2430 = vunpack.c.l.b16 %v225
    %v2431 = vunpack.c.l.b16 %v226
    %v2432 = vunpack.c.l.b16 %v227
    %v2433 = vunpack.c.l.b16 %v228
    %v2434 = vunpack.c.l.b16 %v229
    %v2435 = vunpack.c.l.b16 %v230
    %v2436 = vunpack.c.l.b16 %v231
    %v2437 = vunpack.c.l.b16 %v232
    %v2438 = vunpack.c.l.b16 %v233
    %v2439 = vunpack.c.l.b16 %v234
    %v2440 = vunpack.c.l.b16 %v235
    %v2441 = vunpack.c.l.b16 %v236
    %v2442 = vunpack.c.l.b16 %v237
    %v2443 = vunpack.c.l.b16 %v238
    %v2444 = vunpack.c.l.b16 %v239
    %v2445 = vunpack.c.l.b16 %v240
    %v2446 = vunpack.c.l.b16 %v241
    %v2447 = vunpack.c.l.b16 %v242
    %v2448 = vunpack.c.l.b16 %v243
    %v2449 = vunpack.c.l.b16 %v244
    %v2450 = vunpack.c.l.b16 %v245
    %v2451 = vunpack.c.l.b16 %v246
    %v2452 = vunpack.c.l.b16 %v247
    %v2453 = vunpack.c.l.b16 %v248
    %v2454 = vunpack.c.l.b16 %v249
    %v2455 = vunpack.c.l.b16 %v250
    %v2456 = vunpack.c.l.b16 %v251
    %v2457 = vunpack.c.l.b16 %v252
    %v2458 = vunpack.c.l.b16 %v253
    %v2459 = vunpack.c.l.b16 %v254
    %v2460 = vunpack.c.l.b16 %v255
    %v2461 = vunpack.c.l.b16 %v256
    %v2462 = vunpack.c.l.b16 %v257
    %v2463 = vunpack.c.l.b16 %v258
    %v2464 = vunpack.c.l.b16 %v259
    %v2465 = vunpack.c.l.b16 %v260
    %v2466 = vunpack.c.l.b16 %v261
    %v2467 = vunpack.c.l.b16 %v262
    %v2468 = vunpack.c.l.b16 %v263
    %v2469 = vunpack.c.l.b16 %v264
    %v2470 = vunpack.c.l.b16 %v265
    %v2471 = vunpack.c.l.b16 %v266
    %v2472 = vunpack.c.l.b16 %v267
    %v2473 = vunpack.c.l.b16 %v268
    %v2474 = vunpack.c.l.b16 %v269
    %v2475 = vunpack.c.l.b16 %v270
    %v2476 = vunpack.c.l.b16 %v271
    %v2477 = vunpack.c.l.b16 %v272
    %v2478 = vunpack.c.l.b16 %v273
    %v2479 = vunpack.c.l.b16 %v274
    %v2480 = vunpack.c.l.b16 %v275
    %v2481 = vunpack.c.l.b16 %v276
    %v2482 = vunpack.c.l.b16 %v277
    %v2483 = vunpack.c.l.b16 %v278
    %v2484 = vunpack.c.l.b16 %v279
    %v2485 = vunpack.c.l.b16 %v280
    %v2486 = vunpack.c.l.b16 %v281
    %v2487 = vunpack.c.l.b16 %v282
    %v2488 = vunpack.c.l.b16 %v283
    %v2489 = vunpack.c.l.b16 %v284
    %v2490 = vunpack.c.l.b16 %v285
    %v2491 = vunpack.c.l.b16 %v286
    %v2492 = vunpack.c.l.b16 %v287
    %v2493 = vunpack.c.l.b16 %v288
    %v2494 = vunpack.c.l.b16 %v289
    %v2495 = vunpack.c.l.b16 %v290
    %v2496 = vunpack.c.l.b16 %v291
    %v2497 = vunpack.c.l.b16 %v292
    %v2498 = vunpack.c.l.b16 %v293
    %v2499 = vunpack.c.l.b16 %v294
    %v2500 = vunpack.c.l.b16 %v295
    %v2501 = vunpack.c.l.b16 %v296
    %v2502 = vunpack.c.l.b16 %v297
    %v2503 = vunpack.c.l.b16 %v298
    %v2504 = vunpack.c.l.b16 %v299
    %v2505 = vunpack.c.l.b16 %v300
    %v2506 = vunpack.c.l.b16 %v301
    %v2507 = vunpack.c.l.b16 %v302
    %v2508 = vunpack.c.l.b16 %v303
    %v2509 = vunpack.c.l.b16 %v304
    %v2510 = vunpack.c.l.b16 %v305
    %v2511 = vunpack.c.l.b16 %v306
    %v2512 = vunpack.c.l.b16 %v307
    %v2513 = vunpack.c.l.b16 %v308
    %v2514 = vunpack.c.l.b16 %v309
    %v2515 = vunpack.c.l.b16 %v310
    %v2516 = vunpack.c.l.b16 %v311
    %v2517 = vunpack.c.l.b16 %v312
    %v2518 = vunpack.c.l.b16 %v313
    %v2519 = vunpack.c.l.b16 %v314
    %v2520 = vunpack.c.l.b16 %v315
    %v2521 = vunpack.c.l.b16 %v316
    %v2522 = vunpack.c.l.b16 %v317
    %v2523 = vunpack.c.l.b16 %v318
    %v2524 = vunpack.c.l.b16 %v319
    %v2525 = vunpack.c.l.b16 %v320
    %v2526 = vunpack.c.l.b16 %v321
    %v2527 = vunpack.c.l.b16 %v322
    %v2528 = vunpack.c.l.b16 %v323
    %v2529 = vunpack.c.l.b16 %v324
    %v2530 = vunpack.c.l.b16 %v325
    %v2531 = vunpack.c.l.b16 %v326
    %v2532 = vunpack.c.l.b16 %v327
    %v2533 = vunpack.c.l.b16 %v328
    %v2534 = vunpack.c.l.b16 %v329
    %v2535 = vunpack.c.l.b16 %v330
    %v2536 = vunpack.c.l.b16 %v331
    %v2537 = vunpack.c.l.b16 %v332
    %v2538 = vunpack.c.l.b16 %v333
    %v2539 = vunpack.c.l.b16 %v334
    %v2540 = vunpack.c.l.b16 %v335
    %v2541 = vunpack.c.l.b16 %v336
    %v2542 = vunpack.c.l.b16 %v337
    %v2543 = vunpack.c.l.b16 %v338
    %v2544 = vunpack.c.l.b16 %v339
    %v2545 = vunpack.c.l.b16 %v340
    %v2546 = vunpack.c.l.b16 %v341
    %v2547 = vunpack.c.l.b16 %v342
    %v2548 = vunpack.c.l.b16 %v343
    %v2549 = vunpack.c.l.b16 %v344
    %v2550 = vunpack.c.l.b16 %v345
    %v2551 = vunpack.c.l.b16 %v346
    %v2552 = vunpack.c.l.b16 %v347
    %v2553 = vunpack.c.l.b16 %v348
    %v2554 = vunpack.c.l.b16 %v349
    %v2555 = vunpack.c.l.b16 %v350
    %v2556 = vunpack.c.l.b16 %v351
    %v2557 = vunpack.c.l.b16 %v352
    %v2558 = vunpack.c.l.b16 %v353
    %v2559 = vunpack.c.l.b16 %v354
    %v2560 = vunpack.c.l.b16 %v355
    %v2561 = vunpack.c.l.b16 %v356
    %v2562 = vunpack.c.l.b16 %v357
    %v2563 = vunpack.c.l.b16 %v358
    %v2564 = vunpack.c.l.b16 %v359
    %v2565 = vunpack.c.l.b16 %v360
    %v2566 = vunpack.c.l.b16 %v361
    %v2567 = vunpack.c.l.b16 %v362
    %v2568 = vunpack.c.l.b16 %v363
    %v2569 = vunpack.c.l.b16 %v364
    %v2570 = vunpack.c.l.b16 %v365
    %v2571 = vunpack.c.l.b16 %v366
    %v2572 = vunpack.c.l.b16 %v367
    %v2573 = vunpack.c.l.b16 %v368
    %v2574 = vunpack.c.l.b16 %v369
    %v2575 = vunpack.c.l.b16 %v370
    %v2576 = vunpack.c.l.b16 %v371
    %v2577 = vunpack.c.l.b16 %v372
    %v2578 = vunpack.c.l.b16 %v373
    %v2579 = vunpack.c.l.b16 %v374
    %v2580 = vunpack.c.l.b16 %v375
    %v2581 = vunpack.c.l.b16 %v376
    %v2582 = vunpack.c.l.b16 %v377
    %v2583 = vunpack.c.l.b16 %v378
    %v2584 = vunpack.c.l.b16 %v379
    %v2585 = vunpack.c.l.b16 %v380
    %v2586 = vunpack.c.l.b16 %v381
    %v2587 = vunpack.c.l.b16 %v382
    %v2588 = vunpack.c.l.b16 %v383
    %v2589 = vunpack.c.l.b16 %v384
    %v2590 = vunpack.c.l.b16 %v385
    %v2591 = vunpack.c.l.b16 %v386
    %v2592 = vunpack.c.l.b16 %v387
    %v2593 = vunpack.c.l.b16 %v388
    %v2594 = vunpack.c.l.b16 %v389
    %v2595 = vunpack.c.l.b16 %v390
    %v2596 = vunpack.c.l.b16 %v391
    %v2597 = vunpack.c.l.b16 %v392
    %v2598 = vunpack.c.l.b16 %v393
    %v2599 = vunpack.c.l.b16 %v394
    %v2600 = vunpack.c.l.b16 %v395
    %v2601 = vunpack.c.l.b16 %v396
    %v2602 = vunpack.c.l.b16 %v397
    %v2603 = vunpack.c.l.b16 %v398
    %v2604 = vunpack.c.l.b16 %v399
    %v2605 = vunpack.c.l.b16 %v400
    %v2606 = vunpack.c.l.b16 %v401
    %v2607 = vunpack.c.l.b16 %v402
    %v2608 = vunpack.c.l.b16 %v403
    %v2609 = vunpack.c.l.b16 %v404
    %v2610 = vunpack.c.l.b16 %v405
    %v2611 = vunpack.c.l.b16 %v406
    %v2612 = vunpack.c.l.b16 %v407
    %v2613 = vunpack.c.l.b16 %v408
    %v2614 = vunpack.c.l.b16 %v409
    %v2615 = vunpack.c.l.b16 %v410
    %v2616 = vunpack.c.l.b16 %v411
    %v2617 = vunpack.c.l.b16 %v412
    %v2618 = vunpack.c.l.b16 %v413
    %v2619 = vunpack.c.l.b16 %v414
    %v2620 = vunpack.c.l.b16 %v415
    %v2621 = vunpack.c.l.b16 %v416
    %v2622 = vunpack.c.l.b16 %v417
    %v2623 = vunpack.c.l.b16 %v418
    %v2624 = vunpack.c.l.b16 %v419
    %v2625 = vunpack.c.l.b16 %v420
    %v2626 = vunpack.c.l.b16 %v421
    %v2627 = vunpack.c.l.b16 %v422
    %v2628 = vunpack.c.l.b16 %v423
    %v2629 = vunpack.c.l.b16 %v424
    %v2630 = vunpack.c.l.b16 %v425
    %v2631 = vunpack.c.l.b16 %v426
    %v2632 = vunpack.c.l.b16 %v427
    %v2633 = vunpack.c.l.b16 %v428
    %v2634 = vunpack.c.l.b16 %v429
    %v2635 = vunpack.c.l.b16 %v430
    %v2636 = vunpack.c.l.b16 %v431
    %v2637 = vunpack.c.l.b16 %v432
    %v2638 = vunpack.c.l.b16 %v433
    %v2639 = vunpack.c.l.b16 %v434
    %v2640 = vunpack.c.l.b16 %v435
    %v2641 = vunpack.c.l.b16 %v436
    %v2642 = vunpack.c.l.b16 %v437
    %v2643 = vunpack.c.l.b16 %v438
    %v2644 = vunpack.c.l.b16 %v439
    %v2645 = vunpack.c.l.b16 %v440
    %v2646 = vunpack.c.l.b16 %v441
    %v2647 = vunpack.c.l.b16 %v442
    %v2648 = vunpack.c.l.b16 %v443
    %v2649 = vunpack.c.l.b16 %v444
    %v2650 = vunpack.c.l.b16 %v445
    %v2651 = vunpack.c.l.b16 %v446
    %v2652 = vunpack.c.l.b16 %v447
    %v2653 = vunpack.c.l.b16 %v448
    %v2654 = vunpack.c.l.b16 %v449
    %v2655 = vunpack.c.l.b16 %v450
    %v2656 = vunpack.c.l.b16 %v451
    %v2657 = vunpack.c.l.b16 %v452
    %v2658 = vunpack.c.l.b16 %v453
    %v2659 = vunpack.c.l.b16 %v454
    %v2660 = vunpack.c.l.b16 %v455
    %v2661 = vunpack.c.l.b16 %v456
    %v2662 = vunpack.c.l.b16 %v457
    %v2663 = vunpack.c.l.b16 %v458
    %v2664 = vunpack.c.l.b16 %v459
    %v2665 = vunpack.c.l.b16 %v460
    %v2666 = vunpack.c.l.b16 %v461
    %v2667 = vunpack.c.l.b16 %v462
    %v2668 = vunpack.c.l.b16 %v463
    %v2669 = vunpack.c.l.b16 %v464
    %v2670 = vunpack.c.l.b16 %v465
    %v2671 = vunpack.c.l.b16 %v466
    %v2672 = vunpack.c.l.b16 %v467
    %v2673 = vunpack.c.l.b16 %v468
    %v2674 = vunpack.c.l.b16 %v469
    %v2675 = vunpack.c.l.b16 %v470
    %v2676 = vunpack.c.l.b16 %v471
    %v2677 = vunpack.c.l.b16 %v472
    %v2678 = vunpack.c.l.b16 %v473
    %v2679 = vunpack.c.l.b16 %v474
    %v2680 = vunpack.c.l.b16 %v475
    %v2681 = vunpack.c.l.b16 %v476
    %v2682 = vunpack.c.l.b16 %v477
    %v2683 = vunpack.c.l.b16 %v478
    %v2684 = vunpack.c.l.b16 %v479
    %v2685 = vunpack.c.l.b16 %v480
    %v2686 = vunpack.c.l.b16 %v481
    %v2687 = vunpack.c.l.b16 %v482
    %v2688 = vunpack.c.l.b16 %v483
    %v2689 = vunpack.c.l.b16 %v484
    %v2690 = vunpack.c.l.b16 %v485
    %v2691 = vunpack.c.l.b16 %v486
    %v2692 = vunpack.c.l.b16 %v487
    %v2693 = vunpack.c.l.b16 %v488
    %v2694 = vunpack.c.l.b16 %v489
    %v2695 = vunpack.c.l.b16 %v490
    %v2696 = vunpack.c.l.b16 %v491
    %v2697 = vunpack.c.l.b16 %v492
    %v2698 = vunpack.c.l.b16 %v493
    %v2699 = vunpack.c.l.b16 %v494
    %v2700 = vunpack.c.l.b16 %v495
    %v2701 = vunpack.c.l.b16 %v496
    %v2702 = vunpack.c.l.b16 %v497
    %v2703 = vunpack.c.l.b16 %v498
    %v2704 = vunpack.c.l.b16 %v499
    %v2705 = vunpack.c.l.b16 %v500
    %v2706 = vunpack.c.l.b16 %v501
    %v2707 = vunpack.c.l.b16 %v502
    %v2708 = vunpack.c.l.b16 %v503
    %v2709 = vunpack.c.l.b16 %v504
    %v2710 = vunpack.c.l.b16 %v505
    %v2711 = vunpack.c.l.b16 %v506
    %v2712 = vunpack.c.l.b16 %v507
    %v2713 = vunpack.c.l.b16 %v508
    %v2714 = vunpack.c.l.b16 %v509
    %v2715 = vunpack.c.l.b16 %v510
    %v2716 = vunpack.c.l.b16 %v511
    %v2717 = vunpack.c.l.b16 %v512
    %v2718 = vunpack.c.l.b16 %v513
    %v2719 = vunpack.c.l.b16 %v514
    %v2720 = vunpack.c.l.b16 %v515
    %v2721 = vunpack.c.l.b16 %v516
    %v2722 = vunpack.c.l.b16 %v517
    %v2723 = vunpack.c.l.b16 %v518
    %v2724 = vunpack.c.l.b16 %v519
    %v2725 = vunpack.c.l.b16 %v520
    %v2726 = vunpack.c.l.b16 %v521
    %v2727 = vunpack.c.l.b16 %v522
    %v2728 = vunpack.c.l.b16 %v523
    %v2729 = vunpack.c.l.b16 %v524
    %v2730 = vunpack.c.l.b16 %v525
    %v2731 = vunpack.c.l.b16 %v526
    %v2732 = vunpack.c.l.b16 %v527
    %v2733 = vunpack.c.l.b16 %v528
    %v2734 = vunpack.c.l.b16 %v529
    %v2735 = vunpack.c.l.b16 %v530
    %v2736 = vunpack.c.l.b16 %v531
    %v2737 = vunpack.c.l.b16 %v532
    %v2738 = vunpack.c.l.b16 %v533
    %v2739 = vunpack.c.l.b16 %v534
    %v2740 = vunpack.c.l.b16 %v535
    %v2741 = vunpack.c.l.b16 %v536
    %v2742 = vunpack.c.l.b16 %v537
    %v2743 = vunpack.c.l.b16 %v538
    %v2744 = vunpack.c.l.b16 %v539
    %v2745 = vunpack.c.l.b16 %v540
    %v2746 = vunpack.c.l.b16 %v541
    %v2747 = vunpack.c.l.b16 %v542
    %v2748 = vunpack.c.l.b16 %v543
    %v2749 = vunpack.c.l.b16 %v544
    %v2750 = vunpack.c.l.b16 %v545
    %v2751 = vunpack.c.l.b16 %v546
    %v2752 = vunpack.c.l.b16 %v547
    %v2753 = vunpack.c.l.b16 %v548
    %v2754 = vunpack.c.l.b16 %v549
    %v2755 = vunpack.c.l.b16 %v550
    %v2756 = vunpack.c.l.b16 %v551
    %v2757 = vunpack.c.l.b16 %v552
    %v2758 = vunpack.c.l.b16 %v553
    %v2759 = vunpack.c.l.b16 %v554
    %v2760 = vunpack.c.l.b16 %v555
    %v2761 = vunpack.c.l.b16 %v556
    %v2762 = vunpack.c.l.b16 %v557
    %v2763 = vunpack.c.l.b16 %v558
    %v2764 = vunpack.c.l.b16 %v559
    %v2765 = vunpack.c.l.b16 %v560
    %v2766 = vunpack.c.l.b16 %v561
    %v2767 = vunpack.c.l.b16 %v562
    %v2768 = vunpack.c.l.b16 %v563
    %v2769 = vunpack.c.l.b16 %v564
    %v2770 = vunpack.c.l.b16 %v565
    %v2771 = vunpack.c.l.b16 %v566
    %v2772 = vunpack.c.l.b16 %v567
    %v2773 = vunpack.c.l.b16 %v568
    %v2774 = vunpack.c.l.b16 %v569
    %v2775 = vunpack.c.l.b16 %v570
    %v2776 = vunpack.c.l.b16 %v571
    %v2777 = vunpack.c.l.b16 %v572
    %v2778 = vunpack.c.l.b16 %v573
    %v2779 = vunpack.c.l.b16 %v574
    %v2780 = vunpack.c.l.b16 %v575
    %v2781 = vunpack.c.l.b16 %v576
    %v2782 = vunpack.c.l.b16 %v577
    %v2783 = vunpack.c.l.b16 %v578
    %v2784 = vunpack.c.l.b16 %v579
    %v2785 = vunpack.c.l.b16 %v580
    %v2786 = vunpack.c.l.b16 %v581
    %v2787 = vunpack.c.l.b16 %v582
    %v2788 = vunpack.c.l.b16 %v583
    %v2789 = vunpack.c.l.b16 %v584
    %v2790 = vunpack.c.l.b16 %v585
    %v2791 = vunpack.c.l.b16 %v586
    %v2792 = vunpack.c.l.b16 %v587
    %v2793 = vunpack.c.l.b16 %v588
    %v2794 = vunpack.c.l.b16 %v589
    %v2795 = vunpack.c.l.b16 %v590
    %v2796 = vunpack.c.l.b16 %v591
    %v2797 = vunpack.c.l.b16 %v592
    %v2798 = vunpack.c.l.b16 %v593
    %v2799 = vunpack.c.l.b16 %v594
    %v2800 = vunpack.c.l.b16 %v595
    %v2801 = vunpack.c.l.b16 %v596
    %v2802 = vunpack.c.l.b16 %v597
    %v2803 = vunpack.c.l.b16 %v598
    %v2804 = vunpack.c.l.b16 %v599
    %v2805 = vunpack.c.l.b16 %v600
    %v2806 = vunpack.c.l.b16 %v601
    %v2807 = vunpack.c.l.b16 %v602
    %v2808 = vunpack.c.l.b16 %v603
    %v2809 = vunpack.c.l.b16 %v604
    %v2810 = vunpack.c.l.b16 %v605
    %v2811 = vunpack.c.l.b16 %v606
    %v2812 = vunpack.c.l.b16 %v607
    %v2813 = vunpack.c.l.b16 %v608
    %v2814 = vunpack.c.l.b16 %v609
    %v2815 = vunpack.c.l.b16 %v610
    %v2816 = vunpack.c.l.b16 %v611
    %v2817 = vunpack.c.l.b16 %v612
    %v2818 = vunpack.c.l.b16 %v613
    %v2819 = vunpack.c.l.b16 %v614
    %v2820 = vunpack.c.l.b16 %v615
    %v2821 = vunpack.c.l.b16 %v616
    %v2822 = vunpack.c.l.b16 %v617
    %v2823 = vunpack.c.l.b16 %v618
    %v2824 = vunpack.c.l.b16 %v619
    %v2825 = vunpack.c.l.b16 %v620
    %v2826 = vunpack.c.l.b16 %v621
    %v2827 = vunpack.c.l.b16 %v622
    %v2828 = vunpack.c.l.b16 %v623
    %v2829 = vunpack.c.l.b16 %v624
    %v2830 = vunpack.c.l.b16 %v625
    %v2831 = vunpack.c.l.b16 %v626
    %v2832 = vunpack.c.l.b16 %v627
    %v2833 = vunpack.c.l.b16 %v628
    %v2834 = vunpack.c.l.b16 %v629
    %v2835 = vunpack.c.l.b16 %v630
    %v2836 = vunpack.c.l.b16 %v631
    %v2837 = vunpack.c.l.b16 %v632
    %v2838 = vunpack.c.l.b16 %v633
    %v2839 = vunpack.c.l.b16 %v634
    %v2840 = vunpack.c.l.b16 %v635
    %v2841 = vunpack.c.l.b16 %v636
    %v2842 = vunpack.c.l.b16 %v637
    %v2843 = vunpack.c.l.b16 %v638
    %v2844 = vunpack.c.l.b16 %v639
    %v2845 = vunpack.c.l.b16 %v640
    %v2846 = vunpack.c.l.b16 %v641
    %v2847 = vunpack.c.l.b16 %v642
    %v2848 = vunpack.c.l.b16 %v643
    %v2849 = vunpack.c.l.b16 %v644
    %v2850 = vunpack.c.l.b16 %v645
    %v2851 = vunpack.c.l.b16 %v646
    %v2852 = vunpack.c.l.b16 %v647
    %v2853 = vunpack.c.l.b16 %v648
    %v2854 = vunpack.c.l.b16 %v649
    %v2855 = vunpack.c.l.b16 %v650
    %v2856 = vunpack.c.l.b16 %v651
    %v2857 = vunpack.c.l.b16 %v652
    %v2858 = vunpack.c.l.b16 %v653
    %v2859 = vunpack.c.l.b16 %v654
    %v2860 = vunpack.c.l.b16 %v655
    %v2861 = vunpack.c.l.b16 %v656
    %v2862 = vunpack.c.l.b16 %v657
    %v2863 = vunpack.c.l.b16 %v658
    %v2864 = vunpack.c.l.b16 %v659
    %v2865 = vunpack.c.l.b16 %v660
    %v2866 = vunpack.c.l.b16 %v661
    %v2867 = vunpack.c.l.b16 %v662
    %v2868 = vunpack.c.l.b16 %v663
    %v2869 = vunpack.c.l.b16 %v664
    %v2870 = vunpack.c.l.b16 %v665
    %v2871 = vunpack.c.l.b16 %v666
    %v2872 = vunpack.c.l.b16 %v667
    %v2873 = vunpack.c.l.b16 %v668
    %v2874 = vunpack.c.l.b16 %v669
    %v2875 = vunpack.c.l.b16 %v670
    %v2876 = vunpack.c.l.b16 %v671
    %v2877 = vunpack.c.l.b16 %v672
    %v2878 = vunpack.c.l.b16 %v673
    %v2879 = vunpack.c.l.b16 %v674
    %v2880 = vunpack.c.l.b16 %v675
    %v2881 = vunpack.c.l.b16 %v676
    %v2882 = vunpack.c.l.b16 %v677
    %v2883 = vunpack.c.l.b16 %v678
    %v2884 = vunpack.c.l.b16 %v679
    %v2885 = vunpack.c.l.b16 %v680
    %v2886 = vunpack.c.l.b16 %v681
    %v2887 = vunpack.c.l.b16 %v682
    %v2888 = vunpack.c.l.b16 %v683
    %v2889 = vunpack.c.l.b16 %v684
    %v2890 = vunpack.c.l.b16 %v685
    %v2891 = vunpack.c.l.b16 %v686
    %v2892 = vunpack.c.l.b16 %v687
    %v2893 = vunpack.c.l.b16 %v688
    %v2894 = vunpack.c.l.b16 %v689
    %v2895 = vunpack.c.l.b16 %v690
    %v2896 = vunpack.c.l.b16 %v691
    %v2897 = vunpack.c.l.b16 %v692
    %v2898 = vunpack.c.l.b16 %v693
    %v2899 = vunpack.c.l.b16 %v694
    %v2900 = vunpack.c.l.b16 %v695
    %v2901 = vunpack.c.l.b16 %v696
    %v2902 = vunpack.c.l.b16 %v697
    %v2903 = vunpack.c.l.b16 %v698
    %v2904 = vunpack.c.l.b16 %v699
    %v2905 = vunpack.c.l.b16 %v700
    %v2906 = vunpack.c.l.b16 %v701
    %v2907 = vunpack.c.l.b16 %v702
    %v2908 = vunpack.c.l.b16 %v703
    %v2909 = vunpack.c.l.b16 %v704
    %v2910 = vunpack.c.l.b16 %v705
    %v2911 = vunpack.c.l.b16 %v706
    %v2912 = vunpack.c.l.b16 %v707
    %v2913 = vunpack.c.l.b16 %v708
    %v2914 = vunpack.c.l.b16 %v709
    %v2915 = vunpack.c.l.b16 %v710
    %v2916 = vunpack.c.l.b16 %v711
    %v2917 = vunpack.c.l.b16 %v712
    %v2918 = vunpack.c.l.b16 %v713
    %v2919 = vunpack.c.l.b16 %v714
    %v2920 = vunpack.c.l.b16 %v715
    %v2921 = vunpack.c.l.b16 %v716
    %v2922 = vunpack.c.l.b16 %v717
    %v2923 = vunpack.c.l.b16 %v718
    %v2924 = vunpack.c.l.b16 %v719
    %v2925 = vunpack.c.l.b16 %v720
    %v2926 = vunpack.c.l.b16 %v721
    %v2927 = vunpack.c.l.b16 %v722
    %v2928 = vunpack.c.l.b16 %v723
    %v2929 = vunpack.c.l.b16 %v724
    %v2930 = vunpack.c.l.b16 %v725
    %v2931 = vunpack.c.l.b16 %v726
    %v2932 = vunpack.c.l.b16 %v727
    %v2933 = vunpack.c.l.b16 %v728
    %v2934 = vunpack.c.l.b16 %v729
    %v2935 = vunpack.c.l.b16 %v730
    %v2936 = vunpack.c.l.b16 %v731
    %v2937 = vunpack.c.l.b16 %v732
    %v2938 = vunpack.c.l.b16 %v733
    %v2939 = vunpack.c.l.b16 %v734
    %v2940 = vunpack.c.l.b16 %v735
    %v2941 = vunpack.c.l.b16 %v736
    %v2942 = vunpack.c.l.b16 %v737
    %v2943 = vunpack.c.l.b16 %v738
    %v2944 = vunpack.c.l.b16 %v739
    %v2945 = vunpack.c.l.b16 %v740
    %v2946 = vunpack.c.l.b16 %v741
    %v2947 = vunpack.c.l.b16 %v742
    %v2948 = vunpack.c.l.b16 %v743
    %v2949 = vunpack.c.l.b16 %v744
    %v2950 = vunpack.c.l.b16 %v745
    %v2951 = vunpack.c.l.b16 %v746
    %v2952 = vunpack.c.l.b16 %v747
    %v2953 = vunpack.c.l.b16 %v748
    %v2954 = vunpack.c.l.b16 %v749
    %v2955 = vunpack.c.l.b16 %v750
    %v2956 = vunpack.c.l.b16 %v751
    %v2957 = vunpack.c.l.b16 %v752
    %v2958 = vunpack.c.l.b16 %v753
    %v2959 = vunpack.c.l.b16 %v754
    %v2960 = vunpack.c.l.b16 %v755
    %v2961 = vunpack.c.l.b16 %v756
    %v2962 = vunpack.c.l.b16 %v757
    %v2963 = vunpack.c.l.b16 %v758
    %v2964 = vunpack.c.l.b16 %v759
    %v2965 = vunpack.c.l.b16 %v760
    %v2966 = vunpack.c.l.b16 %v761
    %v2967 = vunpack.c.l.b16 %v762
    %v2968 = vunpack.c.l.b16 %v763
    %v2969 = vunpack.c.l.b16 %v764
    %v2970 = vunpack.c.l.b16 %v765
    %v2971 = vunpack.c.l.b16 %v766
    %v2972 = vunpack.c.l.b16 %v767
    %v2973 = vunpack.c.l.b16 %v768
    %v2974 = vunpack.c.l.b16 %v769
    %v2975 = vunpack.c.l.b16 %v770
    %v2976 = vunpack.c.l.b16 %v771
    %v2977 = vunpack.c.l.b16 %v772
    %v2978 = vunpack.c.l.b16 %v773
    %v2979 = vunpack.c.l.b16 %v774
    %v2980 = vunpack.c.l.b16 %v775
    %v2981 = vunpack.c.l.b16 %v776
    %v2982 = vunpack.c.l.b16 %v777
    %v2983 = vunpack.c.l.b16 %v778
    %v2984 = vunpack.c.l.b16 %v779
    %v2985 = vunpack.c.l.b16 %v780
    %v2986 = vunpack.c.l.b16 %v781
    %v2987 = vunpack.c.l.b16 %v782
    %v2988 = vunpack.c.l.b16 %v783
    %v2989 = vunpack.c.l.b16 %v784
    %v2990 = vunpack.c.l.b16 %v785
    %v2991 = vunpack.c.l.b16 %v786
    %v2992 = vunpack.c.l.b16 %v787
    %v2993 = vunpack.c.l.b16 %v788
    %v2994 = vunpack.c.l.b16 %v789
    %v2995 = vunpack.c.l.b16 %v790
    %v2996 = vunpack.c.l.b16 %v791
    %v2997 = vunpack.c.l.b16 %v792
    %v2998 = vunpack.c.l.b16 %v793
    %v2999 = vunpack.c.l.b16 %v794
    %v3000 = vunpack.c.l.b16 %v795
    %v3001 = vunpack.c.l.b16 %v796
    %v3002 = vunpack.c.l.b16 %v797
    %v3003 = vunpack.c.l.b16 %v798
    %v3004 = vunpack.c.l.b16 %v799
    %v3005 = vunpack.c.l.b16 %v800
    %v3006 = vunpack.c.l.b16 %v801
    %v3007 = vunpack.c.l.b16 %v802
    %v3008 = vunpack.c.l.b16 %v803
    %v3009 = vunpack.c.l.b16 %v804
    %v3010 = vunpack.c.l.b16 %v805
    %v3011 = vunpack.c.l.b16 %v806
    %v3012 = vunpack.c.l.b16 %v807
    %v3013 = vunpack.c.l.b16 %v808
    %v3014 = vunpack.c.l.b16 %v809
    %v3015 = vunpack.c.l.b16 %v810
    %v3016 = vunpack.c.l.b16 %v811
    %v3017 = vunpack.c.l.b16 %v812
    %v3018 = vunpack.c.l.b16 %v813
    %v3019 = vunpack.c.l.b16 %v814
    %v3020 = vunpack.c.l.b16 %v815
    %v3021 = vunpack.c.l.b16 %v816
    %v3022 = vunpack.c.l.b16 %v817
    %v3023 = vunpack.c.l.b16 %v818
    %v3024 = vunpack.c.l.b16 %v819
    %v3025 = vunpack.c.l.b16 %v820
    %v3026 = vunpack.c.l.b16 %v821
    %v3027 = vunpack.c.l.b16 %v822
    %v3028 = vunpack.c.l.b16 %v823
    %v3029 = vunpack.c.l.b16 %v824
    %v3030 = vunpack.c.l.b16 %v825
    %v3031 = vunpack.c.l.b16 %v826
    %v3032 = vunpack.c.l.b16 %v827
    %v3033 = vunpack.c.l.b16 %v828
    %v3034 = vunpack.c.l.b16 %v829
    %v3035 = vunpack.c.l.b16 %v830
    %v3036 = vunpack.c.l.b16 %v831
    %v3037 = vunpack.c.l.b16 %v832
    %v3038 = vunpack.c.l.b16 %v833
    %v3039 = vunpack.c.l.b16 %v834
    %v3040 = vunpack.c.l.b16 %v835
    %v3041 = vunpack.c.l.b16 %v836
    %v3042 = vunpack.c.l.b16 %v837
    %v3043 = vunpack.c.l.b16 %v838
    %v3044 = vunpack.c.l.b16 %v839
    %v3045 = vunpack.c.l.b16 %v840
    %v3046 = vunpack.c.l.b16 %v841
    %v3047 = vunpack.c.l.b16 %v842
    %v3048 = vunpack.c.l.b16 %v843
    %v3049 = vunpack.c.l.b16 %v844
    %v3050 = vunpack.c.l.b16 %v845
    %v3051 = vunpack.c.l.b16 %v846
    %v3052 = vunpack.c.l.b16 %v847
    %v3053 = vunpack.c.l.b16 %v848
    %v3054 = vunpack.c.l.b16 %v849
    %v3055 = vunpack.c.l.b16 %v850
    %v3056 = vunpack.c.l.b16 %v851
    %v3057 = vunpack.c.l.b16 %v852
    %v3058 = vunpack.c.l.b16 %v853
    %v3059 = vunpack.c.l.b16 %v854
    %v3060 = vunpack.c.l.b16 %v855
    %v3061 = vunpack.c.l.b16 %v856
    %v3062 = vunpack.c.l.b16 %v857
    %v3063 = vunpack.c.l.b16 %v858
    %v3064 = vunpack.c.l.b16 %v859
    %v3065 = vunpack.c.l.b16 %v860
    %v3066 = vunpack.c.l.b16 %v861
    %v3067 = vunpack.c.l.b16 %v862
    %v3068 = vunpack.c.l.b16 %v863
    %v3069 = vunpack.c.l.b16 %v864
    %v3070 = vunpack.c.l.b16 %v865
    %v3071 = vunpack.c.l.b16 %v866
    %v3072 = vunpack.c.l.b16 %v867
    %v3073 = vunpack.c.l.b16 %v868
    %v3074 = vunpack.c.l.b16 %v869
    %v3075 = vunpack.c.l.b16 %v870
    %v3076 = vunpack.c.l.b16 %v871
    %v3077 = vunpack.c.l.b16 %v872
    %v3078 = vunpack.c.l.b16 %v873
    %v3079 = vunpack.c.l.b16 %v874
    %v3080 = vunpack.c.l.b16 %v875
    %v3081 = vunpack.c.l.b16 %v876
    %v3082 = vunpack.c.l.b16 %v877
    %v3083 = vunpack.c.l.b16 %v878
    %v3084 = vunpack.c.l.b16 %v879
    %v3085 = vunpack.c.l.b16 %v880
    %v3086 = vunpack.c.l.b16 %v881
    %v3087 = vunpack.c.l.b16 %v882
    %v3088 = vunpack.c.l.b16 %v883
    %v3089 = vunpack.c.l.b16 %v884
    %v3090 = vunpack.c.l.b16 %v885
    %v3091 = vunpack.c.l.b16 %v886
    %v3092 = vunpack.c.l.b16 %v887
    %v3093 = vunpack.c.l.b16 %v888
    %v3094 = vunpack.c.l.b16 %v889
    %v3095 = vunpack.c.l.b16 %v890
    %v3096 = vunpack.c.l.b16 %v891
    %v3097 = vunpack.c.l.b16 %v892
    %v3098 = vunpack.c.l.b16 %v893
    %v3099 = vunpack.c.l.b16 %v894
    %v3100 = vunpack.c.l.b16 %v895
    %v3101 = vunpack.c.l.b16 %v896
    %v3102 = vunpack.c.l.b16 %v897
    %v3103 = vunpack.c.l.b16 %v898
    %v3104 = vunpack.c.l.b16 %v899
    %v3105 = vunpack.c.l.b16 %v900
    %v3106 = vunpack.c.l.b16 %v901
    %v3107 = vunpack.c.l.b16 %v902
    %v3108 = vunpack.c.l.b16 %v903
    %v3109 = vunpack.c.l.b16 %v904
    %v3110 = vunpack.c.l.b16 %v905
    %v3111 = vunpack.c.l.b16 %v906
    %v3112 = vunpack.c.l.b16 %v907
    %v3113 = vunpack.c.l.b16 %v908
    %v3114 = vunpack.c.l.b16 %v909
    %v3115 = vunpack.c.l.b16 %v910
    %v3116 = vunpack.c.l.b16 %v911
    %v3117 = vunpack.c.l.b16 %v912
    %v3118 = vunpack.c.l.b16 %v913
    %v3119 = vunpack.c.l.b16 %v914
    %v3120 = vunpack.c.l.b16 %v915
    %v3121 = vunpack.c.l.b16 %v916
    %v3122 = vunpack.c.l.b16 %v917
    %v3123 = vunpack.c.l.b16 %v918
    %v3124 = vunpack.c.l.b16 %v919
    %v3125 = vunpack.c.l.b16 %v920
    %v3126 = vunpack.c.l.b16 %v921
    %v3127 = vunpack.c.l.b16 %v922
    %v3128 = vunpack.c.l.b16 %v923
    %v3129 = vunpack.c.l.b16 %v924
    %v3130 = vpack.c.b16 %v2235, %v2234
    %v3131 = vpack.c.b16 %v2237, %v2236
    %v3132 = vpack.c.b16 %v2239, %v2238
    %v3133 = vpack.c.b16 %v2241, %v2240
    %v3134 = vpack.c.b16 %v2243, %v2242
    %v3135 = vpack.c.b16 %v2245, %v2244
    %v3136 = vpack.c.b16 %v2247, %v2246
    %v3137 = vpack.c.b16 %v2249, %v2248
    %v3138 = vpack.c.b16 %v2251, %v2250
    %v3139 = vpack.c.b16 %v2253, %v2252
    %v3140 = vpack.c.b16 %v2255, %v2254
    %v3141 = vpack.c.b16 %v2257, %v2256
    %v3142 = vpack.c.b16 %v2259, %v2258
    %v3143 = vpack.c.b16 %v2261, %v2260
    %v3144 = vpack.c.b16 %v2263, %v2262
    %v3145 = vpack.c.b16 %v2265, %v2264
    %v3146 = vpack.c.b16 %v2267, %v2266
    %v3147 = vpack.c.b16 %v2269, %v2268
    %v3148 = vpack.c.b16 %v2271, %v2270
    %v3149 = vpack.c.b16 %v2273, %v2272
    %v3150 = vpack.c.b16 %v2275, %v2274
    %v3151 = vpack.c.b16 %v2277, %v2276
    %v3152 = vpack.c.b16 %v2279, %v2278
    %v3153 = vpack.c.b16 %v2281, %v2280
    %v3154 = vpack.c.b16 %v2283, %v2282
    %v3155 = vpack.c.b16 %v2285, %v2284
    %v3156 = vpack.c.b16 %v2287, %v2286
    %v3157 = vpack.c.b16 %v2289, %v2288
    %v3158 = vpack.c.b16 %v2291, %v2290
    %v3159 = vpack.c.b16 %v2293, %v2292
    %v3160 = vpack.c.b16 %v2295, %v2294
    %v3161 = vpack.c.b16 %v2297, %v2296
    %v3162 = vpack.c.b16 %v2299, %v2298
    %v3163 = vpack.c.b16 %v2301, %v2300
    %v3164 = vpack.c.b16 %v2303, %v2302
    %v3165 = vpack.c.b16 %v2305, %v2304
    %v3166 = vpack.c.b16 %v2307, %v2306
    %v3167 = vpack.c.b16 %v2309, %v2308
    %v3168 = vpack.c.b16 %v2311, %v2310
    %v3169 = vpack.c.b16 %v2313, %v2312
    %v3170 = vpack.c.b16 %v2315, %v2314
    %v3171 = vpack.c.b16 %v2317, %v2316
    %v3172 = vpack.c.b16 %v2319, %v2318
    %v3173 = vpack.c.b16 %v2321, %v2320
    %v3174 = vpack.c.b16 %v2323, %v2322
    %v3175 = vpack.c.b16 %v2325, %v2324
    %v3176 = vpack.c.b16 %v2327, %v2326
    %v3177 = vpack.c.b16 %v2329, %v2328
    %v3178 = vpack.c.b16 %v2331, %v2330
    %v3179 = vpack.c.b16 %v2333, %v2332
    %v3180 = vpack.c.b16 %v2335, %v2334
    %v3181 = vpack.c.b16 %v2337, %v2336
    %v3182 = vpack.c.b16 %v2339, %v2338
    %v3183 = vpack.c.b16 %v2341, %v2340
    %v3184 = vpack.c.b16 %v2343, %v2342
    %v3185 = vpack.c.b16 %v2345, %v2344
    %v3186 = vpack.c.b16 %v2347, %v2346
    %v3187 = vpack.c.b16 %v2349, %v2348
    %v3188 = vpack.c.b16 %v2351, %v2350
    %v3189 = vpack.c.b16 %v2353, %v2352
    %v3190 = vpack.c.b16 %v2355, %v2354
    %v3191 = vpack.c.b16 %v2357, %v2356
    %v3192 = vpack.c.b16 %v2359, %v2358
    %v3193 = vpack.c.b16 %v2361, %v2360
    %v3194 = vpack.c.b16 %v2363, %v2362
    %v3195 = vpack.c.b16 %v2365, %v2364
    %v3196 = vpack.c.b16 %v2367, %v2366
    %v3197 = vpack.c.b16 %v2369, %v2368
    %v3198 = vpack.c.b16 %v2371, %v2370
    %v3199 = vpack.c.b16 %v2373, %v2372
    %v3200 = vpack.c.b16 %v2375, %v2374
    %v3201 = vpack.c.b16 %v2377, %v2376
    %v3202 = vpack.c.b16 %v2379, %v2378
    %v3203 = vpack.c.b16 %v2381, %v2380
    %v3204 = vpack.c.b16 %v2383, %v2382
    %v3205 = vpack.c.b16 %v2385, %v2384
    %v3206 = vpack.c.b16 %v2387, %v2386
    %v3207 = vpack.c.b16 %v2389, %v2388
    %v3208 = vpack.c.b16 %v2391, %v2390
    %v3209 = vpack.c.b16 %v2393, %v2392
    %v3210 = vpack.c.b16 %v2395, %v2394
    %v3211 = vpack.c.b16 %v2397, %v2396
    %v3212 = vpack.c.b16 %v2399, %v2398
    %v3213 = vpack.c.b16 %v2401, %v2400
    %v3214 = vpack.c.b16 %v2403, %v2402
    %v3215 = vpack.c.b16 %v2405, %v2404
    %v3216 = vpack.c.b16 %v2407, %v2406
    %v3217 = vpack.c.b16 %v2409, %v2408
    %v3218 = vpack.c.b16 %v2411, %v2410
    %v3219 = vpack.c.b16 %v2413, %v2412
    %v3220 = vpack.c.b16 %v2415, %v2414
    %v3221 = vpack.c.b16 %v2417, %v2416
    %v3222 = vpack.c.b16 %v2419, %v2418
    %v3223 = vpack.c.b16 %v2421, %v2420
    %v3224 = vpack.c.b16 %v2423, %v2422
    %v3225 = vpack.c.b16 %v2425, %v2424
    %v3226 = vpack.c.b16 %v2427, %v2426
    %v3227 = vpack.c.b16 %v2429, %v2428
    %v3228 = vpack.c.b16 %v2431, %v2430
    %v3229 = vpack.c.b16 %v2433, %v2432
    %v3230 = vpack.c.b16 %v2435, %v2434
    %v3231 = vpack.c.b16 %v2437, %v2436
    %v3232 = vpack.c.b16 %v2439, %v2438
    %v3233 = vpack.c.b16 %v2441, %v2440
    %v3234 = vpack.c.b16 %v2443, %v2442
    %v3235 = vpack.c.b16 %v2445, %v2444
    %v3236 = vpack.c.b16 %v2447, %v2446
    %v3237 = vpack.c.b16 %v2449, %v2448
    %v3238 = vpack.c.b16 %v2451, %v2450
    %v3239 = vpack.c.b16 %v2453, %v2452
    %v3240 = vpack.c.b16 %v2455, %v2454
    %v3241 = vpack.c.b16 %v2457, %v2456
    %v3242 = vpack.c.b16 %v2459, %v2458
    %v3243 = vpack.c.b16 %v2461, %v2460
    %v3244 = vpack.c.b16 %v2463, %v2462
    %v3245 = vpack.c.b16 %v2465, %v2464
    %v3246 = vpack.c.b16 %v2467, %v2466
    %v3247 = vpack.c.b16 %v2469, %v2468
    %v3248 = vpack.c.b16 %v2471, %v2470
    %v3249 = vpack.c.b16 %v2473, %v2472
    %v3250 = vpack.c.b16 %v2475, %v2474
    %v3251 = vpack.c.b16 %v2477, %v2476
    %v3252 = vpack.c.b16 %v2479, %v2478
    %v3253 = vpack.c.b16 %v2481, %v2480
    %v3254 = vpack.c.b16 %v2483, %v2482
    %v3255 = vpack.c.b16 %v2485, %v2484
    %v3256 = vpack.c.b16 %v2487, %v2486
    %v3257 = vpack.c.b16 %v2489, %v2488
    %v3258 = vpack.c.b16 %v2491, %v2490
    %v3259 = vpack.c.b16 %v2493, %v2492
    %v3260 = vpack.c.b16 %v2495, %v2494
    %v3261 = vpack.c.b16 %v2497, %v2496
    %v3262 = vpack.c.b16 %v2499, %v2498
    %v3263 = vpack.c.b16 %v2501, %v2500
    %v3264 = vpack.c.b16 %v2503, %v2502
    %v3265 = vpack.c.b16 %v2505, %v2504
    %v3266 = vpack.c.b16 %v2507, %v2506
    %v3267 = vpack.c.b16 %v2509, %v2508
    %v3268 = vpack.c.b16 %v2511, %v2510
    %v3269 = vpack.c.b16 %v2513, %v2512
    %v3270 = vpack.c.b16 %v2515, %v2514
    %v3271 = vpack.c.b16 %v2517, %v2516
    %v3272 = vpack.c.b16 %v2519, %v2518
    %v3273 = vpack.c.b16 %v2521, %v2520
    %v3274 = vpack.c.b16 %v2523, %v2522
    %v3275 = vpack.c.b16 %v2525, %v2524
    %v3276 = vpack.c.b16 %v2527, %v2526
    %v3277 = vpack.c.b16 %v2529, %v2528
    %v3278 = vpack.c.b16 %v2531, %v2530
    %v3279 = vpack.c.b16 %v2533, %v2532
    %v3280 = vpack.c.b16 %v2535, %v2534
    %v3281 = vpack.c.b16 %v2537, %v2536
    %v3282 = vpack.c.b16 %v2539, %v2538
    %v3283 = vpack.c.b16 %v2541, %v2540
    %v3284 = vpack.c.b16 %v2543, %v2542
    %v3285 = vpack.c.b16 %v2545, %v2544
    %v3286 = vpack.c.b16 %v2547, %v2546
    %v3287 = vpack.c.b16 %v2549, %v2548
    %v3288 = vpack.c.b16 %v2551, %v2550
    %v3289 = vpack.c.b16 %v2553, %v2552
    %v3290 = vpack.c.b16 %v2555, %v2554
    %v3291 = vpack.c.b16 %v2557, %v2556
    %v3292 = vpack.c.b16 %v2559, %v2558
    %v3293 = vpack.c.b16 %v2561, %v2560
    %v3294 = vpack.c.b16 %v2563, %v2562
    %v3295 = vpack.c.b16 %v2565, %v2564
    %v3296 = vpack.c.b16 %v2567, %v2566
    %v3297 = vpack.c.b16 %v2569, %v2568
    %v3298 = vpack.c.b16 %v2571, %v2570
    %v3299 = vpack.c.b16 %v2573, %v2572
    %v3300 = vpack.c.b16 %v2575, %v2574
    %v3301 = vpack.c.b16 %v2577, %v2576
    %v3302 = vpack.c.b16 %v2579, %v2578
    %v3303 = vpack.c.b16 %v2581, %v2580
    %v3304 = vpack.c.b16 %v2583, %v2582
    %v3305 = vpack.c.b16 %v2585, %v2584
    %v3306 = vpack.c.b16 %v2587, %v2586
    %v3307 = vpack.c.b16 %v2589, %v2588
    %v3308 = vpack.c.b16 %v2591, %v2590
    %v3309 = vpack.c.b16 %v2593, %v2592
    %v3310 = vpack.c.b16 %v2595, %v2594
    %v3311 = vpack.c.b16 %v2597, %v2596
    %v3312 = vpack.c.b16 %v2599, %v2598
    %v3313 = vpack.c.b16 %v2601, %v2600
    %v3314 = vpack.c.b16 %v2603, %v2602
    %v3315 = vpack.c.b16 %v2605, %v2604
    %v3316 = vpack.c.b16 %v2607, %v2606
    %v3317 = vpack.c.b16 %v2609, %v2608
    %v3318 = vpack.c.b16 %v2611, %v2610
    %v3319 = vpack.c.b16 %v2613, %v2612
    %v3320 = vpack.c.b16 %v2615, %v2614
    %v3321 = vpack.c.b16 %v2617, %v2616
    %v3322 = vpack.c.b16 %v2619, %v2618
    %v3323 = vpack.c.b16 %v2621, %v2620
    %v3324 = vpack.c.b16 %v2623, %v2622
    %v3325 = vpack.c.b16 %v2625, %v2624
    %v3326 = vpack.c.b16 %v2627, %v2626
    %v3327 = vpack.c.b16 %v2629, %v2628
    %v3328 = vpack.c.b16 %v2631, %v2630
    %v3329 = vpack.c.b16 %v2633, %v2632
    %v3330 = vpack.c.b16 %v2635, %v2634
    %v3331 = vpack.c.b16 %v2637, %v2636
    %v3332 = vpack.c.b16 %v2639, %v2638
    %v3333 = vpack.c.b16 %v2641, %v2640
    %v3334 = vpack.c.b16 %v2643, %v2642
    %v3335 = vpack.c.b16 %v2645, %v2644
    %v3336 = vpack.c.b16 %v2647, %v2646
    %v3337 = vpack.c.b16 %v2649, %v2648
    %v3338 = vpack.c.b16 %v2651, %v2650
    %v3339 = vpack.c.b16 %v2653, %v2652
    %v3340 = vpack.c.b16 %v2655, %v2654
    %v3341 = vpack.c.b16 %v2657, %v2656
    %v3342 = vpack.c.b16 %v2659, %v2658
    %v3343 = vpack.c.b16 %v2661, %v2660
    %v3344 = vpack.c.b16 %v2663, %v2662
    %v3345 = vpack.c.b16 %v2665, %v2664
    %v3346 = vpack.c.b16 %v2667, %v2666
    %v3347 = vpack.c.b16 %v2669, %v2668
    %v3348 = vpack.c.b16 %v2671, %v2670
    %v3349 = vpack.c.b16 %v2673, %v2672
    %v3350 = vpack.c.b16 %v2675, %v2674
    %v3351 = vpack.c.b16 %v2677, %v2676
    %v3352 = vpack.c.b16 %v2679, %v2678
    %v3353 = vpack.c.b16 %v2681, %v2680
    %v3354 = vpack.c.b16 %v2683, %v2682
    %v3355 = vpack.c.b16 %v2685, %v2684
    %v3356 = vpack.c.b16 %v2687, %v2686
    %v3357 = vpack.c.b16 %v2689, %v2688
    %v3358 = vpack.c.b16 %v2691, %v2690
    %v3359 = vpack.c.b16 %v2693, %v2692
    %v3360 = vpack.c.b16 %v2695, %v2694
    %v3361 = vpack.c.b16 %v2697, %v2696
    %v3362 = vpack.c.b16 %v2699, %v2698
    %v3363 = vpack.c.b16 %v2701, %v2700
    %v3364 = vpack.c.b16 %v2703, %v2702
    %v3365 = vpack.c.b16 %v2705, %v2704
    %v3366 = vpack.c.b16 %v2707, %v2706
    %v3367 = vpack.c.b16 %v2709, %v2708
    %v3368 = vpack.c.b16 %v2711, %v2710
    %v3369 = vpack.c.b16 %v2713, %v2712
    %v3370 = vpack.c.b16 %v2715, %v2714
    %v3371 = vpack.c.b16 %v2717, %v2716
    %v3372 = vpack.c.b16 %v2719, %v2718
    %v3373 = vpack.c.b16 %v2721, %v2720
    %v3374 = vpack.c.b16 %v2723, %v2722
    %v3375 = vpack.c.b16 %v2725, %v2724
    %v3376 = vpack.c.b16 %v2727, %v2726
    %v3377 = vpack.c.b16 %v2729, %v2728
    %v3378 = vpack.c.b16 %v2731, %v2730
    %v3379 = vpack.c.b16 %v2733, %v2732
    %v3380 = vpack.c.b16 %v2735, %v2734
    %v3381 = vpack.c.b16 %v2737, %v2736
    %v3382 = vpack.c.b16 %v2739, %v2738
    %v3383 = vpack.c.b16 %v2741, %v2740
    %v3384 = vpack.c.b16 %v2743, %v2742
    %v3385 = vpack.c.b16 %v2745, %v2744
    %v3386 = vpack.c.b16 %v2747, %v2746
    %v3387 = vpack.c.b16 %v2749, %v2748
    %v3388 = vpack.c.b16 %v2751, %v2750
    %v3389 = vpack.c.b16 %v2753, %v2752
    %v3390 = vpack.c.b16 %v2755, %v2754
    %v3391 = vpack.c.b16 %v2757, %v2756
    %v3392 = vpack.c.b16 %v2759, %v2758
    %v3393 = vpack.c.b16 %v2761, %v2760
    %v3394 = vpack.c.b16 %v2763, %v2762
    %v3395 = vpack.c.b16 %v2765, %v2764
    %v3396 = vpack.c.b16 %v2767, %v2766
    %v3397 = vpack.c.b16 %v2769, %v2768
    %v3398 = vpack.c.b16 %v2771, %v2770
    %v3399 = vpack.c.b16 %v2773, %v2772
    %v3400 = vpack.c.b16 %v2775, %v2774
    %v3401 = vpack.c.b16 %v2777, %v2776
    %v3402 = vpack.c.b16 %v2779, %v2778
    %v3403 = vpack.c.b16 %v2781, %v2780
    %v3404 = vpack.c.b16 %v2783, %v2782
    %v3405 = vpack.c.b16 %v2785, %v2784
    %v3406 = vpack.c.b16 %v2787, %v2786
    %v3407 = vpack.c.b16 %v2789, %v2788
    %v3408 = vpack.c.b16 %v2791, %v2790
    %v3409 = vpack.c.b16 %v2793, %v2792
    %v3410 = vpack.c.b16 %v2795, %v2794
    %v3411 = vpack.c.b16 %v2797, %v2796
    %v3412 = vpack.c.b16 %v2799, %v2798
    %v3413 = vpack.c.b16 %v2801, %v2800
    %v3414 = vpack.c.b16 %v2803, %v2802
    %v3415 = vpack.c.b16 %v2805, %v2804
    %v3416 = vpack.c.b16 %v2807, %v2806
    %v3417 = vpack.c.b16 %v2809, %v2808
    %v3418 = vpack.c.b16 %v2811, %v2810
    %v3419 = vpack.c.b16 %v2813, %v2812
    %v3420 = vpack.c.b16 %v2815, %v2814
    %v3421 = vpack.c.b16 %v2817, %v2816
    %v3422 = vpack.c.b16 %v2819, %v2818
    %v3423 = vpack.c.b16 %v2821, %v2820
    %v3424 = vpack.c.b16 %v2823, %v2822
    %v3425 = vpack.c.b16 %v2825, %v2824
    %v3426 = vpack.c.b16 %v2827, %v2826
    %v3427 = vpack.c.b16 %v2829, %v2828
    %v3428 = vpack.c.b16 %v2831, %v2830
    %v3429 = vpack.c.b16 %v2833, %v2832
    %v3430 = vpack.c.b16 %v2835, %v2834
    %v3431 = vpack.c.b16 %v2837, %v2836
    %v3432 = vpack.c.b16 %v2839, %v2838
    %v3433 = vpack.c.b16 %v2841, %v2840
    %v3434 = vpack.c.b16 %v2843, %v2842
    %v3435 = vpack.c.b16 %v2845, %v2844
    %v3436 = vpack.c.b16 %v2847, %v2846
    %v3437 = vpack.c.b16 %v2849, %v2848
    %v3438 = vpack.c.b16 %v2851, %v2850
    %v3439 = vpack.c.b16 %v2853, %v2852
    %v3440 = vpack.c.b16 %v2855, %v2854
    %v3441 = vpack.c.b16 %v2857, %v2856
    %v3442 = vpack.c.b16 %v2859, %v2858
    %v3443 = vpack.c.b16 %v2861, %v2860
    %v3444 = vpack.c.b16 %v2863, %v2862
    %v3445 = vpack.c.b16 %v2865, %v2864
    %v3446 = vpack.c.b16 %v2867, %v2866
    %v3447 = vpack.c.b16 %v2869, %v2868
    %v3448 = vpack.c.b16 %v2871, %v2870
    %v3449 = vpack.c.b16 %v2873, %v2872
    %v3450 = vpack.c.b16 %v2875, %v2874
    %v3451 = vpack.c.b16 %v2877, %v2876
    %v3452 = vpack.c.b16 %v2879, %v2878
    %v3453 = vpack.c.b16 %v2881, %v2880
    %v3454 = vpack.c.b16 %v2883, %v2882
    %v3455 = vpack.c.b16 %v2885, %v2884
    %v3456 = vpack.c.b16 %v2887, %v2886
    %v3457 = vpack.c.b16 %v2889, %v2888
    %v3458 = vpack.c.b16 %v2891, %v2890
    %v3459 = vpack.c.b16 %v2893, %v2892
    %v3460 = vpack.c.b16 %v2895, %v2894
    %v3461 = vpack.c.b16 %v2897, %v2896
    %v3462 = vpack.c.b16 %v2899, %v2898
    %v3463 = vpack.c.b16 %v2901, %v2900
    %v3464 = vpack.c.b16 %v2903, %v2902
    %v3465 = vpack.c.b16 %v2905, %v2904
    %v3466 = vpack.c.b16 %v2907, %v2906
    %v3467 = vpack.c.b16 %v2909, %v2908
    %v3468 = vpack.c.b16 %v2911, %v2910
    %v3469 = vpack.c.b16 %v2913, %v2912
    %v3470 = vpack.c.b16 %v2915, %v2914
    %v3471 = vpack.c.b16 %v2917, %v2916
    %v3472 = vpack.c.b16 %v2919, %v2918
    %v3473 = vpack.c.b16 %v2921, %v2920
    %v3474 = vpack.c.b16 %v2923, %v2922
    %v3475 = vpack.c.b16 %v2925, %v2924
    %v3476 = vpack.c.b16 %v2927, %v2926
    %v3477 = vpack.c.b16 %v2929, %v2928
    %v3478 = vpack.c.b16 %v2931, %v2930
    %v3479 = vpack.c.b16 %v2933, %v2932
    %v3480 = vpack.c.b16 %v2935, %v2934
    %v3481 = vpack.c.b16 %v2937, %v2936
    %v3482 = vpack.c.b16 %v2939, %v2938
    %v3483 = vpack.c.b16 %v2941, %v2940
    %v3484 = vpack.c.b16 %v2943, %v2942
    %v3485 = vpack.c.b16 %v2945, %v2944
    %v3486 = vpack.c.b16 %v2947, %v2946
    %v3487 = vpack.c.b16 %v2949, %v2948
    %v3488 = vpack.c.b16 %v2951, %v2950
    %v3489 = vpack.c.b16 %v2953, %v2952
    %v3490 = vpack.c.b16 %v2955, %v2954
    %v3491 = vpack.c.b16 %v2957, %v2956
    %v3492 = vpack.c.b16 %v2959, %v2958
    %v3493 = vpack.c.b16 %v2961, %v2960
    %v3494 = vpack.c.b16 %v2963, %v2962
    %v3495 = vpack.c.b16 %v2965, %v2964
    %v3496 = vpack.c.b16 %v2967, %v2966
    %v3497 = vpack.c.b16 %v2969, %v2968
    %v3498 = vpack.c.b16 %v2971, %v2970
    %v3499 = vpack.c.b16 %v2973, %v2972
    %v3500 = vpack.c.b16 %v2975, %v2974
    %v3501 = vpack.c.b16 %v2977, %v2976
    %v3502 = vpack.c.b16 %v2979, %v2978
    %v3503 = vpack.c.b16 %v2981, %v2980
    %v3504 = vpack.c.b16 %v2983, %v2982
    %v3505 = vpack.c.b16 %v2985, %v2984
    %v3506 = vpack.c.b16 %v2987, %v2986
    %v3507 = vpack.c.b16 %v2989, %v2988
    %v3508 = vpack.c.b16 %v2991, %v2990
    %v3509 = vpack.c.b16 %v2993, %v2992
    %v3510 = vpack.c.b16 %v2995, %v2994
    %v3511 = vpack.c.b16 %v2997, %v2996
    %v3512 = vpack.c.b16 %v2999, %v2998
    %v3513 = vpack.c.b16 %v3001, %v3000
    %v3514 = vpack.c.b16 %v3003, %v3002
    %v3515 = vpack.c.b16 %v3005, %v3004
    %v3516 = vpack.c.b16 %v3007, %v3006
    %v3517 = vpack.c.b16 %v3009, %v3008
    %v3518 = vpack.c.b16 %v3011, %v3010
    %v3519 = vpack.c.b16 %v3013, %v3012
    %v3520 = vpack.c.b16 %v3015, %v3014
    %v3521 = vpack.c.b16 %v3017, %v3016
    %v3522 = vpack.c.b16 %v3019, %v3018
    %v3523 = vpack.c.b16 %v3021, %v3020
    %v3524 = vpack.c.b16 %v3023, %v3022
    %v3525 = vpack.c.b16 %v3025, %v3024
    %v3526 = vpack.c.b16 %v3027, %v3026
    %v3527 = vpack.c.b16 %v3029, %v3028
    %v3528 = vpack.c.b16 %v3031, %v3030
    %v3529 = vpack.c.b16 %v3033, %v3032
    %v3530 = vpack.c.b16 %v3035, %v3034
    %v3531 = vpack.c.b16 %v3037, %v3036
    %v3532 = vpack.c.b16 %v3039, %v3038
    %v3533 = vpack.c.b16 %v3041, %v3040
    %v3534 = vpack.c.b16 %v3043, %v3042
    %v3535 = vpack.c.b16 %v3045, %v3044
    %v3536 = vpack.c.b16 %v3047, %v3046
    %v3537 = vpack.c.b16 %v3049, %v3048
    %v3538 = vpack.c.b16 %v3051, %v3050
    %v3539 = vpack.c.b16 %v3053, %v3052
    %v3540 = vpack.c.b16 %v3055, %v3054
    %v3541 = vpack.c.b16 %v3057, %v3056
    %v3542 = vpack.c.b16 %v3059, %v3058
    %v3543 = vpack.c.b16 %v3061, %v3060
    %v3544 = vpack.c.b16 %v3063, %v3062
    %v3545 = vpack.c.b16 %v3065, %v3064
    %v3546 = vpack.c.b16 %v3067, %v3066
    %v3547 = vpack.c.b16 %v3069, %v3068
    %v3548 = vpack.c.b16 %v3071, %v3070
    %v3549 = vpack.c.b16 %v3073, %v3072
    %v3550 = vpack.c.b16 %v3075, %v3074
    %v3551 = vpack.c.b16 %v3077, %v3076
    %v3552 = vpack.c.b16 %v3079, %v3078
    %v3553 = vpack.c.b16 %v3081, %v3080
    %v3554 = vpack.c.b16 %v3083, %v3082
    %v3555 = vpack.c.b16 %v3085, %v3084
    %v3556 = vpack.c.b16 %v3087, %v3086
    %v3557 = vpack.c.b16 %v3089, %v3088
    %v3558 = vpack.c.b16 %v3091, %v3090
    %v3559 = vpack.c.b16 %v3093, %v3092
    %v3560 = vpack.c.b16 %v3095, %v3094
    %v3561 = vpack.c.b16 %v3097, %v3096
    %v3562 = vpack.c.b16 %v3099, %v3098
    %v3563 = vpack.c.b16 %v3101, %v3100
    %v3564 = vpack.c.b16 %v3103, %v3102
    %v3565 = vpack.c.b16 %v3105, %v3104
    %v3566 = vpack.c.b16 %v3107, %v3106
    %v3567 = vpack.c.b16 %v3109, %v3108
    %v3568 = vpack.c.b16 %v3111, %v3110
    %v3569 = vpack.c.b16 %v3113, %v3112
    %v3570 = vpack.c.b16 %v3115, %v3114
    %v3571 = vpack.c.b16 %v3117, %v3116
    %v3572 = vpack.c.b16 %v3119, %v3118
    %v3573 = vpack.c.b16 %v3121, %v3120
    %v3574 = vpack.c.b16 %v3123, %v3122
    %v3575 = vpack.c.b16 %v3125, %v3124
    %v3576 = vpack.c.b16 %v3127, %v3126
    %v3577 = vpack.c.b16 %v3129, %v3128
    %4026 = vmatprep.subr.bf16.mxu0 0
    %4027 = vmatpush1.bf16.msra.mxu0 %v3130
    %4028 = vmatprep.subr.bf16.mxu0 0
    %4029 = vmatpush1.bf16.msra.mxu0 %v3131
    %4030 = vmatprep.subr.bf16.mxu0 0
    %4031 = vmatpush1.bf16.msra.mxu0 %v3132
    %4032 = vmatprep.subr.bf16.mxu0 0
    %4033 = vmatpush1.bf16.msra.mxu0 %v3133
    %4034 = vmatprep.subr.bf16.mxu0 0
    %4035 = vmatpush1.bf16.msra.mxu0 %v3134
    %4036 = vmatprep.subr.bf16.mxu0 0
    %4037 = vmatpush1.bf16.msra.mxu0 %v3135
    %4038 = vmatprep.subr.bf16.mxu0 0
    %4039 = vmatpush1.bf16.msra.mxu0 %v3136
    %4040 = vmatprep.subr.bf16.mxu0 0
    %4041 = vmatpush1.bf16.msra.mxu0 %v3137
    %4042 = vmatprep.subr.bf16.mxu0 0
    %4043 = vmatpush1.bf16.msra.mxu0 %v3138
    %4044 = vmatprep.subr.bf16.mxu0 0
    %4045 = vmatpush1.bf16.msra.mxu0 %v3139
    %4046 = vmatprep.subr.bf16.mxu0 0
    %4047 = vmatpush1.bf16.msra.mxu0 %v3140
    %4048 = vmatprep.subr.bf16.mxu0 0
    %4049 = vmatpush1.bf16.msra.mxu0 %v3141
    %4050 = vmatprep.subr.bf16.mxu0 0
    %4051 = vmatpush1.bf16.msra.mxu0 %v3142
    %4052 = vmatprep.subr.bf16.mxu0 0
    %4053 = vmatpush1.bf16.msra.mxu0 %v3143
    %4054 = vmatprep.subr.bf16.mxu0 0
    %4055 = vmatpush1.bf16.msra.mxu0 %v3144
    %4056 = vmatprep.subr.bf16.mxu0 0
    %4057 = vmatpush1.bf16.msra.mxu0 %v3145
    %4058 = vmatprep.mubr.bf16.mxu0 %v976
    %4059 = vmatmul.mubr.bf16.gmra.mrb[0].mxu0 %v962
    %v4060 = vpop.f32.mrb[0].mxu0
    %v4061 = vadd.f32 %v930, %v4060
    %v4062 = vpop.f32.mrb[0].mxu0
    %v4063 = vpop.f32.mrb[0].mxu0
    %v4064 = vpop.f32.mrb[0].mxu0
    %4065 = vdwg.mxu0
    %4066 = vmatprep.subr.bf16.mxu0 0
    %4067 = vmatpush1.bf16.msra.mxu0 %v3146
    %4068 = vmatprep.subr.bf16.mxu0 0
    %4069 = vmatpush1.bf16.msra.mxu0 %v3147
    %4070 = vmatprep.subr.bf16.mxu0 0
    %4071 = vmatpush1.bf16.msra.mxu0 %v3148
    %4072 = vmatprep.subr.bf16.mxu0 0
    %4073 = vmatpush1.bf16.msra.mxu0 %v3149
    %4074 = vmatprep.subr.bf16.mxu0 0
    %4075 = vmatpush1.bf16.msra.mxu0 %v3150
    %4076 = vmatprep.subr.bf16.mxu0 0
    %4077 = vmatpush1.bf16.msra.mxu0 %v3151
    %4078 = vmatprep.subr.bf16.mxu0 0
    %4079 = vmatpush1.bf16.msra.mxu0 %v3152
    %4080 = vmatprep.subr.bf16.mxu0 0
    %4081 = vmatpush1.bf16.msra.mxu0 %v3153
    %4082 = vmatprep.subr.bf16.mxu0 0
    %4083 = vmatpush1.bf16.msra.mxu0 %v3154
    %4084 = vmatprep.subr.bf16.mxu0 0
    %4085 = vmatpush1.bf16.msra.mxu0 %v3155
    %4086 = vmatprep.subr.bf16.mxu0 0
    %4087 = vmatpush1.bf16.msra.mxu0 %v3156
    %4088 = vmatprep.subr.bf16.mxu0 0
    %4089 = vmatpush1.bf16.msra.mxu0 %v3157
    %4090 = vmatprep.subr.bf16.mxu0 0
    %4091 = vmatpush1.bf16.msra.mxu0 %v3158
    %4092 = vmatprep.subr.bf16.mxu0 0
    %4093 = vmatpush1.bf16.msra.mxu0 %v3159
    %4094 = vmatprep.subr.bf16.mxu0 0
    %4095 = vmatpush1.bf16.msra.mxu0 %v3160
    %4096 = vmatprep.subr.bf16.mxu0 0
    %4097 = vmatpush1.bf16.msra.mxu0 %v3161
    %4098 = vmatprep.mubr.bf16.mxu0 %v986
    %4099 = vmatmul.mubr.bf16.gmra.mrb[0].mxu0 %v984
    %v4100 = vpop.f32.mrb[0].mxu0
    %v4101 = vadd.f32 %v4061, %v4100
    %v4102 = vpop.f32.mrb[0].mxu0
    %v4103 = vpop.f32.mrb[0].mxu0
    %v4104 = vpop.f32.mrb[0].mxu0
    %4105 = vdwg.mxu0
    %4106 = vmatprep.subr.bf16.mxu0 0
    %4107 = vmatpush1.bf16.msra.mxu0 %v3162
    %4108 = vmatprep.subr.bf16.mxu0 0
    %4109 = vmatpush1.bf16.msra.mxu0 %v3163
    %4110 = vmatprep.subr.bf16.mxu0 0
    %4111 = vmatpush1.bf16.msra.mxu0 %v3164
    %4112 = vmatprep.subr.bf16.mxu0 0
    %4113 = vmatpush1.bf16.msra.mxu0 %v3165
    %4114 = vmatprep.subr.bf16.mxu0 0
    %4115 = vmatpush1.bf16.msra.mxu0 %v3166
    %4116 = vmatprep.subr.bf16.mxu0 0
    %4117 = vmatpush1.bf16.msra.mxu0 %v3167
    %4118 = vmatprep.subr.bf16.mxu0 0
    %4119 = vmatpush1.bf16.msra.mxu0 %v3168
    %4120 = vmatprep.subr.bf16.mxu0 0
    %4121 = vmatpush1.bf16.msra.mxu0 %v3169
    %4122 = vmatprep.subr.bf16.mxu0 0
    %4123 = vmatpush1.bf16.msra.mxu0 %v3170
    %4124 = vmatprep.subr.bf16.mxu0 0
    %4125 = vmatpush1.bf16.msra.mxu0 %v3171
    %4126 = vmatprep.subr.bf16.mxu0 0
    %4127 = vmatpush1.bf16.msra.mxu0 %v3172
    %4128 = vmatprep.subr.bf16.mxu0 0
    %4129 = vmatpush1.bf16.msra.mxu0 %v3173
    %4130 = vmatprep.subr.bf16.mxu0 0
    %4131 = vmatpush1.bf16.msra.mxu0 %v3174
    %4132 = vmatprep.subr.bf16.mxu0 0
    %4133 = vmatpush1.bf16.msra.mxu0 %v3175
    %4134 = vmatprep.subr.bf16.mxu0 0
    %4135 = vmatpush1.bf16.msra.mxu0 %v3176
    %4136 = vmatprep.subr.bf16.mxu0 0
    %4137 = vmatpush1.bf16.msra.mxu0 %v3177
    %4138 = vmatprep.mubr.bf16.mxu0 %v983
    %4139 = vmatmul.mubr.bf16.gmra.mrb[0].mxu0 %v969
    %v4140 = vpop.f32.mrb[0].mxu0
    %v4141 = vadd.f32 %v4101, %v4140
    %v4142 = vpop.f32.mrb[0].mxu0
    %v4143 = vpop.f32.mrb[0].mxu0
    %v4144 = vpop.f32.mrb[0].mxu0
    %4145 = vdwg.mxu0
    %4146 = vmatprep.subr.bf16.mxu0 0
    %4147 = vmatpush1.bf16.msra.mxu0 %v3178
    %4148 = vmatprep.subr.bf16.mxu0 0
    %4149 = vmatpush1.bf16.msra.mxu0 %v3179
    %4150 = vmatprep.subr.bf16.mxu0 0
    %4151 = vmatpush1.bf16.msra.mxu0 %v3180
    %4152 = vmatprep.subr.bf16.mxu0 0
    %4153 = vmatpush1.bf16.msra.mxu0 %v3181
    %4154 = vmatprep.subr.bf16.mxu0 0
    %4155 = vmatpush1.bf16.msra.mxu0 %v3182
    %4156 = vmatprep.subr.bf16.mxu0 0
    %4157 = vmatpush1.bf16.msra.mxu0 %v3183
    %4158 = vmatprep.subr.bf16.mxu0 0
    %4159 = vmatpush1.bf16.msra.mxu0 %v3184
    %4160 = vmatprep.subr.bf16.mxu0 0
    %4161 = vmatpush1.bf16.msra.mxu0 %v3185
    %4162 = vmatprep.subr.bf16.mxu0 0
    %4163 = vmatpush1.bf16.msra.mxu0 %v3186
    %4164 = vmatprep.subr.bf16.mxu0 0
    %4165 = vmatpush1.bf16.msra.mxu0 %v3187
    %4166 = vmatprep.subr.bf16.mxu0 0
    %4167 = vmatpush1.bf16.msra.mxu0 %v3188
    %4168 = vmatprep.subr.bf16.mxu0 0
    %4169 = vmatpush1.bf16.msra.mxu0 %v3189
    %4170 = vmatprep.subr.bf16.mxu0 0
    %4171 = vmatpush1.bf16.msra.mxu0 %v3190
    %4172 = vmatprep.subr.bf16.mxu0 0
    %4173 = vmatpush1.bf16.msra.mxu0 %v3191
    %4174 = vmatprep.subr.bf16.mxu0 0
    %4175 = vmatpush1.bf16.msra.mxu0 %v3192
    %4176 = vmatprep.subr.bf16.mxu0 0
    %4177 = vmatpush1.bf16.msra.mxu0 %v3193
    %4178 = vmatprep.mubr.bf16.mxu0 %v987
    %4179 = vmatmul.mubr.bf16.gmra.mrb[0].mxu0 %v985
    %v4180 = vpop.f32.mrb[0].mxu0
    %v4181 = vadd.f32 %v4141, %v4180
    %v4182 = vpop.f32.mrb[0].mxu0
    %v4183 = vpop.f32.mrb[0].mxu0
    %v4184 = vpop.f32.mrb[0].mxu0
    %4185 = vdwg.mxu0
    %4186 = vmatprep.subr.bf16.mxu0 0
    %4187 = vmatpush1.bf16.msra.mxu0 %v3194
    %4188 = vmatprep.subr.bf16.mxu0 0
    %4189 = vmatpush1.bf16.msra.mxu0 %v3195
    %4190 = vmatprep.subr.bf16.mxu0 0
    %4191 = vmatpush1.bf16.msra.mxu0 %v3196
    %4192 = vmatprep.subr.bf16.mxu0 0
    %4193 = vmatpush1.bf16.msra.mxu0 %v3197
    %4194 = vmatprep.subr.bf16.mxu0 0
    %4195 = vmatpush1.bf16.msra.mxu0 %v3198
    %4196 = vmatprep.subr.bf16.mxu0 0
    %4197 = vmatpush1.bf16.msra.mxu0 %v3199
    %4198 = vmatprep.subr.bf16.mxu0 0
    %4199 = vmatpush1.bf16.msra.mxu0 %v3200
    %4200 = vmatprep.subr.bf16.mxu0 0
    %4201 = vmatpush1.bf16.msra.mxu0 %v3201
    %4202 = vmatprep.subr.bf16.mxu0 0
    %4203 = vmatpush1.bf16.msra.mxu0 %v3202
    %4204 = vmatprep.subr.bf16.mxu0 0
    %4205 = vmatpush1.bf16.msra.mxu0 %v3203
    %4206 = vmatprep.subr.bf16.mxu0 0
    %4207 = vmatpush1.bf16.msra.mxu0 %v3204
    %4208 = vmatprep.subr.bf16.mxu0 0
    %4209 = vmatpush1.bf16.msra.mxu0 %v3205
    %4210 = vmatprep.subr.bf16.mxu0 0
    %4211 = vmatpush1.bf16.msra.mxu0 %v3206
    %4212 = vmatprep.subr.bf16.mxu0 0
    %4213 = vmatpush1.bf16.msra.mxu0 %v3207
    %4214 = vmatprep.subr.bf16.mxu0 0
    %4215 = vmatpush1.bf16.msra.mxu0 %v3208
    %4216 = vmatprep.subr.bf16.mxu0 0
    %4217 = vmatpush1.bf16.msra.mxu0 %v3209
    %4218 = vmatprep.mubr.bf16.mxu0 %v1025
    %4219 = vmatmul.mubr.bf16.gmra.mrb[0].mxu0 %v1011
    %v4220 = vpop.f32.mrb[0].mxu0
    %v4221 = vadd.f32 %v4181, %v4220
    %v4222 = vpop.f32.mrb[0].mxu0
    %v4223 = vpop.f32.mrb[0].mxu0
    %v4224 = vpop.f32.mrb[0].mxu0
    %4225 = vdwg.mxu0
    %4226 = vmatprep.subr.bf16.mxu0 0
    %4227 = vmatpush1.bf16.msra.mxu0 %v3210
    %4228 = vmatprep.subr.bf16.mxu0 0
    %4229 = vmatpush1.bf16.msra.mxu0 %v3211
    %4230 = vmatprep.subr.bf16.mxu0 0
    %4231 = vmatpush1.bf16.msra.mxu0 %v3212
    %4232 = vmatprep.subr.bf16.mxu0 0
    %4233 = vmatpush1.bf16.msra.mxu0 %v3213
    %4234 = vmatprep.subr.bf16.mxu0 0
    %4235 = vmatpush1.bf16.msra.mxu0 %v3214
    %4236 = vmatprep.subr.bf16.mxu0 0
    %4237 = vmatpush1.bf16.msra.mxu0 %v3215
    %4238 = vmatprep.subr.bf16.mxu0 0
    %4239 = vmatpush1.bf16.msra.mxu0 %v3216
    %4240 = vmatprep.subr.bf16.mxu0 0
    %4241 = vmatpush1.bf16.msra.mxu0 %v3217
    %4242 = vmatprep.subr.bf16.mxu0 0
    %4243 = vmatpush1.bf16.msra.mxu0 %v3218
    %4244 = vmatprep.subr.bf16.mxu0 0
    %4245 = vmatpush1.bf16.msra.mxu0 %v3219
    %4246 = vmatprep.subr.bf16.mxu0 0
    %4247 = vmatpush1.bf16.msra.mxu0 %v3220
    %4248 = vmatprep.subr.bf16.mxu0 0
    %4249 = vmatpush1.bf16.msra.mxu0 %v3221
    %4250 = vmatprep.subr.bf16.mxu0 0
    %4251 = vmatpush1.bf16.msra.mxu0 %v3222
    %4252 = vmatprep.subr.bf16.mxu0 0
    %4253 = vmatpush1.bf16.msra.mxu0 %v3223
    %4254 = vmatprep.subr.bf16.mxu0 0
    %4255 = vmatpush1.bf16.msra.mxu0 %v3224
    %4256 = vmatprep.subr.bf16.mxu0 0
    %4257 = vmatpush1.bf16.msra.mxu0 %v3225
    %4258 = vmatprep.mubr.bf16.mxu0 %v1035
    %4259 = vmatmul.mubr.bf16.gmra.mrb[0].mxu0 %v1033
    %v4260 = vpop.f32.mrb[0].mxu0
    %v4261 = vadd.f32 %v4221, %v4260
    %v4262 = vpop.f32.mrb[0].mxu0
    %v4263 = vpop.f32.mrb[0].mxu0
    %v4264 = vpop.f32.mrb[0].mxu0
    %4265 = vdwg.mxu0
    %4266 = vmatprep.subr.bf16.mxu0 0
    %4267 = vmatpush1.bf16.msra.mxu0 %v3226
    %4268 = vmatprep.subr.bf16.mxu0 0
    %4269 = vmatpush1.bf16.msra.mxu0 %v3227
    %4270 = vmatprep.subr.bf16.mxu0 0
    %4271 = vmatpush1.bf16.msra.mxu0 %v3228
    %4272 = vmatprep.subr.bf16.mxu0 0
    %4273 = vmatpush1.bf16.msra.mxu0 %v3229
    %4274 = vmatprep.subr.bf16.mxu0 0
    %4275 = vmatpush1.bf16.msra.mxu0 %v3230
    %4276 = vmatprep.subr.bf16.mxu0 0
    %4277 = vmatpush1.bf16.msra.mxu0 %v3231
    %4278 = vmatprep.subr.bf16.mxu0 0
    %4279 = vmatpush1.bf16.msra.mxu0 %v3232
    %4280 = vmatprep.subr.bf16.mxu0 0
    %4281 = vmatpush1.bf16.msra.mxu0 %v3233
    %4282 = vmatprep.subr.bf16.mxu0 0
    %4283 = vmatpush1.bf16.msra.mxu0 %v3234
    %4284 = vmatprep.subr.bf16.mxu0 0
    %4285 = vmatpush1.bf16.msra.mxu0 %v3235
    %4286 = vmatprep.subr.bf16.mxu0 0
    %4287 = vmatpush1.bf16.msra.mxu0 %v3236
    %4288 = vmatprep.subr.bf16.mxu0 0
    %4289 = vmatpush1.bf16.msra.mxu0 %v3237
    %4290 = vmatprep.subr.bf16.mxu0 0
    %4291 = vmatpush1.bf16.msra.mxu0 %v3238
    %4292 = vmatprep.subr.bf16.mxu0 0
    %4293 = vmatpush1.bf16.msra.mxu0 %v3239
    %4294 = vmatprep.subr.bf16.mxu0 0
    %4295 = vmatpush1.bf16.msra.mxu0 %v3240
    %4296 = vmatprep.subr.bf16.mxu0 0
    %4297 = vmatpush1.bf16.msra.mxu0 %v3241
    %4298 = vmatprep.mubr.bf16.mxu0 %v1032
    %4299 = vmatmul.mubr.bf16.gmra.mrb[0].mxu0 %v1018
    %v4300 = vpop.f32.mrb[0].mxu0
    %v4301 = vadd.f32 %v4261, %v4300
    %v4302 = vpop.f32.mrb[0].mxu0
    %v4303 = vpop.f32.mrb[0].mxu0
    %v4304 = vpop.f32.mrb[0].mxu0
    %4305 = vdwg.mxu0
    %4306 = vmatprep.subr.bf16.mxu0 0
    %4307 = vmatpush1.bf16.msra.mxu0 %v3242
    %4308 = vmatprep.subr.bf16.mxu0 0
    %4309 = vmatpush1.bf16.msra.mxu0 %v3243
    %4310 = vmatprep.subr.bf16.mxu0 0
    %4311 = vmatpush1.bf16.msra.mxu0 %v3244
    %4312 = vmatprep.subr.bf16.mxu0 0
    %4313 = vmatpush1.bf16.msra.mxu0 %v3245
    %4314 = vmatprep.subr.bf16.mxu0 0
    %4315 = vmatpush1.bf16.msra.mxu0 %v3246
    %4316 = vmatprep.subr.bf16.mxu0 0
    %4317 = vmatpush1.bf16.msra.mxu0 %v3247
    %4318 = vmatprep.subr.bf16.mxu0 0
    %4319 = vmatpush1.bf16.msra.mxu0 %v3248
    %4320 = vmatprep.subr.bf16.mxu0 0
    %4321 = vmatpush1.bf16.msra.mxu0 %v3249
    %4322 = vmatprep.subr.bf16.mxu0 0
    %4323 = vmatpush1.bf16.msra.mxu0 %v3250
    %4324 = vmatprep.subr.bf16.mxu0 0
    %4325 = vmatpush1.bf16.msra.mxu0 %v3251
    %4326 = vmatprep.subr.bf16.mxu0 0
    %4327 = vmatpush1.bf16.msra.mxu0 %v3252
    %4328 = vmatprep.subr.bf16.mxu0 0
    %4329 = vmatpush1.bf16.msra.mxu0 %v3253
    %4330 = vmatprep.subr.bf16.mxu0 0
    %4331 = vmatpush1.bf16.msra.mxu0 %v3254
    %4332 = vmatprep.subr.bf16.mxu0 0
    %4333 = vmatpush1.bf16.msra.mxu0 %v3255
    %4334 = vmatprep.subr.bf16.mxu0 0
    %4335 = vmatpush1.bf16.msra.mxu0 %v3256
    %4336 = vmatprep.subr.bf16.mxu0 0
    %4337 = vmatpush1.bf16.msra.mxu0 %v3257
    %4338 = vmatprep.mubr.bf16.mxu0 %v1036
    %4339 = vmatmul.mubr.bf16.gmra.mrb[0].mxu0 %v1034
    %v4340 = vpop.f32.mrb[0].mxu0
    %v4341 = vadd.f32 %v4301, %v4340
    %v4342 = vpop.f32.mrb[0].mxu0
    %v4343 = vpop.f32.mrb[0].mxu0
    %v4344 = vpop.f32.mrb[0].mxu0
    %4345 = vdwg.mxu0
    %4346 = vmatprep.subr.bf16.mxu0 0
    %4347 = vmatpush1.bf16.msra.mxu0 %v3258
    %4348 = vmatprep.subr.bf16.mxu0 0
    %4349 = vmatpush1.bf16.msra.mxu0 %v3259
    %4350 = vmatprep.subr.bf16.mxu0 0
    %4351 = vmatpush1.bf16.msra.mxu0 %v3260
    %4352 = vmatprep.subr.bf16.mxu0 0
    %4353 = vmatpush1.bf16.msra.mxu0 %v3261
    %4354 = vmatprep.subr.bf16.mxu0 0
    %4355 = vmatpush1.bf16.msra.mxu0 %v3262
    %4356 = vmatprep.subr.bf16.mxu0 0
    %4357 = vmatpush1.bf16.msra.mxu0 %v3263
    %4358 = vmatprep.subr.bf16.mxu0 0
    %4359 = vmatpush1.bf16.msra.mxu0 %v3264
    %4360 = vmatprep.subr.bf16.mxu0 0
    %4361 = vmatpush1.bf16.msra.mxu0 %v3265
    %4362 = vmatprep.subr.bf16.mxu0 0
    %4363 = vmatpush1.bf16.msra.mxu0 %v3266
    %4364 = vmatprep.subr.bf16.mxu0 0
    %4365 = vmatpush1.bf16.msra.mxu0 %v3267
    %4366 = vmatprep.subr.bf16.mxu0 0
    %4367 = vmatpush1.bf16.msra.mxu0 %v3268
    %4368 = vmatprep.subr.bf16.mxu0 0
    %4369 = vmatpush1.bf16.msra.mxu0 %v3269
    %4370 = vmatprep.subr.bf16.mxu0 0
    %4371 = vmatpush1.bf16.msra.mxu0 %v3270
    %4372 = vmatprep.subr.bf16.mxu0 0
    %4373 = vmatpush1.bf16.msra.mxu0 %v3271
    %4374 = vmatprep.subr.bf16.mxu0 0
    %4375 = vmatpush1.bf16.msra.mxu0 %v3272
    %4376 = vmatprep.subr.bf16.mxu0 0
    %4377 = vmatpush1.bf16.msra.mxu0 %v3273
    %4378 = vmatprep.mubr.bf16.mxu0 %v1074
    %4379 = vmatmul.mubr.bf16.gmra.mrb[0].mxu0 %v1060
    %v4380 = vpop.f32.mrb[0].mxu0
    %v4381 = vadd.f32 %v4341, %v4380
    %v4382 = vpop.f32.mrb[0].mxu0
    %v4383 = vpop.f32.mrb[0].mxu0
    %v4384 = vpop.f32.mrb[0].mxu0
    %4385 = vdwg.mxu0
    %4386 = vmatprep.subr.bf16.mxu0 0
    %4387 = vmatpush1.bf16.msra.mxu0 %v3274
    %4388 = vmatprep.subr.bf16.mxu0 0
    %4389 = vmatpush1.bf16.msra.mxu0 %v3275
    %4390 = vmatprep.subr.bf16.mxu0 0
    %4391 = vmatpush1.bf16.msra.mxu0 %v3276
    %4392 = vmatprep.subr.bf16.mxu0 0
    %4393 = vmatpush1.bf16.msra.mxu0 %v3277
    %4394 = vmatprep.subr.bf16.mxu0 0
    %4395 = vmatpush1.bf16.msra.mxu0 %v3278
    %4396 = vmatprep.subr.bf16.mxu0 0
    %4397 = vmatpush1.bf16.msra.mxu0 %v3279
    %4398 = vmatprep.subr.bf16.mxu0 0
    %4399 = vmatpush1.bf16.msra.mxu0 %v3280
    %4400 = vmatprep.subr.bf16.mxu0 0
    %4401 = vmatpush1.bf16.msra.mxu0 %v3281
    %4402 = vmatprep.subr.bf16.mxu0 0
    %4403 = vmatpush1.bf16.msra.mxu0 %v3282
    %4404 = vmatprep.subr.bf16.mxu0 0
    %4405 = vmatpush1.bf16.msra.mxu0 %v3283
    %4406 = vmatprep.subr.bf16.mxu0 0
    %4407 = vmatpush1.bf16.msra.mxu0 %v3284
    %4408 = vmatprep.subr.bf16.mxu0 0
    %4409 = vmatpush1.bf16.msra.mxu0 %v3285
    %4410 = vmatprep.subr.bf16.mxu0 0
    %4411 = vmatpush1.bf16.msra.mxu0 %v3286
    %4412 = vmatprep.subr.bf16.mxu0 0
    %4413 = vmatpush1.bf16.msra.mxu0 %v3287
    %4414 = vmatprep.subr.bf16.mxu0 0
    %4415 = vmatpush1.bf16.msra.mxu0 %v3288
    %4416 = vmatprep.subr.bf16.mxu0 0
    %4417 = vmatpush1.bf16.msra.mxu0 %v3289
    %4418 = vmatprep.mubr.bf16.mxu0 %v1084
    %4419 = vmatmul.mubr.bf16.gmra.mrb[0].mxu0 %v1082
    %v4420 = vpop.f32.mrb[0].mxu0
    %v4421 = vadd.f32 %v4381, %v4420
    %v4422 = vpop.f32.mrb[0].mxu0
    %v4423 = vpop.f32.mrb[0].mxu0
    %v4424 = vpop.f32.mrb[0].mxu0
    %4425 = vdwg.mxu0
    %4426 = vmatprep.subr.bf16.mxu0 0
    %4427 = vmatpush1.bf16.msra.mxu0 %v3290
    %4428 = vmatprep.subr.bf16.mxu0 0
    %4429 = vmatpush1.bf16.msra.mxu0 %v3291
    %4430 = vmatprep.subr.bf16.mxu0 0
    %4431 = vmatpush1.bf16.msra.mxu0 %v3292
    %4432 = vmatprep.subr.bf16.mxu0 0
    %4433 = vmatpush1.bf16.msra.mxu0 %v3293
    %4434 = vmatprep.subr.bf16.mxu0 0
    %4435 = vmatpush1.bf16.msra.mxu0 %v3294
    %4436 = vmatprep.subr.bf16.mxu0 0
    %4437 = vmatpush1.bf16.msra.mxu0 %v3295
    %4438 = vmatprep.subr.bf16.mxu0 0
    %4439 = vmatpush1.bf16.msra.mxu0 %v3296
    %4440 = vmatprep.subr.bf16.mxu0 0
    %4441 = vmatpush1.bf16.msra.mxu0 %v3297
    %4442 = vmatprep.subr.bf16.mxu0 0
    %4443 = vmatpush1.bf16.msra.mxu0 %v3298
    %4444 = vmatprep.subr.bf16.mxu0 0
    %4445 = vmatpush1.bf16.msra.mxu0 %v3299
    %4446 = vmatprep.subr.bf16.mxu0 0
    %4447 = vmatpush1.bf16.msra.mxu0 %v3300
    %4448 = vmatprep.subr.bf16.mxu0 0
    %4449 = vmatpush1.bf16.msra.mxu0 %v3301
    %4450 = vmatprep.subr.bf16.mxu0 0
    %4451 = vmatpush1.bf16.msra.mxu0 %v3302
    %4452 = vmatprep.subr.bf16.mxu0 0
    %4453 = vmatpush1.bf16.msra.mxu0 %v3303
    %4454 = vmatprep.subr.bf16.mxu0 0
    %4455 = vmatpush1.bf16.msra.mxu0 %v3304
    %4456 = vmatprep.subr.bf16.mxu0 0
    %4457 = vmatpush1.bf16.msra.mxu0 %v3305
    %4458 = vmatprep.mubr.bf16.mxu0 %v1081
    %4459 = vmatmul.mubr.bf16.gmra.mrb[0].mxu0 %v1067
    %v4460 = vpop.f32.mrb[0].mxu0
    %v4461 = vadd.f32 %v4421, %v4460
    %v4462 = vpop.f32.mrb[0].mxu0
    %v4463 = vpop.f32.mrb[0].mxu0
    %v4464 = vpop.f32.mrb[0].mxu0
    %4465 = vdwg.mxu0
    %4466 = vmatprep.subr.bf16.mxu0 0
    %4467 = vmatpush1.bf16.msra.mxu0 %v3306
    %4468 = vmatprep.subr.bf16.mxu0 0
    %4469 = vmatpush1.bf16.msra.mxu0 %v3307
    %4470 = vmatprep.subr.bf16.mxu0 0
    %4471 = vmatpush1.bf16.msra.mxu0 %v3308
    %4472 = vmatprep.subr.bf16.mxu0 0
    %4473 = vmatpush1.bf16.msra.mxu0 %v3309
    %4474 = vmatprep.subr.bf16.mxu0 0
    %4475 = vmatpush1.bf16.msra.mxu0 %v3310
    %4476 = vmatprep.subr.bf16.mxu0 0
    %4477 = vmatpush1.bf16.msra.mxu0 %v3311
    %4478 = vmatprep.subr.bf16.mxu0 0
    %4479 = vmatpush1.bf16.msra.mxu0 %v3312
    %4480 = vmatprep.subr.bf16.mxu0 0
    %4481 = vmatpush1.bf16.msra.mxu0 %v3313
    %4482 = vmatprep.subr.bf16.mxu0 0
    %4483 = vmatpush1.bf16.msra.mxu0 %v3314
    %4484 = vmatprep.subr.bf16.mxu0 0
    %4485 = vmatpush1.bf16.msra.mxu0 %v3315
    %4486 = vmatprep.subr.bf16.mxu0 0
    %4487 = vmatpush1.bf16.msra.mxu0 %v3316
    %4488 = vmatprep.subr.bf16.mxu0 0
    %4489 = vmatpush1.bf16.msra.mxu0 %v3317
    %4490 = vmatprep.subr.bf16.mxu0 0
    %4491 = vmatpush1.bf16.msra.mxu0 %v3318
    %4492 = vmatprep.subr.bf16.mxu0 0
    %4493 = vmatpush1.bf16.msra.mxu0 %v3319
    %4494 = vmatprep.subr.bf16.mxu0 0
    %4495 = vmatpush1.bf16.msra.mxu0 %v3320
    %4496 = vmatprep.subr.bf16.mxu0 0
    %4497 = vmatpush1.bf16.msra.mxu0 %v3321
    %4498 = vmatprep.mubr.bf16.mxu0 %v1085
    %4499 = vmatmul.mubr.bf16.gmra.mrb[0].mxu0 %v1083
    %v4500 = vpop.f32.mrb[0].mxu0
    %v4501 = vadd.f32 %v4461, %v4500
    %v4502 = vpop.f32.mrb[0].mxu0
    %v4503 = vpop.f32.mrb[0].mxu0
    %v4504 = vpop.f32.mrb[0].mxu0
    %4505 = vdwg.mxu0
    %4506 = vmatprep.subr.bf16.mxu0 0
    %4507 = vmatpush1.bf16.msra.mxu0 %v3322
    %4508 = vmatprep.subr.bf16.mxu0 0
    %4509 = vmatpush1.bf16.msra.mxu0 %v3323
    %4510 = vmatprep.subr.bf16.mxu0 0
    %4511 = vmatpush1.bf16.msra.mxu0 %v3324
    %4512 = vmatprep.subr.bf16.mxu0 0
    %4513 = vmatpush1.bf16.msra.mxu0 %v3325
    %4514 = vmatprep.subr.bf16.mxu0 0
    %4515 = vmatpush1.bf16.msra.mxu0 %v3326
    %4516 = vmatprep.subr.bf16.mxu0 0
    %4517 = vmatpush1.bf16.msra.mxu0 %v3327
    %4518 = vmatprep.subr.bf16.mxu0 0
    %4519 = vmatpush1.bf16.msra.mxu0 %v3328
    %4520 = vmatprep.subr.bf16.mxu0 0
    %4521 = vmatpush1.bf16.msra.mxu0 %v3329
    %4522 = vmatprep.subr.bf16.mxu0 0
    %4523 = vmatpush1.bf16.msra.mxu0 %v3330
    %4524 = vmatprep.subr.bf16.mxu0 0
    %4525 = vmatpush1.bf16.msra.mxu0 %v3331
    %4526 = vmatprep.subr.bf16.mxu0 0
    %4527 = vmatpush1.bf16.msra.mxu0 %v3332
    %4528 = vmatprep.subr.bf16.mxu0 0
    %4529 = vmatpush1.bf16.msra.mxu0 %v3333
    %4530 = vmatprep.subr.bf16.mxu0 0
    %4531 = vmatpush1.bf16.msra.mxu0 %v3334
    %4532 = vmatprep.subr.bf16.mxu0 0
    %4533 = vmatpush1.bf16.msra.mxu0 %v3335
    %4534 = vmatprep.subr.bf16.mxu0 0
    %4535 = vmatpush1.bf16.msra.mxu0 %v3336
    %4536 = vmatprep.subr.bf16.mxu0 0
    %4537 = vmatpush1.bf16.msra.mxu0 %v3337
    %4538 = vmatprep.mubr.bf16.mxu0 %v1123
    %4539 = vmatmul.mubr.bf16.gmra.mrb[0].mxu0 %v1109
    %v4540 = vpop.f32.mrb[0].mxu0
    %v4541 = vadd.f32 %v4501, %v4540
    %v4542 = vpop.f32.mrb[0].mxu0
    %v4543 = vpop.f32.mrb[0].mxu0
    %v4544 = vpop.f32.mrb[0].mxu0
    %4545 = vdwg.mxu0
    %4546 = vmatprep.subr.bf16.mxu0 0
    %4547 = vmatpush1.bf16.msra.mxu0 %v3338
    %4548 = vmatprep.subr.bf16.mxu0 0
    %4549 = vmatpush1.bf16.msra.mxu0 %v3339
    %4550 = vmatprep.subr.bf16.mxu0 0
    %4551 = vmatpush1.bf16.msra.mxu0 %v3340
    %4552 = vmatprep.subr.bf16.mxu0 0
    %4553 = vmatpush1.bf16.msra.mxu0 %v3341
    %4554 = vmatprep.subr.bf16.mxu0 0
    %4555 = vmatpush1.bf16.msra.mxu0 %v3342
    %4556 = vmatprep.subr.bf16.mxu0 0
    %4557 = vmatpush1.bf16.msra.mxu0 %v3343
    %4558 = vmatprep.subr.bf16.mxu0 0
    %4559 = vmatpush1.bf16.msra.mxu0 %v3344
    %4560 = vmatprep.subr.bf16.mxu0 0
    %4561 = vmatpush1.bf16.msra.mxu0 %v3345
    %4562 = vmatprep.subr.bf16.mxu0 0
    %4563 = vmatpush1.bf16.msra.mxu0 %v3346
    %4564 = vmatprep.subr.bf16.mxu0 0
    %4565 = vmatpush1.bf16.msra.mxu0 %v3347
    %4566 = vmatprep.subr.bf16.mxu0 0
    %4567 = vmatpush1.bf16.msra.mxu0 %v3348
    %4568 = vmatprep.subr.bf16.mxu0 0
    %4569 = vmatpush1.bf16.msra.mxu0 %v3349
    %4570 = vmatprep.subr.bf16.mxu0 0
    %4571 = vmatpush1.bf16.msra.mxu0 %v3350
    %4572 = vmatprep.subr.bf16.mxu0 0
    %4573 = vmatpush1.bf16.msra.mxu0 %v3351
    %4574 = vmatprep.subr.bf16.mxu0 0
    %4575 = vmatpush1.bf16.msra.mxu0 %v3352
    %4576 = vmatprep.subr.bf16.mxu0 0
    %4577 = vmatpush1.bf16.msra.mxu0 %v3353
    %4578 = vmatprep.mubr.bf16.mxu0 %v1133
    %4579 = vmatmul.mubr.bf16.gmra.mrb[0].mxu0 %v1131
    %v4580 = vpop.f32.mrb[0].mxu0
    %v4581 = vadd.f32 %v4541, %v4580
    %v4582 = vpop.f32.mrb[0].mxu0
    %v4583 = vpop.f32.mrb[0].mxu0
    %v4584 = vpop.f32.mrb[0].mxu0
    %4585 = vdwg.mxu0
    %4586 = vmatprep.subr.bf16.mxu0 0
    %4587 = vmatpush1.bf16.msra.mxu0 %v3354
    %4588 = vmatprep.subr.bf16.mxu0 0
    %4589 = vmatpush1.bf16.msra.mxu0 %v3355
    %4590 = vmatprep.subr.bf16.mxu0 0
    %4591 = vmatpush1.bf16.msra.mxu0 %v3356
    %4592 = vmatprep.subr.bf16.mxu0 0
    %4593 = vmatpush1.bf16.msra.mxu0 %v3357
    %4594 = vmatprep.subr.bf16.mxu0 0
    %4595 = vmatpush1.bf16.msra.mxu0 %v3358
    %4596 = vmatprep.subr.bf16.mxu0 0
    %4597 = vmatpush1.bf16.msra.mxu0 %v3359
    %4598 = vmatprep.subr.bf16.mxu0 0
    %4599 = vmatpush1.bf16.msra.mxu0 %v3360
    %4600 = vmatprep.subr.bf16.mxu0 0
    %4601 = vmatpush1.bf16.msra.mxu0 %v3361
    %4602 = vmatprep.subr.bf16.mxu0 0
    %4603 = vmatpush1.bf16.msra.mxu0 %v3362
    %4604 = vmatprep.subr.bf16.mxu0 0
    %4605 = vmatpush1.bf16.msra.mxu0 %v3363
    %4606 = vmatprep.subr.bf16.mxu0 0
    %4607 = vmatpush1.bf16.msra.mxu0 %v3364
    %4608 = vmatprep.subr.bf16.mxu0 0
    %4609 = vmatpush1.bf16.msra.mxu0 %v3365
    %4610 = vmatprep.subr.bf16.mxu0 0
    %4611 = vmatpush1.bf16.msra.mxu0 %v3366
    %4612 = vmatprep.subr.bf16.mxu0 0
    %4613 = vmatpush1.bf16.msra.mxu0 %v3367
    %4614 = vmatprep.subr.bf16.mxu0 0
    %4615 = vmatpush1.bf16.msra.mxu0 %v3368
    %4616 = vmatprep.subr.bf16.mxu0 0
    %4617 = vmatpush1.bf16.msra.mxu0 %v3369
    %4618 = vmatprep.mubr.bf16.mxu0 %v1130
    %4619 = vmatmul.mubr.bf16.gmra.mrb[0].mxu0 %v1116
    %v4620 = vpop.f32.mrb[0].mxu0
    %v4621 = vadd.f32 %v4581, %v4620
    %v4622 = vpop.f32.mrb[0].mxu0
    %v4623 = vpop.f32.mrb[0].mxu0
    %v4624 = vpop.f32.mrb[0].mxu0
    %4625 = vdwg.mxu0
    %4626 = vmatprep.subr.bf16.mxu0 0
    %4627 = vmatpush1.bf16.msra.mxu0 %v3370
    %4628 = vmatprep.subr.bf16.mxu0 0
    %4629 = vmatpush1.bf16.msra.mxu0 %v3371
    %4630 = vmatprep.subr.bf16.mxu0 0
    %4631 = vmatpush1.bf16.msra.mxu0 %v3372
    %4632 = vmatprep.subr.bf16.mxu0 0
    %4633 = vmatpush1.bf16.msra.mxu0 %v3373
    %4634 = vmatprep.subr.bf16.mxu0 0
    %4635 = vmatpush1.bf16.msra.mxu0 %v3374
    %4636 = vmatprep.subr.bf16.mxu0 0
    %4637 = vmatpush1.bf16.msra.mxu0 %v3375
    %4638 = vmatprep.subr.bf16.mxu0 0
    %4639 = vmatpush1.bf16.msra.mxu0 %v3376
    %4640 = vmatprep.subr.bf16.mxu0 0
    %4641 = vmatpush1.bf16.msra.mxu0 %v3377
    %4642 = vmatprep.subr.bf16.mxu0 0
    %4643 = vmatpush1.bf16.msra.mxu0 %v3378
    %4644 = vmatprep.subr.bf16.mxu0 0
    %4645 = vmatpush1.bf16.msra.mxu0 %v3379
    %4646 = vmatprep.subr.bf16.mxu0 0
    %4647 = vmatpush1.bf16.msra.mxu0 %v3380
    %4648 = vmatprep.subr.bf16.mxu0 0
    %4649 = vmatpush1.bf16.msra.mxu0 %v3381
    %4650 = vmatprep.subr.bf16.mxu0 0
    %4651 = vmatpush1.bf16.msra.mxu0 %v3382
    %4652 = vmatprep.subr.bf16.mxu0 0
    %4653 = vmatpush1.bf16.msra.mxu0 %v3383
    %4654 = vmatprep.subr.bf16.mxu0 0
    %4655 = vmatpush1.bf16.msra.mxu0 %v3384
    %4656 = vmatprep.subr.bf16.mxu0 0
    %4657 = vmatpush1.bf16.msra.mxu0 %v3385
    %4658 = vmatprep.mubr.bf16.mxu0 %v1134
    %4659 = vmatmul.mubr.bf16.gmra.mrb[0].mxu0 %v1132
    %v4660 = vpop.f32.mrb[0].mxu0
    %v4661 = vadd.f32 %v4621, %v4660
    %v4662 = vpop.f32.mrb[0].mxu0
    %v4663 = vpop.f32.mrb[0].mxu0
    %v4664 = vpop.f32.mrb[0].mxu0
    %4665 = vdwg.mxu0
    %4666 = vmatprep.subr.bf16.mxu0 0
    %4667 = vmatpush1.bf16.msra.mxu0 %v3386
    %4668 = vmatprep.subr.bf16.mxu0 0
    %4669 = vmatpush1.bf16.msra.mxu0 %v3387
    %4670 = vmatprep.subr.bf16.mxu0 0
    %4671 = vmatpush1.bf16.msra.mxu0 %v3388
    %4672 = vmatprep.subr.bf16.mxu0 0
    %4673 = vmatpush1.bf16.msra.mxu0 %v3389
    %4674 = vmatprep.subr.bf16.mxu0 0
    %4675 = vmatpush1.bf16.msra.mxu0 %v3390
    %4676 = vmatprep.subr.bf16.mxu0 0
    %4677 = vmatpush1.bf16.msra.mxu0 %v3391
    %4678 = vmatprep.subr.bf16.mxu0 0
    %4679 = vmatpush1.bf16.msra.mxu0 %v3392
    %4680 = vmatprep.subr.bf16.mxu0 0
    %4681 = vmatpush1.bf16.msra.mxu0 %v3393
    %4682 = vmatprep.subr.bf16.mxu0 0
    %4683 = vmatpush1.bf16.msra.mxu0 %v3394
    %4684 = vmatprep.subr.bf16.mxu0 0
    %4685 = vmatpush1.bf16.msra.mxu0 %v3395
    %4686 = vmatprep.subr.bf16.mxu0 0
    %4687 = vmatpush1.bf16.msra.mxu0 %v3396
    %4688 = vmatprep.subr.bf16.mxu0 0
    %4689 = vmatpush1.bf16.msra.mxu0 %v3397
    %4690 = vmatprep.subr.bf16.mxu0 0
    %4691 = vmatpush1.bf16.msra.mxu0 %v3398
    %4692 = vmatprep.subr.bf16.mxu0 0
    %4693 = vmatpush1.bf16.msra.mxu0 %v3399
    %4694 = vmatprep.subr.bf16.mxu0 0
    %4695 = vmatpush1.bf16.msra.mxu0 %v3400
    %4696 = vmatprep.subr.bf16.mxu0 0
    %4697 = vmatpush1.bf16.msra.mxu0 %v3401
    %4698 = vmatprep.mubr.bf16.mxu0 %v1172
    %4699 = vmatmul.mubr.bf16.gmra.mrb[0].mxu0 %v1158
    %v4700 = vpop.f32.mrb[0].mxu0
    %v4701 = vadd.f32 %v4661, %v4700
    %v4702 = vpop.f32.mrb[0].mxu0
    %v4703 = vpop.f32.mrb[0].mxu0
    %v4704 = vpop.f32.mrb[0].mxu0
    %4705 = vdwg.mxu0
    %4706 = vmatprep.subr.bf16.mxu0 0
    %4707 = vmatpush1.bf16.msra.mxu0 %v3402
    %4708 = vmatprep.subr.bf16.mxu0 0
    %4709 = vmatpush1.bf16.msra.mxu0 %v3403
    %4710 = vmatprep.subr.bf16.mxu0 0
    %4711 = vmatpush1.bf16.msra.mxu0 %v3404
    %4712 = vmatprep.subr.bf16.mxu0 0
    %4713 = vmatpush1.bf16.msra.mxu0 %v3405
    %4714 = vmatprep.subr.bf16.mxu0 0
    %4715 = vmatpush1.bf16.msra.mxu0 %v3406
    %4716 = vmatprep.subr.bf16.mxu0 0
    %4717 = vmatpush1.bf16.msra.mxu0 %v3407
    %4718 = vmatprep.subr.bf16.mxu0 0
    %4719 = vmatpush1.bf16.msra.mxu0 %v3408
    %4720 = vmatprep.subr.bf16.mxu0 0
    %4721 = vmatpush1.bf16.msra.mxu0 %v3409
    %4722 = vmatprep.subr.bf16.mxu0 0
    %4723 = vmatpush1.bf16.msra.mxu0 %v3410
    %4724 = vmatprep.subr.bf16.mxu0 0
    %4725 = vmatpush1.bf16.msra.mxu0 %v3411
    %4726 = vmatprep.subr.bf16.mxu0 0
    %4727 = vmatpush1.bf16.msra.mxu0 %v3412
    %4728 = vmatprep.subr.bf16.mxu0 0
    %4729 = vmatpush1.bf16.msra.mxu0 %v3413
    %4730 = vmatprep.subr.bf16.mxu0 0
    %4731 = vmatpush1.bf16.msra.mxu0 %v3414
    %4732 = vmatprep.subr.bf16.mxu0 0
    %4733 = vmatpush1.bf16.msra.mxu0 %v3415
    %4734 = vmatprep.subr.bf16.mxu0 0
    %4735 = vmatpush1.bf16.msra.mxu0 %v3416
    %4736 = vmatprep.subr.bf16.mxu0 0
    %4737 = vmatpush1.bf16.msra.mxu0 %v3417
    %4738 = vmatprep.mubr.bf16.mxu0 %v1182
    %4739 = vmatmul.mubr.bf16.gmra.mrb[0].mxu0 %v1180
    %v4740 = vpop.f32.mrb[0].mxu0
    %v4741 = vadd.f32 %v4701, %v4740
    %v4742 = vpop.f32.mrb[0].mxu0
    %v4743 = vpop.f32.mrb[0].mxu0
    %v4744 = vpop.f32.mrb[0].mxu0
    %4745 = vdwg.mxu0
    %4746 = vmatprep.subr.bf16.mxu0 0
    %4747 = vmatpush1.bf16.msra.mxu0 %v3418
    %4748 = vmatprep.subr.bf16.mxu0 0
    %4749 = vmatpush1.bf16.msra.mxu0 %v3419
    %4750 = vmatprep.subr.bf16.mxu0 0
    %4751 = vmatpush1.bf16.msra.mxu0 %v3420
    %4752 = vmatprep.subr.bf16.mxu0 0
    %4753 = vmatpush1.bf16.msra.mxu0 %v3421
    %4754 = vmatprep.subr.bf16.mxu0 0
    %4755 = vmatpush1.bf16.msra.mxu0 %v3422
    %4756 = vmatprep.subr.bf16.mxu0 0
    %4757 = vmatpush1.bf16.msra.mxu0 %v3423
    %4758 = vmatprep.subr.bf16.mxu0 0
    %4759 = vmatpush1.bf16.msra.mxu0 %v3424
    %4760 = vmatprep.subr.bf16.mxu0 0
    %4761 = vmatpush1.bf16.msra.mxu0 %v3425
    %4762 = vmatprep.subr.bf16.mxu0 0
    %4763 = vmatpush1.bf16.msra.mxu0 %v3426
    %4764 = vmatprep.subr.bf16.mxu0 0
    %4765 = vmatpush1.bf16.msra.mxu0 %v3427
    %4766 = vmatprep.subr.bf16.mxu0 0
    %4767 = vmatpush1.bf16.msra.mxu0 %v3428
    %4768 = vmatprep.subr.bf16.mxu0 0
    %4769 = vmatpush1.bf16.msra.mxu0 %v3429
    %4770 = vmatprep.subr.bf16.mxu0 0
    %4771 = vmatpush1.bf16.msra.mxu0 %v3430
    %4772 = vmatprep.subr.bf16.mxu0 0
    %4773 = vmatpush1.bf16.msra.mxu0 %v3431
    %4774 = vmatprep.subr.bf16.mxu0 0
    %4775 = vmatpush1.bf16.msra.mxu0 %v3432
    %4776 = vmatprep.subr.bf16.mxu0 0
    %4777 = vmatpush1.bf16.msra.mxu0 %v3433
    %4778 = vmatprep.mubr.bf16.mxu0 %v1179
    %4779 = vmatmul.mubr.bf16.gmra.mrb[0].mxu0 %v1165
    %v4780 = vpop.f32.mrb[0].mxu0
    %v4781 = vadd.f32 %v4741, %v4780
    %v4782 = vpop.f32.mrb[0].mxu0
    %v4783 = vpop.f32.mrb[0].mxu0
    %v4784 = vpop.f32.mrb[0].mxu0
    %4785 = vdwg.mxu0
    %4786 = vmatprep.subr.bf16.mxu0 0
    %4787 = vmatpush1.bf16.msra.mxu0 %v3434
    %4788 = vmatprep.subr.bf16.mxu0 0
    %4789 = vmatpush1.bf16.msra.mxu0 %v3435
    %4790 = vmatprep.subr.bf16.mxu0 0
    %4791 = vmatpush1.bf16.msra.mxu0 %v3436
    %4792 = vmatprep.subr.bf16.mxu0 0
    %4793 = vmatpush1.bf16.msra.mxu0 %v3437
    %4794 = vmatprep.subr.bf16.mxu0 0
    %4795 = vmatpush1.bf16.msra.mxu0 %v3438
    %4796 = vmatprep.subr.bf16.mxu0 0
    %4797 = vmatpush1.bf16.msra.mxu0 %v3439
    %4798 = vmatprep.subr.bf16.mxu0 0
    %4799 = vmatpush1.bf16.msra.mxu0 %v3440
    %4800 = vmatprep.subr.bf16.mxu0 0
    %4801 = vmatpush1.bf16.msra.mxu0 %v3441
    %4802 = vmatprep.subr.bf16.mxu0 0
    %4803 = vmatpush1.bf16.msra.mxu0 %v3442
    %4804 = vmatprep.subr.bf16.mxu0 0
    %4805 = vmatpush1.bf16.msra.mxu0 %v3443
    %4806 = vmatprep.subr.bf16.mxu0 0
    %4807 = vmatpush1.bf16.msra.mxu0 %v3444
    %4808 = vmatprep.subr.bf16.mxu0 0
    %4809 = vmatpush1.bf16.msra.mxu0 %v3445
    %4810 = vmatprep.subr.bf16.mxu0 0
    %4811 = vmatpush1.bf16.msra.mxu0 %v3446
    %4812 = vmatprep.subr.bf16.mxu0 0
    %4813 = vmatpush1.bf16.msra.mxu0 %v3447
    %4814 = vmatprep.subr.bf16.mxu0 0
    %4815 = vmatpush1.bf16.msra.mxu0 %v3448
    %4816 = vmatprep.subr.bf16.mxu0 0
    %4817 = vmatpush1.bf16.msra.mxu0 %v3449
    %4818 = vmatprep.mubr.bf16.mxu0 %v1183
    %4819 = vmatmul.mubr.bf16.gmra.mrb[0].mxu0 %v1181
    %v4820 = vpop.f32.mrb[0].mxu0
    %v4821 = vadd.f32 %v4781, %v4820
    %v4822 = vpop.f32.mrb[0].mxu0
    %v4823 = vpop.f32.mrb[0].mxu0
    %v4824 = vpop.f32.mrb[0].mxu0
    %4825 = vdwg.mxu0
    %4826 = vmatprep.subr.bf16.mxu0 0
    %4827 = vmatpush1.bf16.msra.mxu0 %v3450
    %4828 = vmatprep.subr.bf16.mxu0 0
    %4829 = vmatpush1.bf16.msra.mxu0 %v3451
    %4830 = vmatprep.subr.bf16.mxu0 0
    %4831 = vmatpush1.bf16.msra.mxu0 %v3452
    %4832 = vmatprep.subr.bf16.mxu0 0
    %4833 = vmatpush1.bf16.msra.mxu0 %v3453
    %4834 = vmatprep.subr.bf16.mxu0 0
    %4835 = vmatpush1.bf16.msra.mxu0 %v3454
    %4836 = vmatprep.subr.bf16.mxu0 0
    %4837 = vmatpush1.bf16.msra.mxu0 %v3455
    %4838 = vmatprep.subr.bf16.mxu0 0
    %4839 = vmatpush1.bf16.msra.mxu0 %v3456
    %4840 = vmatprep.subr.bf16.mxu0 0
    %4841 = vmatpush1.bf16.msra.mxu0 %v3457
    %4842 = vmatprep.subr.bf16.mxu0 0
    %4843 = vmatpush1.bf16.msra.mxu0 %v3458
    %4844 = vmatprep.subr.bf16.mxu0 0
    %4845 = vmatpush1.bf16.msra.mxu0 %v3459
    %4846 = vmatprep.subr.bf16.mxu0 0
    %4847 = vmatpush1.bf16.msra.mxu0 %v3460
    %4848 = vmatprep.subr.bf16.mxu0 0
    %4849 = vmatpush1.bf16.msra.mxu0 %v3461
    %4850 = vmatprep.subr.bf16.mxu0 0
    %4851 = vmatpush1.bf16.msra.mxu0 %v3462
    %4852 = vmatprep.subr.bf16.mxu0 0
    %4853 = vmatpush1.bf16.msra.mxu0 %v3463
    %4854 = vmatprep.subr.bf16.mxu0 0
    %4855 = vmatpush1.bf16.msra.mxu0 %v3464
    %4856 = vmatprep.subr.bf16.mxu0 0
    %4857 = vmatpush1.bf16.msra.mxu0 %v3465
    %4858 = vmatprep.mubr.bf16.mxu0 %v1221
    %4859 = vmatmul.mubr.bf16.gmra.mrb[0].mxu0 %v1207
    %v4860 = vpop.f32.mrb[0].mxu0
    %v4861 = vadd.f32 %v4821, %v4860
    %v4862 = vpop.f32.mrb[0].mxu0
    %v4863 = vpop.f32.mrb[0].mxu0
    %v4864 = vpop.f32.mrb[0].mxu0
    %4865 = vdwg.mxu0
    %4866 = vmatprep.subr.bf16.mxu0 0
    %4867 = vmatpush1.bf16.msra.mxu0 %v3466
    %4868 = vmatprep.subr.bf16.mxu0 0
    %4869 = vmatpush1.bf16.msra.mxu0 %v3467
    %4870 = vmatprep.subr.bf16.mxu0 0
    %4871 = vmatpush1.bf16.msra.mxu0 %v3468
    %4872 = vmatprep.subr.bf16.mxu0 0
    %4873 = vmatpush1.bf16.msra.mxu0 %v3469
    %4874 = vmatprep.subr.bf16.mxu0 0
    %4875 = vmatpush1.bf16.msra.mxu0 %v3470
    %4876 = vmatprep.subr.bf16.mxu0 0
    %4877 = vmatpush1.bf16.msra.mxu0 %v3471
    %4878 = vmatprep.subr.bf16.mxu0 0
    %4879 = vmatpush1.bf16.msra.mxu0 %v3472
    %4880 = vmatprep.subr.bf16.mxu0 0
    %4881 = vmatpush1.bf16.msra.mxu0 %v3473
    %4882 = vmatprep.subr.bf16.mxu0 0
    %4883 = vmatpush1.bf16.msra.mxu0 %v3474
    %4884 = vmatprep.subr.bf16.mxu0 0
    %4885 = vmatpush1.bf16.msra.mxu0 %v3475
    %4886 = vmatprep.subr.bf16.mxu0 0
    %4887 = vmatpush1.bf16.msra.mxu0 %v3476
    %4888 = vmatprep.subr.bf16.mxu0 0
    %4889 = vmatpush1.bf16.msra.mxu0 %v3477
    %4890 = vmatprep.subr.bf16.mxu0 0
    %4891 = vmatpush1.bf16.msra.mxu0 %v3478
    %4892 = vmatprep.subr.bf16.mxu0 0
    %4893 = vmatpush1.bf16.msra.mxu0 %v3479
    %4894 = vmatprep.subr.bf16.mxu0 0
    %4895 = vmatpush1.bf16.msra.mxu0 %v3480
    %4896 = vmatprep.subr.bf16.mxu0 0
    %4897 = vmatpush1.bf16.msra.mxu0 %v3481
    %4898 = vmatprep.mubr.bf16.mxu0 %v1231
    %4899 = vmatmul.mubr.bf16.gmra.mrb[0].mxu0 %v1229
    %v4900 = vpop.f32.mrb[0].mxu0
    %v4901 = vadd.f32 %v4861, %v4900
    %v4902 = vpop.f32.mrb[0].mxu0
    %v4903 = vpop.f32.mrb[0].mxu0
    %v4904 = vpop.f32.mrb[0].mxu0
    %4905 = vdwg.mxu0
    %4906 = vmatprep.subr.bf16.mxu0 0
    %4907 = vmatpush1.bf16.msra.mxu0 %v3482
    %4908 = vmatprep.subr.bf16.mxu0 0
    %4909 = vmatpush1.bf16.msra.mxu0 %v3483
    %4910 = vmatprep.subr.bf16.mxu0 0
    %4911 = vmatpush1.bf16.msra.mxu0 %v3484
    %4912 = vmatprep.subr.bf16.mxu0 0
    %4913 = vmatpush1.bf16.msra.mxu0 %v3485
    %4914 = vmatprep.subr.bf16.mxu0 0
    %4915 = vmatpush1.bf16.msra.mxu0 %v3486
    %4916 = vmatprep.subr.bf16.mxu0 0
    %4917 = vmatpush1.bf16.msra.mxu0 %v3487
    %4918 = vmatprep.subr.bf16.mxu0 0
    %4919 = vmatpush1.bf16.msra.mxu0 %v3488
    %4920 = vmatprep.subr.bf16.mxu0 0
    %4921 = vmatpush1.bf16.msra.mxu0 %v3489
    %4922 = vmatprep.subr.bf16.mxu0 0
    %4923 = vmatpush1.bf16.msra.mxu0 %v3490
    %4924 = vmatprep.subr.bf16.mxu0 0
    %4925 = vmatpush1.bf16.msra.mxu0 %v3491
    %4926 = vmatprep.subr.bf16.mxu0 0
    %4927 = vmatpush1.bf16.msra.mxu0 %v3492
    %4928 = vmatprep.subr.bf16.mxu0 0
    %4929 = vmatpush1.bf16.msra.mxu0 %v3493
    %4930 = vmatprep.subr.bf16.mxu0 0
    %4931 = vmatpush1.bf16.msra.mxu0 %v3494
    %4932 = vmatprep.subr.bf16.mxu0 0
    %4933 = vmatpush1.bf16.msra.mxu0 %v3495
    %4934 = vmatprep.subr.bf16.mxu0 0
    %4935 = vmatpush1.bf16.msra.mxu0 %v3496
    %4936 = vmatprep.subr.bf16.mxu0 0
    %4937 = vmatpush1.bf16.msra.mxu0 %v3497
    %4938 = vmatprep.mubr.bf16.mxu0 %v1228
    %4939 = vmatmul.mubr.bf16.gmra.mrb[0].mxu0 %v1214
    %v4940 = vpop.f32.mrb[0].mxu0
    %v4941 = vadd.f32 %v4901, %v4940
    %v4942 = vpop.f32.mrb[0].mxu0
    %v4943 = vpop.f32.mrb[0].mxu0
    %v4944 = vpop.f32.mrb[0].mxu0
    %4945 = vdwg.mxu0
    %4946 = vmatprep.subr.bf16.mxu0 0
    %4947 = vmatpush1.bf16.msra.mxu0 %v3498
    %4948 = vmatprep.subr.bf16.mxu0 0
    %4949 = vmatpush1.bf16.msra.mxu0 %v3499
    %4950 = vmatprep.subr.bf16.mxu0 0
    %4951 = vmatpush1.bf16.msra.mxu0 %v3500
    %4952 = vmatprep.subr.bf16.mxu0 0
    %4953 = vmatpush1.bf16.msra.mxu0 %v3501
    %4954 = vmatprep.subr.bf16.mxu0 0
    %4955 = vmatpush1.bf16.msra.mxu0 %v3502
    %4956 = vmatprep.subr.bf16.mxu0 0
    %4957 = vmatpush1.bf16.msra.mxu0 %v3503
    %4958 = vmatprep.subr.bf16.mxu0 0
    %4959 = vmatpush1.bf16.msra.mxu0 %v3504
    %4960 = vmatprep.subr.bf16.mxu0 0
    %4961 = vmatpush1.bf16.msra.mxu0 %v3505
    %4962 = vmatprep.subr.bf16.mxu0 0
    %4963 = vmatpush1.bf16.msra.mxu0 %v3506
    %4964 = vmatprep.subr.bf16.mxu0 0
    %4965 = vmatpush1.bf16.msra.mxu0 %v3507
    %4966 = vmatprep.subr.bf16.mxu0 0
    %4967 = vmatpush1.bf16.msra.mxu0 %v3508
    %4968 = vmatprep.subr.bf16.mxu0 0
    %4969 = vmatpush1.bf16.msra.mxu0 %v3509
    %4970 = vmatprep.subr.bf16.mxu0 0
    %4971 = vmatpush1.bf16.msra.mxu0 %v3510
    %4972 = vmatprep.subr.bf16.mxu0 0
    %4973 = vmatpush1.bf16.msra.mxu0 %v3511
    %4974 = vmatprep.subr.bf16.mxu0 0
    %4975 = vmatpush1.bf16.msra.mxu0 %v3512
    %4976 = vmatprep.subr.bf16.mxu0 0
    %4977 = vmatpush1.bf16.msra.mxu0 %v3513
    %4978 = vmatprep.mubr.bf16.mxu0 %v1232
    %4979 = vmatmul.mubr.bf16.gmra.mrb[0].mxu0 %v1230
    %v4980 = vpop.f32.mrb[0].mxu0
    %v4981 = vadd.f32 %v4941, %v4980
    %v4982 = vpop.f32.mrb[0].mxu0
    %v4983 = vpop.f32.mrb[0].mxu0
    %v4984 = vpop.f32.mrb[0].mxu0
    %4985 = vdwg.mxu0
    %4986 = vmatprep.subr.bf16.mxu0 0
    %4987 = vmatpush1.bf16.msra.mxu0 %v3514
    %4988 = vmatprep.subr.bf16.mxu0 0
    %4989 = vmatpush1.bf16.msra.mxu0 %v3515
    %4990 = vmatprep.subr.bf16.mxu0 0
    %4991 = vmatpush1.bf16.msra.mxu0 %v3516
    %4992 = vmatprep.subr.bf16.mxu0 0
    %4993 = vmatpush1.bf16.msra.mxu0 %v3517
    %4994 = vmatprep.subr.bf16.mxu0 0
    %4995 = vmatpush1.bf16.msra.mxu0 %v3518
    %4996 = vmatprep.subr.bf16.mxu0 0
    %4997 = vmatpush1.bf16.msra.mxu0 %v3519
    %4998 = vmatprep.subr.bf16.mxu0 0
    %4999 = vmatpush1.bf16.msra.mxu0 %v3520
    %5000 = vmatprep.subr.bf16.mxu0 0
    %5001 = vmatpush1.bf16.msra.mxu0 %v3521
    %5002 = vmatprep.subr.bf16.mxu0 0
    %5003 = vmatpush1.bf16.msra.mxu0 %v3522
    %5004 = vmatprep.subr.bf16.mxu0 0
    %5005 = vmatpush1.bf16.msra.mxu0 %v3523
    %5006 = vmatprep.subr.bf16.mxu0 0
    %5007 = vmatpush1.bf16.msra.mxu0 %v3524
    %5008 = vmatprep.subr.bf16.mxu0 0
    %5009 = vmatpush1.bf16.msra.mxu0 %v3525
    %5010 = vmatprep.subr.bf16.mxu0 0
    %5011 = vmatpush1.bf16.msra.mxu0 %v3526
    %5012 = vmatprep.subr.bf16.mxu0 0
    %5013 = vmatpush1.bf16.msra.mxu0 %v3527
    %5014 = vmatprep.subr.bf16.mxu0 0
    %5015 = vmatpush1.bf16.msra.mxu0 %v3528
    %5016 = vmatprep.subr.bf16.mxu0 0
    %5017 = vmatpush1.bf16.msra.mxu0 %v3529
    %5018 = vmatprep.mubr.bf16.mxu0 %v1270
    %5019 = vmatmul.mubr.bf16.gmra.mrb[0].mxu0 %v1256
    %v5020 = vpop.f32.mrb[0].mxu0
    %v5021 = vadd.f32 %v4981, %v5020
    %v5022 = vpop.f32.mrb[0].mxu0
    %v5023 = vpop.f32.mrb[0].mxu0
    %v5024 = vpop.f32.mrb[0].mxu0
    %5025 = vdwg.mxu0
    %5026 = vmatprep.subr.bf16.mxu0 0
    %5027 = vmatpush1.bf16.msra.mxu0 %v3530
    %5028 = vmatprep.subr.bf16.mxu0 0
    %5029 = vmatpush1.bf16.msra.mxu0 %v3531
    %5030 = vmatprep.subr.bf16.mxu0 0
    %5031 = vmatpush1.bf16.msra.mxu0 %v3532
    %5032 = vmatprep.subr.bf16.mxu0 0
    %5033 = vmatpush1.bf16.msra.mxu0 %v3533
    %5034 = vmatprep.subr.bf16.mxu0 0
    %5035 = vmatpush1.bf16.msra.mxu0 %v3534
    %5036 = vmatprep.subr.bf16.mxu0 0
    %5037 = vmatpush1.bf16.msra.mxu0 %v3535
    %5038 = vmatprep.subr.bf16.mxu0 0
    %5039 = vmatpush1.bf16.msra.mxu0 %v3536
    %5040 = vmatprep.subr.bf16.mxu0 0
    %5041 = vmatpush1.bf16.msra.mxu0 %v3537
    %5042 = vmatprep.subr.bf16.mxu0 0
    %5043 = vmatpush1.bf16.msra.mxu0 %v3538
    %5044 = vmatprep.subr.bf16.mxu0 0
    %5045 = vmatpush1.bf16.msra.mxu0 %v3539
    %5046 = vmatprep.subr.bf16.mxu0 0
    %5047 = vmatpush1.bf16.msra.mxu0 %v3540
    %5048 = vmatprep.subr.bf16.mxu0 0
    %5049 = vmatpush1.bf16.msra.mxu0 %v3541
    %5050 = vmatprep.subr.bf16.mxu0 0
    %5051 = vmatpush1.bf16.msra.mxu0 %v3542
    %5052 = vmatprep.subr.bf16.mxu0 0
    %5053 = vmatpush1.bf16.msra.mxu0 %v3543
    %5054 = vmatprep.subr.bf16.mxu0 0
    %5055 = vmatpush1.bf16.msra.mxu0 %v3544
    %5056 = vmatprep.subr.bf16.mxu0 0
    %5057 = vmatpush1.bf16.msra.mxu0 %v3545
    %5058 = vmatprep.mubr.bf16.mxu0 %v1280
    %5059 = vmatmul.mubr.bf16.gmra.mrb[0].mxu0 %v1278
    %v5060 = vpop.f32.mrb[0].mxu0
    %v5061 = vadd.f32 %v5021, %v5060
    %v5062 = vpop.f32.mrb[0].mxu0
    %v5063 = vpop.f32.mrb[0].mxu0
    %v5064 = vpop.f32.mrb[0].mxu0
    %5065 = vdwg.mxu0
    %5066 = vmatprep.subr.bf16.mxu0 0
    %5067 = vmatpush1.bf16.msra.mxu0 %v3546
    %5068 = vmatprep.subr.bf16.mxu0 0
    %5069 = vmatpush1.bf16.msra.mxu0 %v3547
    %5070 = vmatprep.subr.bf16.mxu0 0
    %5071 = vmatpush1.bf16.msra.mxu0 %v3548
    %5072 = vmatprep.subr.bf16.mxu0 0
    %5073 = vmatpush1.bf16.msra.mxu0 %v3549
    %5074 = vmatprep.subr.bf16.mxu0 0
    %5075 = vmatpush1.bf16.msra.mxu0 %v3550
    %5076 = vmatprep.subr.bf16.mxu0 0
    %5077 = vmatpush1.bf16.msra.mxu0 %v3551
    %5078 = vmatprep.subr.bf16.mxu0 0
    %5079 = vmatpush1.bf16.msra.mxu0 %v3552
    %5080 = vmatprep.subr.bf16.mxu0 0
    %5081 = vmatpush1.bf16.msra.mxu0 %v3553
    %5082 = vmatprep.subr.bf16.mxu0 0
    %5083 = vmatpush1.bf16.msra.mxu0 %v3554
    %5084 = vmatprep.subr.bf16.mxu0 0
    %5085 = vmatpush1.bf16.msra.mxu0 %v3555
    %5086 = vmatprep.subr.bf16.mxu0 0
    %5087 = vmatpush1.bf16.msra.mxu0 %v3556
    %5088 = vmatprep.subr.bf16.mxu0 0
    %5089 = vmatpush1.bf16.msra.mxu0 %v3557
    %5090 = vmatprep.subr.bf16.mxu0 0
    %5091 = vmatpush1.bf16.msra.mxu0 %v3558
    %5092 = vmatprep.subr.bf16.mxu0 0
    %5093 = vmatpush1.bf16.msra.mxu0 %v3559
    %5094 = vmatprep.subr.bf16.mxu0 0
    %5095 = vmatpush1.bf16.msra.mxu0 %v3560
    %5096 = vmatprep.subr.bf16.mxu0 0
    %5097 = vmatpush1.bf16.msra.mxu0 %v3561
    %5098 = vmatprep.mubr.bf16.mxu0 %v1277
    %5099 = vmatmul.mubr.bf16.gmra.mrb[0].mxu0 %v1263
    %v5100 = vpop.f32.mrb[0].mxu0
    %v5101 = vadd.f32 %v5061, %v5100
    %v5102 = vpop.f32.mrb[0].mxu0
    %v5103 = vpop.f32.mrb[0].mxu0
    %v5104 = vpop.f32.mrb[0].mxu0
    %5105 = vdwg.mxu0
    %5106 = vmatprep.subr.bf16.mxu0 0
    %5107 = vmatpush1.bf16.msra.mxu0 %v3562
    %5108 = vmatprep.subr.bf16.mxu0 0
    %5109 = vmatpush1.bf16.msra.mxu0 %v3563
    %5110 = vmatprep.subr.bf16.mxu0 0
    %5111 = vmatpush1.bf16.msra.mxu0 %v3564
    %5112 = vmatprep.subr.bf16.mxu0 0
    %5113 = vmatpush1.bf16.msra.mxu0 %v3565
    %5114 = vmatprep.subr.bf16.mxu0 0
    %5115 = vmatpush1.bf16.msra.mxu0 %v3566
    %5116 = vmatprep.subr.bf16.mxu0 0
    %5117 = vmatpush1.bf16.msra.mxu0 %v3567
    %5118 = vmatprep.subr.bf16.mxu0 0
    %5119 = vmatpush1.bf16.msra.mxu0 %v3568
    %5120 = vmatprep.subr.bf16.mxu0 0
    %5121 = vmatpush1.bf16.msra.mxu0 %v3569
    %5122 = vmatprep.subr.bf16.mxu0 0
    %5123 = vmatpush1.bf16.msra.mxu0 %v3570
    %5124 = vmatprep.subr.bf16.mxu0 0
    %5125 = vmatpush1.bf16.msra.mxu0 %v3571
    %5126 = vmatprep.subr.bf16.mxu0 0
    %5127 = vmatpush1.bf16.msra.mxu0 %v3572
    %5128 = vmatprep.subr.bf16.mxu0 0
    %5129 = vmatpush1.bf16.msra.mxu0 %v3573
    %5130 = vmatprep.subr.bf16.mxu0 0
    %5131 = vmatpush1.bf16.msra.mxu0 %v3574
    %5132 = vmatprep.subr.bf16.mxu0 0
    %5133 = vmatpush1.bf16.msra.mxu0 %v3575
    %5134 = vmatprep.subr.bf16.mxu0 0
    %5135 = vmatpush1.bf16.msra.mxu0 %v3576
    %5136 = vmatprep.subr.bf16.mxu0 0
    %5137 = vmatpush1.bf16.msra.mxu0 %v3577
    %5138 = vmatprep.mubr.bf16.mxu0 %v1281
    %5139 = vmatmul.mubr.bf16.gmra.mrb[0].mxu0 %v1279
    %v5140 = vpop.f32.mrb[0].mxu0
    %v5141 = vadd.f32 %v5101, %v5140
    %v5142 = vpop.f32.mrb[0].mxu0
    %v5143 = vpop.f32.mrb[0].mxu0
    %v5144 = vpop.f32.mrb[0].mxu0
    %5145 = vdwg.mxu0
    %v5146 = vmax.f32 %v5141, 0.0
    %v5147 = vpack.c.bf16 %v5146, %v5146
    %v5148 = vld [vmem:[%s3] sm:$0xf]
    %v5149 = vld [vmem:[%s3 + $0x4] sm:$0xf]
    %v5150 = vld [vmem:[%s3 + $0x8] sm:$0xf]
    %v5151 = vld [vmem:[%s3 + $0xc] sm:$0xf]
    %v5152 = vld [vmem:[%s3 + $0x10] sm:$0xf]
    %v5153 = vld [vmem:[%s3 + $0x14] sm:$0xf]
    %v5154 = vld [vmem:[%s3 + $0x18] sm:$0xf]
    %v5155 = vld [vmem:[%s3 + $0x1c] sm:$0xf]
    %v5156 = vld [vmem:[%s3 + $0x20] sm:$0xf]
    %v5157 = vld [vmem:[%s3 + $0x24] sm:$0xf]
    %v5158 = vld [vmem:[%s3 + $0x28] sm:$0xf]
    %v5159 = vld [vmem:[%s3 + $0x2c] sm:$0xf]
    %v5160 = vld [vmem:[%s3 + $0x30] sm:$0xf]
    %v5161 = vld [vmem:[%s3 + $0x34] sm:$0xf]
    %v5162 = vld [vmem:[%s3 + $0x38] sm:$0xf]
    %v5163 = vld [vmem:[%s3 + $0x3c] sm:$0xf]
    %v5164 = vld [vmem:[%s4] sm:$0x1]
    %v5166 = vlaneseq
    %v5167 = vshrl.u32 %v5166, 7
    %v5168 = vsub.s32 0, %v5167
    %v5169 = vrot.slane %v5164, %v5168
    %v5187 = vunpack.c.l.b16 %v5148
    %v5188 = vunpack.c.l.b16 %v5149
    %v5189 = vunpack.c.l.b16 %v5150
    %v5190 = vunpack.c.l.b16 %v5151
    %v5191 = vunpack.c.l.b16 %v5152
    %v5192 = vunpack.c.l.b16 %v5153
    %v5193 = vunpack.c.l.b16 %v5154
    %v5194 = vunpack.c.l.b16 %v5155
    %v5195 = vunpack.c.l.b16 %v5156
    %v5196 = vunpack.c.l.b16 %v5157
    %v5197 = vunpack.c.l.b16 %v5158
    %v5198 = vunpack.c.l.b16 %v5159
    %v5199 = vunpack.c.l.b16 %v5160
    %v5200 = vunpack.c.l.b16 %v5161
    %v5201 = vunpack.c.l.b16 %v5162
    %v5202 = vunpack.c.l.b16 %v5163
    %v5203 = vpack.c.b16 %v5188, %v5187
    %v5204 = vpack.c.b16 %v5190, %v5189
    %v5205 = vpack.c.b16 %v5192, %v5191
    %v5206 = vpack.c.b16 %v5194, %v5193
    %v5207 = vpack.c.b16 %v5196, %v5195
    %v5208 = vpack.c.b16 %v5198, %v5197
    %v5209 = vpack.c.b16 %v5200, %v5199
    %v5210 = vpack.c.b16 %v5202, %v5201
    %5219 = vmatprep.subr.bf16.mxu0 0
    %5220 = vmatpush1.bf16.msra.mxu0 %v5203
    %5221 = vmatprep.subr.bf16.mxu0 0
    %5222 = vmatpush1.bf16.msra.mxu0 %v5204
    %5223 = vmatprep.subr.bf16.mxu0 0
    %5224 = vmatpush1.bf16.msra.mxu0 %v5205
    %5225 = vmatprep.subr.bf16.mxu0 0
    %5226 = vmatpush1.bf16.msra.mxu0 %v5206
    %5227 = vmatprep.subr.bf16.mxu0 0
    %5228 = vmatpush1.bf16.msra.mxu0 %v5207
    %5229 = vmatprep.subr.bf16.mxu0 0
    %5230 = vmatpush1.bf16.msra.mxu0 %v5208
    %5231 = vmatprep.subr.bf16.mxu0 0
    %5232 = vmatpush1.bf16.msra.mxu0 %v5209
    %5233 = vmatprep.subr.bf16.mxu0 0
    %5234 = vmatpush1.bf16.msra.mxu0 %v5210
    %5235 = vmatprep.subr.bf16.mxu0 0
    %5236 = vmatpush1.bf16.msra.mxu0 0
    %5237 = vmatprep.subr.bf16.mxu0 0
    %5238 = vmatpush1.bf16.msra.mxu0 0
    %5239 = vmatprep.subr.bf16.mxu0 0
    %5240 = vmatpush1.bf16.msra.mxu0 0
    %5241 = vmatprep.subr.bf16.mxu0 0
    %5242 = vmatpush1.bf16.msra.mxu0 0
    %5243 = vmatprep.subr.bf16.mxu0 0
    %5244 = vmatpush1.bf16.msra.mxu0 0
    %5245 = vmatprep.subr.bf16.mxu0 0
    %5246 = vmatpush1.bf16.msra.mxu0 0
    %5247 = vmatprep.subr.bf16.mxu0 0
    %5248 = vmatpush1.bf16.msra.mxu0 0
    %5249 = vmatprep.subr.bf16.mxu0 0
    %5250 = vmatpush1.bf16.msra.mxu0 0
    %5251 = vmatprep.mubr.bf16.mxu0 0
    %5252 = vmatmul.mubr.bf16.gmra.mrb[0].mxu0 %v5147
    %v5253 = vpop.f32.mrb[0].mxu0
    %v5254 = vadd.f32 %v5169, %v5253
    %v5255 = vpop.f32.mrb[0].mxu0
    %v5256 = vpop.f32.mrb[0].mxu0
    %v5257 = vpop.f32.mrb[0].mxu0
    %5258 = vdwg.mxu0
    %5259 = vst [vmem:[#allocation2] sm:$0x3] %v5254
    // Predicated region
    $region22: #{inner_cnn_forward.5} parent=1 // pred_check
      _
    $region23: #{inner_cnn_forward.5} parent=1 // pred_check_branch
      %5261 = sbr.rel (0) target = $region25
    $region24: #{inner_cnn_forward.5} parent=1 // pred_region
      %s5263 = ssub.s32 32, 32
      %5264 = vsyncadd [#allocation3], %s5263
      %s5266 = sshll.u32 [#allocation2], 4
      %s5267 = int_to_ptr.vmem [resolvable:$true] %s5266
      %5269 = dma.vmem_to_hbm [thread:$0]  %s5267, 32, %s5, [#allocation3]
    $region25: #{inner_cnn_forward.5} parent=1 // pred_fallthru
      _
    // Predicated region
    $region26: #{inner_cnn_forward.5} parent=1 // pred_check
      _
    $region27: #{inner_cnn_forward.5} parent=1 // pred_check_branch
      %5271 = sbr.rel (0) target = $region29
    $region28: #{inner_cnn_forward.5} parent=1 // pred_region
      %5272 = dma.done [#allocation3], 32
    $region29: #{inner_cnn_forward.5} parent=1 // pred_fallthru
      _
    %5273 = vsyncpa [#allocation3], 1

</llo_original>
